<compile_context>
chip_gen: v7x
topology: tpu7x:2x2x1
jax: 0.10.0
libtpu: 0.0.40
codegen_flags: <defaults>
</compile_context>

<pallas_src>
import jax
import jax.numpy as jnp
from jax.experimental import pallas as pl
from jax.experimental.pallas import tpu as pltpu

BN_EPS = 1e-5

_COMPILER_PARAMS = pltpu.CompilerParams(
    dimension_semantics=("parallel",),
    vmem_limit_bytes=32 * 1024 * 1024,
)


# ---------------------------------------------------------------------------
# Stage A kernel: conv1 + BN + ReLU + maxpool(2,2), then conv2 + BN + ReLU
# ---------------------------------------------------------------------------
def _stage_a_kernel(xe_ref, xo_ref, t1_ref, b1_ref, t2_ref, b2_ref, o_ref):
    xe = xe_ref[0]          # (14, 280) bf16: even input rows, lanes = W*Cin
    xo = xo_ref[0]          # (14, 280) bf16: odd  input rows
    # conv1 (5x5, 10->32, BN folded) as row-tap block-Toeplitz matmuls.
    # acc_e / acc_o hold even / odd conv-output rows; columns are ordered
    # (col-parity s, pooled col pj, channel c) so the pool is two contiguous maxes.
    acc_e = jnp.zeros((12, 768), jnp.float32)
    acc_o = jnp.zeros((12, 768), jnp.float32)
    for di in range(5):
        t = t1_ref[di]                              # (280, 768) bf16
        if di % 2 == 0:
            le = xe[di // 2: di // 2 + 12, :]       # input rows 2*pi + di
            lo = xo[di // 2: di // 2 + 12, :]       # input rows 2*pi + 1 + di
        else:
            le = xo[(di - 1) // 2: (di - 1) // 2 + 12, :]
            lo = xe[(di + 1) // 2: (di + 1) // 2 + 12, :]
        acc_e = acc_e + jnp.dot(le, t, preferred_element_type=jnp.float32)
        acc_o = acc_o + jnp.dot(lo, t, preferred_element_type=jnp.float32)
    # MaxPool2d(2,2): per-channel bias add and ReLU commute with max.
    rmax = jnp.maximum(acc_e, acc_o)                      # pool over row pairs
    pooled = jnp.maximum(rmax[:, :384], rmax[:, 384:])    # pool over col pairs
    y1 = jnp.maximum(pooled + b1_ref[...], 0.0)           # (12, 384) == (12,12,32)
    y1 = y1.astype(jnp.bfloat16)
    # conv2 (5x5, 32->64, BN folded): same Toeplitz trick, no pooling.
    acc2 = jnp.zeros((8, 512), jnp.float32)
    for di in range(5):
        acc2 = acc2 + jnp.dot(y1[di:di + 8, :], t2_ref[di],
                              preferred_element_type=jnp.float32)
    y2 = jnp.maximum(acc2 + b2_ref[...], 0.0)             # (8, 512) == (8,8,64)
    o_ref[0] = y2.astype(o_ref.dtype)


def stage_a(xe, xo, t1, b1, t2, b2):
    B = xe.shape[0]
    return pl.pallas_call(
        _stage_a_kernel,
        out_shape=jax.ShapeDtypeStruct((B, 8, 512), jnp.bfloat16),
        grid=(B,),
        in_specs=[
            pl.BlockSpec((1, 14, 280), lambda b: (b, 0, 0)),
            pl.BlockSpec((1, 14, 280), lambda b: (b, 0, 0)),
            pl.BlockSpec((5, 280, 768), lambda b: (0, 0, 0)),
            pl.BlockSpec((1, 384), lambda b: (0, 0)),
            pl.BlockSpec((5, 384, 512), lambda b: (0, 0, 0)),
            pl.BlockSpec((1, 512), lambda b: (0, 0)),
        ],
        out_specs=pl.BlockSpec((1, 8, 512), lambda b: (b, 0, 0)),
        compiler_params=_COMPILER_PARAMS,
    )(xe, xo, t1, b1, t2, b2)


# ---------------------------------------------------------------------------
# Stage B kernel: conv3(1x1)+BN+ReLU + dropout(eval) + fc1+ReLU + fc2+ReLU
# ---------------------------------------------------------------------------
def _stage_b_kernel(y_ref, w3_ref, b3_ref, w1_ref, b1_ref, w2_ref, b2_ref, o_ref):
    y = y_ref[0]                                              # (64 ch, 64 pix) bf16
    # conv3 is a per-pixel 64->10 matmul; rows = 10 channels, cols = 8*8 pixels,
    # which is exactly the torch output.view(B, 10, 64) layout.
    feat = jnp.dot(w3_ref[...], y, preferred_element_type=jnp.float32) + b3_ref[...]
    feat = jnp.maximum(feat, 0.0)                             # (10, 64)
    # TODO(synk): nn.Dropout() is identity here (eval-mode semantics); training
    # mode would mask with pltpu.prng_seed / pltpu.prng_random_bits.
    h = jnp.dot(feat.astype(jnp.bfloat16), w1_ref[...],
                preferred_element_type=jnp.float32) + b1_ref[...]
    h = jnp.maximum(h, 0.0)                                   # (10, 256)
    h = jnp.dot(h.astype(jnp.bfloat16), w2_ref[...],
                preferred_element_type=jnp.float32) + b2_ref[...]
    o_ref[0] = jnp.maximum(h, 0.0).astype(o_ref.dtype)        # (10, 256)


def stage_b(y_cm, w3t, b3, w1t, b1, w2t, b2):
    B = y_cm.shape[0]
    return pl.pallas_call(
        _stage_b_kernel,
        out_shape=jax.ShapeDtypeStruct((B, 10, 256), jnp.float32),
        grid=(B,),
        in_specs=[
            pl.BlockSpec((1, 64, 64), lambda b: (b, 0, 0)),
            pl.BlockSpec((10, 64), lambda b: (0, 0)),
            pl.BlockSpec((10, 1), lambda b: (0, 0)),
            pl.BlockSpec((64, 256), lambda b: (0, 0)),
            pl.BlockSpec((1, 256), lambda b: (0, 0)),
            pl.BlockSpec((256, 256), lambda b: (0, 0)),
            pl.BlockSpec((1, 256), lambda b: (0, 0)),
        ],
        out_specs=pl.BlockSpec((1, 10, 256), lambda b: (b, 0, 0)),
        compiler_params=_COMPILER_PARAMS,
    )(y_cm, w3t, b3, w1t, b1, w2t, b2)


# ---------------------------------------------------------------------------
# One-time parameter preparation (BN folding, Toeplitz conv weights, FC layout)
# ---------------------------------------------------------------------------
def fold_bn(conv_w, conv_b, bn, eps=BN_EPS):
    """Fold eval-mode BatchNorm2d into the preceding conv. conv_w: (Cout,Cin,kh,kw)."""
    gamma, beta, mean, var = bn
    s = gamma / jnp.sqrt(var + eps)
    return conv_w * s[:, None, None, None], conv_b * s + (beta - mean * s)


def conv_row_toeplitz(w_folded, w_in, oj_of_group):
    """Block-Toeplitz matrices lowering a valid conv to per-row-tap matmuls.

    Returns T of shape (kh, w_in*cin, G*cout) with
      T[di, w*cin + ci, g*cout + co] = w_folded[co, ci, di, w - oj_of_group[g]]
    (zero when the tap is outside the kernel), so that for an NHWC-flattened
    input row slab X (rows, w_in*cin):  out[:, g*cout+co] = sum_di X_di @ T[di].
    """
    cout, cin, kh, kw = w_folded.shape
    w_k = jnp.transpose(w_folded, (2, 3, 1, 0))               # (kh, kw, cin, cout)
    dj = jnp.arange(w_in)[:, None] - oj_of_group[None, :]     # (w_in, G)
    valid = (dj >= 0) & (dj < kw)
    t = w_k[:, jnp.clip(dj, 0, kw - 1), :, :]                 # (kh, w_in, G, cin, cout)
    t = t * valid[None, :, :, None, None]
    t = jnp.transpose(t, (0, 1, 3, 2, 4))                     # (kh, w_in, cin, G, cout)
    return t.reshape(kh, w_in * cin, oj_of_group.shape[0] * cout)


def prepare_params(params):
    """Done once at setup (not per forward): fold BN, build Toeplitz conv
    weights in bf16, tile biases to the kernel column layout, transpose FC."""
    w1, b1 = fold_bn(params["conv1_w"], params["conv1_b"], params["bn1"])
    w2, b2 = fold_bn(params["conv2_w"], params["conv2_b"], params["bn2"])
    w3, b3 = fold_bn(params["conv3_w"], params["conv3_b"], params["bn3"])

    # conv1: 28 -> 24 output cols, column groups ordered (col parity, pooled col).
    oj1 = jnp.concatenate([2 * jnp.arange(12), 2 * jnp.arange(12) + 1])
    t1 = conv_row_toeplitz(w1, 28, oj1).astype(jnp.bfloat16)            # (5,280,768)
    b1t = jnp.tile(b1, 12).reshape(1, 384).astype(jnp.float32)

    # conv2: 12 -> 8 output cols, natural column order.
    t2 = conv_row_toeplitz(w2, 12, jnp.arange(8)).astype(jnp.bfloat16)  # (5,384,512)
    b2t = jnp.tile(b2, 8).reshape(1, 512).astype(jnp.float32)

    # conv3 is 1x1: plain (10, 64) matmul weight in the channel-major tail layout.
    w3t = w3.reshape(10, 64).astype(jnp.bfloat16)
    b3t = b3.reshape(10, 1).astype(jnp.float32)

    return {
        "t1": t1, "b1": b1t, "t2": t2, "b2": b2t, "w3": w3t, "b3": b3t,
        "fc1_w": params["fc1_w"].T.astype(jnp.bfloat16),    # (64, 256)
        "fc1_b": params["fc1_b"].reshape(1, 256).astype(jnp.float32),
        "fc2_w": params["fc2_w"].T.astype(jnp.bfloat16),    # (256, 256)
        "fc2_b": params["fc2_b"].reshape(1, 256).astype(jnp.float32),
    }


# ---------------------------------------------------------------------------
# Forward pass
# ---------------------------------------------------------------------------
def cnn_forward(x_nchw, prep):
    B = x_nchw.shape[0]
    # NCHW -> NHWC, flatten (W, C) into lanes and split rows by parity.  These
    # are cheap ops on the tiny network input; everything else is in-kernel.
    x = jnp.transpose(x_nchw, (0, 2, 3, 1)).astype(jnp.bfloat16)        # (B,28,28,10)
    x2d = x.reshape(B, 28, 280)
    xe = x2d[:, 0::2, :]                                                # (B,14,280)
    xo = x2d[:, 1::2, :]

    y2 = stage_a(xe, xo, prep["t1"], prep["b1"], prep["t2"], prep["b2"])  # (B,8,512)

    # (B,8,8,64) -> channel-major (B, 64ch, 64pix): keeps every in-kernel matmul
    # in standard untransposed form (tiny array, negligible XLA transpose).
    y2_cm = jnp.transpose(y2.reshape(B, 64, 64), (0, 2, 1))

    return stage_b(y2_cm, prep["w3"], prep["b3"],
                   prep["fc1_w"], prep["fc1_b"], prep["fc2_w"], prep["fc2_b"])


# ---------------------------------------------------------------------------
# Parameters + pure-JAX f32 reference (for a loose self-check)
# ---------------------------------------------------------------------------
def init_params(key):
    ks = jax.random.split(key, 16)

    def rnd(k, shape, scale=0.05):
        return scale * jax.random.normal(k, shape, dtype=jnp.float32)

    def bn(k, c):
        kg, kb, km, kv = jax.random.split(k, 4)
        return (1.0 + rnd(kg, (c,)), rnd(kb, (c,)), rnd(km, (c,)),
                1.0 + jnp.abs(rnd(kv, (c,))))

    return {
        "conv1_w": rnd(ks[0], (32, 10, 5, 5)), "conv1_b": rnd(ks[1], (32,)),
        "bn1": bn(ks[2], 32),
        "conv2_w": rnd(ks[3], (64, 32, 5, 5)), "conv2_b": rnd(ks[4], (64,)),
        "bn2": bn(ks[5], 64),
        "conv3_w": rnd(ks[6], (10, 64, 1, 1)), "conv3_b": rnd(ks[7], (10,)),
        "bn3": bn(ks[8], 10),
        "fc1_w": rnd(ks[9], (256, 64)), "fc1_b": rnd(ks[10], (256,)),
        "fc2_w": rnd(ks[11], (256, 256)), "fc2_b": rnd(ks[12], (256,)),
    }


def _reference_forward(x_nchw, params):
    """Pure-jnp float32 reference (im2col formulation) for a loose check."""
    B = x_nchw.shape[0]
    x = jnp.transpose(x_nchw, (0, 2, 3, 1)).astype(jnp.float32)

    def im2col(t, k):
        _, H, W, C = t.shape
        Ho, Wo = H - k + 1, W - k + 1
        cols = [t[:, i:i + Ho, j:j + Wo, :] for i in range(k) for j in range(k)]
        return jnp.stack(cols, 3).reshape(t.shape[0] * Ho * Wo, k * k * C), (Ho, Wo)

    def conv(t, w, b, bn, k):
        wf, bf = fold_bn(w, b, bn)
        cols, (Ho, Wo) = im2col(t, k)
        wm = jnp.transpose(wf, (2, 3, 1, 0)).reshape(-1, wf.shape[0])
        y = jnp.maximum(cols @ wm + bf, 0.0)
        return y.reshape(t.shape[0], Ho, Wo, wf.shape[0])

    y = conv(x, params["conv1_w"], params["conv1_b"], params["bn1"], 5)
    y = jnp.maximum(jnp.maximum(y[:, 0::2, 0::2], y[:, 0::2, 1::2]),
                    jnp.maximum(y[:, 1::2, 0::2], y[:, 1::2, 1::2]))
    y = conv(y, params["conv2_w"], params["conv2_b"], params["bn2"], 5)
    y = conv(y, params["conv3_w"], params["conv3_b"], params["bn3"], 1)
    feat = jnp.transpose(y, (0, 3, 1, 2)).reshape(B * 10, 64)
    h = jnp.maximum(feat @ params["fc1_w"].T + params["fc1_b"], 0.0)
    h = jnp.maximum(h @ params["fc2_w"].T + params["fc2_b"], 0.0)
    return h.reshape(B, 10, 256)


if __name__ == "__main__":
    key = jax.random.PRNGKey(0)
    k_params, k_x = jax.random.split(key)
    params = init_params(k_params)
    prep = prepare_params(params)           # one-time weight prep (hoisted out of forward)
    x = jax.random.normal(k_x, (2, 10, 28, 28), dtype=jnp.float32)

    out = jax.jit(cnn_forward)(x, prep)
    out = jax.block_until_ready(out)

    assert out.shape == (2, 10, 256), out.shape
    assert jnp.isfinite(out).all()

    # Loose check vs the f32 reference (bf16 MXU inputs give small differences).
    ref = _reference_forward(x, params)
    assert jnp.allclose(out, ref, atol=7e-2, rtol=1e-1), float(jnp.max(jnp.abs(out - ref)))

    print("KERNEL_OK")
</pallas_src>

<mosaic_0001>
module attributes {stable_mosaic.version = 11 : i64} {
  func.func @_stage_a_kernel(%arg0: i32, %arg1: memref<1x14x280xbf16, #tpu.memory_space<vmem>>, %arg2: memref<1x14x280xbf16, #tpu.memory_space<vmem>>, %arg3: memref<5x280x768xbf16, #tpu.memory_space<vmem>>, %arg4: memref<1x384xf32, #tpu.memory_space<vmem>>, %arg5: memref<5x384x512xbf16, #tpu.memory_space<vmem>>, %arg6: memref<1x512xf32, #tpu.memory_space<vmem>>, %arg7: memref<1x8x512xbf16, #tpu.memory_space<vmem>>) attributes {dimension_semantics = [#tpu.dimension_semantics<parallel>], iteration_bounds = array<i64: 2>, scalar_prefetch = 0 : i64, scratch_operands = 0 : i64, tpu.core_type = #tpu.core_type<tc>, window_params = [{transform_indices = @transform_0, window_bounds = array<i64: 1, 14, 280>}, {transform_indices = @transform_1, window_bounds = array<i64: 1, 14, 280>}, {pipeline_mode = #tpu.pipeline_mode<synchronous>, transform_indices = @transform_2, window_bounds = array<i64: 5, 280, 768>}, {pipeline_mode = #tpu.pipeline_mode<synchronous>, transform_indices = @transform_3, window_bounds = array<i64: 1, 384>}, {pipeline_mode = #tpu.pipeline_mode<synchronous>, transform_indices = @transform_4, window_bounds = array<i64: 5, 384, 512>}, {pipeline_mode = #tpu.pipeline_mode<synchronous>, transform_indices = @transform_5, window_bounds = array<i64: 1, 512>}, {transform_indices = @transform_6, window_bounds = array<i64: 1, 8, 512>}]} {
    %c0 = arith.constant 0 : index
    %c0_0 = arith.constant 0 : index
    %c0_1 = arith.constant 0 : index
    %0 = vector.load %arg1[%c0, %c0_0, %c0_1] : memref<1x14x280xbf16, #tpu.memory_space<vmem>>, vector<1x14x280xbf16>
    %1 = vector.shape_cast %0 : vector<1x14x280xbf16> to vector<14x280xbf16>
    %c0_2 = arith.constant 0 : index
    %c0_3 = arith.constant 0 : index
    %c0_4 = arith.constant 0 : index
    %2 = vector.load %arg2[%c0_2, %c0_3, %c0_4] : memref<1x14x280xbf16, #tpu.memory_space<vmem>>, vector<1x14x280xbf16>
    %3 = vector.shape_cast %2 : vector<1x14x280xbf16> to vector<14x280xbf16>
    %cst = arith.constant 0.000000e+00 : f32
    %4 = vector.broadcast %cst : f32 to vector<12x768xf32>
    %cst_5 = arith.constant 0.000000e+00 : f32
    %5 = vector.broadcast %cst_5 : f32 to vector<12x768xf32>
    %c0_6 = arith.constant 0 : index
    %c0_7 = arith.constant 0 : index
    %c0_8 = arith.constant 0 : index
    %6 = vector.load %arg3[%c0_6, %c0_7, %c0_8] : memref<5x280x768xbf16, #tpu.memory_space<vmem>>, vector<1x280x768xbf16>
    %7 = vector.shape_cast %6 : vector<1x280x768xbf16> to vector<280x768xbf16>
    %8 = vector.extract_strided_slice %1 {offsets = [0, 0], sizes = [12, 280], strides = [1, 1]} : vector<14x280xbf16> to vector<12x280xbf16>
    %9 = vector.extract_strided_slice %3 {offsets = [0, 0], sizes = [12, 280], strides = [1, 1]} : vector<14x280xbf16> to vector<12x280xbf16>
    %cst_9 = arith.constant dense<0.000000e+00> : vector<12x768xf32>
    %10 = tpu.matmul %8, %7, %cst_9 {dimension_numbers = #tpu.dot_dimension_numbers<[1], [0], [0], [1], [0, 0, 1, 1], [], []>} : vector<12x280xbf16>, vector<280x768xbf16>, vector<12x768xf32> -> vector<12x768xf32>
    %11 = arith.addf %4, %10 : vector<12x768xf32>
    %cst_10 = arith.constant dense<0.000000e+00> : vector<12x768xf32>
    %12 = tpu.matmul %9, %7, %cst_10 {dimension_numbers = #tpu.dot_dimension_numbers<[1], [0], [0], [1], [0, 0, 1, 1], [], []>} : vector<12x280xbf16>, vector<280x768xbf16>, vector<12x768xf32> -> vector<12x768xf32>
    %13 = arith.addf %5, %12 : vector<12x768xf32>
    %c1 = arith.constant 1 : index
    %c0_11 = arith.constant 0 : index
    %c0_12 = arith.constant 0 : index
    %14 = vector.load %arg3[%c1, %c0_11, %c0_12] : memref<5x280x768xbf16, #tpu.memory_space<vmem>>, vector<1x280x768xbf16>
    %15 = vector.shape_cast %14 : vector<1x280x768xbf16> to vector<280x768xbf16>
    %16 = vector.extract_strided_slice %3 {offsets = [0, 0], sizes = [12, 280], strides = [1, 1]} : vector<14x280xbf16> to vector<12x280xbf16>
    %17 = vector.extract_strided_slice %1 {offsets = [1, 0], sizes = [12, 280], strides = [1, 1]} : vector<14x280xbf16> to vector<12x280xbf16>
    %cst_13 = arith.constant dense<0.000000e+00> : vector<12x768xf32>
    %18 = tpu.matmul %16, %15, %cst_13 {dimension_numbers = #tpu.dot_dimension_numbers<[1], [0], [0], [1], [0, 0, 1, 1], [], []>} : vector<12x280xbf16>, vector<280x768xbf16>, vector<12x768xf32> -> vector<12x768xf32>
    %19 = arith.addf %11, %18 : vector<12x768xf32>
    %cst_14 = arith.constant dense<0.000000e+00> : vector<12x768xf32>
    %20 = tpu.matmul %17, %15, %cst_14 {dimension_numbers = #tpu.dot_dimension_numbers<[1], [0], [0], [1], [0, 0, 1, 1], [], []>} : vector<12x280xbf16>, vector<280x768xbf16>, vector<12x768xf32> -> vector<12x768xf32>
    %21 = arith.addf %13, %20 : vector<12x768xf32>
    %c2 = arith.constant 2 : index
    %c0_15 = arith.constant 0 : index
    %c0_16 = arith.constant 0 : index
    %22 = vector.load %arg3[%c2, %c0_15, %c0_16] : memref<5x280x768xbf16, #tpu.memory_space<vmem>>, vector<1x280x768xbf16>
    %23 = vector.shape_cast %22 : vector<1x280x768xbf16> to vector<280x768xbf16>
    %24 = vector.extract_strided_slice %1 {offsets = [1, 0], sizes = [12, 280], strides = [1, 1]} : vector<14x280xbf16> to vector<12x280xbf16>
    %25 = vector.extract_strided_slice %3 {offsets = [1, 0], sizes = [12, 280], strides = [1, 1]} : vector<14x280xbf16> to vector<12x280xbf16>
    %cst_17 = arith.constant dense<0.000000e+00> : vector<12x768xf32>
    %26 = tpu.matmul %24, %23, %cst_17 {dimension_numbers = #tpu.dot_dimension_numbers<[1], [0], [0], [1], [0, 0, 1, 1], [], []>} : vector<12x280xbf16>, vector<280x768xbf16>, vector<12x768xf32> -> vector<12x768xf32>
    %27 = arith.addf %19, %26 : vector<12x768xf32>
    %cst_18 = arith.constant dense<0.000000e+00> : vector<12x768xf32>
    %28 = tpu.matmul %25, %23, %cst_18 {dimension_numbers = #tpu.dot_dimension_numbers<[1], [0], [0], [1], [0, 0, 1, 1], [], []>} : vector<12x280xbf16>, vector<280x768xbf16>, vector<12x768xf32> -> vector<12x768xf32>
    %29 = arith.addf %21, %28 : vector<12x768xf32>
    %c3 = arith.constant 3 : index
    %c0_19 = arith.constant 0 : index
    %c0_20 = arith.constant 0 : index
    %30 = vector.load %arg3[%c3, %c0_19, %c0_20] : memref<5x280x768xbf16, #tpu.memory_space<vmem>>, vector<1x280x768xbf16>
    %31 = vector.shape_cast %30 : vector<1x280x768xbf16> to vector<280x768xbf16>
    %32 = vector.extract_strided_slice %3 {offsets = [1, 0], sizes = [12, 280], strides = [1, 1]} : vector<14x280xbf16> to vector<12x280xbf16>
    %33 = vector.extract_strided_slice %1 {offsets = [2, 0], sizes = [12, 280], strides = [1, 1]} : vector<14x280xbf16> to vector<12x280xbf16>
    %cst_21 = arith.constant dense<0.000000e+00> : vector<12x768xf32>
    %34 = tpu.matmul %32, %31, %cst_21 {dimension_numbers = #tpu.dot_dimension_numbers<[1], [0], [0], [1], [0, 0, 1, 1], [], []>} : vector<12x280xbf16>, vector<280x768xbf16>, vector<12x768xf32> -> vector<12x768xf32>
    %35 = arith.addf %27, %34 : vector<12x768xf32>
    %cst_22 = arith.constant dense<0.000000e+00> : vector<12x768xf32>
    %36 = tpu.matmul %33, %31, %cst_22 {dimension_numbers = #tpu.dot_dimension_numbers<[1], [0], [0], [1], [0, 0, 1, 1], [], []>} : vector<12x280xbf16>, vector<280x768xbf16>, vector<12x768xf32> -> vector<12x768xf32>
    %37 = arith.addf %29, %36 : vector<12x768xf32>
    %c4 = arith.constant 4 : index
    %c0_23 = arith.constant 0 : index
    %c0_24 = arith.constant 0 : index
    %38 = vector.load %arg3[%c4, %c0_23, %c0_24] : memref<5x280x768xbf16, #tpu.memory_space<vmem>>, vector<1x280x768xbf16>
    %39 = vector.shape_cast %38 : vector<1x280x768xbf16> to vector<280x768xbf16>
    %40 = vector.extract_strided_slice %1 {offsets = [2, 0], sizes = [12, 280], strides = [1, 1]} : vector<14x280xbf16> to vector<12x280xbf16>
    %41 = vector.extract_strided_slice %3 {offsets = [2, 0], sizes = [12, 280], strides = [1, 1]} : vector<14x280xbf16> to vector<12x280xbf16>
    %cst_25 = arith.constant dense<0.000000e+00> : vector<12x768xf32>
    %42 = tpu.matmul %40, %39, %cst_25 {dimension_numbers = #tpu.dot_dimension_numbers<[1], [0], [0], [1], [0, 0, 1, 1], [], []>} : vector<12x280xbf16>, vector<280x768xbf16>, vector<12x768xf32> -> vector<12x768xf32>
    %43 = arith.addf %35, %42 : vector<12x768xf32>
    %cst_26 = arith.constant dense<0.000000e+00> : vector<12x768xf32>
    %44 = tpu.matmul %41, %39, %cst_26 {dimension_numbers = #tpu.dot_dimension_numbers<[1], [0], [0], [1], [0, 0, 1, 1], [], []>} : vector<12x280xbf16>, vector<280x768xbf16>, vector<12x768xf32> -> vector<12x768xf32>
    %45 = arith.addf %37, %44 : vector<12x768xf32>
    %46 = arith.maximumf %43, %45 : vector<12x768xf32>
    %47 = vector.extract_strided_slice %46 {offsets = [0, 0], sizes = [12, 384], strides = [1, 1]} : vector<12x768xf32> to vector<12x384xf32>
    %48 = vector.extract_strided_slice %46 {offsets = [0, 384], sizes = [12, 384], strides = [1, 1]} : vector<12x768xf32> to vector<12x384xf32>
    %49 = arith.maximumf %47, %48 : vector<12x384xf32>
    %c0_27 = arith.constant 0 : index
    %c0_28 = arith.constant 0 : index
    %50 = vector.load %arg4[%c0_27, %c0_28] : memref<1x384xf32, #tpu.memory_space<vmem>>, vector<1x384xf32>
    %51 = vector.broadcast %50 : vector<1x384xf32> to vector<12x384xf32>
    %52 = arith.addf %49, %51 : vector<12x384xf32>
    %cst_29 = arith.constant 0.000000e+00 : f32
    %53 = vector.broadcast %cst_29 : f32 to vector<12x384xf32>
    %54 = arith.maximumf %52, %53 : vector<12x384xf32>
    %55 = arith.truncf %54 : vector<12x384xf32> to vector<12x384xbf16>
    %cst_30 = arith.constant 0.000000e+00 : f32
    %56 = vector.broadcast %cst_30 : f32 to vector<8x512xf32>
    %57 = vector.extract_strided_slice %55 {offsets = [0, 0], sizes = [8, 384], strides = [1, 1]} : vector<12x384xbf16> to vector<8x384xbf16>
    %c0_31 = arith.constant 0 : index
    %c0_32 = arith.constant 0 : index
    %c0_33 = arith.constant 0 : index
    %58 = vector.load %arg5[%c0_31, %c0_32, %c0_33] : memref<5x384x512xbf16, #tpu.memory_space<vmem>>, vector<1x384x512xbf16>
    %59 = vector.shape_cast %58 : vector<1x384x512xbf16> to vector<384x512xbf16>
    %cst_34 = arith.constant dense<0.000000e+00> : vector<8x512xf32>
    %60 = tpu.matmul %57, %59, %cst_34 {dimension_numbers = #tpu.dot_dimension_numbers<[1], [0], [0], [1], [0, 0, 1, 1], [], []>} : vector<8x384xbf16>, vector<384x512xbf16>, vector<8x512xf32> -> vector<8x512xf32>
    %61 = arith.addf %56, %60 : vector<8x512xf32>
    %62 = vector.extract_strided_slice %55 {offsets = [1, 0], sizes = [8, 384], strides = [1, 1]} : vector<12x384xbf16> to vector<8x384xbf16>
    %c1_35 = arith.constant 1 : index
    %c0_36 = arith.constant 0 : index
    %c0_37 = arith.constant 0 : index
    %63 = vector.load %arg5[%c1_35, %c0_36, %c0_37] : memref<5x384x512xbf16, #tpu.memory_space<vmem>>, vector<1x384x512xbf16>
    %64 = vector.shape_cast %63 : vector<1x384x512xbf16> to vector<384x512xbf16>
    %cst_38 = arith.constant dense<0.000000e+00> : vector<8x512xf32>
    %65 = tpu.matmul %62, %64, %cst_38 {dimension_numbers = #tpu.dot_dimension_numbers<[1], [0], [0], [1], [0, 0, 1, 1], [], []>} : vector<8x384xbf16>, vector<384x512xbf16>, vector<8x512xf32> -> vector<8x512xf32>
    %66 = arith.addf %61, %65 : vector<8x512xf32>
    %67 = vector.extract_strided_slice %55 {offsets = [2, 0], sizes = [8, 384], strides = [1, 1]} : vector<12x384xbf16> to vector<8x384xbf16>
    %c2_39 = arith.constant 2 : index
    %c0_40 = arith.constant 0 : index
    %c0_41 = arith.constant 0 : index
    %68 = vector.load %arg5[%c2_39, %c0_40, %c0_41] : memref<5x384x512xbf16, #tpu.memory_space<vmem>>, vector<1x384x512xbf16>
    %69 = vector.shape_cast %68 : vector<1x384x512xbf16> to vector<384x512xbf16>
    %cst_42 = arith.constant dense<0.000000e+00> : vector<8x512xf32>
    %70 = tpu.matmul %67, %69, %cst_42 {dimension_numbers = #tpu.dot_dimension_numbers<[1], [0], [0], [1], [0, 0, 1, 1], [], []>} : vector<8x384xbf16>, vector<384x512xbf16>, vector<8x512xf32> -> vector<8x512xf32>
    %71 = arith.addf %66, %70 : vector<8x512xf32>
    %72 = vector.extract_strided_slice %55 {offsets = [3, 0], sizes = [8, 384], strides = [1, 1]} : vector<12x384xbf16> to vector<8x384xbf16>
    %c3_43 = arith.constant 3 : index
    %c0_44 = arith.constant 0 : index
    %c0_45 = arith.constant 0 : index
    %73 = vector.load %arg5[%c3_43, %c0_44, %c0_45] : memref<5x384x512xbf16, #tpu.memory_space<vmem>>, vector<1x384x512xbf16>
    %74 = vector.shape_cast %73 : vector<1x384x512xbf16> to vector<384x512xbf16>
    %cst_46 = arith.constant dense<0.000000e+00> : vector<8x512xf32>
    %75 = tpu.matmul %72, %74, %cst_46 {dimension_numbers = #tpu.dot_dimension_numbers<[1], [0], [0], [1], [0, 0, 1, 1], [], []>} : vector<8x384xbf16>, vector<384x512xbf16>, vector<8x512xf32> -> vector<8x512xf32>
    %76 = arith.addf %71, %75 : vector<8x512xf32>
    %77 = vector.extract_strided_slice %55 {offsets = [4, 0], sizes = [8, 384], strides = [1, 1]} : vector<12x384xbf16> to vector<8x384xbf16>
    %c4_47 = arith.constant 4 : index
    %c0_48 = arith.constant 0 : index
    %c0_49 = arith.constant 0 : index
    %78 = vector.load %arg5[%c4_47, %c0_48, %c0_49] : memref<5x384x512xbf16, #tpu.memory_space<vmem>>, vector<1x384x512xbf16>
    %79 = vector.shape_cast %78 : vector<1x384x512xbf16> to vector<384x512xbf16>
    %cst_50 = arith.constant dense<0.000000e+00> : vector<8x512xf32>
    %80 = tpu.matmul %77, %79, %cst_50 {dimension_numbers = #tpu.dot_dimension_numbers<[1], [0], [0], [1], [0, 0, 1, 1], [], []>} : vector<8x384xbf16>, vector<384x512xbf16>, vector<8x512xf32> -> vector<8x512xf32>
    %81 = arith.addf %76, %80 : vector<8x512xf32>
    %c0_51 = arith.constant 0 : index
    %c0_52 = arith.constant 0 : index
    %82 = vector.load %arg6[%c0_51, %c0_52] : memref<1x512xf32, #tpu.memory_space<vmem>>, vector<1x512xf32>
    %83 = vector.broadcast %82 : vector<1x512xf32> to vector<8x512xf32>
    %84 = arith.addf %81, %83 : vector<8x512xf32>
    %cst_53 = arith.constant 0.000000e+00 : f32
    %85 = vector.broadcast %cst_53 : f32 to vector<8x512xf32>
    %86 = arith.maximumf %84, %85 : vector<8x512xf32>
    %87 = arith.truncf %86 : vector<8x512xf32> to vector<8x512xbf16>
    %c0_54 = arith.constant 0 : index
    %c0_55 = arith.constant 0 : index
    %c0_56 = arith.constant 0 : index
    %88 = vector.load %arg7[%c0_54, %c0_55, %c0_56] : memref<1x8x512xbf16, #tpu.memory_space<vmem>>, vector<1x8x512xbf16>
    %89 = vector.shape_cast %88 : vector<1x8x512xbf16> to vector<8x512xbf16>
    %90 = vector.shape_cast %87 : vector<8x512xbf16> to vector<1x8x512xbf16>
    tpu.vector_store %arg7[%c0_54, %c0_55, %c0_56], %90 {strides = array<i32>} : memref<1x8x512xbf16, #tpu.memory_space<vmem>>, vector<1x8x512xbf16>,
    return
  }
  func.func @transform_0(%arg0: i32) -> (i32, i32, i32) {
    %c0_i32 = arith.constant 0 : i32
    %c0_i32_0 = arith.constant 0 : i32
    %c0_i32_1 = arith.constant 0 : i32
    return %arg0, %c0_i32, %c0_i32_0 : i32, i32, i32
  }
  func.func @transform_1(%arg0: i32) -> (i32, i32, i32) {
    %c0_i32 = arith.constant 0 : i32
    %c0_i32_0 = arith.constant 0 : i32
    %c0_i32_1 = arith.constant 0 : i32
    return %arg0, %c0_i32, %c0_i32_0 : i32, i32, i32
  }
  func.func @transform_2(%arg0: i32) -> (i32, i32, i32) {
    %c0_i32 = arith.constant 0 : i32
    %c0_i32_0 = arith.constant 0 : i32
    %c0_i32_1 = arith.constant 0 : i32
    %c0_i32_2 = arith.constant 0 : i32
    return %c0_i32, %c0_i32_0, %c0_i32_1 : i32, i32, i32
  }
  func.func @transform_3(%arg0: i32) -> (i32, i32) {
    %c0_i32 = arith.constant 0 : i32
    %c0_i32_0 = arith.constant 0 : i32
    %c0_i32_1 = arith.constant 0 : i32
    return %c0_i32, %c0_i32_0 : i32, i32
  }
  func.func @transform_4(%arg0: i32) -> (i32, i32, i32) {
    %c0_i32 = arith.constant 0 : i32
    %c0_i32_0 = arith.constant 0 : i32
    %c0_i32_1 = arith.constant 0 : i32
    %c0_i32_2 = arith.constant 0 : i32
    return %c0_i32, %c0_i32_0, %c0_i32_1 : i32, i32, i32
  }
  func.func @transform_5(%arg0: i32) -> (i32, i32) {
    %c0_i32 = arith.constant 0 : i32
    %c0_i32_0 = arith.constant 0 : i32
    %c0_i32_1 = arith.constant 0 : i32
    return %c0_i32, %c0_i32_0 : i32, i32
  }
  func.func @transform_6(%arg0: i32) -> (i32, i32, i32) {
    %c0_i32 = arith.constant 0 : i32
    %c0_i32_0 = arith.constant 0 : i32
    %c0_i32_1 = arith.constant 0 : i32
    return %arg0, %c0_i32, %c0_i32_0 : i32, i32, i32
  }
}

module attributes {stable_mosaic.version = 11 : i64} {
  func.func @_stage_b_kernel(%arg0: i32, %arg1: memref<1x64x64xbf16, #tpu.memory_space<vmem>>, %arg2: memref<10x64xbf16, #tpu.memory_space<vmem>>, %arg3: memref<10x1xf32, #tpu.memory_space<vmem>>, %arg4: memref<64x256xbf16, #tpu.memory_space<vmem>>, %arg5: memref<1x256xf32, #tpu.memory_space<vmem>>, %arg6: memref<256x256xbf16, #tpu.memory_space<vmem>>, %arg7: memref<1x256xf32, #tpu.memory_space<vmem>>, %arg8: memref<1x10x256xf32, #tpu.memory_space<vmem>>) attributes {dimension_semantics = [#tpu.dimension_semantics<parallel>], iteration_bounds = array<i64: 2>, scalar_prefetch = 0 : i64, scratch_operands = 0 : i64, tpu.core_type = #tpu.core_type<tc>, window_params = [{transform_indices = @transform_0, window_bounds = array<i64: 1, 64, 64>}, {pipeline_mode = #tpu.pipeline_mode<synchronous>, transform_indices = @transform_1, window_bounds = array<i64: 10, 64>}, {pipeline_mode = #tpu.pipeline_mode<synchronous>, transform_indices = @transform_2, window_bounds = array<i64: 10, 1>}, {pipeline_mode = #tpu.pipeline_mode<synchronous>, transform_indices = @transform_3, window_bounds = array<i64: 64, 256>}, {pipeline_mode = #tpu.pipeline_mode<synchronous>, transform_indices = @transform_4, window_bounds = array<i64: 1, 256>}, {pipeline_mode = #tpu.pipeline_mode<synchronous>, transform_indices = @transform_5, window_bounds = array<i64: 256, 256>}, {pipeline_mode = #tpu.pipeline_mode<synchronous>, transform_indices = @transform_6, window_bounds = array<i64: 1, 256>}, {transform_indices = @transform_7, window_bounds = array<i64: 1, 10, 256>}]} {
    %c0 = arith.constant 0 : index
    %c0_0 = arith.constant 0 : index
    %c0_1 = arith.constant 0 : index
    %0 = vector.load %arg1[%c0, %c0_0, %c0_1] : memref<1x64x64xbf16, #tpu.memory_space<vmem>>, vector<1x64x64xbf16>
    %1 = vector.shape_cast %0 : vector<1x64x64xbf16> to vector<64x64xbf16>
    %c0_2 = arith.constant 0 : index
    %c0_3 = arith.constant 0 : index
    %2 = vector.load %arg2[%c0_2, %c0_3] : memref<10x64xbf16, #tpu.memory_space<vmem>>, vector<10x64xbf16>
    %cst = arith.constant dense<0.000000e+00> : vector<10x64xf32>
    %3 = tpu.matmul %2, %1, %cst {dimension_numbers = #tpu.dot_dimension_numbers<[1], [0], [0], [1], [0, 0, 1, 1], [], []>} : vector<10x64xbf16>, vector<64x64xbf16>, vector<10x64xf32> -> vector<10x64xf32>
    %c0_4 = arith.constant 0 : index
    %c0_5 = arith.constant 0 : index
    %4 = vector.load %arg3[%c0_4, %c0_5] : memref<10x1xf32, #tpu.memory_space<vmem>>, vector<10x1xf32>
    %5 = vector.broadcast %4 : vector<10x1xf32> to vector<10x64xf32>
    %6 = arith.addf %3, %5 : vector<10x64xf32>
    %cst_6 = arith.constant 0.000000e+00 : f32
    %7 = vector.broadcast %cst_6 : f32 to vector<10x64xf32>
    %8 = arith.maximumf %6, %7 : vector<10x64xf32>
    %9 = arith.truncf %8 : vector<10x64xf32> to vector<10x64xbf16>
    %c0_7 = arith.constant 0 : index
    %c0_8 = arith.constant 0 : index
    %10 = vector.load %arg4[%c0_7, %c0_8] : memref<64x256xbf16, #tpu.memory_space<vmem>>, vector<64x256xbf16>
    %cst_9 = arith.constant dense<0.000000e+00> : vector<10x256xf32>
    %11 = tpu.matmul %9, %10, %cst_9 {dimension_numbers = #tpu.dot_dimension_numbers<[1], [0], [0], [1], [0, 0, 1, 1], [], []>} : vector<10x64xbf16>, vector<64x256xbf16>, vector<10x256xf32> -> vector<10x256xf32>
    %c0_10 = arith.constant 0 : index
    %c0_11 = arith.constant 0 : index
    %12 = vector.load %arg5[%c0_10, %c0_11] : memref<1x256xf32, #tpu.memory_space<vmem>>, vector<1x256xf32>
    %13 = vector.broadcast %12 : vector<1x256xf32> to vector<10x256xf32>
    %14 = arith.addf %11, %13 : vector<10x256xf32>
    %cst_12 = arith.constant 0.000000e+00 : f32
    %15 = vector.broadcast %cst_12 : f32 to vector<10x256xf32>
    %16 = arith.maximumf %14, %15 : vector<10x256xf32>
    %17 = arith.truncf %16 : vector<10x256xf32> to vector<10x256xbf16>
    %c0_13 = arith.constant 0 : index
    %c0_14 = arith.constant 0 : index
    %18 = vector.load %arg6[%c0_13, %c0_14] : memref<256x256xbf16, #tpu.memory_space<vmem>>, vector<256x256xbf16>
    %cst_15 = arith.constant dense<0.000000e+00> : vector<10x256xf32>
    %19 = tpu.matmul %17, %18, %cst_15 {dimension_numbers = #tpu.dot_dimension_numbers<[1], [0], [0], [1], [0, 0, 1, 1], [], []>} : vector<10x256xbf16>, vector<256x256xbf16>, vector<10x256xf32> -> vector<10x256xf32>
    %c0_16 = arith.constant 0 : index
    %c0_17 = arith.constant 0 : index
    %20 = vector.load %arg7[%c0_16, %c0_17] : memref<1x256xf32, #tpu.memory_space<vmem>>, vector<1x256xf32>
    %21 = vector.broadcast %20 : vector<1x256xf32> to vector<10x256xf32>
    %22 = arith.addf %19, %21 : vector<10x256xf32>
    %cst_18 = arith.constant 0.000000e+00 : f32
    %23 = vector.broadcast %cst_18 : f32 to vector<10x256xf32>
    %24 = arith.maximumf %22, %23 : vector<10x256xf32>
    %c0_19 = arith.constant 0 : index
    %c0_20 = arith.constant 0 : index
    %c0_21 = arith.constant 0 : index
    %25 = vector.load %arg8[%c0_19, %c0_20, %c0_21] : memref<1x10x256xf32, #tpu.memory_space<vmem>>, vector<1x10x256xf32>
    %26 = vector.shape_cast %25 : vector<1x10x256xf32> to vector<10x256xf32>
    %27 = vector.shape_cast %24 : vector<10x256xf32> to vector<1x10x256xf32>
    tpu.vector_store %arg8[%c0_19, %c0_20, %c0_21], %27 {strides = array<i32>} : memref<1x10x256xf32, #tpu.memory_space<vmem>>, vector<1x10x256xf32>,
    return
  }
  func.func @transform_0(%arg0: i32) -> (i32, i32, i32) {
    %c0_i32 = arith.constant 0 : i32
    %c0_i32_0 = arith.constant 0 : i32
    %c0_i32_1 = arith.constant 0 : i32
    return %arg0, %c0_i32, %c0_i32_0 : i32, i32, i32
  }
  func.func @transform_1(%arg0: i32) -> (i32, i32) {
    %c0_i32 = arith.constant 0 : i32
    %c0_i32_0 = arith.constant 0 : i32
    %c0_i32_1 = arith.constant 0 : i32
    return %c0_i32, %c0_i32_0 : i32, i32
  }
  func.func @transform_2(%arg0: i32) -> (i32, i32) {
    %c0_i32 = arith.constant 0 : i32
    %c0_i32_0 = arith.constant 0 : i32
    %c0_i32_1 = arith.constant 0 : i32
    return %c0_i32, %c0_i32_0 : i32, i32
  }
  func.func @transform_3(%arg0: i32) -> (i32, i32) {
    %c0_i32 = arith.constant 0 : i32
    %c0_i32_0 = arith.constant 0 : i32
    %c0_i32_1 = arith.constant 0 : i32
    return %c0_i32, %c0_i32_0 : i32, i32
  }
  func.func @transform_4(%arg0: i32) -> (i32, i32) {
    %c0_i32 = arith.constant 0 : i32
    %c0_i32_0 = arith.constant 0 : i32
    %c0_i32_1 = arith.constant 0 : i32
    return %c0_i32, %c0_i32_0 : i32, i32
  }
  func.func @transform_5(%arg0: i32) -> (i32, i32) {
    %c0_i32 = arith.constant 0 : i32
    %c0_i32_0 = arith.constant 0 : i32
    %c0_i32_1 = arith.constant 0 : i32
    return %c0_i32, %c0_i32_0 : i32, i32
  }
  func.func @transform_6(%arg0: i32) -> (i32, i32) {
    %c0_i32 = arith.constant 0 : i32
    %c0_i32_0 = arith.constant 0 : i32
    %c0_i32_1 = arith.constant 0 : i32
    return %c0_i32, %c0_i32_0 : i32, i32
  }
  func.func @transform_7(%arg0: i32) -> (i32, i32, i32) {
    %c0_i32 = arith.constant 0 : i32
    %c0_i32_0 = arith.constant 0 : i32
    %c0_i32_1 = arith.constant 0 : i32
    return %arg0, %c0_i32, %c0_i32_0 : i32, i32, i32
  }
}

</mosaic_0001>

<llo_original>
// kernel: cnn_forward.3
$region0: #{cnn_forward.3}
  #allocation0 [shape = 'u32[]', space=smem, size = 0x4, offset = 0x4, fixed_abs, tag = 'smem constant byte address 0x4 - core index']
  #allocation1 [shape = 'u32[144,128]{1,0:T(1,128)}', space=vmem, size = 0x12000, scoped, tag = 'internal scratch']
  %s0 = inlined_call_operand.vmem [shape: bf16[2,64,64], index: 0, kind: input, shape index: {}]
  %s1 = inlined_call_operand.vmem [shape: bf16[10,64], index: 1, kind: input, shape index: {}]
  %s2 = inlined_call_operand.vmem [shape: f32[10,1], index: 2, kind: input, shape index: {}]
  %s3 = inlined_call_operand.vmem [shape: bf16[64,256], index: 3, kind: input, shape index: {}]
  %s4 = inlined_call_operand.vmem [shape: f32[1,256], index: 4, kind: input, shape index: {}]
  %s5 = inlined_call_operand.vmem [shape: bf16[256,256], index: 5, kind: input, shape index: {}]
  %s6 = inlined_call_operand.vmem [shape: f32[1,256], index: 6, kind: input, shape index: {}]
  %s7 = inlined_call_operand.vmem [shape: f32[2,10,256], index: 7, kind: output, shape index: {}]
  %s8 = sld [smem:[#allocation0]]
  $region61: #{cnn_forward.3} parent=0
    _
  %s10 = ssub.s32 1, %s8
  %s11 = scalar_select 0, %s10, %s8
  loop: start=0, step=1, limit=4
  $region2: #{cnn_forward.3} parent=0 // loop_pre_header
    _
  $region3: #{cnn_forward.3} parent=0 // loop_header
    %s13 = sphi 0, %s17
    %p14 = scmp.ge.s32.totalorder %s13, 4
    %s23 = sphi 0, %s25
    %s26 = sphi 0, %s23
    %s27 = sphi 0, %s26
    %s43 = sphi 0, %s27
    %s47 = sphi 0, %s47
    %s49 = sphi 0, %s47
    %s50 = sphi 0, %s49
    %s64 = sphi 0, %s50
    %s68 = sphi 0, %s68
    %s70 = sphi 0, %s68
    %s71 = sphi 0, %s70
    %s85 = sphi 0, %s71
    %s89 = sphi 0, %s89
    %s91 = sphi 0, %s89
    %s92 = sphi 0, %s91
    %s106 = sphi 0, %s92
    %s110 = sphi 0, %s110
    %s112 = sphi 0, %s110
    %s113 = sphi 0, %s112
    %s127 = sphi 0, %s113
    %s131 = sphi 0, %s131
    %s133 = sphi 0, %s131
    %s134 = sphi 0, %s133
    %s148 = sphi 0, %s134
    %s152 = sphi 0, %s152
    %s154 = sphi 0, %s152
    %s155 = sphi 0, %s154
    %s169 = sphi 0, %s155
    %s175 = sphi 0, %s177
    %s178 = sphi 0, %s175
    %s179 = sphi 0, %s178
    %s195 = sphi 0, %s179
  $region4: #{cnn_forward.3} parent=0 // loop_header_branch
    %16 = sbr.rel (%p14) target = $region8
  $region5: #{cnn_forward.3} parent=0 // loop_body
    %s18 = ssub.s32 %s13, 1
    %s19 = ssub.s32 %s13, 2
    %s20 = sadd.s32 %s13, 1
    %s21 = ssub.s32 %s13, %s20
    %p22 = scmp.eq.s32.totalorder %s21, 0
    %s24 = sadd.s32 %s23, 1
    %s25 = scalar_select %p22, %s23, %s24
    %p28 = pneg %p22
    %p29 = scmp.eq.s32.totalorder %s13, 1
    %p30 = por %p28, %p29
    %p31 = scmp.ne.s32.totalorder %s23, %s26
    %p32 = scmp.eq.s32.totalorder %s13, 0
    %p33 = por %p31, %p32
    %p34 = scmp.ne.s32.totalorder %s23, %s26
    %p35 = scmp.eq.s32.totalorder %s18, 1
    %p36 = por %p34, %p35
    %p37 = scmp.ne.s32.totalorder %s26, %s27
    %p38 = scmp.eq.s32.totalorder %s18, 0
    %p39 = por %p37, %p38
    %p40 = scmp.ne.s32.totalorder %s26, %s27
    %p41 = scmp.eq.s32.totalorder %s19, 1
    %p42 = por %p40, %p41
    %p44 = scmp.ne.s32.totalorder %s27, %s43
    %p45 = scmp.eq.s32.totalorder %s19, 0
    %p46 = por %p44, %p45
    %s48 = sadd.s32 %s47, 1
    %p51 = scmp.eq.s32.totalorder %s13, 1
    %p52 = scmp.ne.s32.totalorder %s47, %s49
    %p53 = scmp.eq.s32.totalorder %s13, 0
    %p54 = por %p52, %p53
    %p55 = scmp.ne.s32.totalorder %s47, %s49
    %p56 = scmp.eq.s32.totalorder %s18, 1
    %p57 = por %p55, %p56
    %p58 = scmp.ne.s32.totalorder %s49, %s50
    %p59 = scmp.eq.s32.totalorder %s18, 0
    %p60 = por %p58, %p59
    %p61 = scmp.ne.s32.totalorder %s49, %s50
    %p62 = scmp.eq.s32.totalorder %s19, 1
    %p63 = por %p61, %p62
    %p65 = scmp.ne.s32.totalorder %s50, %s64
    %p66 = scmp.eq.s32.totalorder %s19, 0
    %p67 = por %p65, %p66
    %s69 = sadd.s32 %s68, 1
    %p72 = scmp.eq.s32.totalorder %s13, 1
    %p73 = scmp.ne.s32.totalorder %s68, %s70
    %p74 = scmp.eq.s32.totalorder %s13, 0
    %p75 = por %p73, %p74
    %p76 = scmp.ne.s32.totalorder %s68, %s70
    %p77 = scmp.eq.s32.totalorder %s18, 1
    %p78 = por %p76, %p77
    %p79 = scmp.ne.s32.totalorder %s70, %s71
    %p80 = scmp.eq.s32.totalorder %s18, 0
    %p81 = por %p79, %p80
    %p82 = scmp.ne.s32.totalorder %s70, %s71
    %p83 = scmp.eq.s32.totalorder %s19, 1
    %p84 = por %p82, %p83
    %p86 = scmp.ne.s32.totalorder %s71, %s85
    %p87 = scmp.eq.s32.totalorder %s19, 0
    %p88 = por %p86, %p87
    %s90 = sadd.s32 %s89, 1
    %p93 = scmp.eq.s32.totalorder %s13, 1
    %p94 = scmp.ne.s32.totalorder %s89, %s91
    %p95 = scmp.eq.s32.totalorder %s13, 0
    %p96 = por %p94, %p95
    %p97 = scmp.ne.s32.totalorder %s89, %s91
    %p98 = scmp.eq.s32.totalorder %s18, 1
    %p99 = por %p97, %p98
    %p100 = scmp.ne.s32.totalorder %s91, %s92
    %p101 = scmp.eq.s32.totalorder %s18, 0
    %p102 = por %p100, %p101
    %p103 = scmp.ne.s32.totalorder %s91, %s92
    %p104 = scmp.eq.s32.totalorder %s19, 1
    %p105 = por %p103, %p104
    %p107 = scmp.ne.s32.totalorder %s92, %s106
    %p108 = scmp.eq.s32.totalorder %s19, 0
    %p109 = por %p107, %p108
    %s111 = sadd.s32 %s110, 1
    %p114 = scmp.eq.s32.totalorder %s13, 1
    %p115 = scmp.ne.s32.totalorder %s110, %s112
    %p116 = scmp.eq.s32.totalorder %s13, 0
    %p117 = por %p115, %p116
    %p118 = scmp.ne.s32.totalorder %s110, %s112
    %p119 = scmp.eq.s32.totalorder %s18, 1
    %p120 = por %p118, %p119
    %p121 = scmp.ne.s32.totalorder %s112, %s113
    %p122 = scmp.eq.s32.totalorder %s18, 0
    %p123 = por %p121, %p122
    %p124 = scmp.ne.s32.totalorder %s112, %s113
    %p125 = scmp.eq.s32.totalorder %s19, 1
    %p126 = por %p124, %p125
    %p128 = scmp.ne.s32.totalorder %s113, %s127
    %p129 = scmp.eq.s32.totalorder %s19, 0
    %p130 = por %p128, %p129
    %s132 = sadd.s32 %s131, 1
    %p135 = scmp.eq.s32.totalorder %s13, 1
    %p136 = scmp.ne.s32.totalorder %s131, %s133
    %p137 = scmp.eq.s32.totalorder %s13, 0
    %p138 = por %p136, %p137
    %p139 = scmp.ne.s32.totalorder %s131, %s133
    %p140 = scmp.eq.s32.totalorder %s18, 1
    %p141 = por %p139, %p140
    %p142 = scmp.ne.s32.totalorder %s133, %s134
    %p143 = scmp.eq.s32.totalorder %s18, 0
    %p144 = por %p142, %p143
    %p145 = scmp.ne.s32.totalorder %s133, %s134
    %p146 = scmp.eq.s32.totalorder %s19, 1
    %p147 = por %p145, %p146
    %p149 = scmp.ne.s32.totalorder %s134, %s148
    %p150 = scmp.eq.s32.totalorder %s19, 0
    %p151 = por %p149, %p150
    %s153 = sadd.s32 %s152, 1
    %p156 = scmp.eq.s32.totalorder %s13, 1
    %p157 = scmp.ne.s32.totalorder %s152, %s154
    %p158 = scmp.eq.s32.totalorder %s13, 0
    %p159 = por %p157, %p158
    %p160 = scmp.ne.s32.totalorder %s152, %s154
    %p161 = scmp.eq.s32.totalorder %s18, 1
    %p162 = por %p160, %p161
    %p163 = scmp.ne.s32.totalorder %s154, %s155
    %p164 = scmp.eq.s32.totalorder %s18, 0
    %p165 = por %p163, %p164
    %p166 = scmp.ne.s32.totalorder %s154, %s155
    %p167 = scmp.eq.s32.totalorder %s19, 1
    %p168 = por %p166, %p167
    %p170 = scmp.ne.s32.totalorder %s155, %s169
    %p171 = scmp.eq.s32.totalorder %s19, 0
    %p172 = por %p170, %p171
    %s173 = ssub.s32 %s13, %s20
    %p174 = scmp.eq.s32.totalorder %s173, 0
    %s176 = sadd.s32 %s175, 1
    %s177 = scalar_select %p174, %s175, %s176
    %p180 = pneg %p174
    %p181 = scmp.eq.s32.totalorder %s13, 1
    %p182 = por %p180, %p181
    %p183 = scmp.ne.s32.totalorder %s175, %s178
    %p184 = scmp.eq.s32.totalorder %s13, 0
    %p185 = por %p183, %p184
    %p186 = scmp.ne.s32.totalorder %s175, %s178
    %p187 = scmp.eq.s32.totalorder %s18, 1
    %p188 = por %p186, %p187
    %p189 = scmp.ne.s32.totalorder %s178, %s179
    %p190 = scmp.eq.s32.totalorder %s18, 0
    %p191 = por %p189, %p190
    %p192 = scmp.ne.s32.totalorder %s178, %s179
    %p193 = scmp.eq.s32.totalorder %s19, 1
    %p194 = por %p192, %p193
    %p196 = scmp.ne.s32.totalorder %s179, %s195
    %p197 = scmp.eq.s32.totalorder %s19, 0
    %p198 = por %p196, %p197
    %p199 = scmp.le.s32.totalorder 1, %s13
    %p200 = scmp.lt.s32.totalorder %s13, 3
    %p201 = pnand %p199, %p200
    %p202 = pneg %p201
    // Predicated region
    $region9: #{cnn_forward.3} parent=5 // pred_check
      _
    $region10: #{cnn_forward.3} parent=5 // pred_check_branch
      %204 = sbr.rel (%p201) target = $region12
    $region11: #{cnn_forward.3} parent=5 // pred_region
      %s205 = ssub.s32 %s13, 1
      // Predicated region
      $region13: #{cnn_forward.3} parent=11 // pred_check
        %p206 = pneg %p60
      $region14: #{cnn_forward.3} parent=11 // pred_check_branch
        %208 = sbr.rel (%p206) target = $region16
      $region15: #{cnn_forward.3} parent=11 // pred_region
        _
      $region16: #{cnn_forward.3} parent=11 // pred_fallthru
        _
      // Predicated region
      $region17: #{cnn_forward.3} parent=11 // pred_check
        %p209 = pneg %p81
      $region18: #{cnn_forward.3} parent=11 // pred_check_branch
        %211 = sbr.rel (%p209) target = $region20
      $region19: #{cnn_forward.3} parent=11 // pred_region
        _
      $region20: #{cnn_forward.3} parent=11 // pred_fallthru
        _
      // Predicated region
      $region21: #{cnn_forward.3} parent=11 // pred_check
        %p212 = pneg %p102
      $region22: #{cnn_forward.3} parent=11 // pred_check_branch
        %214 = sbr.rel (%p212) target = $region24
      $region23: #{cnn_forward.3} parent=11 // pred_region
        _
      $region24: #{cnn_forward.3} parent=11 // pred_fallthru
        _
      // Predicated region
      $region25: #{cnn_forward.3} parent=11 // pred_check
        %p215 = pneg %p123
      $region26: #{cnn_forward.3} parent=11 // pred_check_branch
        %217 = sbr.rel (%p215) target = $region28
      $region27: #{cnn_forward.3} parent=11 // pred_region
        _
      $region28: #{cnn_forward.3} parent=11 // pred_fallthru
        _
      // Predicated region
      $region29: #{cnn_forward.3} parent=11 // pred_check
        %p218 = pneg %p144
      $region30: #{cnn_forward.3} parent=11 // pred_check_branch
        %220 = sbr.rel (%p218) target = $region32
      $region31: #{cnn_forward.3} parent=11 // pred_region
        _
      $region32: #{cnn_forward.3} parent=11 // pred_fallthru
        _
      // Predicated region
      $region33: #{cnn_forward.3} parent=11 // pred_check
        %p221 = pneg %p165
      $region34: #{cnn_forward.3} parent=11 // pred_check_branch
        %223 = sbr.rel (%p221) target = $region36
      $region35: #{cnn_forward.3} parent=11 // pred_region
        _
      $region36: #{cnn_forward.3} parent=11 // pred_fallthru
        _
    $region12: #{cnn_forward.3} parent=5 // pred_fallthru
      _
    %p224 = scmp.lt.s32.totalorder %s13, 2
    // Predicated region
    $region37: #{cnn_forward.3} parent=5 // pred_check
      %p225 = pneg %p224
    $region38: #{cnn_forward.3} parent=5 // pred_check_branch
      %227 = sbr.rel (%p225) target = $region40
    $region39: #{cnn_forward.3} parent=5 // pred_region
      // Predicated region
      $region41: #{cnn_forward.3} parent=39 // pred_check
        %p228 = pneg %p33
      $region42: #{cnn_forward.3} parent=39 // pred_check_branch
        %230 = sbr.rel (%p228) target = $region44
      $region43: #{cnn_forward.3} parent=39 // pred_region
        %p231 = scmp.lt.s32.totalorder %s13, 1
        %s232 = scalar_select %p231, %s13, 1
        %s233 = smul.addr %s232, 8
        %s234 = smul.addr %s233, 4
        %s235 = scalar_lea.vmem %s0, %s234
      $region44: #{cnn_forward.3} parent=39 // pred_fallthru
        _
    $region40: #{cnn_forward.3} parent=5 // pred_fallthru
      _
    %p236 = scmp.le.s32.totalorder 1, %s13
    %p237 = scmp.lt.s32.totalorder %s13, 3
    %p238 = pnand %p236, %p237
    %p239 = pneg %p238
    // Predicated region
    $region45: #{cnn_forward.3} parent=5 // pred_check
      _
    $region46: #{cnn_forward.3} parent=5 // pred_check_branch
      %241 = sbr.rel (%p238) target = $region48
    $region47: #{cnn_forward.3} parent=5 // pred_region
      %s242 = ssub.s32 %s13, 1
      %p243 = scmp.lt.s32.totalorder %s18, 1
      %s244 = scalar_select %p243, %s18, 1
      %s245 = smul.addr %s244, 8
      %s246 = smul.addr %s245, 4
      %s247 = scalar_lea.vmem %s0, %s246
      %p248 = pneg %p39
      %p249 = pneg %p36
      %p250 = pneg %p60
      %p251 = pneg %p57
      %p252 = pneg %p81
      %p253 = pneg %p78
      %p254 = pneg %p102
      %p255 = pneg %p99
      %p256 = pneg %p123
      %p257 = pneg %p120
      %p258 = pneg %p144
      %p259 = pneg %p141
      %p260 = pneg %p165
      %p261 = pneg %p162
      %p262 = pneg %p191
      %p263 = pneg %p188
      %p264 = scmp.lt.s32.totalorder %s18, 1
      %s265 = scalar_select %p264, %s18, 1
      %s266 = smul.addr %s265, 4
      %s267 = smul.addr %s266, 8
      %s268 = scalar_lea.vmem %s7, %s267
      %p269 = scmp.lt.s32.totalorder %s18, 1
      %s270 = scalar_select %p269, %s18, 1
      %s271 = smul.addr %s270, 8
      %s272 = smul.addr %s271, 4
      %s273 = scalar_lea.vmem %s0, %s272
      %p274 = scmp.lt.s32.totalorder %s18, 1
      %s275 = scalar_select %p274, %s18, 1
      %s276 = smul.addr %s275, 4
      %s277 = smul.addr %s276, 8
      %s278 = scalar_lea.vmem %s7, %s277
      %v280 = vld [vmem:[%s273] sm:$0xf]
      %v281 = vld [vmem:[%s273 + $0x4] sm:$0xf]
      %v282 = vld [vmem:[%s273 + $0x8] sm:$0xf]
      %v283 = vld [vmem:[%s273 + $0xc] sm:$0xf]
      %v284 = vld [vmem:[%s273 + $0x10] sm:$0xf]
      %v285 = vld [vmem:[%s273 + $0x14] sm:$0xf]
      %v286 = vld [vmem:[%s273 + $0x18] sm:$0xf]
      %v287 = vld [vmem:[%s273 + $0x1c] sm:$0xf]
      %v288 = vld [vmem:[%s1] sm:$0xf]
      %v289 = vld [vmem:[%s1 + $0x4] sm:$0x1]
      %v290 = vld [vmem:[%s2] sm:$0xff]
      %v291 = vld [vmem:[%s2 + $0x8] sm:$0x3]
      %293 = vset.pattern.permute.xlu0 0
      %294 = vperm.xlu0 %293, %v290
      %v295 = vpop.permute.xlu0 %294
      %298 = vset.pattern.permute.xlu0 0
      %299 = vperm.xlu0 %298, %v291
      %v300 = vpop.permute.xlu0 %299
      %v304 = vunpack.c.l.b16 %v288
      %v305 = vunpack.c.l.b16 %v289
      %v306 = vpack.c.b16 %v305, %v304
      %v315 = vunpack.c.l.b16 %v280
      %v316 = vunpack.c.l.b16 %v281
      %v317 = vunpack.c.l.b16 %v282
      %v318 = vunpack.c.l.b16 %v283
      %v319 = vunpack.c.l.b16 %v284
      %v320 = vunpack.c.l.b16 %v285
      %v321 = vunpack.c.l.b16 %v286
      %v322 = vunpack.c.l.b16 %v287
      %v323 = vpack.c.b16 %v316, %v315
      %v324 = vpack.c.b16 %v318, %v317
      %v325 = vpack.c.b16 %v320, %v319
      %v326 = vpack.c.b16 %v322, %v321
      %vm331 = vcmask 523264
      %v333 = vsel %vm331, %v306, 0
      %335 = vmatprep.subr.bf16.mxu0 0
      %336 = vmatpush1.bf16.msra.mxu0 %v323
      %337 = vmatprep.subr.bf16.mxu0 0
      %338 = vmatpush1.bf16.msra.mxu0 %v324
      %339 = vmatprep.subr.bf16.mxu0 0
      %340 = vmatpush1.bf16.msra.mxu0 %v325
      %341 = vmatprep.subr.bf16.mxu0 0
      %342 = vmatpush1.bf16.msra.mxu0 %v326
      %343 = vmatprep.subr.bf16.mxu0 0
      %344 = vmatpush1.bf16.msra.mxu0 0
      %345 = vmatprep.subr.bf16.mxu0 0
      %346 = vmatpush1.bf16.msra.mxu0 0
      %347 = vmatprep.subr.bf16.mxu0 0
      %348 = vmatpush1.bf16.msra.mxu0 0
      %349 = vmatprep.subr.bf16.mxu0 0
      %350 = vmatpush1.bf16.msra.mxu0 0
      %351 = vmatprep.subr.bf16.mxu0 0
      %352 = vmatpush1.bf16.msra.mxu0 0
      %353 = vmatprep.subr.bf16.mxu0 0
      %354 = vmatpush1.bf16.msra.mxu0 0
      %355 = vmatprep.subr.bf16.mxu0 0
      %356 = vmatpush1.bf16.msra.mxu0 0
      %357 = vmatprep.subr.bf16.mxu0 0
      %358 = vmatpush1.bf16.msra.mxu0 0
      %359 = vmatprep.subr.bf16.mxu0 0
      %360 = vmatpush1.bf16.msra.mxu0 0
      %361 = vmatprep.subr.bf16.mxu0 0
      %362 = vmatpush1.bf16.msra.mxu0 0
      %363 = vmatprep.subr.bf16.mxu0 0
      %364 = vmatpush1.bf16.msra.mxu0 0
      %365 = vmatprep.subr.bf16.mxu0 0
      %366 = vmatpush1.bf16.msra.mxu0 0
      %367 = vmatprep.mubr.bf16.mxu0 0
      %368 = vmatmul.mubr.bf16.gmra.mrb[0].mxu0 %v333
      %v369 = vpop.f32.mrb[0].mxu0
      %v370 = vadd.f32 %v295, %v369
      %v371 = vpop.f32.mrb[0].mxu0
      %v372 = vpop.f32.mrb[0].mxu0
      %v373 = vadd.f32 %v300, %v372
      %v374 = vpop.f32.mrb[0].mxu0
      %375 = vdwg.mxu0
      %v376 = vmax.f32 %v370, 0.0
      %v377 = vmax.f32 %v373, 0.0
      %v378 = vpack.c.bf16 %v377, %v376
      %v379 = vld [vmem:[%s3] sm:$0xff]
      %v380 = vld [vmem:[%s3 + $0x8] sm:$0xff]
      %v381 = vld [vmem:[%s3 + $0x10] sm:$0xff]
      %v382 = vld [vmem:[%s3 + $0x18] sm:$0xff]
      %v383 = vld [vmem:[%s3 + $0x20] sm:$0xff]
      %v384 = vld [vmem:[%s3 + $0x28] sm:$0xff]
      %v385 = vld [vmem:[%s3 + $0x30] sm:$0xff]
      %v386 = vld [vmem:[%s3 + $0x38] sm:$0xff]
      %v387 = vld [vmem:[%s4] sm:$0x3]
      %v389 = vlaneseq
      %v390 = vshrl.u32 %v389, 7
      %v391 = vsub.s32 0, %v390
      %v392 = vrot.slane %v387, %v391
      %v393 = vlaneseq
      %v394 = vshrl.u32 %v393, 7
      %v395 = vsub.s32 1, %v394
      %v396 = vrot.slane %v387, %v395
      %v407 = vunpack.c.l.b16 %v379
      %v408 = vunpack.c.h.b16 %v379
      %v409 = vunpack.c.l.b16 %v380
      %v410 = vunpack.c.h.b16 %v380
      %v411 = vunpack.c.l.b16 %v381
      %v412 = vunpack.c.h.b16 %v381
      %v413 = vunpack.c.l.b16 %v382
      %v414 = vunpack.c.h.b16 %v382
      %v415 = vunpack.c.l.b16 %v383
      %v416 = vunpack.c.h.b16 %v383
      %v417 = vunpack.c.l.b16 %v384
      %v418 = vunpack.c.h.b16 %v384
      %v419 = vunpack.c.l.b16 %v385
      %v420 = vunpack.c.h.b16 %v385
      %v421 = vunpack.c.l.b16 %v386
      %v422 = vunpack.c.h.b16 %v386
      %v423 = vpack.c.b16 %v409, %v407
      %v424 = vpack.c.b16 %v410, %v408
      %v425 = vpack.c.b16 %v413, %v411
      %v426 = vpack.c.b16 %v414, %v412
      %v427 = vpack.c.b16 %v417, %v415
      %v428 = vpack.c.b16 %v418, %v416
      %v429 = vpack.c.b16 %v421, %v419
      %v430 = vpack.c.b16 %v422, %v420
      %v440 = vsel %vm331, %v378, 0
      %442 = vmatprep.subr.bf16.mxu0 %v424
      %443 = vmatpush1.bf16.msra.mxu0 %v423
      %444 = vmatprep.subr.bf16.mxu0 %v426
      %445 = vmatpush1.bf16.msra.mxu0 %v425
      %446 = vmatprep.subr.bf16.mxu0 %v428
      %447 = vmatpush1.bf16.msra.mxu0 %v427
      %448 = vmatprep.subr.bf16.mxu0 %v430
      %449 = vmatpush1.bf16.msra.mxu0 %v429
      %450 = vmatprep.subr.bf16.mxu0 0
      %451 = vmatpush1.bf16.msra.mxu0 0
      %452 = vmatprep.subr.bf16.mxu0 0
      %453 = vmatpush1.bf16.msra.mxu0 0
      %454 = vmatprep.subr.bf16.mxu0 0
      %455 = vmatpush1.bf16.msra.mxu0 0
      %456 = vmatprep.subr.bf16.mxu0 0
      %457 = vmatpush1.bf16.msra.mxu0 0
      %458 = vmatprep.subr.bf16.mxu0 0
      %459 = vmatpush1.bf16.msra.mxu0 0
      %460 = vmatprep.subr.bf16.mxu0 0
      %461 = vmatpush1.bf16.msra.mxu0 0
      %462 = vmatprep.subr.bf16.mxu0 0
      %463 = vmatpush1.bf16.msra.mxu0 0
      %464 = vmatprep.subr.bf16.mxu0 0
      %465 = vmatpush1.bf16.msra.mxu0 0
      %466 = vmatprep.subr.bf16.mxu0 0
      %467 = vmatpush1.bf16.msra.mxu0 0
      %468 = vmatprep.subr.bf16.mxu0 0
      %469 = vmatpush1.bf16.msra.mxu0 0
      %470 = vmatprep.subr.bf16.mxu0 0
      %471 = vmatpush1.bf16.msra.mxu0 0
      %472 = vmatprep.subr.bf16.mxu0 0
      %473 = vmatpush1.bf16.msra.mxu0 0
      %474 = vmatprep.mubr.bf16.mxu0 0
      %475 = vmatmul.mubr.bf16.gmra.mrb[0].mxu0 %v440
      %v476 = vpop.f32.mrb[0].mxu0
      %v477 = vadd.f32 %v392, %v476
      %v478 = vpop.f32.mrb[0].mxu0
      %v479 = vadd.f32 %v396, %v478
      %v480 = vpop.f32.mrb[0].mxu0
      %v481 = vadd.f32 %v392, %v480
      %v482 = vpop.f32.mrb[0].mxu0
      %v483 = vadd.f32 %v396, %v482
      %484 = vdwg.mxu0
      %v485 = vmax.f32 %v477, 0.0
      %v486 = vmax.f32 %v479, 0.0
      %v487 = vmax.f32 %v481, 0.0
      %v488 = vmax.f32 %v483, 0.0
      %v489 = vpack.c.bf16 %v487, %v485
      %v490 = vpack.c.bf16 %v488, %v486
      %v491 = vld [vmem:[%s5] sm:$0xff]
      %v492 = vld [vmem:[%s5 + $0x8] sm:$0xff]
      %v493 = vld [vmem:[%s5 + $0x10] sm:$0xff]
      %v494 = vld [vmem:[%s5 + $0x18] sm:$0xff]
      %v495 = vld [vmem:[%s5 + $0x20] sm:$0xff]
      %v496 = vld [vmem:[%s5 + $0x28] sm:$0xff]
      %v497 = vld [vmem:[%s5 + $0x30] sm:$0xff]
      %v498 = vld [vmem:[%s5 + $0x38] sm:$0xff]
      %v499 = vld [vmem:[%s5 + $0x40] sm:$0xff]
      %v500 = vld [vmem:[%s5 + $0x48] sm:$0xff]
      %v501 = vld [vmem:[%s5 + $0x50] sm:$0xff]
      %v502 = vld [vmem:[%s5 + $0x58] sm:$0xff]
      %v503 = vld [vmem:[%s5 + $0x60] sm:$0xff]
      %v504 = vld [vmem:[%s5 + $0x68] sm:$0xff]
      %v505 = vld [vmem:[%s5 + $0x70] sm:$0xff]
      %v506 = vld [vmem:[%s5 + $0x78] sm:$0xff]
      %v507 = vld [vmem:[%s5 + $0x80] sm:$0xff]
      %v508 = vld [vmem:[%s5 + $0x88] sm:$0xff]
      %v509 = vld [vmem:[%s5 + $0x90] sm:$0xff]
      %v510 = vld [vmem:[%s5 + $0x98] sm:$0xff]
      %v511 = vld [vmem:[%s5 + $0xa0] sm:$0xff]
      %v512 = vld [vmem:[%s5 + $0xa8] sm:$0xff]
      %v513 = vld [vmem:[%s5 + $0xb0] sm:$0xff]
      %v514 = vld [vmem:[%s5 + $0xb8] sm:$0xff]
      %v515 = vld [vmem:[%s5 + $0xc0] sm:$0xff]
      %v516 = vld [vmem:[%s5 + $0xc8] sm:$0xff]
      %v517 = vld [vmem:[%s5 + $0xd0] sm:$0xff]
      %v518 = vld [vmem:[%s5 + $0xd8] sm:$0xff]
      %v519 = vld [vmem:[%s5 + $0xe0] sm:$0xff]
      %v520 = vld [vmem:[%s5 + $0xe8] sm:$0xff]
      %v521 = vld [vmem:[%s5 + $0xf0] sm:$0xff]
      %v522 = vld [vmem:[%s5 + $0xf8] sm:$0xff]
      %v523 = vld [vmem:[%s6] sm:$0x3]
      %v525 = vlaneseq
      %v526 = vshrl.u32 %v525, 7
      %v527 = vsub.s32 0, %v526
      %v528 = vrot.slane %v523, %v527
      %v529 = vlaneseq
      %v530 = vshrl.u32 %v529, 7
      %v531 = vsub.s32 1, %v530
      %v532 = vrot.slane %v523, %v531
      %v567 = vunpack.c.l.b16 %v491
      %v568 = vunpack.c.h.b16 %v491
      %v569 = vunpack.c.l.b16 %v492
      %v570 = vunpack.c.h.b16 %v492
      %v571 = vunpack.c.l.b16 %v493
      %v572 = vunpack.c.h.b16 %v493
      %v573 = vunpack.c.l.b16 %v494
      %v574 = vunpack.c.h.b16 %v494
      %v575 = vunpack.c.l.b16 %v495
      %v576 = vunpack.c.h.b16 %v495
      %v577 = vunpack.c.l.b16 %v496
      %v578 = vunpack.c.h.b16 %v496
      %v579 = vunpack.c.l.b16 %v497
      %v580 = vunpack.c.h.b16 %v497
      %v581 = vunpack.c.l.b16 %v498
      %v582 = vunpack.c.h.b16 %v498
      %v583 = vunpack.c.l.b16 %v499
      %v584 = vunpack.c.h.b16 %v499
      %v585 = vunpack.c.l.b16 %v500
      %v586 = vunpack.c.h.b16 %v500
      %v587 = vunpack.c.l.b16 %v501
      %v588 = vunpack.c.h.b16 %v501
      %v589 = vunpack.c.l.b16 %v502
      %v590 = vunpack.c.h.b16 %v502
      %v591 = vunpack.c.l.b16 %v503
      %v592 = vunpack.c.h.b16 %v503
      %v593 = vunpack.c.l.b16 %v504
      %v594 = vunpack.c.h.b16 %v504
      %v595 = vunpack.c.l.b16 %v505
      %v596 = vunpack.c.h.b16 %v505
      %v597 = vunpack.c.l.b16 %v506
      %v598 = vunpack.c.h.b16 %v506
      %v599 = vunpack.c.l.b16 %v507
      %v600 = vunpack.c.h.b16 %v507
      %v601 = vunpack.c.l.b16 %v508
      %v602 = vunpack.c.h.b16 %v508
      %v603 = vunpack.c.l.b16 %v509
      %v604 = vunpack.c.h.b16 %v509
      %v605 = vunpack.c.l.b16 %v510
      %v606 = vunpack.c.h.b16 %v510
      %v607 = vunpack.c.l.b16 %v511
      %v608 = vunpack.c.h.b16 %v511
      %v609 = vunpack.c.l.b16 %v512
      %v610 = vunpack.c.h.b16 %v512
      %v611 = vunpack.c.l.b16 %v513
      %v612 = vunpack.c.h.b16 %v513
      %v613 = vunpack.c.l.b16 %v514
      %v614 = vunpack.c.h.b16 %v514
      %v615 = vunpack.c.l.b16 %v515
      %v616 = vunpack.c.h.b16 %v515
      %v617 = vunpack.c.l.b16 %v516
      %v618 = vunpack.c.h.b16 %v516
      %v619 = vunpack.c.l.b16 %v517
      %v620 = vunpack.c.h.b16 %v517
      %v621 = vunpack.c.l.b16 %v518
      %v622 = vunpack.c.h.b16 %v518
      %v623 = vunpack.c.l.b16 %v519
      %v624 = vunpack.c.h.b16 %v519
      %v625 = vunpack.c.l.b16 %v520
      %v626 = vunpack.c.h.b16 %v520
      %v627 = vunpack.c.l.b16 %v521
      %v628 = vunpack.c.h.b16 %v521
      %v629 = vunpack.c.l.b16 %v522
      %v630 = vunpack.c.h.b16 %v522
      %v631 = vpack.c.b16 %v569, %v567
      %v632 = vpack.c.b16 %v570, %v568
      %v633 = vpack.c.b16 %v573, %v571
      %v634 = vpack.c.b16 %v574, %v572
      %v635 = vpack.c.b16 %v577, %v575
      %v636 = vpack.c.b16 %v578, %v576
      %v637 = vpack.c.b16 %v581, %v579
      %v638 = vpack.c.b16 %v582, %v580
      %v639 = vpack.c.b16 %v585, %v583
      %v640 = vpack.c.b16 %v586, %v584
      %v641 = vpack.c.b16 %v589, %v587
      %v642 = vpack.c.b16 %v590, %v588
      %v643 = vpack.c.b16 %v593, %v591
      %v644 = vpack.c.b16 %v594, %v592
      %v645 = vpack.c.b16 %v597, %v595
      %v646 = vpack.c.b16 %v598, %v596
      %v647 = vpack.c.b16 %v601, %v599
      %v648 = vpack.c.b16 %v602, %v600
      %v649 = vpack.c.b16 %v605, %v603
      %v650 = vpack.c.b16 %v606, %v604
      %v651 = vpack.c.b16 %v609, %v607
      %v652 = vpack.c.b16 %v610, %v608
      %v653 = vpack.c.b16 %v613, %v611
      %v654 = vpack.c.b16 %v614, %v612
      %v655 = vpack.c.b16 %v617, %v615
      %v656 = vpack.c.b16 %v618, %v616
      %v657 = vpack.c.b16 %v621, %v619
      %v658 = vpack.c.b16 %v622, %v620
      %v659 = vpack.c.b16 %v625, %v623
      %v660 = vpack.c.b16 %v626, %v624
      %v661 = vpack.c.b16 %v629, %v627
      %v662 = vpack.c.b16 %v630, %v628
      %695 = vmatprep.subr.bf16.mxu0 %v632
      %696 = vmatpush1.bf16.msra.mxu0 %v631
      %697 = vmatprep.subr.bf16.mxu0 %v634
      %698 = vmatpush1.bf16.msra.mxu0 %v633
      %699 = vmatprep.subr.bf16.mxu0 %v636
      %700 = vmatpush1.bf16.msra.mxu0 %v635
      %701 = vmatprep.subr.bf16.mxu0 %v638
      %702 = vmatpush1.bf16.msra.mxu0 %v637
      %703 = vmatprep.subr.bf16.mxu0 %v640
      %704 = vmatpush1.bf16.msra.mxu0 %v639
      %705 = vmatprep.subr.bf16.mxu0 %v642
      %706 = vmatpush1.bf16.msra.mxu0 %v641
      %707 = vmatprep.subr.bf16.mxu0 %v644
      %708 = vmatpush1.bf16.msra.mxu0 %v643
      %709 = vmatprep.subr.bf16.mxu0 %v646
      %710 = vmatpush1.bf16.msra.mxu0 %v645
      %711 = vmatprep.subr.bf16.mxu0 %v648
      %712 = vmatpush1.bf16.msra.mxu0 %v647
      %713 = vmatprep.subr.bf16.mxu0 %v650
      %714 = vmatpush1.bf16.msra.mxu0 %v649
      %715 = vmatprep.subr.bf16.mxu0 %v652
      %716 = vmatpush1.bf16.msra.mxu0 %v651
      %717 = vmatprep.subr.bf16.mxu0 %v654
      %718 = vmatpush1.bf16.msra.mxu0 %v653
      %719 = vmatprep.subr.bf16.mxu0 %v656
      %720 = vmatpush1.bf16.msra.mxu0 %v655
      %721 = vmatprep.subr.bf16.mxu0 %v658
      %722 = vmatpush1.bf16.msra.mxu0 %v657
      %723 = vmatprep.subr.bf16.mxu0 %v660
      %724 = vmatpush1.bf16.msra.mxu0 %v659
      %725 = vmatprep.subr.bf16.mxu0 %v662
      %726 = vmatpush1.bf16.msra.mxu0 %v661
      %727 = vmatprep.mubr.bf16.mxu0 %v490
      %728 = vmatmul.mubr.bf16.gmra.mrb[0].mxu0 %v489
      %v729 = vpop.f32.mrb[0].mxu0
      %v730 = vadd.f32 %v528, %v729
      %v731 = vpop.f32.mrb[0].mxu0
      %v732 = vadd.f32 %v532, %v731
      %v733 = vpop.f32.mrb[0].mxu0
      %v734 = vadd.f32 %v528, %v733
      %v735 = vpop.f32.mrb[0].mxu0
      %v736 = vadd.f32 %v532, %v735
      %737 = vdwg.mxu0
      %v738 = vmax.f32 %v730, 0.0
      %v739 = vmax.f32 %v732, 0.0
      %v740 = vmax.f32 %v734, 0.0
      %v741 = vmax.f32 %v736, 0.0
      %742 = vst [vmem:[%s278] sm:$0xff] %v738
      %743 = vst [vmem:[%s278 + $0x8] sm:$0xff] %v739
      %744 = vst [vmem:[%s278 + $0x10] sm:$0x3] %v740
      %745 = vst [vmem:[%s278 + $0x18] sm:$0x3] %v741
      %p746 = scmp.lt.s32.totalorder %s18, 1
      %s747 = scalar_select %p746, %s18, 1
      %s748 = smul.addr %s747, 4
      %s749 = smul.addr %s748, 8
      %s750 = scalar_lea.vmem %s7, %s749
      // Predicated region
      $region49: #{cnn_forward.3} parent=47 // pred_check
        %p751 = pneg %p188
      $region50: #{cnn_forward.3} parent=47 // pred_check_branch
        %753 = sbr.rel (%p751) target = $region52
      $region51: #{cnn_forward.3} parent=47 // pred_region
        _
      $region52: #{cnn_forward.3} parent=47 // pred_fallthru
        _
    $region48: #{cnn_forward.3} parent=5 // pred_fallthru
      _
    %p754 = scmp.le.s32.totalorder 2, %s13
    // Predicated region
    $region53: #{cnn_forward.3} parent=5 // pred_check
      %p755 = pneg %p754
    $region54: #{cnn_forward.3} parent=5 // pred_check_branch
      %757 = sbr.rel (%p755) target = $region56
    $region55: #{cnn_forward.3} parent=5 // pred_region
      %s758 = ssub.s32 %s13, 2
      // Predicated region
      $region57: #{cnn_forward.3} parent=55 // pred_check
        %p759 = pneg %p194
      $region58: #{cnn_forward.3} parent=55 // pred_check_branch
        %761 = sbr.rel (%p759) target = $region60
      $region59: #{cnn_forward.3} parent=55 // pred_region
        %p762 = scmp.lt.s32.totalorder %s19, 1
        %s763 = scalar_select %p762, %s19, 1
        %s764 = smul.addr %s763, 4
        %s765 = smul.addr %s764, 8
        %s766 = scalar_lea.vmem %s7, %s765
      $region60: #{cnn_forward.3} parent=55 // pred_fallthru
        _
    $region56: #{cnn_forward.3} parent=5 // pred_fallthru
      _
  $region6: #{cnn_forward.3} parent=0 // loop_footer
    %s17 = sadd.s32 1, %s13
  $region7: #{cnn_forward.3} parent=0 // loop_footer_branch
    %12 = sbr.rel target = $region3
  $region8: #{cnn_forward.3} parent=0 // loop_exit
    _

// kernel: cnn_forward.2
$region0: #{cnn_forward.2}
  #allocation0 [shape = 'u32[]', space=smem, size = 0x4, offset = 0x4, fixed_abs, tag = 'smem constant byte address 0x4 - core index']
  #allocation1 [shape = 'u32[144,128]{1,0:T(1,128)}', space=vmem, size = 0x12000, scoped, tag = 'internal scratch']
  %s0 = inlined_call_operand.vmem [shape: bf16[2,14,280], index: 0, kind: input, shape index: {}]
  %s1 = inlined_call_operand.vmem [shape: bf16[2,14,280], index: 1, kind: input, shape index: {}]
  %s2 = inlined_call_operand.hbm [shape: bf16[5,280,768], index: 2, kind: input, shape index: {}]
  %s3 = inlined_call_operand.hbm [shape: f32[1,384], index: 3, kind: input, shape index: {}]
  %s4 = inlined_call_operand.hbm [shape: bf16[5,384,512], index: 4, kind: input, shape index: {}]
  %s5 = inlined_call_operand.hbm [shape: f32[1,512], index: 5, kind: input, shape index: {}]
  %s6 = inlined_call_operand.vmem [shape: bf16[2,8,512], index: 6, kind: output, shape index: {}]
  %s7 = sld [smem:[#allocation0]]
  $region73: #{cnn_forward.2} parent=0
    _
  %s9 = ssub.s32 1, %s7
  %s10 = scalar_select 0, %s9, %s7
  $region1: #{cnn_forward.2} parent=0
    #allocation2 [shape = 'u8[2150400]{0}', space=vmem, size = 0x20d000, scoped, tag = 'input window, operand 2, single buffered']
    #allocation3 [shape = 's32[2]{0}', space=sflag, size = 0x8, scoped, tag = 'scoped memory for cnn_forward.2']
    #allocation4 [shape = 'u8[1536]{0}', space=vmem, size = 0x800, scoped, tag = 'input window, operand 3, single buffered']
    #allocation5 [shape = 's32[1]{0}', space=sflag, size = 0x4, scoped, tag = 'scoped memory for cnn_forward.2']
    #allocation6 [shape = 'u8[1966080]{0}', space=vmem, size = 0x1e0000, scoped, tag = 'input window, operand 4, single buffered']
    #allocation7 [shape = 'u8[2048]{0}', space=vmem, size = 0x800, scoped, tag = 'input window, operand 5, single buffered']
    #allocation8 [shape = 's32[1]{0}', space=sflag, size = 0x4, scoped, tag = 'scoped memory for cnn_forward.2']
    %11 = vsyncpa [#allocation3], 0
    %12 = vsyncpa [#allocation5], 0
    %13 = vsyncpa [#allocation8], 0
    loop: start=0, step=1, limit=4
    $region2: #{cnn_forward.2} parent=1 // loop_pre_header
      _
    $region3: #{cnn_forward.2} parent=1 // loop_header
      %s15 = sphi 0, %s19
      %p16 = scmp.ge.s32.totalorder %s15, 4
      %s25 = sphi 0, %s27
      %s28 = sphi 0, %s25
      %s29 = sphi 0, %s28
      %s45 = sphi 0, %s29
      %s51 = sphi 0, %s53
      %s54 = sphi 0, %s51
      %s55 = sphi 0, %s54
      %s71 = sphi 0, %s55
      %s75 = sphi 0, %s75
      %s77 = sphi 0, %s75
      %s78 = sphi 0, %s77
      %s92 = sphi 0, %s78
      %s96 = sphi 0, %s96
      %s98 = sphi 0, %s96
      %s99 = sphi 0, %s98
      %s113 = sphi 0, %s99
      %s117 = sphi 0, %s117
      %s119 = sphi 0, %s117
      %s120 = sphi 0, %s119
      %s134 = sphi 0, %s120
      %s138 = sphi 0, %s138
      %s140 = sphi 0, %s138
      %s141 = sphi 0, %s140
      %s155 = sphi 0, %s141
      %s161 = sphi 0, %s163
      %s164 = sphi 0, %s161
      %s165 = sphi 0, %s164
      %s181 = sphi 0, %s165
    $region4: #{cnn_forward.2} parent=1 // loop_header_branch
      %18 = sbr.rel (%p16) target = $region8
    $region5: #{cnn_forward.2} parent=1 // loop_body
      %s20 = ssub.s32 %s15, 1
      %s21 = ssub.s32 %s15, 2
      %s22 = sadd.s32 %s15, 1
      %s23 = ssub.s32 %s15, %s22
      %p24 = scmp.eq.s32.totalorder %s23, 0
      %s26 = sadd.s32 %s25, 1
      %s27 = scalar_select %p24, %s25, %s26
      %p30 = pneg %p24
      %p31 = scmp.eq.s32.totalorder %s15, 1
      %p32 = por %p30, %p31
      %p33 = scmp.ne.s32.totalorder %s25, %s28
      %p34 = scmp.eq.s32.totalorder %s15, 0
      %p35 = por %p33, %p34
      %p36 = scmp.ne.s32.totalorder %s25, %s28
      %p37 = scmp.eq.s32.totalorder %s20, 1
      %p38 = por %p36, %p37
      %p39 = scmp.ne.s32.totalorder %s28, %s29
      %p40 = scmp.eq.s32.totalorder %s20, 0
      %p41 = por %p39, %p40
      %p42 = scmp.ne.s32.totalorder %s28, %s29
      %p43 = scmp.eq.s32.totalorder %s21, 1
      %p44 = por %p42, %p43
      %p46 = scmp.ne.s32.totalorder %s29, %s45
      %p47 = scmp.eq.s32.totalorder %s21, 0
      %p48 = por %p46, %p47
      %s49 = ssub.s32 %s15, %s22
      %p50 = scmp.eq.s32.totalorder %s49, 0
      %s52 = sadd.s32 %s51, 1
      %s53 = scalar_select %p50, %s51, %s52
      %p56 = pneg %p50
      %p57 = scmp.eq.s32.totalorder %s15, 1
      %p58 = por %p56, %p57
      %p59 = scmp.ne.s32.totalorder %s51, %s54
      %p60 = scmp.eq.s32.totalorder %s15, 0
      %p61 = por %p59, %p60
      %p62 = scmp.ne.s32.totalorder %s51, %s54
      %p63 = scmp.eq.s32.totalorder %s20, 1
      %p64 = por %p62, %p63
      %p65 = scmp.ne.s32.totalorder %s54, %s55
      %p66 = scmp.eq.s32.totalorder %s20, 0
      %p67 = por %p65, %p66
      %p68 = scmp.ne.s32.totalorder %s54, %s55
      %p69 = scmp.eq.s32.totalorder %s21, 1
      %p70 = por %p68, %p69
      %p72 = scmp.ne.s32.totalorder %s55, %s71
      %p73 = scmp.eq.s32.totalorder %s21, 0
      %p74 = por %p72, %p73
      %s76 = sadd.s32 %s75, 1
      %p79 = scmp.eq.s32.totalorder %s15, 1
      %p80 = scmp.ne.s32.totalorder %s75, %s77
      %p81 = scmp.eq.s32.totalorder %s15, 0
      %p82 = por %p80, %p81
      %p83 = scmp.ne.s32.totalorder %s75, %s77
      %p84 = scmp.eq.s32.totalorder %s20, 1
      %p85 = por %p83, %p84
      %p86 = scmp.ne.s32.totalorder %s77, %s78
      %p87 = scmp.eq.s32.totalorder %s20, 0
      %p88 = por %p86, %p87
      %p89 = scmp.ne.s32.totalorder %s77, %s78
      %p90 = scmp.eq.s32.totalorder %s21, 1
      %p91 = por %p89, %p90
      %p93 = scmp.ne.s32.totalorder %s78, %s92
      %p94 = scmp.eq.s32.totalorder %s21, 0
      %p95 = por %p93, %p94
      %s97 = sadd.s32 %s96, 1
      %p100 = scmp.eq.s32.totalorder %s15, 1
      %p101 = scmp.ne.s32.totalorder %s96, %s98
      %p102 = scmp.eq.s32.totalorder %s15, 0
      %p103 = por %p101, %p102
      %p104 = scmp.ne.s32.totalorder %s96, %s98
      %p105 = scmp.eq.s32.totalorder %s20, 1
      %p106 = por %p104, %p105
      %p107 = scmp.ne.s32.totalorder %s98, %s99
      %p108 = scmp.eq.s32.totalorder %s20, 0
      %p109 = por %p107, %p108
      %p110 = scmp.ne.s32.totalorder %s98, %s99
      %p111 = scmp.eq.s32.totalorder %s21, 1
      %p112 = por %p110, %p111
      %p114 = scmp.ne.s32.totalorder %s99, %s113
      %p115 = scmp.eq.s32.totalorder %s21, 0
      %p116 = por %p114, %p115
      %s118 = sadd.s32 %s117, 1
      %p121 = scmp.eq.s32.totalorder %s15, 1
      %p122 = scmp.ne.s32.totalorder %s117, %s119
      %p123 = scmp.eq.s32.totalorder %s15, 0
      %p124 = por %p122, %p123
      %p125 = scmp.ne.s32.totalorder %s117, %s119
      %p126 = scmp.eq.s32.totalorder %s20, 1
      %p127 = por %p125, %p126
      %p128 = scmp.ne.s32.totalorder %s119, %s120
      %p129 = scmp.eq.s32.totalorder %s20, 0
      %p130 = por %p128, %p129
      %p131 = scmp.ne.s32.totalorder %s119, %s120
      %p132 = scmp.eq.s32.totalorder %s21, 1
      %p133 = por %p131, %p132
      %p135 = scmp.ne.s32.totalorder %s120, %s134
      %p136 = scmp.eq.s32.totalorder %s21, 0
      %p137 = por %p135, %p136
      %s139 = sadd.s32 %s138, 1
      %p142 = scmp.eq.s32.totalorder %s15, 1
      %p143 = scmp.ne.s32.totalorder %s138, %s140
      %p144 = scmp.eq.s32.totalorder %s15, 0
      %p145 = por %p143, %p144
      %p146 = scmp.ne.s32.totalorder %s138, %s140
      %p147 = scmp.eq.s32.totalorder %s20, 1
      %p148 = por %p146, %p147
      %p149 = scmp.ne.s32.totalorder %s140, %s141
      %p150 = scmp.eq.s32.totalorder %s20, 0
      %p151 = por %p149, %p150
      %p152 = scmp.ne.s32.totalorder %s140, %s141
      %p153 = scmp.eq.s32.totalorder %s21, 1
      %p154 = por %p152, %p153
      %p156 = scmp.ne.s32.totalorder %s141, %s155
      %p157 = scmp.eq.s32.totalorder %s21, 0
      %p158 = por %p156, %p157
      %s159 = ssub.s32 %s15, %s22
      %p160 = scmp.eq.s32.totalorder %s159, 0
      %s162 = sadd.s32 %s161, 1
      %s163 = scalar_select %p160, %s161, %s162
      %p166 = pneg %p160
      %p167 = scmp.eq.s32.totalorder %s15, 1
      %p168 = por %p166, %p167
      %p169 = scmp.ne.s32.totalorder %s161, %s164
      %p170 = scmp.eq.s32.totalorder %s15, 0
      %p171 = por %p169, %p170
      %p172 = scmp.ne.s32.totalorder %s161, %s164
      %p173 = scmp.eq.s32.totalorder %s20, 1
      %p174 = por %p172, %p173
      %p175 = scmp.ne.s32.totalorder %s164, %s165
      %p176 = scmp.eq.s32.totalorder %s20, 0
      %p177 = por %p175, %p176
      %p178 = scmp.ne.s32.totalorder %s164, %s165
      %p179 = scmp.eq.s32.totalorder %s21, 1
      %p180 = por %p178, %p179
      %p182 = scmp.ne.s32.totalorder %s165, %s181
      %p183 = scmp.eq.s32.totalorder %s21, 0
      %p184 = por %p182, %p183
      %p185 = scmp.le.s32.totalorder 1, %s15
      %p186 = scmp.lt.s32.totalorder %s15, 3
      %p187 = pnand %p185, %p186
      %p188 = pneg %p187
      // Predicated region
      $region9: #{cnn_forward.2} parent=5 // pred_check
        _
      $region10: #{cnn_forward.2} parent=5 // pred_check_branch
        %190 = sbr.rel (%p187) target = $region12
      $region11: #{cnn_forward.2} parent=5 // pred_region
        %s191 = ssub.s32 %s15, 1
        // Predicated region
        $region13: #{cnn_forward.2} parent=11 // pred_check
          %p192 = pneg %p88
        $region14: #{cnn_forward.2} parent=11 // pred_check_branch
          %194 = sbr.rel (%p192) target = $region16
        $region15: #{cnn_forward.2} parent=11 // pred_region
          %s196 = ssub.s32 67200, 67200
          %197 = vsyncadd [#allocation3], %s196
          %s198 = sshll.u32 [#allocation2], 4
          %s199 = int_to_ptr.vmem [resolvable:$true] %s198
          %204 = dma.hbm_to_vmem [thread:$0]  %s2, 67200, %s199, [#allocation3], 384, 384, 24
        $region16: #{cnn_forward.2} parent=11 // pred_fallthru
          _
        // Predicated region
        $region17: #{cnn_forward.2} parent=11 // pred_check
          %p205 = pneg %p109
        $region18: #{cnn_forward.2} parent=11 // pred_check_branch
          %207 = sbr.rel (%p205) target = $region20
        $region19: #{cnn_forward.2} parent=11 // pred_region
          %s209 = ssub.s32 48, 48
          %210 = vsyncadd [#allocation5], %s209
          %s212 = sshll.u32 [#allocation4], 4
          %s213 = int_to_ptr.vmem [resolvable:$true] %s212
          %215 = dma.hbm_to_vmem [thread:$0]  %s3, 48, %s213, [#allocation5]
        $region20: #{cnn_forward.2} parent=11 // pred_fallthru
          _
        // Predicated region
        $region21: #{cnn_forward.2} parent=11 // pred_check
          %p216 = pneg %p130
        $region22: #{cnn_forward.2} parent=11 // pred_check_branch
          %218 = sbr.rel (%p216) target = $region24
        $region23: #{cnn_forward.2} parent=11 // pred_region
          %s220 = ssub.s32 61440, 61440
          %221 = vsyncadd [#allocation5], %s220
          %s222 = sshll.u32 [#allocation6], 4
          %s223 = int_to_ptr.vmem [resolvable:$true] %s222
          %228 = dma.hbm_to_vmem [thread:$0]  %s4, 61440, %s223, [#allocation5], 256, 256, 16
        $region24: #{cnn_forward.2} parent=11 // pred_fallthru
          _
        // Predicated region
        $region25: #{cnn_forward.2} parent=11 // pred_check
          %p229 = pneg %p151
        $region26: #{cnn_forward.2} parent=11 // pred_check_branch
          %231 = sbr.rel (%p229) target = $region28
        $region27: #{cnn_forward.2} parent=11 // pred_region
          %s233 = ssub.s32 64, 64
          %234 = vsyncadd [#allocation8], %s233
          %s236 = sshll.u32 [#allocation7], 4
          %s237 = int_to_ptr.vmem [resolvable:$true] %s236
          %239 = dma.hbm_to_vmem [thread:$0]  %s5, 64, %s237, [#allocation8]
        $region28: #{cnn_forward.2} parent=11 // pred_fallthru
          _
      $region12: #{cnn_forward.2} parent=5 // pred_fallthru
        _
      %p240 = scmp.lt.s32.totalorder %s15, 2
      // Predicated region
      $region29: #{cnn_forward.2} parent=5 // pred_check
        %p241 = pneg %p240
      $region30: #{cnn_forward.2} parent=5 // pred_check_branch
        %243 = sbr.rel (%p241) target = $region32
      $region31: #{cnn_forward.2} parent=5 // pred_region
        // Predicated region
        $region33: #{cnn_forward.2} parent=31 // pred_check
          %p244 = pneg %p35
        $region34: #{cnn_forward.2} parent=31 // pred_check_branch
          %246 = sbr.rel (%p244) target = $region36
        $region35: #{cnn_forward.2} parent=31 // pred_region
          %p247 = scmp.lt.s32.totalorder %s15, 1
          %s248 = scalar_select %p247, %s15, 1
          %s249 = smul.addr %s248, 6
          %s250 = smul.addr %s249, 4
          %s251 = scalar_lea.vmem %s0, %s250
        $region36: #{cnn_forward.2} parent=31 // pred_fallthru
          _
        // Predicated region
        $region37: #{cnn_forward.2} parent=31 // pred_check
          %p252 = pneg %p61
        $region38: #{cnn_forward.2} parent=31 // pred_check_branch
          %254 = sbr.rel (%p252) target = $region40
        $region39: #{cnn_forward.2} parent=31 // pred_region
          %p255 = scmp.lt.s32.totalorder %s15, 1
          %s256 = scalar_select %p255, %s15, 1
          %s257 = smul.addr %s256, 6
          %s258 = smul.addr %s257, 4
          %s259 = scalar_lea.vmem %s1, %s258
        $region40: #{cnn_forward.2} parent=31 // pred_fallthru
          _
      $region32: #{cnn_forward.2} parent=5 // pred_fallthru
        _
      %p260 = scmp.le.s32.totalorder 1, %s15
      %p261 = scmp.lt.s32.totalorder %s15, 3
      %p262 = pnand %p260, %p261
      %p263 = pneg %p262
      // Predicated region
      $region41: #{cnn_forward.2} parent=5 // pred_check
        _
      $region42: #{cnn_forward.2} parent=5 // pred_check_branch
        %265 = sbr.rel (%p262) target = $region44
      $region43: #{cnn_forward.2} parent=5 // pred_region
        %s266 = ssub.s32 %s15, 1
        // Predicated region
        $region45: #{cnn_forward.2} parent=43 // pred_check
          %p267 = pneg %p88
        $region46: #{cnn_forward.2} parent=43 // pred_check_branch
          %269 = sbr.rel (%p267) target = $region48
        $region47: #{cnn_forward.2} parent=43 // pred_region
          %270 = dma.done [#allocation3], 67200
        $region48: #{cnn_forward.2} parent=43 // pred_fallthru
          _
        // Predicated region
        $region49: #{cnn_forward.2} parent=43 // pred_check
          %p271 = pneg %p109
        $region50: #{cnn_forward.2} parent=43 // pred_check_branch
          %273 = sbr.rel (%p271) target = $region52
        $region51: #{cnn_forward.2} parent=43 // pred_region
          %274 = dma.done [#allocation5], 48
        $region52: #{cnn_forward.2} parent=43 // pred_fallthru
          _
        // Predicated region
        $region53: #{cnn_forward.2} parent=43 // pred_check
          %p275 = pneg %p130
        $region54: #{cnn_forward.2} parent=43 // pred_check_branch
          %277 = sbr.rel (%p275) target = $region56
        $region55: #{cnn_forward.2} parent=43 // pred_region
          %278 = dma.done [#allocation5], 61440
        $region56: #{cnn_forward.2} parent=43 // pred_fallthru
          _
        // Predicated region
        $region57: #{cnn_forward.2} parent=43 // pred_check
          %p279 = pneg %p151
        $region58: #{cnn_forward.2} parent=43 // pred_check_branch
          %281 = sbr.rel (%p279) target = $region60
        $region59: #{cnn_forward.2} parent=43 // pred_region
          %282 = dma.done [#allocation8], 64
        $region60: #{cnn_forward.2} parent=43 // pred_fallthru
          _
        %p283 = scmp.lt.s32.totalorder %s20, 1
        %s284 = scalar_select %p283, %s20, 1
        %s285 = smul.addr %s284, 6
        %s286 = smul.addr %s285, 4
        %s287 = scalar_lea.vmem %s0, %s286
        %p288 = pneg %p41
        %p289 = pneg %p38
        %p290 = scmp.lt.s32.totalorder %s20, 1
        %s291 = scalar_select %p290, %s20, 1
        %s292 = smul.addr %s291, 6
        %s293 = smul.addr %s292, 4
        %s294 = scalar_lea.vmem %s1, %s293
        %p295 = pneg %p67
        %p296 = pneg %p64
        %p297 = pneg %p88
        %p298 = pneg %p85
        %p299 = pneg %p109
        %p300 = pneg %p106
        %p301 = pneg %p130
        %p302 = pneg %p127
        %p303 = pneg %p151
        %p304 = pneg %p148
        %p305 = pneg %p177
        %p306 = pneg %p174
        %p307 = scmp.lt.s32.totalorder %s20, 1
        %s308 = scalar_select %p307, %s20, 1
        %s309 = smul.addr %s308, 4
        %s310 = smul.addr %s309, 4
        %s311 = scalar_lea.vmem %s6, %s310
        %p312 = scmp.lt.s32.totalorder %s20, 1
        %s313 = scalar_select %p312, %s20, 1
        %s314 = smul.addr %s313, 6
        %s315 = smul.addr %s314, 4
        %s316 = scalar_lea.vmem %s0, %s315
        %p317 = scmp.lt.s32.totalorder %s20, 1
        %s318 = scalar_select %p317, %s20, 1
        %s319 = smul.addr %s318, 6
        %s320 = smul.addr %s319, 4
        %s321 = scalar_lea.vmem %s1, %s320
        %p322 = scmp.lt.s32.totalorder %s20, 1
        %s323 = scalar_select %p322, %s20, 1
        %s324 = smul.addr %s323, 4
        %s325 = smul.addr %s324, 4
        %s326 = scalar_lea.vmem %s6, %s325
        %v328 = vld [vmem:[%s316] sm:$0xff]
        %v329 = vld [vmem:[%s316 + $0x8] sm:$0xf]
        %v330 = vld [vmem:[%s316 + $0xc] sm:$0x77]
        %v331 = vld [vmem:[%s316 + $0x14] sm:$0x7]
        %v332 = vld [vmem:[%s321] sm:$0xff]
        %v333 = vld [vmem:[%s321 + $0x8] sm:$0xf]
        %v334 = vld [vmem:[%s321 + $0xc] sm:$0x77]
        %v335 = vld [vmem:[%s321 + $0x14] sm:$0x7]
        %v336 = vld [vmem:[#allocation2] sm:$0xff]
        %v337 = vld [vmem:[#allocation2 + $0x8] sm:$0xff]
        %v338 = vld [vmem:[#allocation2 + $0x10] sm:$0xff]
        %v339 = vld [vmem:[#allocation2 + $0x18] sm:$0xff]
        %v340 = vld [vmem:[#allocation2 + $0x20] sm:$0xff]
        %v341 = vld [vmem:[#allocation2 + $0x28] sm:$0xff]
        %v342 = vld [vmem:[#allocation2 + $0x30] sm:$0xff]
        %v343 = vld [vmem:[#allocation2 + $0x38] sm:$0xff]
        %v344 = vld [vmem:[#allocation2 + $0x40] sm:$0xff]
        %v345 = vld [vmem:[#allocation2 + $0x48] sm:$0xff]
        %v346 = vld [vmem:[#allocation2 + $0x50] sm:$0xff]
        %v347 = vld [vmem:[#allocation2 + $0x58] sm:$0xff]
        %v348 = vld [vmem:[#allocation2 + $0x60] sm:$0xff]
        %v349 = vld [vmem:[#allocation2 + $0x68] sm:$0xff]
        %v350 = vld [vmem:[#allocation2 + $0x70] sm:$0xff]
        %v351 = vld [vmem:[#allocation2 + $0x78] sm:$0xff]
        %v352 = vld [vmem:[#allocation2 + $0x80] sm:$0xff]
        %v353 = vld [vmem:[#allocation2 + $0x88] sm:$0xff]
        %v354 = vld [vmem:[#allocation2 + $0x90] sm:$0xff]
        %v355 = vld [vmem:[#allocation2 + $0x98] sm:$0xff]
        %v356 = vld [vmem:[#allocation2 + $0xa0] sm:$0xff]
        %v357 = vld [vmem:[#allocation2 + $0xa8] sm:$0xff]
        %v358 = vld [vmem:[#allocation2 + $0xb0] sm:$0xff]
        %v359 = vld [vmem:[#allocation2 + $0xb8] sm:$0xff]
        %v360 = vld [vmem:[#allocation2 + $0xc0] sm:$0xff]
        %v361 = vld [vmem:[#allocation2 + $0xc8] sm:$0xff]
        %v362 = vld [vmem:[#allocation2 + $0xd0] sm:$0xff]
        %v363 = vld [vmem:[#allocation2 + $0xd8] sm:$0xff]
        %v364 = vld [vmem:[#allocation2 + $0xe0] sm:$0xff]
        %v365 = vld [vmem:[#allocation2 + $0xe8] sm:$0xff]
        %v366 = vld [vmem:[#allocation2 + $0xf0] sm:$0xff]
        %v367 = vld [vmem:[#allocation2 + $0xf8] sm:$0xff]
        %v368 = vld [vmem:[#allocation2 + $0x100] sm:$0xff]
        %v369 = vld [vmem:[#allocation2 + $0x108] sm:$0xff]
        %v370 = vld [vmem:[#allocation2 + $0x110] sm:$0xff]
        %v371 = vld [vmem:[#allocation2 + $0x118] sm:$0xff]
        %v372 = vld [vmem:[#allocation2 + $0x120] sm:$0xff]
        %v373 = vld [vmem:[#allocation2 + $0x128] sm:$0xff]
        %v374 = vld [vmem:[#allocation2 + $0x130] sm:$0xff]
        %v375 = vld [vmem:[#allocation2 + $0x138] sm:$0xff]
        %v376 = vld [vmem:[#allocation2 + $0x140] sm:$0xff]
        %v377 = vld [vmem:[#allocation2 + $0x148] sm:$0xff]
        %v378 = vld [vmem:[#allocation2 + $0x150] sm:$0xff]
        %v379 = vld [vmem:[#allocation2 + $0x158] sm:$0xff]
        %v380 = vld [vmem:[#allocation2 + $0x160] sm:$0xff]
        %v381 = vld [vmem:[#allocation2 + $0x168] sm:$0xff]
        %v382 = vld [vmem:[#allocation2 + $0x170] sm:$0xff]
        %v383 = vld [vmem:[#allocation2 + $0x178] sm:$0xff]
        %v384 = vld [vmem:[#allocation2 + $0x180] sm:$0xff]
        %v385 = vld [vmem:[#allocation2 + $0x188] sm:$0xff]
        %v386 = vld [vmem:[#allocation2 + $0x190] sm:$0xff]
        %v387 = vld [vmem:[#allocation2 + $0x198] sm:$0xff]
        %v388 = vld [vmem:[#allocation2 + $0x1a0] sm:$0xff]
        %v389 = vld [vmem:[#allocation2 + $0x1a8] sm:$0xff]
        %v390 = vld [vmem:[#allocation2 + $0x1b0] sm:$0xff]
        %v391 = vld [vmem:[#allocation2 + $0x1b8] sm:$0xff]
        %v392 = vld [vmem:[#allocation2 + $0x1c0] sm:$0xff]
        %v393 = vld [vmem:[#allocation2 + $0x1c8] sm:$0xff]
        %v394 = vld [vmem:[#allocation2 + $0x1d0] sm:$0xff]
        %v395 = vld [vmem:[#allocation2 + $0x1d8] sm:$0xff]
        %v396 = vld [vmem:[#allocation2 + $0x1e0] sm:$0xff]
        %v397 = vld [vmem:[#allocation2 + $0x1e8] sm:$0xff]
        %v398 = vld [vmem:[#allocation2 + $0x1f0] sm:$0xff]
        %v399 = vld [vmem:[#allocation2 + $0x1f8] sm:$0xff]
        %v400 = vld [vmem:[#allocation2 + $0x200] sm:$0xff]
        %v401 = vld [vmem:[#allocation2 + $0x208] sm:$0xff]
        %v402 = vld [vmem:[#allocation2 + $0x210] sm:$0xff]
        %v403 = vld [vmem:[#allocation2 + $0x218] sm:$0xff]
        %v404 = vld [vmem:[#allocation2 + $0x220] sm:$0xff]
        %v405 = vld [vmem:[#allocation2 + $0x228] sm:$0xff]
        %v406 = vld [vmem:[#allocation2 + $0x230] sm:$0xff]
        %v407 = vld [vmem:[#allocation2 + $0x238] sm:$0xff]
        %v408 = vld [vmem:[#allocation2 + $0x240] sm:$0xff]
        %v409 = vld [vmem:[#allocation2 + $0x248] sm:$0xff]
        %v410 = vld [vmem:[#allocation2 + $0x250] sm:$0xff]
        %v411 = vld [vmem:[#allocation2 + $0x258] sm:$0xff]
        %v412 = vld [vmem:[#allocation2 + $0x260] sm:$0xff]
        %v413 = vld [vmem:[#allocation2 + $0x268] sm:$0xff]
        %v414 = vld [vmem:[#allocation2 + $0x270] sm:$0xff]
        %v415 = vld [vmem:[#allocation2 + $0x278] sm:$0xff]
        %v416 = vld [vmem:[#allocation2 + $0x280] sm:$0xff]
        %v417 = vld [vmem:[#allocation2 + $0x288] sm:$0xff]
        %v418 = vld [vmem:[#allocation2 + $0x290] sm:$0xff]
        %v419 = vld [vmem:[#allocation2 + $0x298] sm:$0xff]
        %v420 = vld [vmem:[#allocation2 + $0x2a0] sm:$0xff]
        %v421 = vld [vmem:[#allocation2 + $0x2a8] sm:$0xff]
        %v422 = vld [vmem:[#allocation2 + $0x2b0] sm:$0xff]
        %v423 = vld [vmem:[#allocation2 + $0x2b8] sm:$0xff]
        %v424 = vld [vmem:[#allocation2 + $0x2c0] sm:$0xff]
        %v425 = vld [vmem:[#allocation2 + $0x2c8] sm:$0xff]
        %v426 = vld [vmem:[#allocation2 + $0x2d0] sm:$0xff]
        %v427 = vld [vmem:[#allocation2 + $0x2d8] sm:$0xff]
        %v428 = vld [vmem:[#allocation2 + $0x2e0] sm:$0xff]
        %v429 = vld [vmem:[#allocation2 + $0x2e8] sm:$0xff]
        %v430 = vld [vmem:[#allocation2 + $0x2f0] sm:$0xff]
        %v431 = vld [vmem:[#allocation2 + $0x2f8] sm:$0xff]
        %v432 = vld [vmem:[#allocation2 + $0x300] sm:$0xff]
        %v433 = vld [vmem:[#allocation2 + $0x308] sm:$0xff]
        %v434 = vld [vmem:[#allocation2 + $0x310] sm:$0xff]
        %v435 = vld [vmem:[#allocation2 + $0x318] sm:$0xff]
        %v436 = vld [vmem:[#allocation2 + $0x320] sm:$0xff]
        %v437 = vld [vmem:[#allocation2 + $0x328] sm:$0xff]
        %v438 = vld [vmem:[#allocation2 + $0x330] sm:$0xff]
        %v439 = vld [vmem:[#allocation2 + $0x338] sm:$0xff]
        %v440 = vld [vmem:[#allocation2 + $0x340] sm:$0xff]
        %s441 = scalar_lea.vmem [#allocation2], 840
        %v442 = vld [vmem:[%s441] sm:$0xff]
        %v443 = vld [vmem:[%s441 + $0x8] sm:$0xff]
        %v444 = vld [vmem:[%s441 + $0x10] sm:$0xff]
        %v445 = vld [vmem:[%s441 + $0x18] sm:$0xff]
        %v446 = vld [vmem:[%s441 + $0x20] sm:$0xff]
        %v447 = vld [vmem:[%s441 + $0x28] sm:$0xff]
        %v448 = vld [vmem:[%s441 + $0x30] sm:$0xff]
        %v449 = vld [vmem:[%s441 + $0x38] sm:$0xff]
        %v450 = vld [vmem:[%s441 + $0x40] sm:$0xff]
        %v451 = vld [vmem:[%s441 + $0x48] sm:$0xff]
        %v452 = vld [vmem:[%s441 + $0x50] sm:$0xff]
        %v453 = vld [vmem:[%s441 + $0x58] sm:$0xff]
        %v454 = vld [vmem:[%s441 + $0x60] sm:$0xff]
        %v455 = vld [vmem:[%s441 + $0x68] sm:$0xff]
        %v456 = vld [vmem:[%s441 + $0x70] sm:$0xff]
        %v457 = vld [vmem:[%s441 + $0x78] sm:$0xff]
        %v458 = vld [vmem:[%s441 + $0x80] sm:$0xff]
        %v459 = vld [vmem:[%s441 + $0x88] sm:$0xff]
        %v460 = vld [vmem:[%s441 + $0x90] sm:$0xff]
        %v461 = vld [vmem:[%s441 + $0x98] sm:$0xff]
        %v462 = vld [vmem:[%s441 + $0xa0] sm:$0xff]
        %v463 = vld [vmem:[%s441 + $0xa8] sm:$0xff]
        %v464 = vld [vmem:[%s441 + $0xb0] sm:$0xff]
        %v465 = vld [vmem:[%s441 + $0xb8] sm:$0xff]
        %v466 = vld [vmem:[%s441 + $0xc0] sm:$0xff]
        %v467 = vld [vmem:[%s441 + $0xc8] sm:$0xff]
        %v468 = vld [vmem:[%s441 + $0xd0] sm:$0xff]
        %v469 = vld [vmem:[%s441 + $0xd8] sm:$0xff]
        %v470 = vld [vmem:[%s441 + $0xe0] sm:$0xff]
        %v471 = vld [vmem:[%s441 + $0xe8] sm:$0xff]
        %v472 = vld [vmem:[%s441 + $0xf0] sm:$0xff]
        %v473 = vld [vmem:[%s441 + $0xf8] sm:$0xff]
        %v474 = vld [vmem:[%s441 + $0x100] sm:$0xff]
        %v475 = vld [vmem:[%s441 + $0x108] sm:$0xff]
        %v476 = vld [vmem:[%s441 + $0x110] sm:$0xff]
        %v477 = vld [vmem:[%s441 + $0x118] sm:$0xff]
        %v478 = vld [vmem:[%s441 + $0x120] sm:$0xff]
        %v479 = vld [vmem:[%s441 + $0x128] sm:$0xff]
        %v480 = vld [vmem:[%s441 + $0x130] sm:$0xff]
        %v481 = vld [vmem:[%s441 + $0x138] sm:$0xff]
        %v482 = vld [vmem:[%s441 + $0x140] sm:$0xff]
        %v483 = vld [vmem:[%s441 + $0x148] sm:$0xff]
        %v484 = vld [vmem:[%s441 + $0x150] sm:$0xff]
        %v485 = vld [vmem:[%s441 + $0x158] sm:$0xff]
        %v486 = vld [vmem:[%s441 + $0x160] sm:$0xff]
        %v487 = vld [vmem:[%s441 + $0x168] sm:$0xff]
        %v488 = vld [vmem:[%s441 + $0x170] sm:$0xff]
        %v489 = vld [vmem:[%s441 + $0x178] sm:$0xff]
        %v490 = vld [vmem:[%s441 + $0x180] sm:$0xff]
        %v491 = vld [vmem:[%s441 + $0x188] sm:$0xff]
        %v492 = vld [vmem:[%s441 + $0x190] sm:$0xff]
        %v493 = vld [vmem:[%s441 + $0x198] sm:$0xff]
        %v494 = vld [vmem:[%s441 + $0x1a0] sm:$0xff]
        %v495 = vld [vmem:[%s441 + $0x1a8] sm:$0xff]
        %v496 = vld [vmem:[%s441 + $0x1b0] sm:$0xff]
        %v497 = vld [vmem:[%s441 + $0x1b8] sm:$0xff]
        %v498 = vld [vmem:[%s441 + $0x1c0] sm:$0xff]
        %v499 = vld [vmem:[%s441 + $0x1c8] sm:$0xff]
        %v500 = vld [vmem:[%s441 + $0x1d0] sm:$0xff]
        %v501 = vld [vmem:[%s441 + $0x1d8] sm:$0xff]
        %v502 = vld [vmem:[%s441 + $0x1e0] sm:$0xff]
        %v503 = vld [vmem:[%s441 + $0x1e8] sm:$0xff]
        %v504 = vld [vmem:[%s441 + $0x1f0] sm:$0xff]
        %v505 = vld [vmem:[%s441 + $0x1f8] sm:$0xff]
        %v506 = vld [vmem:[%s441 + $0x200] sm:$0xff]
        %v507 = vld [vmem:[%s441 + $0x208] sm:$0xff]
        %v508 = vld [vmem:[%s441 + $0x210] sm:$0xff]
        %v509 = vld [vmem:[%s441 + $0x218] sm:$0xff]
        %v510 = vld [vmem:[%s441 + $0x220] sm:$0xff]
        %v511 = vld [vmem:[%s441 + $0x228] sm:$0xff]
        %v512 = vld [vmem:[%s441 + $0x230] sm:$0xff]
        %v513 = vld [vmem:[%s441 + $0x238] sm:$0xff]
        %v514 = vld [vmem:[%s441 + $0x240] sm:$0xff]
        %v515 = vld [vmem:[%s441 + $0x248] sm:$0xff]
        %v516 = vld [vmem:[%s441 + $0x250] sm:$0xff]
        %v517 = vld [vmem:[%s441 + $0x258] sm:$0xff]
        %v518 = vld [vmem:[%s441 + $0x260] sm:$0xff]
        %v519 = vld [vmem:[%s441 + $0x268] sm:$0xff]
        %v520 = vld [vmem:[%s441 + $0x270] sm:$0xff]
        %v521 = vld [vmem:[%s441 + $0x278] sm:$0xff]
        %v522 = vld [vmem:[%s441 + $0x280] sm:$0xff]
        %v523 = vld [vmem:[%s441 + $0x288] sm:$0xff]
        %v524 = vld [vmem:[%s441 + $0x290] sm:$0xff]
        %v525 = vld [vmem:[%s441 + $0x298] sm:$0xff]
        %v526 = vld [vmem:[%s441 + $0x2a0] sm:$0xff]
        %v527 = vld [vmem:[%s441 + $0x2a8] sm:$0xff]
        %v528 = vld [vmem:[%s441 + $0x2b0] sm:$0xff]
        %v529 = vld [vmem:[%s441 + $0x2b8] sm:$0xff]
        %v530 = vld [vmem:[%s441 + $0x2c0] sm:$0xff]
        %v531 = vld [vmem:[%s441 + $0x2c8] sm:$0xff]
        %v532 = vld [vmem:[%s441 + $0x2d0] sm:$0xff]
        %v533 = vld [vmem:[%s441 + $0x2d8] sm:$0xff]
        %v534 = vld [vmem:[%s441 + $0x2e0] sm:$0xff]
        %v535 = vld [vmem:[%s441 + $0x2e8] sm:$0xff]
        %v536 = vld [vmem:[%s441 + $0x2f0] sm:$0xff]
        %v537 = vld [vmem:[%s441 + $0x2f8] sm:$0xff]
        %v538 = vld [vmem:[%s441 + $0x300] sm:$0xff]
        %v539 = vld [vmem:[%s441 + $0x308] sm:$0xff]
        %v540 = vld [vmem:[%s441 + $0x310] sm:$0xff]
        %v541 = vld [vmem:[%s441 + $0x318] sm:$0xff]
        %v542 = vld [vmem:[%s441 + $0x320] sm:$0xff]
        %v543 = vld [vmem:[%s441 + $0x328] sm:$0xff]
        %v544 = vld [vmem:[%s441 + $0x330] sm:$0xff]
        %v545 = vld [vmem:[%s441 + $0x338] sm:$0xff]
        %v546 = vld [vmem:[%s441 + $0x340] sm:$0xff]
        %v551 = vunpack.c.l.b16 %v332
        %v552 = vunpack.c.h.b16 %v332
        %v553 = vunpack.c.l.b16 %v333
        %v554 = vunpack.c.l.b16 %v334
        %v555 = vunpack.c.h.b16 %v334
        %v556 = vunpack.c.l.b16 %v335
        %v557 = vpack.c.b16 %v554, %v551
        %v558 = vpack.c.b16 %v555, %v552
        %v559 = vpack.c.b16 %v556, %v553
        %v667 = vunpack.c.l.b16 %v442
        %v668 = vunpack.c.h.b16 %v442
        %v669 = vunpack.c.l.b16 %v443
        %v670 = vunpack.c.h.b16 %v443
        %v671 = vunpack.c.l.b16 %v444
        %v672 = vunpack.c.h.b16 %v444
        %v673 = vunpack.c.l.b16 %v445
        %v674 = vunpack.c.h.b16 %v445
        %v675 = vunpack.c.l.b16 %v446
        %v676 = vunpack.c.h.b16 %v446
        %v677 = vunpack.c.l.b16 %v447
        %v678 = vunpack.c.h.b16 %v447
        %v679 = vunpack.c.l.b16 %v448
        %v680 = vunpack.c.h.b16 %v448
        %v681 = vunpack.c.l.b16 %v449
        %v682 = vunpack.c.h.b16 %v449
        %v683 = vunpack.c.l.b16 %v450
        %v684 = vunpack.c.h.b16 %v450
        %v685 = vunpack.c.l.b16 %v451
        %v686 = vunpack.c.h.b16 %v451
        %v687 = vunpack.c.l.b16 %v452
        %v688 = vunpack.c.h.b16 %v452
        %v689 = vunpack.c.l.b16 %v453
        %v690 = vunpack.c.h.b16 %v453
        %v691 = vunpack.c.l.b16 %v454
        %v692 = vunpack.c.h.b16 %v454
        %v693 = vunpack.c.l.b16 %v455
        %v694 = vunpack.c.h.b16 %v455
        %v695 = vunpack.c.l.b16 %v456
        %v696 = vunpack.c.h.b16 %v456
        %v697 = vunpack.c.l.b16 %v457
        %v698 = vunpack.c.h.b16 %v457
        %v699 = vunpack.c.l.b16 %v458
        %v700 = vunpack.c.h.b16 %v458
        %v701 = vunpack.c.l.b16 %v459
        %v702 = vunpack.c.h.b16 %v459
        %v703 = vunpack.c.l.b16 %v460
        %v704 = vunpack.c.h.b16 %v460
        %v705 = vunpack.c.l.b16 %v461
        %v706 = vunpack.c.h.b16 %v461
        %v707 = vunpack.c.l.b16 %v462
        %v708 = vunpack.c.h.b16 %v462
        %v709 = vunpack.c.l.b16 %v463
        %v710 = vunpack.c.h.b16 %v463
        %v711 = vunpack.c.l.b16 %v464
        %v712 = vunpack.c.h.b16 %v464
        %v713 = vunpack.c.l.b16 %v465
        %v714 = vunpack.c.h.b16 %v465
        %v715 = vunpack.c.l.b16 %v466
        %v716 = vunpack.c.h.b16 %v466
        %v717 = vunpack.c.l.b16 %v467
        %v718 = vunpack.c.h.b16 %v467
        %v719 = vunpack.c.l.b16 %v468
        %v720 = vunpack.c.h.b16 %v468
        %v721 = vunpack.c.l.b16 %v469
        %v722 = vunpack.c.h.b16 %v469
        %v723 = vunpack.c.l.b16 %v470
        %v724 = vunpack.c.h.b16 %v470
        %v725 = vunpack.c.l.b16 %v471
        %v726 = vunpack.c.h.b16 %v471
        %v727 = vunpack.c.l.b16 %v472
        %v728 = vunpack.c.h.b16 %v472
        %v729 = vunpack.c.l.b16 %v473
        %v730 = vunpack.c.h.b16 %v473
        %v731 = vunpack.c.l.b16 %v474
        %v732 = vunpack.c.h.b16 %v474
        %v733 = vunpack.c.l.b16 %v475
        %v734 = vunpack.c.h.b16 %v475
        %v735 = vunpack.c.l.b16 %v476
        %v736 = vunpack.c.h.b16 %v476
        %v737 = vunpack.c.l.b16 %v477
        %v738 = vunpack.c.h.b16 %v477
        %v739 = vunpack.c.l.b16 %v478
        %v740 = vunpack.c.h.b16 %v478
        %v741 = vunpack.c.l.b16 %v479
        %v742 = vunpack.c.h.b16 %v479
        %v743 = vunpack.c.l.b16 %v480
        %v744 = vunpack.c.h.b16 %v480
        %v745 = vunpack.c.l.b16 %v481
        %v746 = vunpack.c.h.b16 %v481
        %v747 = vunpack.c.l.b16 %v482
        %v748 = vunpack.c.h.b16 %v482
        %v749 = vunpack.c.l.b16 %v483
        %v750 = vunpack.c.h.b16 %v483
        %v751 = vunpack.c.l.b16 %v484
        %v752 = vunpack.c.h.b16 %v484
        %v753 = vunpack.c.l.b16 %v485
        %v754 = vunpack.c.h.b16 %v485
        %v755 = vunpack.c.l.b16 %v486
        %v756 = vunpack.c.h.b16 %v486
        %v757 = vunpack.c.l.b16 %v487
        %v758 = vunpack.c.h.b16 %v487
        %v759 = vunpack.c.l.b16 %v488
        %v760 = vunpack.c.h.b16 %v488
        %v761 = vunpack.c.l.b16 %v489
        %v762 = vunpack.c.h.b16 %v489
        %v763 = vunpack.c.l.b16 %v490
        %v764 = vunpack.c.h.b16 %v490
        %v765 = vunpack.c.l.b16 %v491
        %v766 = vunpack.c.h.b16 %v491
        %v767 = vunpack.c.l.b16 %v492
        %v768 = vunpack.c.h.b16 %v492
        %v769 = vunpack.c.l.b16 %v493
        %v770 = vunpack.c.h.b16 %v493
        %v771 = vunpack.c.l.b16 %v494
        %v772 = vunpack.c.h.b16 %v494
        %v773 = vunpack.c.l.b16 %v495
        %v774 = vunpack.c.h.b16 %v495
        %v775 = vunpack.c.l.b16 %v496
        %v776 = vunpack.c.h.b16 %v496
        %v777 = vunpack.c.l.b16 %v497
        %v778 = vunpack.c.h.b16 %v497
        %v779 = vunpack.c.l.b16 %v498
        %v780 = vunpack.c.h.b16 %v498
        %v781 = vunpack.c.l.b16 %v499
        %v782 = vunpack.c.h.b16 %v499
        %v783 = vunpack.c.l.b16 %v500
        %v784 = vunpack.c.h.b16 %v500
        %v785 = vunpack.c.l.b16 %v501
        %v786 = vunpack.c.h.b16 %v501
        %v787 = vunpack.c.l.b16 %v502
        %v788 = vunpack.c.h.b16 %v502
        %v789 = vunpack.c.l.b16 %v503
        %v790 = vunpack.c.h.b16 %v503
        %v791 = vunpack.c.l.b16 %v504
        %v792 = vunpack.c.h.b16 %v504
        %v793 = vunpack.c.l.b16 %v505
        %v794 = vunpack.c.h.b16 %v505
        %v795 = vunpack.c.l.b16 %v506
        %v796 = vunpack.c.h.b16 %v506
        %v797 = vunpack.c.l.b16 %v507
        %v798 = vunpack.c.h.b16 %v507
        %v799 = vunpack.c.l.b16 %v508
        %v800 = vunpack.c.h.b16 %v508
        %v801 = vunpack.c.l.b16 %v509
        %v802 = vunpack.c.h.b16 %v509
        %v803 = vunpack.c.l.b16 %v510
        %v804 = vunpack.c.h.b16 %v510
        %v805 = vunpack.c.l.b16 %v511
        %v806 = vunpack.c.h.b16 %v511
        %v807 = vunpack.c.l.b16 %v512
        %v808 = vunpack.c.h.b16 %v512
        %v809 = vunpack.c.l.b16 %v513
        %v810 = vunpack.c.h.b16 %v513
        %v811 = vunpack.c.l.b16 %v514
        %v812 = vunpack.c.h.b16 %v514
        %v813 = vunpack.c.l.b16 %v515
        %v814 = vunpack.c.h.b16 %v515
        %v815 = vunpack.c.l.b16 %v516
        %v816 = vunpack.c.h.b16 %v516
        %v817 = vunpack.c.l.b16 %v517
        %v818 = vunpack.c.h.b16 %v517
        %v819 = vunpack.c.l.b16 %v518
        %v820 = vunpack.c.h.b16 %v518
        %v821 = vunpack.c.l.b16 %v519
        %v822 = vunpack.c.h.b16 %v519
        %v823 = vunpack.c.l.b16 %v520
        %v824 = vunpack.c.h.b16 %v520
        %v825 = vunpack.c.l.b16 %v521
        %v826 = vunpack.c.h.b16 %v521
        %v827 = vunpack.c.l.b16 %v522
        %v828 = vunpack.c.h.b16 %v522
        %v829 = vunpack.c.l.b16 %v523
        %v830 = vunpack.c.h.b16 %v523
        %v831 = vunpack.c.l.b16 %v524
        %v832 = vunpack.c.h.b16 %v524
        %v833 = vunpack.c.l.b16 %v525
        %v834 = vunpack.c.h.b16 %v525
        %v835 = vunpack.c.l.b16 %v526
        %v836 = vunpack.c.h.b16 %v526
        %v837 = vunpack.c.l.b16 %v527
        %v838 = vunpack.c.h.b16 %v527
        %v839 = vunpack.c.l.b16 %v528
        %v840 = vunpack.c.h.b16 %v528
        %v841 = vunpack.c.l.b16 %v529
        %v842 = vunpack.c.h.b16 %v529
        %v843 = vunpack.c.l.b16 %v530
        %v844 = vunpack.c.h.b16 %v530
        %v845 = vunpack.c.l.b16 %v531
        %v846 = vunpack.c.h.b16 %v531
        %v847 = vunpack.c.l.b16 %v532
        %v848 = vunpack.c.h.b16 %v532
        %v849 = vunpack.c.l.b16 %v533
        %v850 = vunpack.c.h.b16 %v533
        %v851 = vunpack.c.l.b16 %v534
        %v852 = vunpack.c.h.b16 %v534
        %v853 = vunpack.c.l.b16 %v535
        %v854 = vunpack.c.h.b16 %v535
        %v855 = vunpack.c.l.b16 %v536
        %v856 = vunpack.c.h.b16 %v536
        %v857 = vunpack.c.l.b16 %v537
        %v858 = vunpack.c.h.b16 %v537
        %v859 = vunpack.c.l.b16 %v538
        %v860 = vunpack.c.h.b16 %v538
        %v861 = vunpack.c.l.b16 %v539
        %v862 = vunpack.c.h.b16 %v539
        %v863 = vunpack.c.l.b16 %v540
        %v864 = vunpack.c.h.b16 %v540
        %v865 = vunpack.c.l.b16 %v541
        %v866 = vunpack.c.h.b16 %v541
        %v867 = vunpack.c.l.b16 %v542
        %v868 = vunpack.c.h.b16 %v542
        %v869 = vunpack.c.l.b16 %v543
        %v870 = vunpack.c.h.b16 %v543
        %v871 = vunpack.c.l.b16 %v544
        %v872 = vunpack.c.h.b16 %v544
        %v873 = vunpack.c.l.b16 %v545
        %v874 = vunpack.c.h.b16 %v545
        %v875 = vunpack.c.l.b16 %v546
        %v876 = vunpack.c.h.b16 %v546
        %v877 = vpack.c.b16 %v673, %v667
        %v878 = vpack.c.b16 %v674, %v668
        %v879 = vpack.c.b16 %v675, %v669
        %v880 = vpack.c.b16 %v676, %v670
        %v881 = vpack.c.b16 %v677, %v671
        %v882 = vpack.c.b16 %v678, %v672
        %v883 = vpack.c.b16 %v685, %v679
        %v884 = vpack.c.b16 %v686, %v680
        %v885 = vpack.c.b16 %v687, %v681
        %v886 = vpack.c.b16 %v688, %v682
        %v887 = vpack.c.b16 %v689, %v683
        %v888 = vpack.c.b16 %v690, %v684
        %v889 = vpack.c.b16 %v697, %v691
        %v890 = vpack.c.b16 %v698, %v692
        %v891 = vpack.c.b16 %v699, %v693
        %v892 = vpack.c.b16 %v700, %v694
        %v893 = vpack.c.b16 %v701, %v695
        %v894 = vpack.c.b16 %v702, %v696
        %v895 = vpack.c.b16 %v709, %v703
        %v896 = vpack.c.b16 %v710, %v704
        %v897 = vpack.c.b16 %v711, %v705
        %v898 = vpack.c.b16 %v712, %v706
        %v899 = vpack.c.b16 %v713, %v707
        %v900 = vpack.c.b16 %v714, %v708
        %v901 = vpack.c.b16 %v721, %v715
        %v902 = vpack.c.b16 %v722, %v716
        %v903 = vpack.c.b16 %v723, %v717
        %v904 = vpack.c.b16 %v724, %v718
        %v905 = vpack.c.b16 %v725, %v719
        %v906 = vpack.c.b16 %v726, %v720
        %v907 = vpack.c.b16 %v733, %v727
        %v908 = vpack.c.b16 %v734, %v728
        %v909 = vpack.c.b16 %v735, %v729
        %v910 = vpack.c.b16 %v736, %v730
        %v911 = vpack.c.b16 %v737, %v731
        %v912 = vpack.c.b16 %v738, %v732
        %v913 = vpack.c.b16 %v745, %v739
        %v914 = vpack.c.b16 %v746, %v740
        %v915 = vpack.c.b16 %v747, %v741
        %v916 = vpack.c.b16 %v748, %v742
        %v917 = vpack.c.b16 %v749, %v743
        %v918 = vpack.c.b16 %v750, %v744
        %v919 = vpack.c.b16 %v757, %v751
        %v920 = vpack.c.b16 %v758, %v752
        %v921 = vpack.c.b16 %v759, %v753
        %v922 = vpack.c.b16 %v760, %v754
        %v923 = vpack.c.b16 %v761, %v755
        %v924 = vpack.c.b16 %v762, %v756
        %v925 = vpack.c.b16 %v769, %v763
        %v926 = vpack.c.b16 %v770, %v764
        %v927 = vpack.c.b16 %v771, %v765
        %v928 = vpack.c.b16 %v772, %v766
        %v929 = vpack.c.b16 %v773, %v767
        %v930 = vpack.c.b16 %v774, %v768
        %v931 = vpack.c.b16 %v781, %v775
        %v932 = vpack.c.b16 %v782, %v776
        %v933 = vpack.c.b16 %v783, %v777
        %v934 = vpack.c.b16 %v784, %v778
        %v935 = vpack.c.b16 %v785, %v779
        %v936 = vpack.c.b16 %v786, %v780
        %v937 = vpack.c.b16 %v793, %v787
        %v938 = vpack.c.b16 %v794, %v788
        %v939 = vpack.c.b16 %v795, %v789
        %v940 = vpack.c.b16 %v796, %v790
        %v941 = vpack.c.b16 %v797, %v791
        %v942 = vpack.c.b16 %v798, %v792
        %v943 = vpack.c.b16 %v805, %v799
        %v944 = vpack.c.b16 %v806, %v800
        %v945 = vpack.c.b16 %v807, %v801
        %v946 = vpack.c.b16 %v808, %v802
        %v947 = vpack.c.b16 %v809, %v803
        %v948 = vpack.c.b16 %v810, %v804
        %v949 = vpack.c.b16 %v817, %v811
        %v950 = vpack.c.b16 %v818, %v812
        %v951 = vpack.c.b16 %v819, %v813
        %v952 = vpack.c.b16 %v820, %v814
        %v953 = vpack.c.b16 %v821, %v815
        %v954 = vpack.c.b16 %v822, %v816
        %v955 = vpack.c.b16 %v829, %v823
        %v956 = vpack.c.b16 %v830, %v824
        %v957 = vpack.c.b16 %v831, %v825
        %v958 = vpack.c.b16 %v832, %v826
        %v959 = vpack.c.b16 %v833, %v827
        %v960 = vpack.c.b16 %v834, %v828
        %v961 = vpack.c.b16 %v841, %v835
        %v962 = vpack.c.b16 %v842, %v836
        %v963 = vpack.c.b16 %v843, %v837
        %v964 = vpack.c.b16 %v844, %v838
        %v965 = vpack.c.b16 %v845, %v839
        %v966 = vpack.c.b16 %v846, %v840
        %v967 = vpack.c.b16 %v853, %v847
        %v968 = vpack.c.b16 %v854, %v848
        %v969 = vpack.c.b16 %v855, %v849
        %v970 = vpack.c.b16 %v856, %v850
        %v971 = vpack.c.b16 %v857, %v851
        %v972 = vpack.c.b16 %v858, %v852
        %v973 = vpack.c.b16 %v865, %v859
        %v974 = vpack.c.b16 %v866, %v860
        %v975 = vpack.c.b16 %v867, %v861
        %v976 = vpack.c.b16 %v868, %v862
        %v977 = vpack.c.b16 %v869, %v863
        %v978 = vpack.c.b16 %v870, %v864
        %v979 = vpack.c.b16 %v871, %v871
        %v980 = vpack.c.b16 %v872, %v872
        %v981 = vpack.c.b16 %v873, %v873
        %v982 = vpack.c.b16 %v874, %v874
        %v983 = vpack.c.b16 %v875, %v875
        %v984 = vpack.c.b16 %v876, %v876
        %vm1087 = vcmask 195584
        %v1089 = vsel %vm1087, %v559, 0
        %vm1091 = vcmask 1043456
        %v1093 = vsel %vm1091, %v979, 0
        %v1096 = vsel %vm1091, %v980, 0
        %v1099 = vsel %vm1091, %v981, 0
        %v1102 = vsel %vm1091, %v982, 0
        %v1105 = vsel %vm1091, %v983, 0
        %v1108 = vsel %vm1091, %v984, 0
        %1110 = vmatprep.subr.bf16.mxu0 %v878
        %1111 = vmatpush1.bf16.msra.mxu0 %v877
        %1112 = vmatprep.subr.bf16.mxu0 %v884
        %1113 = vmatpush1.bf16.msra.mxu0 %v883
        %1114 = vmatprep.subr.bf16.mxu0 %v890
        %1115 = vmatpush1.bf16.msra.mxu0 %v889
        %1116 = vmatprep.subr.bf16.mxu0 %v896
        %1117 = vmatpush1.bf16.msra.mxu0 %v895
        %1118 = vmatprep.subr.bf16.mxu0 %v902
        %1119 = vmatpush1.bf16.msra.mxu0 %v901
        %1120 = vmatprep.subr.bf16.mxu0 %v908
        %1121 = vmatpush1.bf16.msra.mxu0 %v907
        %1122 = vmatprep.subr.bf16.mxu0 %v914
        %1123 = vmatpush1.bf16.msra.mxu0 %v913
        %1124 = vmatprep.subr.bf16.mxu0 %v920
        %1125 = vmatpush1.bf16.msra.mxu0 %v919
        %1126 = vmatprep.subr.bf16.mxu0 %v926
        %1127 = vmatpush1.bf16.msra.mxu0 %v925
        %1128 = vmatprep.subr.bf16.mxu0 %v932
        %1129 = vmatpush1.bf16.msra.mxu0 %v931
        %1130 = vmatprep.subr.bf16.mxu0 %v938
        %1131 = vmatpush1.bf16.msra.mxu0 %v937
        %1132 = vmatprep.subr.bf16.mxu0 %v944
        %1133 = vmatpush1.bf16.msra.mxu0 %v943
        %1134 = vmatprep.subr.bf16.mxu0 %v950
        %1135 = vmatpush1.bf16.msra.mxu0 %v949
        %1136 = vmatprep.subr.bf16.mxu0 %v956
        %1137 = vmatpush1.bf16.msra.mxu0 %v955
        %1138 = vmatprep.subr.bf16.mxu0 %v962
        %1139 = vmatpush1.bf16.msra.mxu0 %v961
        %1140 = vmatprep.subr.bf16.mxu0 %v968
        %1141 = vmatpush1.bf16.msra.mxu0 %v967
        %1142 = vmatprep.mubr.bf16.mxu0 %v558
        %1143 = vmatmul.mubr.bf16.gmra.mrb[0].mxu0 %v557
        %v1144 = vpop.f32.mrb[0].mxu0
        %v1145 = vadd.f32 0.0, %v1144
        %v1146 = vpop.f32.mrb[0].mxu0
        %v1147 = vadd.f32 0.0, %v1146
        %v1148 = vpop.f32.mrb[0].mxu0
        %v1149 = vadd.f32 0.0, %v1148
        %v1150 = vpop.f32.mrb[0].mxu0
        %v1151 = vadd.f32 0.0, %v1150
        %1152 = vdwg.mxu0
        %1153 = vmatprep.subr.bf16.mxu0 %v974
        %1154 = vmatpush1.bf16.msra.mxu0 %v973
        %1155 = vmatprep.subr.bf16.mxu0 %v1096
        %1156 = vmatpush1.bf16.msra.mxu0 %v1093
        %1157 = vmatprep.subr.bf16.mxu0 0
        %1158 = vmatpush1.bf16.msra.mxu0 0
        %1159 = vmatprep.subr.bf16.mxu0 0
        %1160 = vmatpush1.bf16.msra.mxu0 0
        %1161 = vmatprep.subr.bf16.mxu0 0
        %1162 = vmatpush1.bf16.msra.mxu0 0
        %1163 = vmatprep.subr.bf16.mxu0 0
        %1164 = vmatpush1.bf16.msra.mxu0 0
        %1165 = vmatprep.subr.bf16.mxu0 0
        %1166 = vmatpush1.bf16.msra.mxu0 0
        %1167 = vmatprep.subr.bf16.mxu0 0
        %1168 = vmatpush1.bf16.msra.mxu0 0
        %1169 = vmatprep.subr.bf16.mxu0 0
        %1170 = vmatpush1.bf16.msra.mxu0 0
        %1171 = vmatprep.subr.bf16.mxu0 0
        %1172 = vmatpush1.bf16.msra.mxu0 0
        %1173 = vmatprep.subr.bf16.mxu0 0
        %1174 = vmatpush1.bf16.msra.mxu0 0
        %1175 = vmatprep.subr.bf16.mxu0 0
        %1176 = vmatpush1.bf16.msra.mxu0 0
        %1177 = vmatprep.subr.bf16.mxu0 0
        %1178 = vmatpush1.bf16.msra.mxu0 0
        %1179 = vmatprep.subr.bf16.mxu0 0
        %1180 = vmatpush1.bf16.msra.mxu0 0
        %1181 = vmatprep.subr.bf16.mxu0 0
        %1182 = vmatpush1.bf16.msra.mxu0 0
        %1183 = vmatprep.subr.bf16.mxu0 0
        %1184 = vmatpush1.bf16.msra.mxu0 0
        %1185 = vmatprep.mubr.bf16.mxu0 0
        %1186 = vmatmul.mubr.bf16.gmra.mrb[0].mxu0 %v1089
        %v1187 = vpop.f32.mrb[0].mxu0
        %v1188 = vadd.f32 %v1145, %v1187
        %v1189 = vpop.f32.mrb[0].mxu0
        %v1190 = vadd.f32 %v1147, %v1189
        %v1191 = vpop.f32.mrb[0].mxu0
        %v1192 = vadd.f32 %v1149, %v1191
        %v1193 = vpop.f32.mrb[0].mxu0
        %v1194 = vadd.f32 %v1151, %v1193
        %1195 = vdwg.mxu0
        %1196 = vmatprep.subr.bf16.mxu0 %v880
        %1197 = vmatpush1.bf16.msra.mxu0 %v879
        %1198 = vmatprep.subr.bf16.mxu0 %v886
        %1199 = vmatpush1.bf16.msra.mxu0 %v885
        %1200 = vmatprep.subr.bf16.mxu0 %v892
        %1201 = vmatpush1.bf16.msra.mxu0 %v891
        %1202 = vmatprep.subr.bf16.mxu0 %v898
        %1203 = vmatpush1.bf16.msra.mxu0 %v897
        %1204 = vmatprep.subr.bf16.mxu0 %v904
        %1205 = vmatpush1.bf16.msra.mxu0 %v903
        %1206 = vmatprep.subr.bf16.mxu0 %v910
        %1207 = vmatpush1.bf16.msra.mxu0 %v909
        %1208 = vmatprep.subr.bf16.mxu0 %v916
        %1209 = vmatpush1.bf16.msra.mxu0 %v915
        %1210 = vmatprep.subr.bf16.mxu0 %v922
        %1211 = vmatpush1.bf16.msra.mxu0 %v921
        %1212 = vmatprep.subr.bf16.mxu0 %v928
        %1213 = vmatpush1.bf16.msra.mxu0 %v927
        %1214 = vmatprep.subr.bf16.mxu0 %v934
        %1215 = vmatpush1.bf16.msra.mxu0 %v933
        %1216 = vmatprep.subr.bf16.mxu0 %v940
        %1217 = vmatpush1.bf16.msra.mxu0 %v939
        %1218 = vmatprep.subr.bf16.mxu0 %v946
        %1219 = vmatpush1.bf16.msra.mxu0 %v945
        %1220 = vmatprep.subr.bf16.mxu0 %v952
        %1221 = vmatpush1.bf16.msra.mxu0 %v951
        %1222 = vmatprep.subr.bf16.mxu0 %v958
        %1223 = vmatpush1.bf16.msra.mxu0 %v957
        %1224 = vmatprep.subr.bf16.mxu0 %v964
        %1225 = vmatpush1.bf16.msra.mxu0 %v963
        %1226 = vmatprep.subr.bf16.mxu0 %v970
        %1227 = vmatpush1.bf16.msra.mxu0 %v969
        %1228 = vmatprep.mubr.bf16.mxu0 %v558
        %1229 = vmatmul.mubr.bf16.gmra.mrb[0].mxu0 %v557
        %v1230 = vpop.f32.mrb[0].mxu0
        %v1231 = vadd.f32 0.0, %v1230
        %v1232 = vpop.f32.mrb[0].mxu0
        %v1233 = vadd.f32 0.0, %v1232
        %v1234 = vpop.f32.mrb[0].mxu0
        %v1235 = vadd.f32 0.0, %v1234
        %v1236 = vpop.f32.mrb[0].mxu0
        %v1237 = vadd.f32 0.0, %v1236
        %1238 = vdwg.mxu0
        %1239 = vmatprep.subr.bf16.mxu0 %v976
        %1240 = vmatpush1.bf16.msra.mxu0 %v975
        %1241 = vmatprep.subr.bf16.mxu0 %v1102
        %1242 = vmatpush1.bf16.msra.mxu0 %v1099
        %1243 = vmatprep.subr.bf16.mxu0 0
        %1244 = vmatpush1.bf16.msra.mxu0 0
        %1245 = vmatprep.subr.bf16.mxu0 0
        %1246 = vmatpush1.bf16.msra.mxu0 0
        %1247 = vmatprep.subr.bf16.mxu0 0
        %1248 = vmatpush1.bf16.msra.mxu0 0
        %1249 = vmatprep.subr.bf16.mxu0 0
        %1250 = vmatpush1.bf16.msra.mxu0 0
        %1251 = vmatprep.subr.bf16.mxu0 0
        %1252 = vmatpush1.bf16.msra.mxu0 0
        %1253 = vmatprep.subr.bf16.mxu0 0
        %1254 = vmatpush1.bf16.msra.mxu0 0
        %1255 = vmatprep.subr.bf16.mxu0 0
        %1256 = vmatpush1.bf16.msra.mxu0 0
        %1257 = vmatprep.subr.bf16.mxu0 0
        %1258 = vmatpush1.bf16.msra.mxu0 0
        %1259 = vmatprep.subr.bf16.mxu0 0
        %1260 = vmatpush1.bf16.msra.mxu0 0
        %1261 = vmatprep.subr.bf16.mxu0 0
        %1262 = vmatpush1.bf16.msra.mxu0 0
        %1263 = vmatprep.subr.bf16.mxu0 0
        %1264 = vmatpush1.bf16.msra.mxu0 0
        %1265 = vmatprep.subr.bf16.mxu0 0
        %1266 = vmatpush1.bf16.msra.mxu0 0
        %1267 = vmatprep.subr.bf16.mxu0 0
        %1268 = vmatpush1.bf16.msra.mxu0 0
        %1269 = vmatprep.subr.bf16.mxu0 0
        %1270 = vmatpush1.bf16.msra.mxu0 0
        %1271 = vmatprep.mubr.bf16.mxu0 0
        %1272 = vmatmul.mubr.bf16.gmra.mrb[0].mxu0 %v1089
        %v1273 = vpop.f32.mrb[0].mxu0
        %v1274 = vadd.f32 %v1231, %v1273
        %v1275 = vpop.f32.mrb[0].mxu0
        %v1276 = vadd.f32 %v1233, %v1275
        %v1277 = vpop.f32.mrb[0].mxu0
        %v1278 = vadd.f32 %v1235, %v1277
        %v1279 = vpop.f32.mrb[0].mxu0
        %v1280 = vadd.f32 %v1237, %v1279
        %1281 = vdwg.mxu0
        %1282 = vmatprep.subr.bf16.mxu0 %v882
        %1283 = vmatpush1.bf16.msra.mxu0 %v881
        %1284 = vmatprep.subr.bf16.mxu0 %v888
        %1285 = vmatpush1.bf16.msra.mxu0 %v887
        %1286 = vmatprep.subr.bf16.mxu0 %v894
        %1287 = vmatpush1.bf16.msra.mxu0 %v893
        %1288 = vmatprep.subr.bf16.mxu0 %v900
        %1289 = vmatpush1.bf16.msra.mxu0 %v899
        %1290 = vmatprep.subr.bf16.mxu0 %v906
        %1291 = vmatpush1.bf16.msra.mxu0 %v905
        %1292 = vmatprep.subr.bf16.mxu0 %v912
        %1293 = vmatpush1.bf16.msra.mxu0 %v911
        %1294 = vmatprep.subr.bf16.mxu0 %v918
        %1295 = vmatpush1.bf16.msra.mxu0 %v917
        %1296 = vmatprep.subr.bf16.mxu0 %v924
        %1297 = vmatpush1.bf16.msra.mxu0 %v923
        %1298 = vmatprep.subr.bf16.mxu0 %v930
        %1299 = vmatpush1.bf16.msra.mxu0 %v929
        %1300 = vmatprep.subr.bf16.mxu0 %v936
        %1301 = vmatpush1.bf16.msra.mxu0 %v935
        %1302 = vmatprep.subr.bf16.mxu0 %v942
        %1303 = vmatpush1.bf16.msra.mxu0 %v941
        %1304 = vmatprep.subr.bf16.mxu0 %v948
        %1305 = vmatpush1.bf16.msra.mxu0 %v947
        %1306 = vmatprep.subr.bf16.mxu0 %v954
        %1307 = vmatpush1.bf16.msra.mxu0 %v953
        %1308 = vmatprep.subr.bf16.mxu0 %v960
        %1309 = vmatpush1.bf16.msra.mxu0 %v959
        %1310 = vmatprep.subr.bf16.mxu0 %v966
        %1311 = vmatpush1.bf16.msra.mxu0 %v965
        %1312 = vmatprep.subr.bf16.mxu0 %v972
        %1313 = vmatpush1.bf16.msra.mxu0 %v971
        %1314 = vmatprep.mubr.bf16.mxu0 %v558
        %1315 = vmatmul.mubr.bf16.gmra.mrb[0].mxu0 %v557
        %v1316 = vpop.f32.mrb[0].mxu0
        %v1317 = vadd.f32 0.0, %v1316
        %v1318 = vpop.f32.mrb[0].mxu0
        %v1319 = vadd.f32 0.0, %v1318
        %v1320 = vpop.f32.mrb[0].mxu0
        %v1321 = vadd.f32 0.0, %v1320
        %v1322 = vpop.f32.mrb[0].mxu0
        %v1323 = vadd.f32 0.0, %v1322
        %1324 = vdwg.mxu0
        %1325 = vmatprep.subr.bf16.mxu0 %v978
        %1326 = vmatpush1.bf16.msra.mxu0 %v977
        %1327 = vmatprep.subr.bf16.mxu0 %v1108
        %1328 = vmatpush1.bf16.msra.mxu0 %v1105
        %1329 = vmatprep.subr.bf16.mxu0 0
        %1330 = vmatpush1.bf16.msra.mxu0 0
        %1331 = vmatprep.subr.bf16.mxu0 0
        %1332 = vmatpush1.bf16.msra.mxu0 0
        %1333 = vmatprep.subr.bf16.mxu0 0
        %1334 = vmatpush1.bf16.msra.mxu0 0
        %1335 = vmatprep.subr.bf16.mxu0 0
        %1336 = vmatpush1.bf16.msra.mxu0 0
        %1337 = vmatprep.subr.bf16.mxu0 0
        %1338 = vmatpush1.bf16.msra.mxu0 0
        %1339 = vmatprep.subr.bf16.mxu0 0
        %1340 = vmatpush1.bf16.msra.mxu0 0
        %1341 = vmatprep.subr.bf16.mxu0 0
        %1342 = vmatpush1.bf16.msra.mxu0 0
        %1343 = vmatprep.subr.bf16.mxu0 0
        %1344 = vmatpush1.bf16.msra.mxu0 0
        %1345 = vmatprep.subr.bf16.mxu0 0
        %1346 = vmatpush1.bf16.msra.mxu0 0
        %1347 = vmatprep.subr.bf16.mxu0 0
        %1348 = vmatpush1.bf16.msra.mxu0 0
        %1349 = vmatprep.subr.bf16.mxu0 0
        %1350 = vmatpush1.bf16.msra.mxu0 0
        %1351 = vmatprep.subr.bf16.mxu0 0
        %1352 = vmatpush1.bf16.msra.mxu0 0
        %1353 = vmatprep.subr.bf16.mxu0 0
        %1354 = vmatpush1.bf16.msra.mxu0 0
        %1355 = vmatprep.subr.bf16.mxu0 0
        %1356 = vmatpush1.bf16.msra.mxu0 0
        %1357 = vmatprep.mubr.bf16.mxu0 0
        %1358 = vmatmul.mubr.bf16.gmra.mrb[0].mxu0 %v1089
        %v1359 = vpop.f32.mrb[0].mxu0
        %v1360 = vadd.f32 %v1317, %v1359
        %v1361 = vpop.f32.mrb[0].mxu0
        %v1362 = vadd.f32 %v1319, %v1361
        %v1363 = vpop.f32.mrb[0].mxu0
        %v1364 = vadd.f32 %v1321, %v1363
        %v1365 = vpop.f32.mrb[0].mxu0
        %v1366 = vadd.f32 %v1323, %v1365
        %1367 = vdwg.mxu0
        %v1372 = vunpack.c.l.b16 %v328
        %v1373 = vunpack.c.h.b16 %v328
        %v1374 = vunpack.c.l.b16 %v329
        %v1375 = vunpack.c.l.b16 %v330
        %v1376 = vunpack.c.h.b16 %v330
        %v1377 = vunpack.c.l.b16 %v331
        %v1378 = vpack.c.b16 %v1375, %v1372
        %v1379 = vpack.c.b16 %v1376, %v1373
        %v1380 = vpack.c.b16 %v1377, %v1374
        %v1488 = vunpack.c.l.b16 %v336
        %v1489 = vunpack.c.h.b16 %v336
        %v1490 = vunpack.c.l.b16 %v337
        %v1491 = vunpack.c.h.b16 %v337
        %v1492 = vunpack.c.l.b16 %v338
        %v1493 = vunpack.c.h.b16 %v338
        %v1494 = vunpack.c.l.b16 %v339
        %v1495 = vunpack.c.h.b16 %v339
        %v1496 = vunpack.c.l.b16 %v340
        %v1497 = vunpack.c.h.b16 %v340
        %v1498 = vunpack.c.l.b16 %v341
        %v1499 = vunpack.c.h.b16 %v341
        %v1500 = vunpack.c.l.b16 %v342
        %v1501 = vunpack.c.h.b16 %v342
        %v1502 = vunpack.c.l.b16 %v343
        %v1503 = vunpack.c.h.b16 %v343
        %v1504 = vunpack.c.l.b16 %v344
        %v1505 = vunpack.c.h.b16 %v344
        %v1506 = vunpack.c.l.b16 %v345
        %v1507 = vunpack.c.h.b16 %v345
        %v1508 = vunpack.c.l.b16 %v346
        %v1509 = vunpack.c.h.b16 %v346
        %v1510 = vunpack.c.l.b16 %v347
        %v1511 = vunpack.c.h.b16 %v347
        %v1512 = vunpack.c.l.b16 %v348
        %v1513 = vunpack.c.h.b16 %v348
        %v1514 = vunpack.c.l.b16 %v349
        %v1515 = vunpack.c.h.b16 %v349
        %v1516 = vunpack.c.l.b16 %v350
        %v1517 = vunpack.c.h.b16 %v350
        %v1518 = vunpack.c.l.b16 %v351
        %v1519 = vunpack.c.h.b16 %v351
        %v1520 = vunpack.c.l.b16 %v352
        %v1521 = vunpack.c.h.b16 %v352
        %v1522 = vunpack.c.l.b16 %v353
        %v1523 = vunpack.c.h.b16 %v353
        %v1524 = vunpack.c.l.b16 %v354
        %v1525 = vunpack.c.h.b16 %v354
        %v1526 = vunpack.c.l.b16 %v355
        %v1527 = vunpack.c.h.b16 %v355
        %v1528 = vunpack.c.l.b16 %v356
        %v1529 = vunpack.c.h.b16 %v356
        %v1530 = vunpack.c.l.b16 %v357
        %v1531 = vunpack.c.h.b16 %v357
        %v1532 = vunpack.c.l.b16 %v358
        %v1533 = vunpack.c.h.b16 %v358
        %v1534 = vunpack.c.l.b16 %v359
        %v1535 = vunpack.c.h.b16 %v359
        %v1536 = vunpack.c.l.b16 %v360
        %v1537 = vunpack.c.h.b16 %v360
        %v1538 = vunpack.c.l.b16 %v361
        %v1539 = vunpack.c.h.b16 %v361
        %v1540 = vunpack.c.l.b16 %v362
        %v1541 = vunpack.c.h.b16 %v362
        %v1542 = vunpack.c.l.b16 %v363
        %v1543 = vunpack.c.h.b16 %v363
        %v1544 = vunpack.c.l.b16 %v364
        %v1545 = vunpack.c.h.b16 %v364
        %v1546 = vunpack.c.l.b16 %v365
        %v1547 = vunpack.c.h.b16 %v365
        %v1548 = vunpack.c.l.b16 %v366
        %v1549 = vunpack.c.h.b16 %v366
        %v1550 = vunpack.c.l.b16 %v367
        %v1551 = vunpack.c.h.b16 %v367
        %v1552 = vunpack.c.l.b16 %v368
        %v1553 = vunpack.c.h.b16 %v368
        %v1554 = vunpack.c.l.b16 %v369
        %v1555 = vunpack.c.h.b16 %v369
        %v1556 = vunpack.c.l.b16 %v370
        %v1557 = vunpack.c.h.b16 %v370
        %v1558 = vunpack.c.l.b16 %v371
        %v1559 = vunpack.c.h.b16 %v371
        %v1560 = vunpack.c.l.b16 %v372
        %v1561 = vunpack.c.h.b16 %v372
        %v1562 = vunpack.c.l.b16 %v373
        %v1563 = vunpack.c.h.b16 %v373
        %v1564 = vunpack.c.l.b16 %v374
        %v1565 = vunpack.c.h.b16 %v374
        %v1566 = vunpack.c.l.b16 %v375
        %v1567 = vunpack.c.h.b16 %v375
        %v1568 = vunpack.c.l.b16 %v376
        %v1569 = vunpack.c.h.b16 %v376
        %v1570 = vunpack.c.l.b16 %v377
        %v1571 = vunpack.c.h.b16 %v377
        %v1572 = vunpack.c.l.b16 %v378
        %v1573 = vunpack.c.h.b16 %v378
        %v1574 = vunpack.c.l.b16 %v379
        %v1575 = vunpack.c.h.b16 %v379
        %v1576 = vunpack.c.l.b16 %v380
        %v1577 = vunpack.c.h.b16 %v380
        %v1578 = vunpack.c.l.b16 %v381
        %v1579 = vunpack.c.h.b16 %v381
        %v1580 = vunpack.c.l.b16 %v382
        %v1581 = vunpack.c.h.b16 %v382
        %v1582 = vunpack.c.l.b16 %v383
        %v1583 = vunpack.c.h.b16 %v383
        %v1584 = vunpack.c.l.b16 %v384
        %v1585 = vunpack.c.h.b16 %v384
        %v1586 = vunpack.c.l.b16 %v385
        %v1587 = vunpack.c.h.b16 %v385
        %v1588 = vunpack.c.l.b16 %v386
        %v1589 = vunpack.c.h.b16 %v386
        %v1590 = vunpack.c.l.b16 %v387
        %v1591 = vunpack.c.h.b16 %v387
        %v1592 = vunpack.c.l.b16 %v388
        %v1593 = vunpack.c.h.b16 %v388
        %v1594 = vunpack.c.l.b16 %v389
        %v1595 = vunpack.c.h.b16 %v389
        %v1596 = vunpack.c.l.b16 %v390
        %v1597 = vunpack.c.h.b16 %v390
        %v1598 = vunpack.c.l.b16 %v391
        %v1599 = vunpack.c.h.b16 %v391
        %v1600 = vunpack.c.l.b16 %v392
        %v1601 = vunpack.c.h.b16 %v392
        %v1602 = vunpack.c.l.b16 %v393
        %v1603 = vunpack.c.h.b16 %v393
        %v1604 = vunpack.c.l.b16 %v394
        %v1605 = vunpack.c.h.b16 %v394
        %v1606 = vunpack.c.l.b16 %v395
        %v1607 = vunpack.c.h.b16 %v395
        %v1608 = vunpack.c.l.b16 %v396
        %v1609 = vunpack.c.h.b16 %v396
        %v1610 = vunpack.c.l.b16 %v397
        %v1611 = vunpack.c.h.b16 %v397
        %v1612 = vunpack.c.l.b16 %v398
        %v1613 = vunpack.c.h.b16 %v398
        %v1614 = vunpack.c.l.b16 %v399
        %v1615 = vunpack.c.h.b16 %v399
        %v1616 = vunpack.c.l.b16 %v400
        %v1617 = vunpack.c.h.b16 %v400
        %v1618 = vunpack.c.l.b16 %v401
        %v1619 = vunpack.c.h.b16 %v401
        %v1620 = vunpack.c.l.b16 %v402
        %v1621 = vunpack.c.h.b16 %v402
        %v1622 = vunpack.c.l.b16 %v403
        %v1623 = vunpack.c.h.b16 %v403
        %v1624 = vunpack.c.l.b16 %v404
        %v1625 = vunpack.c.h.b16 %v404
        %v1626 = vunpack.c.l.b16 %v405
        %v1627 = vunpack.c.h.b16 %v405
        %v1628 = vunpack.c.l.b16 %v406
        %v1629 = vunpack.c.h.b16 %v406
        %v1630 = vunpack.c.l.b16 %v407
        %v1631 = vunpack.c.h.b16 %v407
        %v1632 = vunpack.c.l.b16 %v408
        %v1633 = vunpack.c.h.b16 %v408
        %v1634 = vunpack.c.l.b16 %v409
        %v1635 = vunpack.c.h.b16 %v409
        %v1636 = vunpack.c.l.b16 %v410
        %v1637 = vunpack.c.h.b16 %v410
        %v1638 = vunpack.c.l.b16 %v411
        %v1639 = vunpack.c.h.b16 %v411
        %v1640 = vunpack.c.l.b16 %v412
        %v1641 = vunpack.c.h.b16 %v412
        %v1642 = vunpack.c.l.b16 %v413
        %v1643 = vunpack.c.h.b16 %v413
        %v1644 = vunpack.c.l.b16 %v414
        %v1645 = vunpack.c.h.b16 %v414
        %v1646 = vunpack.c.l.b16 %v415
        %v1647 = vunpack.c.h.b16 %v415
        %v1648 = vunpack.c.l.b16 %v416
        %v1649 = vunpack.c.h.b16 %v416
        %v1650 = vunpack.c.l.b16 %v417
        %v1651 = vunpack.c.h.b16 %v417
        %v1652 = vunpack.c.l.b16 %v418
        %v1653 = vunpack.c.h.b16 %v418
        %v1654 = vunpack.c.l.b16 %v419
        %v1655 = vunpack.c.h.b16 %v419
        %v1656 = vunpack.c.l.b16 %v420
        %v1657 = vunpack.c.h.b16 %v420
        %v1658 = vunpack.c.l.b16 %v421
        %v1659 = vunpack.c.h.b16 %v421
        %v1660 = vunpack.c.l.b16 %v422
        %v1661 = vunpack.c.h.b16 %v422
        %v1662 = vunpack.c.l.b16 %v423
        %v1663 = vunpack.c.h.b16 %v423
        %v1664 = vunpack.c.l.b16 %v424
        %v1665 = vunpack.c.h.b16 %v424
        %v1666 = vunpack.c.l.b16 %v425
        %v1667 = vunpack.c.h.b16 %v425
        %v1668 = vunpack.c.l.b16 %v426
        %v1669 = vunpack.c.h.b16 %v426
        %v1670 = vunpack.c.l.b16 %v427
        %v1671 = vunpack.c.h.b16 %v427
        %v1672 = vunpack.c.l.b16 %v428
        %v1673 = vunpack.c.h.b16 %v428
        %v1674 = vunpack.c.l.b16 %v429
        %v1675 = vunpack.c.h.b16 %v429
        %v1676 = vunpack.c.l.b16 %v430
        %v1677 = vunpack.c.h.b16 %v430
        %v1678 = vunpack.c.l.b16 %v431
        %v1679 = vunpack.c.h.b16 %v431
        %v1680 = vunpack.c.l.b16 %v432
        %v1681 = vunpack.c.h.b16 %v432
        %v1682 = vunpack.c.l.b16 %v433
        %v1683 = vunpack.c.h.b16 %v433
        %v1684 = vunpack.c.l.b16 %v434
        %v1685 = vunpack.c.h.b16 %v434
        %v1686 = vunpack.c.l.b16 %v435
        %v1687 = vunpack.c.h.b16 %v435
        %v1688 = vunpack.c.l.b16 %v436
        %v1689 = vunpack.c.h.b16 %v436
        %v1690 = vunpack.c.l.b16 %v437
        %v1691 = vunpack.c.h.b16 %v437
        %v1692 = vunpack.c.l.b16 %v438
        %v1693 = vunpack.c.h.b16 %v438
        %v1694 = vunpack.c.l.b16 %v439
        %v1695 = vunpack.c.h.b16 %v439
        %v1696 = vunpack.c.l.b16 %v440
        %v1697 = vunpack.c.h.b16 %v440
        %v1698 = vpack.c.b16 %v1494, %v1488
        %v1699 = vpack.c.b16 %v1495, %v1489
        %v1700 = vpack.c.b16 %v1496, %v1490
        %v1701 = vpack.c.b16 %v1497, %v1491
        %v1702 = vpack.c.b16 %v1498, %v1492
        %v1703 = vpack.c.b16 %v1499, %v1493
        %v1704 = vpack.c.b16 %v1506, %v1500
        %v1705 = vpack.c.b16 %v1507, %v1501
        %v1706 = vpack.c.b16 %v1508, %v1502
        %v1707 = vpack.c.b16 %v1509, %v1503
        %v1708 = vpack.c.b16 %v1510, %v1504
        %v1709 = vpack.c.b16 %v1511, %v1505
        %v1710 = vpack.c.b16 %v1518, %v1512
        %v1711 = vpack.c.b16 %v1519, %v1513
        %v1712 = vpack.c.b16 %v1520, %v1514
        %v1713 = vpack.c.b16 %v1521, %v1515
        %v1714 = vpack.c.b16 %v1522, %v1516
        %v1715 = vpack.c.b16 %v1523, %v1517
        %v1716 = vpack.c.b16 %v1530, %v1524
        %v1717 = vpack.c.b16 %v1531, %v1525
        %v1718 = vpack.c.b16 %v1532, %v1526
        %v1719 = vpack.c.b16 %v1533, %v1527
        %v1720 = vpack.c.b16 %v1534, %v1528
        %v1721 = vpack.c.b16 %v1535, %v1529
        %v1722 = vpack.c.b16 %v1542, %v1536
        %v1723 = vpack.c.b16 %v1543, %v1537
        %v1724 = vpack.c.b16 %v1544, %v1538
        %v1725 = vpack.c.b16 %v1545, %v1539
        %v1726 = vpack.c.b16 %v1546, %v1540
        %v1727 = vpack.c.b16 %v1547, %v1541
        %v1728 = vpack.c.b16 %v1554, %v1548
        %v1729 = vpack.c.b16 %v1555, %v1549
        %v1730 = vpack.c.b16 %v1556, %v1550
        %v1731 = vpack.c.b16 %v1557, %v1551
        %v1732 = vpack.c.b16 %v1558, %v1552
        %v1733 = vpack.c.b16 %v1559, %v1553
        %v1734 = vpack.c.b16 %v1566, %v1560
        %v1735 = vpack.c.b16 %v1567, %v1561
        %v1736 = vpack.c.b16 %v1568, %v1562
        %v1737 = vpack.c.b16 %v1569, %v1563
        %v1738 = vpack.c.b16 %v1570, %v1564
        %v1739 = vpack.c.b16 %v1571, %v1565
        %v1740 = vpack.c.b16 %v1578, %v1572
        %v1741 = vpack.c.b16 %v1579, %v1573
        %v1742 = vpack.c.b16 %v1580, %v1574
        %v1743 = vpack.c.b16 %v1581, %v1575
        %v1744 = vpack.c.b16 %v1582, %v1576
        %v1745 = vpack.c.b16 %v1583, %v1577
        %v1746 = vpack.c.b16 %v1590, %v1584
        %v1747 = vpack.c.b16 %v1591, %v1585
        %v1748 = vpack.c.b16 %v1592, %v1586
        %v1749 = vpack.c.b16 %v1593, %v1587
        %v1750 = vpack.c.b16 %v1594, %v1588
        %v1751 = vpack.c.b16 %v1595, %v1589
        %v1752 = vpack.c.b16 %v1602, %v1596
        %v1753 = vpack.c.b16 %v1603, %v1597
        %v1754 = vpack.c.b16 %v1604, %v1598
        %v1755 = vpack.c.b16 %v1605, %v1599
        %v1756 = vpack.c.b16 %v1606, %v1600
        %v1757 = vpack.c.b16 %v1607, %v1601
        %v1758 = vpack.c.b16 %v1614, %v1608
        %v1759 = vpack.c.b16 %v1615, %v1609
        %v1760 = vpack.c.b16 %v1616, %v1610
        %v1761 = vpack.c.b16 %v1617, %v1611
        %v1762 = vpack.c.b16 %v1618, %v1612
        %v1763 = vpack.c.b16 %v1619, %v1613
        %v1764 = vpack.c.b16 %v1626, %v1620
        %v1765 = vpack.c.b16 %v1627, %v1621
        %v1766 = vpack.c.b16 %v1628, %v1622
        %v1767 = vpack.c.b16 %v1629, %v1623
        %v1768 = vpack.c.b16 %v1630, %v1624
        %v1769 = vpack.c.b16 %v1631, %v1625
        %v1770 = vpack.c.b16 %v1638, %v1632
        %v1771 = vpack.c.b16 %v1639, %v1633
        %v1772 = vpack.c.b16 %v1640, %v1634
        %v1773 = vpack.c.b16 %v1641, %v1635
        %v1774 = vpack.c.b16 %v1642, %v1636
        %v1775 = vpack.c.b16 %v1643, %v1637
        %v1776 = vpack.c.b16 %v1650, %v1644
        %v1777 = vpack.c.b16 %v1651, %v1645
        %v1778 = vpack.c.b16 %v1652, %v1646
        %v1779 = vpack.c.b16 %v1653, %v1647
        %v1780 = vpack.c.b16 %v1654, %v1648
        %v1781 = vpack.c.b16 %v1655, %v1649
        %v1782 = vpack.c.b16 %v1662, %v1656
        %v1783 = vpack.c.b16 %v1663, %v1657
        %v1784 = vpack.c.b16 %v1664, %v1658
        %v1785 = vpack.c.b16 %v1665, %v1659
        %v1786 = vpack.c.b16 %v1666, %v1660
        %v1787 = vpack.c.b16 %v1667, %v1661
        %v1788 = vpack.c.b16 %v1674, %v1668
        %v1789 = vpack.c.b16 %v1675, %v1669
        %v1790 = vpack.c.b16 %v1676, %v1670
        %v1791 = vpack.c.b16 %v1677, %v1671
        %v1792 = vpack.c.b16 %v1678, %v1672
        %v1793 = vpack.c.b16 %v1679, %v1673
        %v1794 = vpack.c.b16 %v1686, %v1680
        %v1795 = vpack.c.b16 %v1687, %v1681
        %v1796 = vpack.c.b16 %v1688, %v1682
        %v1797 = vpack.c.b16 %v1689, %v1683
        %v1798 = vpack.c.b16 %v1690, %v1684
        %v1799 = vpack.c.b16 %v1691, %v1685
        %v1800 = vpack.c.b16 %v1692, %v1692
        %v1801 = vpack.c.b16 %v1693, %v1693
        %v1802 = vpack.c.b16 %v1694, %v1694
        %v1803 = vpack.c.b16 %v1695, %v1695
        %v1804 = vpack.c.b16 %v1696, %v1696
        %v1805 = vpack.c.b16 %v1697, %v1697
        %v1909 = vsel %vm1087, %v1380, 0
        %v1912 = vsel %vm1091, %v1800, 0
        %v1915 = vsel %vm1091, %v1801, 0
        %v1918 = vsel %vm1091, %v1802, 0
        %v1921 = vsel %vm1091, %v1803, 0
        %v1924 = vsel %vm1091, %v1804, 0
        %v1927 = vsel %vm1091, %v1805, 0
        %1929 = vmatprep.subr.bf16.mxu0 %v1699
        %1930 = vmatpush1.bf16.msra.mxu0 %v1698
        %1931 = vmatprep.subr.bf16.mxu0 %v1705
        %1932 = vmatpush1.bf16.msra.mxu0 %v1704
        %1933 = vmatprep.subr.bf16.mxu0 %v1711
        %1934 = vmatpush1.bf16.msra.mxu0 %v1710
        %1935 = vmatprep.subr.bf16.mxu0 %v1717
        %1936 = vmatpush1.bf16.msra.mxu0 %v1716
        %1937 = vmatprep.subr.bf16.mxu0 %v1723
        %1938 = vmatpush1.bf16.msra.mxu0 %v1722
        %1939 = vmatprep.subr.bf16.mxu0 %v1729
        %1940 = vmatpush1.bf16.msra.mxu0 %v1728
        %1941 = vmatprep.subr.bf16.mxu0 %v1735
        %1942 = vmatpush1.bf16.msra.mxu0 %v1734
        %1943 = vmatprep.subr.bf16.mxu0 %v1741
        %1944 = vmatpush1.bf16.msra.mxu0 %v1740
        %1945 = vmatprep.subr.bf16.mxu0 %v1747
        %1946 = vmatpush1.bf16.msra.mxu0 %v1746
        %1947 = vmatprep.subr.bf16.mxu0 %v1753
        %1948 = vmatpush1.bf16.msra.mxu0 %v1752
        %1949 = vmatprep.subr.bf16.mxu0 %v1759
        %1950 = vmatpush1.bf16.msra.mxu0 %v1758
        %1951 = vmatprep.subr.bf16.mxu0 %v1765
        %1952 = vmatpush1.bf16.msra.mxu0 %v1764
        %1953 = vmatprep.subr.bf16.mxu0 %v1771
        %1954 = vmatpush1.bf16.msra.mxu0 %v1770
        %1955 = vmatprep.subr.bf16.mxu0 %v1777
        %1956 = vmatpush1.bf16.msra.mxu0 %v1776
        %1957 = vmatprep.subr.bf16.mxu0 %v1783
        %1958 = vmatpush1.bf16.msra.mxu0 %v1782
        %1959 = vmatprep.subr.bf16.mxu0 %v1789
        %1960 = vmatpush1.bf16.msra.mxu0 %v1788
        %1961 = vmatprep.mubr.bf16.mxu0 %v1379
        %1962 = vmatmul.mubr.bf16.gmra.mrb[0].mxu0 %v1378
        %v1963 = vpop.f32.mrb[0].mxu0
        %v1964 = vadd.f32 %v1188, %v1963
        %v1965 = vpop.f32.mrb[0].mxu0
        %v1966 = vadd.f32 %v1190, %v1965
        %v1967 = vpop.f32.mrb[0].mxu0
        %v1968 = vadd.f32 %v1192, %v1967
        %v1969 = vpop.f32.mrb[0].mxu0
        %v1970 = vadd.f32 %v1194, %v1969
        %1971 = vdwg.mxu0
        %1972 = vmatprep.subr.bf16.mxu0 %v1795
        %1973 = vmatpush1.bf16.msra.mxu0 %v1794
        %1974 = vmatprep.subr.bf16.mxu0 %v1915
        %1975 = vmatpush1.bf16.msra.mxu0 %v1912
        %1976 = vmatprep.subr.bf16.mxu0 0
        %1977 = vmatpush1.bf16.msra.mxu0 0
        %1978 = vmatprep.subr.bf16.mxu0 0
        %1979 = vmatpush1.bf16.msra.mxu0 0
        %1980 = vmatprep.subr.bf16.mxu0 0
        %1981 = vmatpush1.bf16.msra.mxu0 0
        %1982 = vmatprep.subr.bf16.mxu0 0
        %1983 = vmatpush1.bf16.msra.mxu0 0
        %1984 = vmatprep.subr.bf16.mxu0 0
        %1985 = vmatpush1.bf16.msra.mxu0 0
        %1986 = vmatprep.subr.bf16.mxu0 0
        %1987 = vmatpush1.bf16.msra.mxu0 0
        %1988 = vmatprep.subr.bf16.mxu0 0
        %1989 = vmatpush1.bf16.msra.mxu0 0
        %1990 = vmatprep.subr.bf16.mxu0 0
        %1991 = vmatpush1.bf16.msra.mxu0 0
        %1992 = vmatprep.subr.bf16.mxu0 0
        %1993 = vmatpush1.bf16.msra.mxu0 0
        %1994 = vmatprep.subr.bf16.mxu0 0
        %1995 = vmatpush1.bf16.msra.mxu0 0
        %1996 = vmatprep.subr.bf16.mxu0 0
        %1997 = vmatpush1.bf16.msra.mxu0 0
        %1998 = vmatprep.subr.bf16.mxu0 0
        %1999 = vmatpush1.bf16.msra.mxu0 0
        %2000 = vmatprep.subr.bf16.mxu0 0
        %2001 = vmatpush1.bf16.msra.mxu0 0
        %2002 = vmatprep.subr.bf16.mxu0 0
        %2003 = vmatpush1.bf16.msra.mxu0 0
        %2004 = vmatprep.mubr.bf16.mxu0 0
        %2005 = vmatmul.mubr.bf16.gmra.mrb[0].mxu0 %v1909
        %v2006 = vpop.f32.mrb[0].mxu0
        %v2007 = vadd.f32 %v1964, %v2006
        %v2008 = vpop.f32.mrb[0].mxu0
        %v2009 = vadd.f32 %v1966, %v2008
        %v2010 = vpop.f32.mrb[0].mxu0
        %v2011 = vadd.f32 %v1968, %v2010
        %v2012 = vpop.f32.mrb[0].mxu0
        %v2013 = vadd.f32 %v1970, %v2012
        %2014 = vdwg.mxu0
        %2015 = vmatprep.subr.bf16.mxu0 %v1701
        %2016 = vmatpush1.bf16.msra.mxu0 %v1700
        %2017 = vmatprep.subr.bf16.mxu0 %v1707
        %2018 = vmatpush1.bf16.msra.mxu0 %v1706
        %2019 = vmatprep.subr.bf16.mxu0 %v1713
        %2020 = vmatpush1.bf16.msra.mxu0 %v1712
        %2021 = vmatprep.subr.bf16.mxu0 %v1719
        %2022 = vmatpush1.bf16.msra.mxu0 %v1718
        %2023 = vmatprep.subr.bf16.mxu0 %v1725
        %2024 = vmatpush1.bf16.msra.mxu0 %v1724
        %2025 = vmatprep.subr.bf16.mxu0 %v1731
        %2026 = vmatpush1.bf16.msra.mxu0 %v1730
        %2027 = vmatprep.subr.bf16.mxu0 %v1737
        %2028 = vmatpush1.bf16.msra.mxu0 %v1736
        %2029 = vmatprep.subr.bf16.mxu0 %v1743
        %2030 = vmatpush1.bf16.msra.mxu0 %v1742
        %2031 = vmatprep.subr.bf16.mxu0 %v1749
        %2032 = vmatpush1.bf16.msra.mxu0 %v1748
        %2033 = vmatprep.subr.bf16.mxu0 %v1755
        %2034 = vmatpush1.bf16.msra.mxu0 %v1754
        %2035 = vmatprep.subr.bf16.mxu0 %v1761
        %2036 = vmatpush1.bf16.msra.mxu0 %v1760
        %2037 = vmatprep.subr.bf16.mxu0 %v1767
        %2038 = vmatpush1.bf16.msra.mxu0 %v1766
        %2039 = vmatprep.subr.bf16.mxu0 %v1773
        %2040 = vmatpush1.bf16.msra.mxu0 %v1772
        %2041 = vmatprep.subr.bf16.mxu0 %v1779
        %2042 = vmatpush1.bf16.msra.mxu0 %v1778
        %2043 = vmatprep.subr.bf16.mxu0 %v1785
        %2044 = vmatpush1.bf16.msra.mxu0 %v1784
        %2045 = vmatprep.subr.bf16.mxu0 %v1791
        %2046 = vmatpush1.bf16.msra.mxu0 %v1790
        %2047 = vmatprep.mubr.bf16.mxu0 %v1379
        %2048 = vmatmul.mubr.bf16.gmra.mrb[0].mxu0 %v1378
        %v2049 = vpop.f32.mrb[0].mxu0
        %v2050 = vadd.f32 %v1274, %v2049
        %v2051 = vpop.f32.mrb[0].mxu0
        %v2052 = vadd.f32 %v1276, %v2051
        %v2053 = vpop.f32.mrb[0].mxu0
        %v2054 = vadd.f32 %v1278, %v2053
        %v2055 = vpop.f32.mrb[0].mxu0
        %v2056 = vadd.f32 %v1280, %v2055
        %2057 = vdwg.mxu0
        %2058 = vmatprep.subr.bf16.mxu0 %v1797
        %2059 = vmatpush1.bf16.msra.mxu0 %v1796
        %2060 = vmatprep.subr.bf16.mxu0 %v1921
        %2061 = vmatpush1.bf16.msra.mxu0 %v1918
        %2062 = vmatprep.subr.bf16.mxu0 0
        %2063 = vmatpush1.bf16.msra.mxu0 0
        %2064 = vmatprep.subr.bf16.mxu0 0
        %2065 = vmatpush1.bf16.msra.mxu0 0
        %2066 = vmatprep.subr.bf16.mxu0 0
        %2067 = vmatpush1.bf16.msra.mxu0 0
        %2068 = vmatprep.subr.bf16.mxu0 0
        %2069 = vmatpush1.bf16.msra.mxu0 0
        %2070 = vmatprep.subr.bf16.mxu0 0
        %2071 = vmatpush1.bf16.msra.mxu0 0
        %2072 = vmatprep.subr.bf16.mxu0 0
        %2073 = vmatpush1.bf16.msra.mxu0 0
        %2074 = vmatprep.subr.bf16.mxu0 0
        %2075 = vmatpush1.bf16.msra.mxu0 0
        %2076 = vmatprep.subr.bf16.mxu0 0
        %2077 = vmatpush1.bf16.msra.mxu0 0
        %2078 = vmatprep.subr.bf16.mxu0 0
        %2079 = vmatpush1.bf16.msra.mxu0 0
        %2080 = vmatprep.subr.bf16.mxu0 0
        %2081 = vmatpush1.bf16.msra.mxu0 0
        %2082 = vmatprep.subr.bf16.mxu0 0
        %2083 = vmatpush1.bf16.msra.mxu0 0
        %2084 = vmatprep.subr.bf16.mxu0 0
        %2085 = vmatpush1.bf16.msra.mxu0 0
        %2086 = vmatprep.subr.bf16.mxu0 0
        %2087 = vmatpush1.bf16.msra.mxu0 0
        %2088 = vmatprep.subr.bf16.mxu0 0
        %2089 = vmatpush1.bf16.msra.mxu0 0
        %2090 = vmatprep.mubr.bf16.mxu0 0
        %2091 = vmatmul.mubr.bf16.gmra.mrb[0].mxu0 %v1909
        %v2092 = vpop.f32.mrb[0].mxu0
        %v2093 = vadd.f32 %v2050, %v2092
        %v2094 = vpop.f32.mrb[0].mxu0
        %v2095 = vadd.f32 %v2052, %v2094
        %v2096 = vpop.f32.mrb[0].mxu0
        %v2097 = vadd.f32 %v2054, %v2096
        %v2098 = vpop.f32.mrb[0].mxu0
        %v2099 = vadd.f32 %v2056, %v2098
        %2100 = vdwg.mxu0
        %2101 = vmatprep.subr.bf16.mxu0 %v1703
        %2102 = vmatpush1.bf16.msra.mxu0 %v1702
        %2103 = vmatprep.subr.bf16.mxu0 %v1709
        %2104 = vmatpush1.bf16.msra.mxu0 %v1708
        %2105 = vmatprep.subr.bf16.mxu0 %v1715
        %2106 = vmatpush1.bf16.msra.mxu0 %v1714
        %2107 = vmatprep.subr.bf16.mxu0 %v1721
        %2108 = vmatpush1.bf16.msra.mxu0 %v1720
        %2109 = vmatprep.subr.bf16.mxu0 %v1727
        %2110 = vmatpush1.bf16.msra.mxu0 %v1726
        %2111 = vmatprep.subr.bf16.mxu0 %v1733
        %2112 = vmatpush1.bf16.msra.mxu0 %v1732
        %2113 = vmatprep.subr.bf16.mxu0 %v1739
        %2114 = vmatpush1.bf16.msra.mxu0 %v1738
        %2115 = vmatprep.subr.bf16.mxu0 %v1745
        %2116 = vmatpush1.bf16.msra.mxu0 %v1744
        %2117 = vmatprep.subr.bf16.mxu0 %v1751
        %2118 = vmatpush1.bf16.msra.mxu0 %v1750
        %2119 = vmatprep.subr.bf16.mxu0 %v1757
        %2120 = vmatpush1.bf16.msra.mxu0 %v1756
        %2121 = vmatprep.subr.bf16.mxu0 %v1763
        %2122 = vmatpush1.bf16.msra.mxu0 %v1762
        %2123 = vmatprep.subr.bf16.mxu0 %v1769
        %2124 = vmatpush1.bf16.msra.mxu0 %v1768
        %2125 = vmatprep.subr.bf16.mxu0 %v1775
        %2126 = vmatpush1.bf16.msra.mxu0 %v1774
        %2127 = vmatprep.subr.bf16.mxu0 %v1781
        %2128 = vmatpush1.bf16.msra.mxu0 %v1780
        %2129 = vmatprep.subr.bf16.mxu0 %v1787
        %2130 = vmatpush1.bf16.msra.mxu0 %v1786
        %2131 = vmatprep.subr.bf16.mxu0 %v1793
        %2132 = vmatpush1.bf16.msra.mxu0 %v1792
        %2133 = vmatprep.mubr.bf16.mxu0 %v1379
        %2134 = vmatmul.mubr.bf16.gmra.mrb[0].mxu0 %v1378
        %v2135 = vpop.f32.mrb[0].mxu0
        %v2136 = vadd.f32 %v1360, %v2135
        %v2137 = vpop.f32.mrb[0].mxu0
        %v2138 = vadd.f32 %v1362, %v2137
        %v2139 = vpop.f32.mrb[0].mxu0
        %v2140 = vadd.f32 %v1364, %v2139
        %v2141 = vpop.f32.mrb[0].mxu0
        %v2142 = vadd.f32 %v1366, %v2141
        %2143 = vdwg.mxu0
        %2144 = vmatprep.subr.bf16.mxu0 %v1799
        %2145 = vmatpush1.bf16.msra.mxu0 %v1798
        %2146 = vmatprep.subr.bf16.mxu0 %v1927
        %2147 = vmatpush1.bf16.msra.mxu0 %v1924
        %2148 = vmatprep.subr.bf16.mxu0 0
        %2149 = vmatpush1.bf16.msra.mxu0 0
        %2150 = vmatprep.subr.bf16.mxu0 0
        %2151 = vmatpush1.bf16.msra.mxu0 0
        %2152 = vmatprep.subr.bf16.mxu0 0
        %2153 = vmatpush1.bf16.msra.mxu0 0
        %2154 = vmatprep.subr.bf16.mxu0 0
        %2155 = vmatpush1.bf16.msra.mxu0 0
        %2156 = vmatprep.subr.bf16.mxu0 0
        %2157 = vmatpush1.bf16.msra.mxu0 0
        %2158 = vmatprep.subr.bf16.mxu0 0
        %2159 = vmatpush1.bf16.msra.mxu0 0
        %2160 = vmatprep.subr.bf16.mxu0 0
        %2161 = vmatpush1.bf16.msra.mxu0 0
        %2162 = vmatprep.subr.bf16.mxu0 0
        %2163 = vmatpush1.bf16.msra.mxu0 0
        %2164 = vmatprep.subr.bf16.mxu0 0
        %2165 = vmatpush1.bf16.msra.mxu0 0
        %2166 = vmatprep.subr.bf16.mxu0 0
        %2167 = vmatpush1.bf16.msra.mxu0 0
        %2168 = vmatprep.subr.bf16.mxu0 0
        %2169 = vmatpush1.bf16.msra.mxu0 0
        %2170 = vmatprep.subr.bf16.mxu0 0
        %2171 = vmatpush1.bf16.msra.mxu0 0
        %2172 = vmatprep.subr.bf16.mxu0 0
        %2173 = vmatpush1.bf16.msra.mxu0 0
        %2174 = vmatprep.subr.bf16.mxu0 0
        %2175 = vmatpush1.bf16.msra.mxu0 0
        %2176 = vmatprep.mubr.bf16.mxu0 0
        %2177 = vmatmul.mubr.bf16.gmra.mrb[0].mxu0 %v1909
        %v2178 = vpop.f32.mrb[0].mxu0
        %v2179 = vadd.f32 %v2136, %v2178
        %v2180 = vpop.f32.mrb[0].mxu0
        %v2181 = vadd.f32 %v2138, %v2180
        %v2182 = vpop.f32.mrb[0].mxu0
        %v2183 = vadd.f32 %v2140, %v2182
        %v2184 = vpop.f32.mrb[0].mxu0
        %v2185 = vadd.f32 %v2142, %v2184
        %2186 = vdwg.mxu0
        %v2188 = vshrl.u32 %v1378, 16
        %v2190 = vshll.u32 %v1378, 16
        %v2192 = vrot.slane %v2190, 1
        %v2193 = vor.u32 %v2188, %v2192
        %v2195 = vshrl.u32 %v1379, 16
        %v2197 = vshll.u32 %v1379, 16
        %v2199 = vrot.slane %v2197, 1
        %v2200 = vor.u32 %v2195, %v2199
        %v2201 = vshrl.u32 %v1380, 16
        %v2203 = vshll.u32 %v1380, 16
        %v2205 = vrot.slane %v2203, 1
        %v2206 = vor.u32 %v2201, %v2205
        %v2210 = vsel %vm1087, %v2206, 0
        %2212 = vmatprep.subr.bf16.mxu0 %v878
        %2213 = vmatpush1.bf16.msra.mxu0 %v877
        %2214 = vmatprep.subr.bf16.mxu0 %v884
        %2215 = vmatpush1.bf16.msra.mxu0 %v883
        %2216 = vmatprep.subr.bf16.mxu0 %v890
        %2217 = vmatpush1.bf16.msra.mxu0 %v889
        %2218 = vmatprep.subr.bf16.mxu0 %v896
        %2219 = vmatpush1.bf16.msra.mxu0 %v895
        %2220 = vmatprep.subr.bf16.mxu0 %v902
        %2221 = vmatpush1.bf16.msra.mxu0 %v901
        %2222 = vmatprep.subr.bf16.mxu0 %v908
        %2223 = vmatpush1.bf16.msra.mxu0 %v907
        %2224 = vmatprep.subr.bf16.mxu0 %v914
        %2225 = vmatpush1.bf16.msra.mxu0 %v913
        %2226 = vmatprep.subr.bf16.mxu0 %v920
        %2227 = vmatpush1.bf16.msra.mxu0 %v919
        %2228 = vmatprep.subr.bf16.mxu0 %v926
        %2229 = vmatpush1.bf16.msra.mxu0 %v925
        %2230 = vmatprep.subr.bf16.mxu0 %v932
        %2231 = vmatpush1.bf16.msra.mxu0 %v931
        %2232 = vmatprep.subr.bf16.mxu0 %v938
        %2233 = vmatpush1.bf16.msra.mxu0 %v937
        %2234 = vmatprep.subr.bf16.mxu0 %v944
        %2235 = vmatpush1.bf16.msra.mxu0 %v943
        %2236 = vmatprep.subr.bf16.mxu0 %v950
        %2237 = vmatpush1.bf16.msra.mxu0 %v949
        %2238 = vmatprep.subr.bf16.mxu0 %v956
        %2239 = vmatpush1.bf16.msra.mxu0 %v955
        %2240 = vmatprep.subr.bf16.mxu0 %v962
        %2241 = vmatpush1.bf16.msra.mxu0 %v961
        %2242 = vmatprep.subr.bf16.mxu0 %v968
        %2243 = vmatpush1.bf16.msra.mxu0 %v967
        %2244 = vmatprep.mubr.bf16.mxu0 %v2200
        %2245 = vmatmul.mubr.bf16.gmra.mrb[0].mxu0 %v2193
        %v2246 = vpop.f32.mrb[0].mxu0
        %v2247 = vadd.f32 0.0, %v2246
        %v2248 = vpop.f32.mrb[0].mxu0
        %v2249 = vadd.f32 0.0, %v2248
        %v2250 = vpop.f32.mrb[0].mxu0
        %v2251 = vadd.f32 0.0, %v2250
        %v2252 = vpop.f32.mrb[0].mxu0
        %v2253 = vadd.f32 0.0, %v2252
        %2254 = vdwg.mxu0
        %2255 = vmatprep.subr.bf16.mxu0 %v974
        %2256 = vmatpush1.bf16.msra.mxu0 %v973
        %2257 = vmatprep.subr.bf16.mxu0 %v1096
        %2258 = vmatpush1.bf16.msra.mxu0 %v1093
        %2259 = vmatprep.subr.bf16.mxu0 0
        %2260 = vmatpush1.bf16.msra.mxu0 0
        %2261 = vmatprep.subr.bf16.mxu0 0
        %2262 = vmatpush1.bf16.msra.mxu0 0
        %2263 = vmatprep.subr.bf16.mxu0 0
        %2264 = vmatpush1.bf16.msra.mxu0 0
        %2265 = vmatprep.subr.bf16.mxu0 0
        %2266 = vmatpush1.bf16.msra.mxu0 0
        %2267 = vmatprep.subr.bf16.mxu0 0
        %2268 = vmatpush1.bf16.msra.mxu0 0
        %2269 = vmatprep.subr.bf16.mxu0 0
        %2270 = vmatpush1.bf16.msra.mxu0 0
        %2271 = vmatprep.subr.bf16.mxu0 0
        %2272 = vmatpush1.bf16.msra.mxu0 0
        %2273 = vmatprep.subr.bf16.mxu0 0
        %2274 = vmatpush1.bf16.msra.mxu0 0
        %2275 = vmatprep.subr.bf16.mxu0 0
        %2276 = vmatpush1.bf16.msra.mxu0 0
        %2277 = vmatprep.subr.bf16.mxu0 0
        %2278 = vmatpush1.bf16.msra.mxu0 0
        %2279 = vmatprep.subr.bf16.mxu0 0
        %2280 = vmatpush1.bf16.msra.mxu0 0
        %2281 = vmatprep.subr.bf16.mxu0 0
        %2282 = vmatpush1.bf16.msra.mxu0 0
        %2283 = vmatprep.subr.bf16.mxu0 0
        %2284 = vmatpush1.bf16.msra.mxu0 0
        %2285 = vmatprep.subr.bf16.mxu0 0
        %2286 = vmatpush1.bf16.msra.mxu0 0
        %2287 = vmatprep.mubr.bf16.mxu0 0
        %2288 = vmatmul.mubr.bf16.gmra.mrb[0].mxu0 %v2210
        %v2289 = vpop.f32.mrb[0].mxu0
        %v2290 = vadd.f32 %v2247, %v2289
        %v2291 = vpop.f32.mrb[0].mxu0
        %v2292 = vadd.f32 %v2249, %v2291
        %v2293 = vpop.f32.mrb[0].mxu0
        %v2294 = vadd.f32 %v2251, %v2293
        %v2295 = vpop.f32.mrb[0].mxu0
        %v2296 = vadd.f32 %v2253, %v2295
        %2297 = vdwg.mxu0
        %2298 = vmatprep.subr.bf16.mxu0 %v880
        %2299 = vmatpush1.bf16.msra.mxu0 %v879
        %2300 = vmatprep.subr.bf16.mxu0 %v886
        %2301 = vmatpush1.bf16.msra.mxu0 %v885
        %2302 = vmatprep.subr.bf16.mxu0 %v892
        %2303 = vmatpush1.bf16.msra.mxu0 %v891
        %2304 = vmatprep.subr.bf16.mxu0 %v898
        %2305 = vmatpush1.bf16.msra.mxu0 %v897
        %2306 = vmatprep.subr.bf16.mxu0 %v904
        %2307 = vmatpush1.bf16.msra.mxu0 %v903
        %2308 = vmatprep.subr.bf16.mxu0 %v910
        %2309 = vmatpush1.bf16.msra.mxu0 %v909
        %2310 = vmatprep.subr.bf16.mxu0 %v916
        %2311 = vmatpush1.bf16.msra.mxu0 %v915
        %2312 = vmatprep.subr.bf16.mxu0 %v922
        %2313 = vmatpush1.bf16.msra.mxu0 %v921
        %2314 = vmatprep.subr.bf16.mxu0 %v928
        %2315 = vmatpush1.bf16.msra.mxu0 %v927
        %2316 = vmatprep.subr.bf16.mxu0 %v934
        %2317 = vmatpush1.bf16.msra.mxu0 %v933
        %2318 = vmatprep.subr.bf16.mxu0 %v940
        %2319 = vmatpush1.bf16.msra.mxu0 %v939
        %2320 = vmatprep.subr.bf16.mxu0 %v946
        %2321 = vmatpush1.bf16.msra.mxu0 %v945
        %2322 = vmatprep.subr.bf16.mxu0 %v952
        %2323 = vmatpush1.bf16.msra.mxu0 %v951
        %2324 = vmatprep.subr.bf16.mxu0 %v958
        %2325 = vmatpush1.bf16.msra.mxu0 %v957
        %2326 = vmatprep.subr.bf16.mxu0 %v964
        %2327 = vmatpush1.bf16.msra.mxu0 %v963
        %2328 = vmatprep.subr.bf16.mxu0 %v970
        %2329 = vmatpush1.bf16.msra.mxu0 %v969
        %2330 = vmatprep.mubr.bf16.mxu0 %v2200
        %2331 = vmatmul.mubr.bf16.gmra.mrb[0].mxu0 %v2193
        %v2332 = vpop.f32.mrb[0].mxu0
        %v2333 = vadd.f32 0.0, %v2332
        %v2334 = vpop.f32.mrb[0].mxu0
        %v2335 = vadd.f32 0.0, %v2334
        %v2336 = vpop.f32.mrb[0].mxu0
        %v2337 = vadd.f32 0.0, %v2336
        %v2338 = vpop.f32.mrb[0].mxu0
        %v2339 = vadd.f32 0.0, %v2338
        %2340 = vdwg.mxu0
        %2341 = vmatprep.subr.bf16.mxu0 %v976
        %2342 = vmatpush1.bf16.msra.mxu0 %v975
        %2343 = vmatprep.subr.bf16.mxu0 %v1102
        %2344 = vmatpush1.bf16.msra.mxu0 %v1099
        %2345 = vmatprep.subr.bf16.mxu0 0
        %2346 = vmatpush1.bf16.msra.mxu0 0
        %2347 = vmatprep.subr.bf16.mxu0 0
        %2348 = vmatpush1.bf16.msra.mxu0 0
        %2349 = vmatprep.subr.bf16.mxu0 0
        %2350 = vmatpush1.bf16.msra.mxu0 0
        %2351 = vmatprep.subr.bf16.mxu0 0
        %2352 = vmatpush1.bf16.msra.mxu0 0
        %2353 = vmatprep.subr.bf16.mxu0 0
        %2354 = vmatpush1.bf16.msra.mxu0 0
        %2355 = vmatprep.subr.bf16.mxu0 0
        %2356 = vmatpush1.bf16.msra.mxu0 0
        %2357 = vmatprep.subr.bf16.mxu0 0
        %2358 = vmatpush1.bf16.msra.mxu0 0
        %2359 = vmatprep.subr.bf16.mxu0 0
        %2360 = vmatpush1.bf16.msra.mxu0 0
        %2361 = vmatprep.subr.bf16.mxu0 0
        %2362 = vmatpush1.bf16.msra.mxu0 0
        %2363 = vmatprep.subr.bf16.mxu0 0
        %2364 = vmatpush1.bf16.msra.mxu0 0
        %2365 = vmatprep.subr.bf16.mxu0 0
        %2366 = vmatpush1.bf16.msra.mxu0 0
        %2367 = vmatprep.subr.bf16.mxu0 0
        %2368 = vmatpush1.bf16.msra.mxu0 0
        %2369 = vmatprep.subr.bf16.mxu0 0
        %2370 = vmatpush1.bf16.msra.mxu0 0
        %2371 = vmatprep.subr.bf16.mxu0 0
        %2372 = vmatpush1.bf16.msra.mxu0 0
        %2373 = vmatprep.mubr.bf16.mxu0 0
        %2374 = vmatmul.mubr.bf16.gmra.mrb[0].mxu0 %v2210
        %v2375 = vpop.f32.mrb[0].mxu0
        %v2376 = vadd.f32 %v2333, %v2375
        %v2377 = vpop.f32.mrb[0].mxu0
        %v2378 = vadd.f32 %v2335, %v2377
        %v2379 = vpop.f32.mrb[0].mxu0
        %v2380 = vadd.f32 %v2337, %v2379
        %v2381 = vpop.f32.mrb[0].mxu0
        %v2382 = vadd.f32 %v2339, %v2381
        %2383 = vdwg.mxu0
        %2384 = vmatprep.subr.bf16.mxu0 %v882
        %2385 = vmatpush1.bf16.msra.mxu0 %v881
        %2386 = vmatprep.subr.bf16.mxu0 %v888
        %2387 = vmatpush1.bf16.msra.mxu0 %v887
        %2388 = vmatprep.subr.bf16.mxu0 %v894
        %2389 = vmatpush1.bf16.msra.mxu0 %v893
        %2390 = vmatprep.subr.bf16.mxu0 %v900
        %2391 = vmatpush1.bf16.msra.mxu0 %v899
        %2392 = vmatprep.subr.bf16.mxu0 %v906
        %2393 = vmatpush1.bf16.msra.mxu0 %v905
        %2394 = vmatprep.subr.bf16.mxu0 %v912
        %2395 = vmatpush1.bf16.msra.mxu0 %v911
        %2396 = vmatprep.subr.bf16.mxu0 %v918
        %2397 = vmatpush1.bf16.msra.mxu0 %v917
        %2398 = vmatprep.subr.bf16.mxu0 %v924
        %2399 = vmatpush1.bf16.msra.mxu0 %v923
        %2400 = vmatprep.subr.bf16.mxu0 %v930
        %2401 = vmatpush1.bf16.msra.mxu0 %v929
        %2402 = vmatprep.subr.bf16.mxu0 %v936
        %2403 = vmatpush1.bf16.msra.mxu0 %v935
        %2404 = vmatprep.subr.bf16.mxu0 %v942
        %2405 = vmatpush1.bf16.msra.mxu0 %v941
        %2406 = vmatprep.subr.bf16.mxu0 %v948
        %2407 = vmatpush1.bf16.msra.mxu0 %v947
        %2408 = vmatprep.subr.bf16.mxu0 %v954
        %2409 = vmatpush1.bf16.msra.mxu0 %v953
        %2410 = vmatprep.subr.bf16.mxu0 %v960
        %2411 = vmatpush1.bf16.msra.mxu0 %v959
        %2412 = vmatprep.subr.bf16.mxu0 %v966
        %2413 = vmatpush1.bf16.msra.mxu0 %v965
        %2414 = vmatprep.subr.bf16.mxu0 %v972
        %2415 = vmatpush1.bf16.msra.mxu0 %v971
        %2416 = vmatprep.mubr.bf16.mxu0 %v2200
        %2417 = vmatmul.mubr.bf16.gmra.mrb[0].mxu0 %v2193
        %v2418 = vpop.f32.mrb[0].mxu0
        %v2419 = vadd.f32 0.0, %v2418
        %v2420 = vpop.f32.mrb[0].mxu0
        %v2421 = vadd.f32 0.0, %v2420
        %v2422 = vpop.f32.mrb[0].mxu0
        %v2423 = vadd.f32 0.0, %v2422
        %v2424 = vpop.f32.mrb[0].mxu0
        %v2425 = vadd.f32 0.0, %v2424
        %2426 = vdwg.mxu0
        %2427 = vmatprep.subr.bf16.mxu0 %v978
        %2428 = vmatpush1.bf16.msra.mxu0 %v977
        %2429 = vmatprep.subr.bf16.mxu0 %v1108
        %2430 = vmatpush1.bf16.msra.mxu0 %v1105
        %2431 = vmatprep.subr.bf16.mxu0 0
        %2432 = vmatpush1.bf16.msra.mxu0 0
        %2433 = vmatprep.subr.bf16.mxu0 0
        %2434 = vmatpush1.bf16.msra.mxu0 0
        %2435 = vmatprep.subr.bf16.mxu0 0
        %2436 = vmatpush1.bf16.msra.mxu0 0
        %2437 = vmatprep.subr.bf16.mxu0 0
        %2438 = vmatpush1.bf16.msra.mxu0 0
        %2439 = vmatprep.subr.bf16.mxu0 0
        %2440 = vmatpush1.bf16.msra.mxu0 0
        %2441 = vmatprep.subr.bf16.mxu0 0
        %2442 = vmatpush1.bf16.msra.mxu0 0
        %2443 = vmatprep.subr.bf16.mxu0 0
        %2444 = vmatpush1.bf16.msra.mxu0 0
        %2445 = vmatprep.subr.bf16.mxu0 0
        %2446 = vmatpush1.bf16.msra.mxu0 0
        %2447 = vmatprep.subr.bf16.mxu0 0
        %2448 = vmatpush1.bf16.msra.mxu0 0
        %2449 = vmatprep.subr.bf16.mxu0 0
        %2450 = vmatpush1.bf16.msra.mxu0 0
        %2451 = vmatprep.subr.bf16.mxu0 0
        %2452 = vmatpush1.bf16.msra.mxu0 0
        %2453 = vmatprep.subr.bf16.mxu0 0
        %2454 = vmatpush1.bf16.msra.mxu0 0
        %2455 = vmatprep.subr.bf16.mxu0 0
        %2456 = vmatpush1.bf16.msra.mxu0 0
        %2457 = vmatprep.subr.bf16.mxu0 0
        %2458 = vmatpush1.bf16.msra.mxu0 0
        %2459 = vmatprep.mubr.bf16.mxu0 0
        %2460 = vmatmul.mubr.bf16.gmra.mrb[0].mxu0 %v2210
        %v2461 = vpop.f32.mrb[0].mxu0
        %v2462 = vadd.f32 %v2419, %v2461
        %v2463 = vpop.f32.mrb[0].mxu0
        %v2464 = vadd.f32 %v2421, %v2463
        %v2465 = vpop.f32.mrb[0].mxu0
        %v2466 = vadd.f32 %v2423, %v2465
        %v2467 = vpop.f32.mrb[0].mxu0
        %v2468 = vadd.f32 %v2425, %v2467
        %2469 = vdwg.mxu0
        %2470 = vmatprep.subr.bf16.mxu0 %v1699
        %2471 = vmatpush1.bf16.msra.mxu0 %v1698
        %2472 = vmatprep.subr.bf16.mxu0 %v1705
        %2473 = vmatpush1.bf16.msra.mxu0 %v1704
        %2474 = vmatprep.subr.bf16.mxu0 %v1711
        %2475 = vmatpush1.bf16.msra.mxu0 %v1710
        %2476 = vmatprep.subr.bf16.mxu0 %v1717
        %2477 = vmatpush1.bf16.msra.mxu0 %v1716
        %2478 = vmatprep.subr.bf16.mxu0 %v1723
        %2479 = vmatpush1.bf16.msra.mxu0 %v1722
        %2480 = vmatprep.subr.bf16.mxu0 %v1729
        %2481 = vmatpush1.bf16.msra.mxu0 %v1728
        %2482 = vmatprep.subr.bf16.mxu0 %v1735
        %2483 = vmatpush1.bf16.msra.mxu0 %v1734
        %2484 = vmatprep.subr.bf16.mxu0 %v1741
        %2485 = vmatpush1.bf16.msra.mxu0 %v1740
        %2486 = vmatprep.subr.bf16.mxu0 %v1747
        %2487 = vmatpush1.bf16.msra.mxu0 %v1746
        %2488 = vmatprep.subr.bf16.mxu0 %v1753
        %2489 = vmatpush1.bf16.msra.mxu0 %v1752
        %2490 = vmatprep.subr.bf16.mxu0 %v1759
        %2491 = vmatpush1.bf16.msra.mxu0 %v1758
        %2492 = vmatprep.subr.bf16.mxu0 %v1765
        %2493 = vmatpush1.bf16.msra.mxu0 %v1764
        %2494 = vmatprep.subr.bf16.mxu0 %v1771
        %2495 = vmatpush1.bf16.msra.mxu0 %v1770
        %2496 = vmatprep.subr.bf16.mxu0 %v1777
        %2497 = vmatpush1.bf16.msra.mxu0 %v1776
        %2498 = vmatprep.subr.bf16.mxu0 %v1783
        %2499 = vmatpush1.bf16.msra.mxu0 %v1782
        %2500 = vmatprep.subr.bf16.mxu0 %v1789
        %2501 = vmatpush1.bf16.msra.mxu0 %v1788
        %2502 = vmatprep.mubr.bf16.mxu0 %v558
        %2503 = vmatmul.mubr.bf16.gmra.mrb[0].mxu0 %v557
        %v2504 = vpop.f32.mrb[0].mxu0
        %v2505 = vadd.f32 %v2290, %v2504
        %v2506 = vpop.f32.mrb[0].mxu0
        %v2507 = vadd.f32 %v2292, %v2506
        %v2508 = vpop.f32.mrb[0].mxu0
        %v2509 = vadd.f32 %v2294, %v2508
        %v2510 = vpop.f32.mrb[0].mxu0
        %v2511 = vadd.f32 %v2296, %v2510
        %2512 = vdwg.mxu0
        %2513 = vmatprep.subr.bf16.mxu0 %v1795
        %2514 = vmatpush1.bf16.msra.mxu0 %v1794
        %2515 = vmatprep.subr.bf16.mxu0 %v1915
        %2516 = vmatpush1.bf16.msra.mxu0 %v1912
        %2517 = vmatprep.subr.bf16.mxu0 0
        %2518 = vmatpush1.bf16.msra.mxu0 0
        %2519 = vmatprep.subr.bf16.mxu0 0
        %2520 = vmatpush1.bf16.msra.mxu0 0
        %2521 = vmatprep.subr.bf16.mxu0 0
        %2522 = vmatpush1.bf16.msra.mxu0 0
        %2523 = vmatprep.subr.bf16.mxu0 0
        %2524 = vmatpush1.bf16.msra.mxu0 0
        %2525 = vmatprep.subr.bf16.mxu0 0
        %2526 = vmatpush1.bf16.msra.mxu0 0
        %2527 = vmatprep.subr.bf16.mxu0 0
        %2528 = vmatpush1.bf16.msra.mxu0 0
        %2529 = vmatprep.subr.bf16.mxu0 0
        %2530 = vmatpush1.bf16.msra.mxu0 0
        %2531 = vmatprep.subr.bf16.mxu0 0
        %2532 = vmatpush1.bf16.msra.mxu0 0
        %2533 = vmatprep.subr.bf16.mxu0 0
        %2534 = vmatpush1.bf16.msra.mxu0 0
        %2535 = vmatprep.subr.bf16.mxu0 0
        %2536 = vmatpush1.bf16.msra.mxu0 0
        %2537 = vmatprep.subr.bf16.mxu0 0
        %2538 = vmatpush1.bf16.msra.mxu0 0
        %2539 = vmatprep.subr.bf16.mxu0 0
        %2540 = vmatpush1.bf16.msra.mxu0 0
        %2541 = vmatprep.subr.bf16.mxu0 0
        %2542 = vmatpush1.bf16.msra.mxu0 0
        %2543 = vmatprep.subr.bf16.mxu0 0
        %2544 = vmatpush1.bf16.msra.mxu0 0
        %2545 = vmatprep.mubr.bf16.mxu0 0
        %2546 = vmatmul.mubr.bf16.gmra.mrb[0].mxu0 %v1089
        %v2547 = vpop.f32.mrb[0].mxu0
        %v2548 = vadd.f32 %v2505, %v2547
        %v2549 = vpop.f32.mrb[0].mxu0
        %v2550 = vadd.f32 %v2507, %v2549
        %v2551 = vpop.f32.mrb[0].mxu0
        %v2552 = vadd.f32 %v2509, %v2551
        %v2553 = vpop.f32.mrb[0].mxu0
        %v2554 = vadd.f32 %v2511, %v2553
        %2555 = vdwg.mxu0
        %2556 = vmatprep.subr.bf16.mxu0 %v1701
        %2557 = vmatpush1.bf16.msra.mxu0 %v1700
        %2558 = vmatprep.subr.bf16.mxu0 %v1707
        %2559 = vmatpush1.bf16.msra.mxu0 %v1706
        %2560 = vmatprep.subr.bf16.mxu0 %v1713
        %2561 = vmatpush1.bf16.msra.mxu0 %v1712
        %2562 = vmatprep.subr.bf16.mxu0 %v1719
        %2563 = vmatpush1.bf16.msra.mxu0 %v1718
        %2564 = vmatprep.subr.bf16.mxu0 %v1725
        %2565 = vmatpush1.bf16.msra.mxu0 %v1724
        %2566 = vmatprep.subr.bf16.mxu0 %v1731
        %2567 = vmatpush1.bf16.msra.mxu0 %v1730
        %2568 = vmatprep.subr.bf16.mxu0 %v1737
        %2569 = vmatpush1.bf16.msra.mxu0 %v1736
        %2570 = vmatprep.subr.bf16.mxu0 %v1743
        %2571 = vmatpush1.bf16.msra.mxu0 %v1742
        %2572 = vmatprep.subr.bf16.mxu0 %v1749
        %2573 = vmatpush1.bf16.msra.mxu0 %v1748
        %2574 = vmatprep.subr.bf16.mxu0 %v1755
        %2575 = vmatpush1.bf16.msra.mxu0 %v1754
        %2576 = vmatprep.subr.bf16.mxu0 %v1761
        %2577 = vmatpush1.bf16.msra.mxu0 %v1760
        %2578 = vmatprep.subr.bf16.mxu0 %v1767
        %2579 = vmatpush1.bf16.msra.mxu0 %v1766
        %2580 = vmatprep.subr.bf16.mxu0 %v1773
        %2581 = vmatpush1.bf16.msra.mxu0 %v1772
        %2582 = vmatprep.subr.bf16.mxu0 %v1779
        %2583 = vmatpush1.bf16.msra.mxu0 %v1778
        %2584 = vmatprep.subr.bf16.mxu0 %v1785
        %2585 = vmatpush1.bf16.msra.mxu0 %v1784
        %2586 = vmatprep.subr.bf16.mxu0 %v1791
        %2587 = vmatpush1.bf16.msra.mxu0 %v1790
        %2588 = vmatprep.mubr.bf16.mxu0 %v558
        %2589 = vmatmul.mubr.bf16.gmra.mrb[0].mxu0 %v557
        %v2590 = vpop.f32.mrb[0].mxu0
        %v2591 = vadd.f32 %v2376, %v2590
        %v2592 = vpop.f32.mrb[0].mxu0
        %v2593 = vadd.f32 %v2378, %v2592
        %v2594 = vpop.f32.mrb[0].mxu0
        %v2595 = vadd.f32 %v2380, %v2594
        %v2596 = vpop.f32.mrb[0].mxu0
        %v2597 = vadd.f32 %v2382, %v2596
        %2598 = vdwg.mxu0
        %2599 = vmatprep.subr.bf16.mxu0 %v1797
        %2600 = vmatpush1.bf16.msra.mxu0 %v1796
        %2601 = vmatprep.subr.bf16.mxu0 %v1921
        %2602 = vmatpush1.bf16.msra.mxu0 %v1918
        %2603 = vmatprep.subr.bf16.mxu0 0
        %2604 = vmatpush1.bf16.msra.mxu0 0
        %2605 = vmatprep.subr.bf16.mxu0 0
        %2606 = vmatpush1.bf16.msra.mxu0 0
        %2607 = vmatprep.subr.bf16.mxu0 0
        %2608 = vmatpush1.bf16.msra.mxu0 0
        %2609 = vmatprep.subr.bf16.mxu0 0
        %2610 = vmatpush1.bf16.msra.mxu0 0
        %2611 = vmatprep.subr.bf16.mxu0 0
        %2612 = vmatpush1.bf16.msra.mxu0 0
        %2613 = vmatprep.subr.bf16.mxu0 0
        %2614 = vmatpush1.bf16.msra.mxu0 0
        %2615 = vmatprep.subr.bf16.mxu0 0
        %2616 = vmatpush1.bf16.msra.mxu0 0
        %2617 = vmatprep.subr.bf16.mxu0 0
        %2618 = vmatpush1.bf16.msra.mxu0 0
        %2619 = vmatprep.subr.bf16.mxu0 0
        %2620 = vmatpush1.bf16.msra.mxu0 0
        %2621 = vmatprep.subr.bf16.mxu0 0
        %2622 = vmatpush1.bf16.msra.mxu0 0
        %2623 = vmatprep.subr.bf16.mxu0 0
        %2624 = vmatpush1.bf16.msra.mxu0 0
        %2625 = vmatprep.subr.bf16.mxu0 0
        %2626 = vmatpush1.bf16.msra.mxu0 0
        %2627 = vmatprep.subr.bf16.mxu0 0
        %2628 = vmatpush1.bf16.msra.mxu0 0
        %2629 = vmatprep.subr.bf16.mxu0 0
        %2630 = vmatpush1.bf16.msra.mxu0 0
        %2631 = vmatprep.mubr.bf16.mxu0 0
        %2632 = vmatmul.mubr.bf16.gmra.mrb[0].mxu0 %v1089
        %v2633 = vpop.f32.mrb[0].mxu0
        %v2634 = vadd.f32 %v2591, %v2633
        %v2635 = vpop.f32.mrb[0].mxu0
        %v2636 = vadd.f32 %v2593, %v2635
        %v2637 = vpop.f32.mrb[0].mxu0
        %v2638 = vadd.f32 %v2595, %v2637
        %v2639 = vpop.f32.mrb[0].mxu0
        %v2640 = vadd.f32 %v2597, %v2639
        %2641 = vdwg.mxu0
        %2642 = vmatprep.subr.bf16.mxu0 %v1703
        %2643 = vmatpush1.bf16.msra.mxu0 %v1702
        %2644 = vmatprep.subr.bf16.mxu0 %v1709
        %2645 = vmatpush1.bf16.msra.mxu0 %v1708
        %2646 = vmatprep.subr.bf16.mxu0 %v1715
        %2647 = vmatpush1.bf16.msra.mxu0 %v1714
        %2648 = vmatprep.subr.bf16.mxu0 %v1721
        %2649 = vmatpush1.bf16.msra.mxu0 %v1720
        %2650 = vmatprep.subr.bf16.mxu0 %v1727
        %2651 = vmatpush1.bf16.msra.mxu0 %v1726
        %2652 = vmatprep.subr.bf16.mxu0 %v1733
        %2653 = vmatpush1.bf16.msra.mxu0 %v1732
        %2654 = vmatprep.subr.bf16.mxu0 %v1739
        %2655 = vmatpush1.bf16.msra.mxu0 %v1738
        %2656 = vmatprep.subr.bf16.mxu0 %v1745
        %2657 = vmatpush1.bf16.msra.mxu0 %v1744
        %2658 = vmatprep.subr.bf16.mxu0 %v1751
        %2659 = vmatpush1.bf16.msra.mxu0 %v1750
        %2660 = vmatprep.subr.bf16.mxu0 %v1757
        %2661 = vmatpush1.bf16.msra.mxu0 %v1756
        %2662 = vmatprep.subr.bf16.mxu0 %v1763
        %2663 = vmatpush1.bf16.msra.mxu0 %v1762
        %2664 = vmatprep.subr.bf16.mxu0 %v1769
        %2665 = vmatpush1.bf16.msra.mxu0 %v1768
        %2666 = vmatprep.subr.bf16.mxu0 %v1775
        %2667 = vmatpush1.bf16.msra.mxu0 %v1774
        %2668 = vmatprep.subr.bf16.mxu0 %v1781
        %2669 = vmatpush1.bf16.msra.mxu0 %v1780
        %2670 = vmatprep.subr.bf16.mxu0 %v1787
        %2671 = vmatpush1.bf16.msra.mxu0 %v1786
        %2672 = vmatprep.subr.bf16.mxu0 %v1793
        %2673 = vmatpush1.bf16.msra.mxu0 %v1792
        %2674 = vmatprep.mubr.bf16.mxu0 %v558
        %2675 = vmatmul.mubr.bf16.gmra.mrb[0].mxu0 %v557
        %v2676 = vpop.f32.mrb[0].mxu0
        %v2677 = vadd.f32 %v2462, %v2676
        %v2678 = vpop.f32.mrb[0].mxu0
        %v2679 = vadd.f32 %v2464, %v2678
        %v2680 = vpop.f32.mrb[0].mxu0
        %v2681 = vadd.f32 %v2466, %v2680
        %v2682 = vpop.f32.mrb[0].mxu0
        %v2683 = vadd.f32 %v2468, %v2682
        %2684 = vdwg.mxu0
        %2685 = vmatprep.subr.bf16.mxu0 %v1799
        %2686 = vmatpush1.bf16.msra.mxu0 %v1798
        %2687 = vmatprep.subr.bf16.mxu0 %v1927
        %2688 = vmatpush1.bf16.msra.mxu0 %v1924
        %2689 = vmatprep.subr.bf16.mxu0 0
        %2690 = vmatpush1.bf16.msra.mxu0 0
        %2691 = vmatprep.subr.bf16.mxu0 0
        %2692 = vmatpush1.bf16.msra.mxu0 0
        %2693 = vmatprep.subr.bf16.mxu0 0
        %2694 = vmatpush1.bf16.msra.mxu0 0
        %2695 = vmatprep.subr.bf16.mxu0 0
        %2696 = vmatpush1.bf16.msra.mxu0 0
        %2697 = vmatprep.subr.bf16.mxu0 0
        %2698 = vmatpush1.bf16.msra.mxu0 0
        %2699 = vmatprep.subr.bf16.mxu0 0
        %2700 = vmatpush1.bf16.msra.mxu0 0
        %2701 = vmatprep.subr.bf16.mxu0 0
        %2702 = vmatpush1.bf16.msra.mxu0 0
        %2703 = vmatprep.subr.bf16.mxu0 0
        %2704 = vmatpush1.bf16.msra.mxu0 0
        %2705 = vmatprep.subr.bf16.mxu0 0
        %2706 = vmatpush1.bf16.msra.mxu0 0
        %2707 = vmatprep.subr.bf16.mxu0 0
        %2708 = vmatpush1.bf16.msra.mxu0 0
        %2709 = vmatprep.subr.bf16.mxu0 0
        %2710 = vmatpush1.bf16.msra.mxu0 0
        %2711 = vmatprep.subr.bf16.mxu0 0
        %2712 = vmatpush1.bf16.msra.mxu0 0
        %2713 = vmatprep.subr.bf16.mxu0 0
        %2714 = vmatpush1.bf16.msra.mxu0 0
        %2715 = vmatprep.subr.bf16.mxu0 0
        %2716 = vmatpush1.bf16.msra.mxu0 0
        %2717 = vmatprep.mubr.bf16.mxu0 0
        %2718 = vmatmul.mubr.bf16.gmra.mrb[0].mxu0 %v1089
        %v2719 = vpop.f32.mrb[0].mxu0
        %v2720 = vadd.f32 %v2677, %v2719
        %v2721 = vpop.f32.mrb[0].mxu0
        %v2722 = vadd.f32 %v2679, %v2721
        %v2723 = vpop.f32.mrb[0].mxu0
        %v2724 = vadd.f32 %v2681, %v2723
        %v2725 = vpop.f32.mrb[0].mxu0
        %v2726 = vadd.f32 %v2683, %v2725
        %2727 = vdwg.mxu0
        %s2728 = scalar_lea.vmem [#allocation2], 1680
        %v2729 = vld [vmem:[%s2728] sm:$0xff]
        %v2730 = vld [vmem:[%s2728 + $0x8] sm:$0xff]
        %v2731 = vld [vmem:[%s2728 + $0x10] sm:$0xff]
        %v2732 = vld [vmem:[%s2728 + $0x18] sm:$0xff]
        %v2733 = vld [vmem:[%s2728 + $0x20] sm:$0xff]
        %v2734 = vld [vmem:[%s2728 + $0x28] sm:$0xff]
        %v2735 = vld [vmem:[%s2728 + $0x30] sm:$0xff]
        %v2736 = vld [vmem:[%s2728 + $0x38] sm:$0xff]
        %v2737 = vld [vmem:[%s2728 + $0x40] sm:$0xff]
        %v2738 = vld [vmem:[%s2728 + $0x48] sm:$0xff]
        %v2739 = vld [vmem:[%s2728 + $0x50] sm:$0xff]
        %v2740 = vld [vmem:[%s2728 + $0x58] sm:$0xff]
        %v2741 = vld [vmem:[%s2728 + $0x60] sm:$0xff]
        %v2742 = vld [vmem:[%s2728 + $0x68] sm:$0xff]
        %v2743 = vld [vmem:[%s2728 + $0x70] sm:$0xff]
        %v2744 = vld [vmem:[%s2728 + $0x78] sm:$0xff]
        %v2745 = vld [vmem:[%s2728 + $0x80] sm:$0xff]
        %v2746 = vld [vmem:[%s2728 + $0x88] sm:$0xff]
        %v2747 = vld [vmem:[%s2728 + $0x90] sm:$0xff]
        %v2748 = vld [vmem:[%s2728 + $0x98] sm:$0xff]
        %v2749 = vld [vmem:[%s2728 + $0xa0] sm:$0xff]
        %v2750 = vld [vmem:[%s2728 + $0xa8] sm:$0xff]
        %v2751 = vld [vmem:[%s2728 + $0xb0] sm:$0xff]
        %v2752 = vld [vmem:[%s2728 + $0xb8] sm:$0xff]
        %v2753 = vld [vmem:[%s2728 + $0xc0] sm:$0xff]
        %v2754 = vld [vmem:[%s2728 + $0xc8] sm:$0xff]
        %v2755 = vld [vmem:[%s2728 + $0xd0] sm:$0xff]
        %v2756 = vld [vmem:[%s2728 + $0xd8] sm:$0xff]
        %v2757 = vld [vmem:[%s2728 + $0xe0] sm:$0xff]
        %v2758 = vld [vmem:[%s2728 + $0xe8] sm:$0xff]
        %v2759 = vld [vmem:[%s2728 + $0xf0] sm:$0xff]
        %v2760 = vld [vmem:[%s2728 + $0xf8] sm:$0xff]
        %v2761 = vld [vmem:[%s2728 + $0x100] sm:$0xff]
        %v2762 = vld [vmem:[%s2728 + $0x108] sm:$0xff]
        %v2763 = vld [vmem:[%s2728 + $0x110] sm:$0xff]
        %v2764 = vld [vmem:[%s2728 + $0x118] sm:$0xff]
        %v2765 = vld [vmem:[%s2728 + $0x120] sm:$0xff]
        %v2766 = vld [vmem:[%s2728 + $0x128] sm:$0xff]
        %v2767 = vld [vmem:[%s2728 + $0x130] sm:$0xff]
        %v2768 = vld [vmem:[%s2728 + $0x138] sm:$0xff]
        %v2769 = vld [vmem:[%s2728 + $0x140] sm:$0xff]
        %v2770 = vld [vmem:[%s2728 + $0x148] sm:$0xff]
        %v2771 = vld [vmem:[%s2728 + $0x150] sm:$0xff]
        %v2772 = vld [vmem:[%s2728 + $0x158] sm:$0xff]
        %v2773 = vld [vmem:[%s2728 + $0x160] sm:$0xff]
        %v2774 = vld [vmem:[%s2728 + $0x168] sm:$0xff]
        %v2775 = vld [vmem:[%s2728 + $0x170] sm:$0xff]
        %v2776 = vld [vmem:[%s2728 + $0x178] sm:$0xff]
        %v2777 = vld [vmem:[%s2728 + $0x180] sm:$0xff]
        %v2778 = vld [vmem:[%s2728 + $0x188] sm:$0xff]
        %v2779 = vld [vmem:[%s2728 + $0x190] sm:$0xff]
        %v2780 = vld [vmem:[%s2728 + $0x198] sm:$0xff]
        %v2781 = vld [vmem:[%s2728 + $0x1a0] sm:$0xff]
        %v2782 = vld [vmem:[%s2728 + $0x1a8] sm:$0xff]
        %v2783 = vld [vmem:[%s2728 + $0x1b0] sm:$0xff]
        %v2784 = vld [vmem:[%s2728 + $0x1b8] sm:$0xff]
        %v2785 = vld [vmem:[%s2728 + $0x1c0] sm:$0xff]
        %v2786 = vld [vmem:[%s2728 + $0x1c8] sm:$0xff]
        %v2787 = vld [vmem:[%s2728 + $0x1d0] sm:$0xff]
        %v2788 = vld [vmem:[%s2728 + $0x1d8] sm:$0xff]
        %v2789 = vld [vmem:[%s2728 + $0x1e0] sm:$0xff]
        %v2790 = vld [vmem:[%s2728 + $0x1e8] sm:$0xff]
        %v2791 = vld [vmem:[%s2728 + $0x1f0] sm:$0xff]
        %v2792 = vld [vmem:[%s2728 + $0x1f8] sm:$0xff]
        %v2793 = vld [vmem:[%s2728 + $0x200] sm:$0xff]
        %v2794 = vld [vmem:[%s2728 + $0x208] sm:$0xff]
        %v2795 = vld [vmem:[%s2728 + $0x210] sm:$0xff]
        %v2796 = vld [vmem:[%s2728 + $0x218] sm:$0xff]
        %v2797 = vld [vmem:[%s2728 + $0x220] sm:$0xff]
        %v2798 = vld [vmem:[%s2728 + $0x228] sm:$0xff]
        %v2799 = vld [vmem:[%s2728 + $0x230] sm:$0xff]
        %v2800 = vld [vmem:[%s2728 + $0x238] sm:$0xff]
        %v2801 = vld [vmem:[%s2728 + $0x240] sm:$0xff]
        %v2802 = vld [vmem:[%s2728 + $0x248] sm:$0xff]
        %v2803 = vld [vmem:[%s2728 + $0x250] sm:$0xff]
        %v2804 = vld [vmem:[%s2728 + $0x258] sm:$0xff]
        %v2805 = vld [vmem:[%s2728 + $0x260] sm:$0xff]
        %v2806 = vld [vmem:[%s2728 + $0x268] sm:$0xff]
        %v2807 = vld [vmem:[%s2728 + $0x270] sm:$0xff]
        %v2808 = vld [vmem:[%s2728 + $0x278] sm:$0xff]
        %v2809 = vld [vmem:[%s2728 + $0x280] sm:$0xff]
        %v2810 = vld [vmem:[%s2728 + $0x288] sm:$0xff]
        %v2811 = vld [vmem:[%s2728 + $0x290] sm:$0xff]
        %v2812 = vld [vmem:[%s2728 + $0x298] sm:$0xff]
        %v2813 = vld [vmem:[%s2728 + $0x2a0] sm:$0xff]
        %v2814 = vld [vmem:[%s2728 + $0x2a8] sm:$0xff]
        %v2815 = vld [vmem:[%s2728 + $0x2b0] sm:$0xff]
        %v2816 = vld [vmem:[%s2728 + $0x2b8] sm:$0xff]
        %v2817 = vld [vmem:[%s2728 + $0x2c0] sm:$0xff]
        %v2818 = vld [vmem:[%s2728 + $0x2c8] sm:$0xff]
        %v2819 = vld [vmem:[%s2728 + $0x2d0] sm:$0xff]
        %v2820 = vld [vmem:[%s2728 + $0x2d8] sm:$0xff]
        %v2821 = vld [vmem:[%s2728 + $0x2e0] sm:$0xff]
        %v2822 = vld [vmem:[%s2728 + $0x2e8] sm:$0xff]
        %v2823 = vld [vmem:[%s2728 + $0x2f0] sm:$0xff]
        %v2824 = vld [vmem:[%s2728 + $0x2f8] sm:$0xff]
        %v2825 = vld [vmem:[%s2728 + $0x300] sm:$0xff]
        %v2826 = vld [vmem:[%s2728 + $0x308] sm:$0xff]
        %v2827 = vld [vmem:[%s2728 + $0x310] sm:$0xff]
        %v2828 = vld [vmem:[%s2728 + $0x318] sm:$0xff]
        %v2829 = vld [vmem:[%s2728 + $0x320] sm:$0xff]
        %v2830 = vld [vmem:[%s2728 + $0x328] sm:$0xff]
        %v2831 = vld [vmem:[%s2728 + $0x330] sm:$0xff]
        %v2832 = vld [vmem:[%s2728 + $0x338] sm:$0xff]
        %v2833 = vld [vmem:[%s2728 + $0x340] sm:$0xff]
        %v2939 = vunpack.c.l.b16 %v2729
        %v2940 = vunpack.c.h.b16 %v2729
        %v2941 = vunpack.c.l.b16 %v2730
        %v2942 = vunpack.c.h.b16 %v2730
        %v2943 = vunpack.c.l.b16 %v2731
        %v2944 = vunpack.c.h.b16 %v2731
        %v2945 = vunpack.c.l.b16 %v2732
        %v2946 = vunpack.c.h.b16 %v2732
        %v2947 = vunpack.c.l.b16 %v2733
        %v2948 = vunpack.c.h.b16 %v2733
        %v2949 = vunpack.c.l.b16 %v2734
        %v2950 = vunpack.c.h.b16 %v2734
        %v2951 = vunpack.c.l.b16 %v2735
        %v2952 = vunpack.c.h.b16 %v2735
        %v2953 = vunpack.c.l.b16 %v2736
        %v2954 = vunpack.c.h.b16 %v2736
        %v2955 = vunpack.c.l.b16 %v2737
        %v2956 = vunpack.c.h.b16 %v2737
        %v2957 = vunpack.c.l.b16 %v2738
        %v2958 = vunpack.c.h.b16 %v2738
        %v2959 = vunpack.c.l.b16 %v2739
        %v2960 = vunpack.c.h.b16 %v2739
        %v2961 = vunpack.c.l.b16 %v2740
        %v2962 = vunpack.c.h.b16 %v2740
        %v2963 = vunpack.c.l.b16 %v2741
        %v2964 = vunpack.c.h.b16 %v2741
        %v2965 = vunpack.c.l.b16 %v2742
        %v2966 = vunpack.c.h.b16 %v2742
        %v2967 = vunpack.c.l.b16 %v2743
        %v2968 = vunpack.c.h.b16 %v2743
        %v2969 = vunpack.c.l.b16 %v2744
        %v2970 = vunpack.c.h.b16 %v2744
        %v2971 = vunpack.c.l.b16 %v2745
        %v2972 = vunpack.c.h.b16 %v2745
        %v2973 = vunpack.c.l.b16 %v2746
        %v2974 = vunpack.c.h.b16 %v2746
        %v2975 = vunpack.c.l.b16 %v2747
        %v2976 = vunpack.c.h.b16 %v2747
        %v2977 = vunpack.c.l.b16 %v2748
        %v2978 = vunpack.c.h.b16 %v2748
        %v2979 = vunpack.c.l.b16 %v2749
        %v2980 = vunpack.c.h.b16 %v2749
        %v2981 = vunpack.c.l.b16 %v2750
        %v2982 = vunpack.c.h.b16 %v2750
        %v2983 = vunpack.c.l.b16 %v2751
        %v2984 = vunpack.c.h.b16 %v2751
        %v2985 = vunpack.c.l.b16 %v2752
        %v2986 = vunpack.c.h.b16 %v2752
        %v2987 = vunpack.c.l.b16 %v2753
        %v2988 = vunpack.c.h.b16 %v2753
        %v2989 = vunpack.c.l.b16 %v2754
        %v2990 = vunpack.c.h.b16 %v2754
        %v2991 = vunpack.c.l.b16 %v2755
        %v2992 = vunpack.c.h.b16 %v2755
        %v2993 = vunpack.c.l.b16 %v2756
        %v2994 = vunpack.c.h.b16 %v2756
        %v2995 = vunpack.c.l.b16 %v2757
        %v2996 = vunpack.c.h.b16 %v2757
        %v2997 = vunpack.c.l.b16 %v2758
        %v2998 = vunpack.c.h.b16 %v2758
        %v2999 = vunpack.c.l.b16 %v2759
        %v3000 = vunpack.c.h.b16 %v2759
        %v3001 = vunpack.c.l.b16 %v2760
        %v3002 = vunpack.c.h.b16 %v2760
        %v3003 = vunpack.c.l.b16 %v2761
        %v3004 = vunpack.c.h.b16 %v2761
        %v3005 = vunpack.c.l.b16 %v2762
        %v3006 = vunpack.c.h.b16 %v2762
        %v3007 = vunpack.c.l.b16 %v2763
        %v3008 = vunpack.c.h.b16 %v2763
        %v3009 = vunpack.c.l.b16 %v2764
        %v3010 = vunpack.c.h.b16 %v2764
        %v3011 = vunpack.c.l.b16 %v2765
        %v3012 = vunpack.c.h.b16 %v2765
        %v3013 = vunpack.c.l.b16 %v2766
        %v3014 = vunpack.c.h.b16 %v2766
        %v3015 = vunpack.c.l.b16 %v2767
        %v3016 = vunpack.c.h.b16 %v2767
        %v3017 = vunpack.c.l.b16 %v2768
        %v3018 = vunpack.c.h.b16 %v2768
        %v3019 = vunpack.c.l.b16 %v2769
        %v3020 = vunpack.c.h.b16 %v2769
        %v3021 = vunpack.c.l.b16 %v2770
        %v3022 = vunpack.c.h.b16 %v2770
        %v3023 = vunpack.c.l.b16 %v2771
        %v3024 = vunpack.c.h.b16 %v2771
        %v3025 = vunpack.c.l.b16 %v2772
        %v3026 = vunpack.c.h.b16 %v2772
        %v3027 = vunpack.c.l.b16 %v2773
        %v3028 = vunpack.c.h.b16 %v2773
        %v3029 = vunpack.c.l.b16 %v2774
        %v3030 = vunpack.c.h.b16 %v2774
        %v3031 = vunpack.c.l.b16 %v2775
        %v3032 = vunpack.c.h.b16 %v2775
        %v3033 = vunpack.c.l.b16 %v2776
        %v3034 = vunpack.c.h.b16 %v2776
        %v3035 = vunpack.c.l.b16 %v2777
        %v3036 = vunpack.c.h.b16 %v2777
        %v3037 = vunpack.c.l.b16 %v2778
        %v3038 = vunpack.c.h.b16 %v2778
        %v3039 = vunpack.c.l.b16 %v2779
        %v3040 = vunpack.c.h.b16 %v2779
        %v3041 = vunpack.c.l.b16 %v2780
        %v3042 = vunpack.c.h.b16 %v2780
        %v3043 = vunpack.c.l.b16 %v2781
        %v3044 = vunpack.c.h.b16 %v2781
        %v3045 = vunpack.c.l.b16 %v2782
        %v3046 = vunpack.c.h.b16 %v2782
        %v3047 = vunpack.c.l.b16 %v2783
        %v3048 = vunpack.c.h.b16 %v2783
        %v3049 = vunpack.c.l.b16 %v2784
        %v3050 = vunpack.c.h.b16 %v2784
        %v3051 = vunpack.c.l.b16 %v2785
        %v3052 = vunpack.c.h.b16 %v2785
        %v3053 = vunpack.c.l.b16 %v2786
        %v3054 = vunpack.c.h.b16 %v2786
        %v3055 = vunpack.c.l.b16 %v2787
        %v3056 = vunpack.c.h.b16 %v2787
        %v3057 = vunpack.c.l.b16 %v2788
        %v3058 = vunpack.c.h.b16 %v2788
        %v3059 = vunpack.c.l.b16 %v2789
        %v3060 = vunpack.c.h.b16 %v2789
        %v3061 = vunpack.c.l.b16 %v2790
        %v3062 = vunpack.c.h.b16 %v2790
        %v3063 = vunpack.c.l.b16 %v2791
        %v3064 = vunpack.c.h.b16 %v2791
        %v3065 = vunpack.c.l.b16 %v2792
        %v3066 = vunpack.c.h.b16 %v2792
        %v3067 = vunpack.c.l.b16 %v2793
        %v3068 = vunpack.c.h.b16 %v2793
        %v3069 = vunpack.c.l.b16 %v2794
        %v3070 = vunpack.c.h.b16 %v2794
        %v3071 = vunpack.c.l.b16 %v2795
        %v3072 = vunpack.c.h.b16 %v2795
        %v3073 = vunpack.c.l.b16 %v2796
        %v3074 = vunpack.c.h.b16 %v2796
        %v3075 = vunpack.c.l.b16 %v2797
        %v3076 = vunpack.c.h.b16 %v2797
        %v3077 = vunpack.c.l.b16 %v2798
        %v3078 = vunpack.c.h.b16 %v2798
        %v3079 = vunpack.c.l.b16 %v2799
        %v3080 = vunpack.c.h.b16 %v2799
        %v3081 = vunpack.c.l.b16 %v2800
        %v3082 = vunpack.c.h.b16 %v2800
        %v3083 = vunpack.c.l.b16 %v2801
        %v3084 = vunpack.c.h.b16 %v2801
        %v3085 = vunpack.c.l.b16 %v2802
        %v3086 = vunpack.c.h.b16 %v2802
        %v3087 = vunpack.c.l.b16 %v2803
        %v3088 = vunpack.c.h.b16 %v2803
        %v3089 = vunpack.c.l.b16 %v2804
        %v3090 = vunpack.c.h.b16 %v2804
        %v3091 = vunpack.c.l.b16 %v2805
        %v3092 = vunpack.c.h.b16 %v2805
        %v3093 = vunpack.c.l.b16 %v2806
        %v3094 = vunpack.c.h.b16 %v2806
        %v3095 = vunpack.c.l.b16 %v2807
        %v3096 = vunpack.c.h.b16 %v2807
        %v3097 = vunpack.c.l.b16 %v2808
        %v3098 = vunpack.c.h.b16 %v2808
        %v3099 = vunpack.c.l.b16 %v2809
        %v3100 = vunpack.c.h.b16 %v2809
        %v3101 = vunpack.c.l.b16 %v2810
        %v3102 = vunpack.c.h.b16 %v2810
        %v3103 = vunpack.c.l.b16 %v2811
        %v3104 = vunpack.c.h.b16 %v2811
        %v3105 = vunpack.c.l.b16 %v2812
        %v3106 = vunpack.c.h.b16 %v2812
        %v3107 = vunpack.c.l.b16 %v2813
        %v3108 = vunpack.c.h.b16 %v2813
        %v3109 = vunpack.c.l.b16 %v2814
        %v3110 = vunpack.c.h.b16 %v2814
        %v3111 = vunpack.c.l.b16 %v2815
        %v3112 = vunpack.c.h.b16 %v2815
        %v3113 = vunpack.c.l.b16 %v2816
        %v3114 = vunpack.c.h.b16 %v2816
        %v3115 = vunpack.c.l.b16 %v2817
        %v3116 = vunpack.c.h.b16 %v2817
        %v3117 = vunpack.c.l.b16 %v2818
        %v3118 = vunpack.c.h.b16 %v2818
        %v3119 = vunpack.c.l.b16 %v2819
        %v3120 = vunpack.c.h.b16 %v2819
        %v3121 = vunpack.c.l.b16 %v2820
        %v3122 = vunpack.c.h.b16 %v2820
        %v3123 = vunpack.c.l.b16 %v2821
        %v3124 = vunpack.c.h.b16 %v2821
        %v3125 = vunpack.c.l.b16 %v2822
        %v3126 = vunpack.c.h.b16 %v2822
        %v3127 = vunpack.c.l.b16 %v2823
        %v3128 = vunpack.c.h.b16 %v2823
        %v3129 = vunpack.c.l.b16 %v2824
        %v3130 = vunpack.c.h.b16 %v2824
        %v3131 = vunpack.c.l.b16 %v2825
        %v3132 = vunpack.c.h.b16 %v2825
        %v3133 = vunpack.c.l.b16 %v2826
        %v3134 = vunpack.c.h.b16 %v2826
        %v3135 = vunpack.c.l.b16 %v2827
        %v3136 = vunpack.c.h.b16 %v2827
        %v3137 = vunpack.c.l.b16 %v2828
        %v3138 = vunpack.c.h.b16 %v2828
        %v3139 = vunpack.c.l.b16 %v2829
        %v3140 = vunpack.c.h.b16 %v2829
        %v3141 = vunpack.c.l.b16 %v2830
        %v3142 = vunpack.c.h.b16 %v2830
        %v3143 = vunpack.c.l.b16 %v2831
        %v3144 = vunpack.c.h.b16 %v2831
        %v3145 = vunpack.c.l.b16 %v2832
        %v3146 = vunpack.c.h.b16 %v2832
        %v3147 = vunpack.c.l.b16 %v2833
        %v3148 = vunpack.c.h.b16 %v2833
        %v3149 = vpack.c.b16 %v2945, %v2939
        %v3150 = vpack.c.b16 %v2946, %v2940
        %v3151 = vpack.c.b16 %v2947, %v2941
        %v3152 = vpack.c.b16 %v2948, %v2942
        %v3153 = vpack.c.b16 %v2949, %v2943
        %v3154 = vpack.c.b16 %v2950, %v2944
        %v3155 = vpack.c.b16 %v2957, %v2951
        %v3156 = vpack.c.b16 %v2958, %v2952
        %v3157 = vpack.c.b16 %v2959, %v2953
        %v3158 = vpack.c.b16 %v2960, %v2954
        %v3159 = vpack.c.b16 %v2961, %v2955
        %v3160 = vpack.c.b16 %v2962, %v2956
        %v3161 = vpack.c.b16 %v2969, %v2963
        %v3162 = vpack.c.b16 %v2970, %v2964
        %v3163 = vpack.c.b16 %v2971, %v2965
        %v3164 = vpack.c.b16 %v2972, %v2966
        %v3165 = vpack.c.b16 %v2973, %v2967
        %v3166 = vpack.c.b16 %v2974, %v2968
        %v3167 = vpack.c.b16 %v2981, %v2975
        %v3168 = vpack.c.b16 %v2982, %v2976
        %v3169 = vpack.c.b16 %v2983, %v2977
        %v3170 = vpack.c.b16 %v2984, %v2978
        %v3171 = vpack.c.b16 %v2985, %v2979
        %v3172 = vpack.c.b16 %v2986, %v2980
        %v3173 = vpack.c.b16 %v2993, %v2987
        %v3174 = vpack.c.b16 %v2994, %v2988
        %v3175 = vpack.c.b16 %v2995, %v2989
        %v3176 = vpack.c.b16 %v2996, %v2990
        %v3177 = vpack.c.b16 %v2997, %v2991
        %v3178 = vpack.c.b16 %v2998, %v2992
        %v3179 = vpack.c.b16 %v3005, %v2999
        %v3180 = vpack.c.b16 %v3006, %v3000
        %v3181 = vpack.c.b16 %v3007, %v3001
        %v3182 = vpack.c.b16 %v3008, %v3002
        %v3183 = vpack.c.b16 %v3009, %v3003
        %v3184 = vpack.c.b16 %v3010, %v3004
        %v3185 = vpack.c.b16 %v3017, %v3011
        %v3186 = vpack.c.b16 %v3018, %v3012
        %v3187 = vpack.c.b16 %v3019, %v3013
        %v3188 = vpack.c.b16 %v3020, %v3014
        %v3189 = vpack.c.b16 %v3021, %v3015
        %v3190 = vpack.c.b16 %v3022, %v3016
        %v3191 = vpack.c.b16 %v3029, %v3023
        %v3192 = vpack.c.b16 %v3030, %v3024
        %v3193 = vpack.c.b16 %v3031, %v3025
        %v3194 = vpack.c.b16 %v3032, %v3026
        %v3195 = vpack.c.b16 %v3033, %v3027
        %v3196 = vpack.c.b16 %v3034, %v3028
        %v3197 = vpack.c.b16 %v3041, %v3035
        %v3198 = vpack.c.b16 %v3042, %v3036
        %v3199 = vpack.c.b16 %v3043, %v3037
        %v3200 = vpack.c.b16 %v3044, %v3038
        %v3201 = vpack.c.b16 %v3045, %v3039
        %v3202 = vpack.c.b16 %v3046, %v3040
        %v3203 = vpack.c.b16 %v3053, %v3047
        %v3204 = vpack.c.b16 %v3054, %v3048
        %v3205 = vpack.c.b16 %v3055, %v3049
        %v3206 = vpack.c.b16 %v3056, %v3050
        %v3207 = vpack.c.b16 %v3057, %v3051
        %v3208 = vpack.c.b16 %v3058, %v3052
        %v3209 = vpack.c.b16 %v3065, %v3059
        %v3210 = vpack.c.b16 %v3066, %v3060
        %v3211 = vpack.c.b16 %v3067, %v3061
        %v3212 = vpack.c.b16 %v3068, %v3062
        %v3213 = vpack.c.b16 %v3069, %v3063
        %v3214 = vpack.c.b16 %v3070, %v3064
        %v3215 = vpack.c.b16 %v3077, %v3071
        %v3216 = vpack.c.b16 %v3078, %v3072
        %v3217 = vpack.c.b16 %v3079, %v3073
        %v3218 = vpack.c.b16 %v3080, %v3074
        %v3219 = vpack.c.b16 %v3081, %v3075
        %v3220 = vpack.c.b16 %v3082, %v3076
        %v3221 = vpack.c.b16 %v3089, %v3083
        %v3222 = vpack.c.b16 %v3090, %v3084
        %v3223 = vpack.c.b16 %v3091, %v3085
        %v3224 = vpack.c.b16 %v3092, %v3086
        %v3225 = vpack.c.b16 %v3093, %v3087
        %v3226 = vpack.c.b16 %v3094, %v3088
        %v3227 = vpack.c.b16 %v3101, %v3095
        %v3228 = vpack.c.b16 %v3102, %v3096
        %v3229 = vpack.c.b16 %v3103, %v3097
        %v3230 = vpack.c.b16 %v3104, %v3098
        %v3231 = vpack.c.b16 %v3105, %v3099
        %v3232 = vpack.c.b16 %v3106, %v3100
        %v3233 = vpack.c.b16 %v3113, %v3107
        %v3234 = vpack.c.b16 %v3114, %v3108
        %v3235 = vpack.c.b16 %v3115, %v3109
        %v3236 = vpack.c.b16 %v3116, %v3110
        %v3237 = vpack.c.b16 %v3117, %v3111
        %v3238 = vpack.c.b16 %v3118, %v3112
        %v3239 = vpack.c.b16 %v3125, %v3119
        %v3240 = vpack.c.b16 %v3126, %v3120
        %v3241 = vpack.c.b16 %v3127, %v3121
        %v3242 = vpack.c.b16 %v3128, %v3122
        %v3243 = vpack.c.b16 %v3129, %v3123
        %v3244 = vpack.c.b16 %v3130, %v3124
        %v3245 = vpack.c.b16 %v3137, %v3131
        %v3246 = vpack.c.b16 %v3138, %v3132
        %v3247 = vpack.c.b16 %v3139, %v3133
        %v3248 = vpack.c.b16 %v3140, %v3134
        %v3249 = vpack.c.b16 %v3141, %v3135
        %v3250 = vpack.c.b16 %v3142, %v3136
        %v3251 = vpack.c.b16 %v3143, %v3143
        %v3252 = vpack.c.b16 %v3144, %v3144
        %v3253 = vpack.c.b16 %v3145, %v3145
        %v3254 = vpack.c.b16 %v3146, %v3146
        %v3255 = vpack.c.b16 %v3147, %v3147
        %v3256 = vpack.c.b16 %v3148, %v3148
        %v3360 = vsel %vm1091, %v3251, 0
        %v3363 = vsel %vm1091, %v3252, 0
        %v3366 = vsel %vm1091, %v3253, 0
        %v3369 = vsel %vm1091, %v3254, 0
        %v3372 = vsel %vm1091, %v3255, 0
        %v3375 = vsel %vm1091, %v3256, 0
        %3377 = vmatprep.subr.bf16.mxu0 %v3150
        %3378 = vmatpush1.bf16.msra.mxu0 %v3149
        %3379 = vmatprep.subr.bf16.mxu0 %v3156
        %3380 = vmatpush1.bf16.msra.mxu0 %v3155
        %3381 = vmatprep.subr.bf16.mxu0 %v3162
        %3382 = vmatpush1.bf16.msra.mxu0 %v3161
        %3383 = vmatprep.subr.bf16.mxu0 %v3168
        %3384 = vmatpush1.bf16.msra.mxu0 %v3167
        %3385 = vmatprep.subr.bf16.mxu0 %v3174
        %3386 = vmatpush1.bf16.msra.mxu0 %v3173
        %3387 = vmatprep.subr.bf16.mxu0 %v3180
        %3388 = vmatpush1.bf16.msra.mxu0 %v3179
        %3389 = vmatprep.subr.bf16.mxu0 %v3186
        %3390 = vmatpush1.bf16.msra.mxu0 %v3185
        %3391 = vmatprep.subr.bf16.mxu0 %v3192
        %3392 = vmatpush1.bf16.msra.mxu0 %v3191
        %3393 = vmatprep.subr.bf16.mxu0 %v3198
        %3394 = vmatpush1.bf16.msra.mxu0 %v3197
        %3395 = vmatprep.subr.bf16.mxu0 %v3204
        %3396 = vmatpush1.bf16.msra.mxu0 %v3203
        %3397 = vmatprep.subr.bf16.mxu0 %v3210
        %3398 = vmatpush1.bf16.msra.mxu0 %v3209
        %3399 = vmatprep.subr.bf16.mxu0 %v3216
        %3400 = vmatpush1.bf16.msra.mxu0 %v3215
        %3401 = vmatprep.subr.bf16.mxu0 %v3222
        %3402 = vmatpush1.bf16.msra.mxu0 %v3221
        %3403 = vmatprep.subr.bf16.mxu0 %v3228
        %3404 = vmatpush1.bf16.msra.mxu0 %v3227
        %3405 = vmatprep.subr.bf16.mxu0 %v3234
        %3406 = vmatpush1.bf16.msra.mxu0 %v3233
        %3407 = vmatprep.subr.bf16.mxu0 %v3240
        %3408 = vmatpush1.bf16.msra.mxu0 %v3239
        %3409 = vmatprep.mubr.bf16.mxu0 %v2200
        %3410 = vmatmul.mubr.bf16.gmra.mrb[0].mxu0 %v2193
        %v3411 = vpop.f32.mrb[0].mxu0
        %v3412 = vadd.f32 0.0, %v3411
        %v3413 = vpop.f32.mrb[0].mxu0
        %v3414 = vadd.f32 0.0, %v3413
        %v3415 = vpop.f32.mrb[0].mxu0
        %v3416 = vadd.f32 0.0, %v3415
        %v3417 = vpop.f32.mrb[0].mxu0
        %v3418 = vadd.f32 0.0, %v3417
        %3419 = vdwg.mxu0
        %3420 = vmatprep.subr.bf16.mxu0 %v3246
        %3421 = vmatpush1.bf16.msra.mxu0 %v3245
        %3422 = vmatprep.subr.bf16.mxu0 %v3363
        %3423 = vmatpush1.bf16.msra.mxu0 %v3360
        %3424 = vmatprep.subr.bf16.mxu0 0
        %3425 = vmatpush1.bf16.msra.mxu0 0
        %3426 = vmatprep.subr.bf16.mxu0 0
        %3427 = vmatpush1.bf16.msra.mxu0 0
        %3428 = vmatprep.subr.bf16.mxu0 0
        %3429 = vmatpush1.bf16.msra.mxu0 0
        %3430 = vmatprep.subr.bf16.mxu0 0
        %3431 = vmatpush1.bf16.msra.mxu0 0
        %3432 = vmatprep.subr.bf16.mxu0 0
        %3433 = vmatpush1.bf16.msra.mxu0 0
        %3434 = vmatprep.subr.bf16.mxu0 0
        %3435 = vmatpush1.bf16.msra.mxu0 0
        %3436 = vmatprep.subr.bf16.mxu0 0
        %3437 = vmatpush1.bf16.msra.mxu0 0
        %3438 = vmatprep.subr.bf16.mxu0 0
        %3439 = vmatpush1.bf16.msra.mxu0 0
        %3440 = vmatprep.subr.bf16.mxu0 0
        %3441 = vmatpush1.bf16.msra.mxu0 0
        %3442 = vmatprep.subr.bf16.mxu0 0
        %3443 = vmatpush1.bf16.msra.mxu0 0
        %3444 = vmatprep.subr.bf16.mxu0 0
        %3445 = vmatpush1.bf16.msra.mxu0 0
        %3446 = vmatprep.subr.bf16.mxu0 0
        %3447 = vmatpush1.bf16.msra.mxu0 0
        %3448 = vmatprep.subr.bf16.mxu0 0
        %3449 = vmatpush1.bf16.msra.mxu0 0
        %3450 = vmatprep.subr.bf16.mxu0 0
        %3451 = vmatpush1.bf16.msra.mxu0 0
        %3452 = vmatprep.mubr.bf16.mxu0 0
        %3453 = vmatmul.mubr.bf16.gmra.mrb[0].mxu0 %v2210
        %v3454 = vpop.f32.mrb[0].mxu0
        %v3455 = vadd.f32 %v3412, %v3454
        %v3456 = vpop.f32.mrb[0].mxu0
        %v3457 = vadd.f32 %v3414, %v3456
        %v3458 = vpop.f32.mrb[0].mxu0
        %v3459 = vadd.f32 %v3416, %v3458
        %v3460 = vpop.f32.mrb[0].mxu0
        %v3461 = vadd.f32 %v3418, %v3460
        %3462 = vdwg.mxu0
        %3463 = vmatprep.subr.bf16.mxu0 %v3152
        %3464 = vmatpush1.bf16.msra.mxu0 %v3151
        %3465 = vmatprep.subr.bf16.mxu0 %v3158
        %3466 = vmatpush1.bf16.msra.mxu0 %v3157
        %3467 = vmatprep.subr.bf16.mxu0 %v3164
        %3468 = vmatpush1.bf16.msra.mxu0 %v3163
        %3469 = vmatprep.subr.bf16.mxu0 %v3170
        %3470 = vmatpush1.bf16.msra.mxu0 %v3169
        %3471 = vmatprep.subr.bf16.mxu0 %v3176
        %3472 = vmatpush1.bf16.msra.mxu0 %v3175
        %3473 = vmatprep.subr.bf16.mxu0 %v3182
        %3474 = vmatpush1.bf16.msra.mxu0 %v3181
        %3475 = vmatprep.subr.bf16.mxu0 %v3188
        %3476 = vmatpush1.bf16.msra.mxu0 %v3187
        %3477 = vmatprep.subr.bf16.mxu0 %v3194
        %3478 = vmatpush1.bf16.msra.mxu0 %v3193
        %3479 = vmatprep.subr.bf16.mxu0 %v3200
        %3480 = vmatpush1.bf16.msra.mxu0 %v3199
        %3481 = vmatprep.subr.bf16.mxu0 %v3206
        %3482 = vmatpush1.bf16.msra.mxu0 %v3205
        %3483 = vmatprep.subr.bf16.mxu0 %v3212
        %3484 = vmatpush1.bf16.msra.mxu0 %v3211
        %3485 = vmatprep.subr.bf16.mxu0 %v3218
        %3486 = vmatpush1.bf16.msra.mxu0 %v3217
        %3487 = vmatprep.subr.bf16.mxu0 %v3224
        %3488 = vmatpush1.bf16.msra.mxu0 %v3223
        %3489 = vmatprep.subr.bf16.mxu0 %v3230
        %3490 = vmatpush1.bf16.msra.mxu0 %v3229
        %3491 = vmatprep.subr.bf16.mxu0 %v3236
        %3492 = vmatpush1.bf16.msra.mxu0 %v3235
        %3493 = vmatprep.subr.bf16.mxu0 %v3242
        %3494 = vmatpush1.bf16.msra.mxu0 %v3241
        %3495 = vmatprep.mubr.bf16.mxu0 %v2200
        %3496 = vmatmul.mubr.bf16.gmra.mrb[0].mxu0 %v2193
        %v3497 = vpop.f32.mrb[0].mxu0
        %v3498 = vadd.f32 0.0, %v3497
        %v3499 = vpop.f32.mrb[0].mxu0
        %v3500 = vadd.f32 0.0, %v3499
        %v3501 = vpop.f32.mrb[0].mxu0
        %v3502 = vadd.f32 0.0, %v3501
        %v3503 = vpop.f32.mrb[0].mxu0
        %v3504 = vadd.f32 0.0, %v3503
        %3505 = vdwg.mxu0
        %3506 = vmatprep.subr.bf16.mxu0 %v3248
        %3507 = vmatpush1.bf16.msra.mxu0 %v3247
        %3508 = vmatprep.subr.bf16.mxu0 %v3369
        %3509 = vmatpush1.bf16.msra.mxu0 %v3366
        %3510 = vmatprep.subr.bf16.mxu0 0
        %3511 = vmatpush1.bf16.msra.mxu0 0
        %3512 = vmatprep.subr.bf16.mxu0 0
        %3513 = vmatpush1.bf16.msra.mxu0 0
        %3514 = vmatprep.subr.bf16.mxu0 0
        %3515 = vmatpush1.bf16.msra.mxu0 0
        %3516 = vmatprep.subr.bf16.mxu0 0
        %3517 = vmatpush1.bf16.msra.mxu0 0
        %3518 = vmatprep.subr.bf16.mxu0 0
        %3519 = vmatpush1.bf16.msra.mxu0 0
        %3520 = vmatprep.subr.bf16.mxu0 0
        %3521 = vmatpush1.bf16.msra.mxu0 0
        %3522 = vmatprep.subr.bf16.mxu0 0
        %3523 = vmatpush1.bf16.msra.mxu0 0
        %3524 = vmatprep.subr.bf16.mxu0 0
        %3525 = vmatpush1.bf16.msra.mxu0 0
        %3526 = vmatprep.subr.bf16.mxu0 0
        %3527 = vmatpush1.bf16.msra.mxu0 0
        %3528 = vmatprep.subr.bf16.mxu0 0
        %3529 = vmatpush1.bf16.msra.mxu0 0
        %3530 = vmatprep.subr.bf16.mxu0 0
        %3531 = vmatpush1.bf16.msra.mxu0 0
        %3532 = vmatprep.subr.bf16.mxu0 0
        %3533 = vmatpush1.bf16.msra.mxu0 0
        %3534 = vmatprep.subr.bf16.mxu0 0
        %3535 = vmatpush1.bf16.msra.mxu0 0
        %3536 = vmatprep.subr.bf16.mxu0 0
        %3537 = vmatpush1.bf16.msra.mxu0 0
        %3538 = vmatprep.mubr.bf16.mxu0 0
        %3539 = vmatmul.mubr.bf16.gmra.mrb[0].mxu0 %v2210
        %v3540 = vpop.f32.mrb[0].mxu0
        %v3541 = vadd.f32 %v3498, %v3540
        %v3542 = vpop.f32.mrb[0].mxu0
        %v3543 = vadd.f32 %v3500, %v3542
        %v3544 = vpop.f32.mrb[0].mxu0
        %v3545 = vadd.f32 %v3502, %v3544
        %v3546 = vpop.f32.mrb[0].mxu0
        %v3547 = vadd.f32 %v3504, %v3546
        %3548 = vdwg.mxu0
        %3549 = vmatprep.subr.bf16.mxu0 %v3154
        %3550 = vmatpush1.bf16.msra.mxu0 %v3153
        %3551 = vmatprep.subr.bf16.mxu0 %v3160
        %3552 = vmatpush1.bf16.msra.mxu0 %v3159
        %3553 = vmatprep.subr.bf16.mxu0 %v3166
        %3554 = vmatpush1.bf16.msra.mxu0 %v3165
        %3555 = vmatprep.subr.bf16.mxu0 %v3172
        %3556 = vmatpush1.bf16.msra.mxu0 %v3171
        %3557 = vmatprep.subr.bf16.mxu0 %v3178
        %3558 = vmatpush1.bf16.msra.mxu0 %v3177
        %3559 = vmatprep.subr.bf16.mxu0 %v3184
        %3560 = vmatpush1.bf16.msra.mxu0 %v3183
        %3561 = vmatprep.subr.bf16.mxu0 %v3190
        %3562 = vmatpush1.bf16.msra.mxu0 %v3189
        %3563 = vmatprep.subr.bf16.mxu0 %v3196
        %3564 = vmatpush1.bf16.msra.mxu0 %v3195
        %3565 = vmatprep.subr.bf16.mxu0 %v3202
        %3566 = vmatpush1.bf16.msra.mxu0 %v3201
        %3567 = vmatprep.subr.bf16.mxu0 %v3208
        %3568 = vmatpush1.bf16.msra.mxu0 %v3207
        %3569 = vmatprep.subr.bf16.mxu0 %v3214
        %3570 = vmatpush1.bf16.msra.mxu0 %v3213
        %3571 = vmatprep.subr.bf16.mxu0 %v3220
        %3572 = vmatpush1.bf16.msra.mxu0 %v3219
        %3573 = vmatprep.subr.bf16.mxu0 %v3226
        %3574 = vmatpush1.bf16.msra.mxu0 %v3225
        %3575 = vmatprep.subr.bf16.mxu0 %v3232
        %3576 = vmatpush1.bf16.msra.mxu0 %v3231
        %3577 = vmatprep.subr.bf16.mxu0 %v3238
        %3578 = vmatpush1.bf16.msra.mxu0 %v3237
        %3579 = vmatprep.subr.bf16.mxu0 %v3244
        %3580 = vmatpush1.bf16.msra.mxu0 %v3243
        %3581 = vmatprep.mubr.bf16.mxu0 %v2200
        %3582 = vmatmul.mubr.bf16.gmra.mrb[0].mxu0 %v2193
        %v3583 = vpop.f32.mrb[0].mxu0
        %v3584 = vadd.f32 0.0, %v3583
        %v3585 = vpop.f32.mrb[0].mxu0
        %v3586 = vadd.f32 0.0, %v3585
        %v3587 = vpop.f32.mrb[0].mxu0
        %v3588 = vadd.f32 0.0, %v3587
        %v3589 = vpop.f32.mrb[0].mxu0
        %v3590 = vadd.f32 0.0, %v3589
        %3591 = vdwg.mxu0
        %3592 = vmatprep.subr.bf16.mxu0 %v3250
        %3593 = vmatpush1.bf16.msra.mxu0 %v3249
        %3594 = vmatprep.subr.bf16.mxu0 %v3375
        %3595 = vmatpush1.bf16.msra.mxu0 %v3372
        %3596 = vmatprep.subr.bf16.mxu0 0
        %3597 = vmatpush1.bf16.msra.mxu0 0
        %3598 = vmatprep.subr.bf16.mxu0 0
        %3599 = vmatpush1.bf16.msra.mxu0 0
        %3600 = vmatprep.subr.bf16.mxu0 0
        %3601 = vmatpush1.bf16.msra.mxu0 0
        %3602 = vmatprep.subr.bf16.mxu0 0
        %3603 = vmatpush1.bf16.msra.mxu0 0
        %3604 = vmatprep.subr.bf16.mxu0 0
        %3605 = vmatpush1.bf16.msra.mxu0 0
        %3606 = vmatprep.subr.bf16.mxu0 0
        %3607 = vmatpush1.bf16.msra.mxu0 0
        %3608 = vmatprep.subr.bf16.mxu0 0
        %3609 = vmatpush1.bf16.msra.mxu0 0
        %3610 = vmatprep.subr.bf16.mxu0 0
        %3611 = vmatpush1.bf16.msra.mxu0 0
        %3612 = vmatprep.subr.bf16.mxu0 0
        %3613 = vmatpush1.bf16.msra.mxu0 0
        %3614 = vmatprep.subr.bf16.mxu0 0
        %3615 = vmatpush1.bf16.msra.mxu0 0
        %3616 = vmatprep.subr.bf16.mxu0 0
        %3617 = vmatpush1.bf16.msra.mxu0 0
        %3618 = vmatprep.subr.bf16.mxu0 0
        %3619 = vmatpush1.bf16.msra.mxu0 0
        %3620 = vmatprep.subr.bf16.mxu0 0
        %3621 = vmatpush1.bf16.msra.mxu0 0
        %3622 = vmatprep.subr.bf16.mxu0 0
        %3623 = vmatpush1.bf16.msra.mxu0 0
        %3624 = vmatprep.mubr.bf16.mxu0 0
        %3625 = vmatmul.mubr.bf16.gmra.mrb[0].mxu0 %v2210
        %v3626 = vpop.f32.mrb[0].mxu0
        %v3627 = vadd.f32 %v3584, %v3626
        %v3628 = vpop.f32.mrb[0].mxu0
        %v3629 = vadd.f32 %v3586, %v3628
        %v3630 = vpop.f32.mrb[0].mxu0
        %v3631 = vadd.f32 %v3588, %v3630
        %v3632 = vpop.f32.mrb[0].mxu0
        %v3633 = vadd.f32 %v3590, %v3632
        %3634 = vdwg.mxu0
        %v3635 = vadd.f32 %v2007, %v3455
        %v3636 = vadd.f32 %v2009, %v3457
        %v3637 = vadd.f32 %v2093, %v3541
        %v3638 = vadd.f32 %v2095, %v3543
        %v3639 = vadd.f32 %v2179, %v3627
        %v3640 = vadd.f32 %v2181, %v3629
        %v3641 = vadd.f32 %v2011, %v3459
        %v3642 = vadd.f32 %v2013, %v3461
        %v3643 = vadd.f32 %v2097, %v3545
        %v3644 = vadd.f32 %v2099, %v3547
        %v3645 = vadd.f32 %v2183, %v3631
        %v3646 = vadd.f32 %v2185, %v3633
        %v3648 = vshrl.u32 %v557, 16
        %v3650 = vshll.u32 %v557, 16
        %v3652 = vrot.slane %v3650, 1
        %v3653 = vor.u32 %v3648, %v3652
        %v3655 = vshrl.u32 %v558, 16
        %v3657 = vshll.u32 %v558, 16
        %v3659 = vrot.slane %v3657, 1
        %v3660 = vor.u32 %v3655, %v3659
        %v3661 = vshrl.u32 %v559, 16
        %v3663 = vshll.u32 %v559, 16
        %v3665 = vrot.slane %v3663, 1
        %v3666 = vor.u32 %v3661, %v3665
        %v3670 = vsel %vm1087, %v3666, 0
        %3672 = vmatprep.subr.bf16.mxu0 %v3150
        %3673 = vmatpush1.bf16.msra.mxu0 %v3149
        %3674 = vmatprep.subr.bf16.mxu0 %v3156
        %3675 = vmatpush1.bf16.msra.mxu0 %v3155
        %3676 = vmatprep.subr.bf16.mxu0 %v3162
        %3677 = vmatpush1.bf16.msra.mxu0 %v3161
        %3678 = vmatprep.subr.bf16.mxu0 %v3168
        %3679 = vmatpush1.bf16.msra.mxu0 %v3167
        %3680 = vmatprep.subr.bf16.mxu0 %v3174
        %3681 = vmatpush1.bf16.msra.mxu0 %v3173
        %3682 = vmatprep.subr.bf16.mxu0 %v3180
        %3683 = vmatpush1.bf16.msra.mxu0 %v3179
        %3684 = vmatprep.subr.bf16.mxu0 %v3186
        %3685 = vmatpush1.bf16.msra.mxu0 %v3185
        %3686 = vmatprep.subr.bf16.mxu0 %v3192
        %3687 = vmatpush1.bf16.msra.mxu0 %v3191
        %3688 = vmatprep.subr.bf16.mxu0 %v3198
        %3689 = vmatpush1.bf16.msra.mxu0 %v3197
        %3690 = vmatprep.subr.bf16.mxu0 %v3204
        %3691 = vmatpush1.bf16.msra.mxu0 %v3203
        %3692 = vmatprep.subr.bf16.mxu0 %v3210
        %3693 = vmatpush1.bf16.msra.mxu0 %v3209
        %3694 = vmatprep.subr.bf16.mxu0 %v3216
        %3695 = vmatpush1.bf16.msra.mxu0 %v3215
        %3696 = vmatprep.subr.bf16.mxu0 %v3222
        %3697 = vmatpush1.bf16.msra.mxu0 %v3221
        %3698 = vmatprep.subr.bf16.mxu0 %v3228
        %3699 = vmatpush1.bf16.msra.mxu0 %v3227
        %3700 = vmatprep.subr.bf16.mxu0 %v3234
        %3701 = vmatpush1.bf16.msra.mxu0 %v3233
        %3702 = vmatprep.subr.bf16.mxu0 %v3240
        %3703 = vmatpush1.bf16.msra.mxu0 %v3239
        %3704 = vmatprep.mubr.bf16.mxu0 %v3660
        %3705 = vmatmul.mubr.bf16.gmra.mrb[0].mxu0 %v3653
        %v3706 = vpop.f32.mrb[0].mxu0
        %v3707 = vadd.f32 0.0, %v3706
        %v3708 = vpop.f32.mrb[0].mxu0
        %v3709 = vadd.f32 0.0, %v3708
        %v3710 = vpop.f32.mrb[0].mxu0
        %v3711 = vadd.f32 0.0, %v3710
        %v3712 = vpop.f32.mrb[0].mxu0
        %v3713 = vadd.f32 0.0, %v3712
        %3714 = vdwg.mxu0
        %3715 = vmatprep.subr.bf16.mxu0 %v3246
        %3716 = vmatpush1.bf16.msra.mxu0 %v3245
        %3717 = vmatprep.subr.bf16.mxu0 %v3363
        %3718 = vmatpush1.bf16.msra.mxu0 %v3360
        %3719 = vmatprep.subr.bf16.mxu0 0
        %3720 = vmatpush1.bf16.msra.mxu0 0
        %3721 = vmatprep.subr.bf16.mxu0 0
        %3722 = vmatpush1.bf16.msra.mxu0 0
        %3723 = vmatprep.subr.bf16.mxu0 0
        %3724 = vmatpush1.bf16.msra.mxu0 0
        %3725 = vmatprep.subr.bf16.mxu0 0
        %3726 = vmatpush1.bf16.msra.mxu0 0
        %3727 = vmatprep.subr.bf16.mxu0 0
        %3728 = vmatpush1.bf16.msra.mxu0 0
        %3729 = vmatprep.subr.bf16.mxu0 0
        %3730 = vmatpush1.bf16.msra.mxu0 0
        %3731 = vmatprep.subr.bf16.mxu0 0
        %3732 = vmatpush1.bf16.msra.mxu0 0
        %3733 = vmatprep.subr.bf16.mxu0 0
        %3734 = vmatpush1.bf16.msra.mxu0 0
        %3735 = vmatprep.subr.bf16.mxu0 0
        %3736 = vmatpush1.bf16.msra.mxu0 0
        %3737 = vmatprep.subr.bf16.mxu0 0
        %3738 = vmatpush1.bf16.msra.mxu0 0
        %3739 = vmatprep.subr.bf16.mxu0 0
        %3740 = vmatpush1.bf16.msra.mxu0 0
        %3741 = vmatprep.subr.bf16.mxu0 0
        %3742 = vmatpush1.bf16.msra.mxu0 0
        %3743 = vmatprep.subr.bf16.mxu0 0
        %3744 = vmatpush1.bf16.msra.mxu0 0
        %3745 = vmatprep.subr.bf16.mxu0 0
        %3746 = vmatpush1.bf16.msra.mxu0 0
        %3747 = vmatprep.mubr.bf16.mxu0 0
        %3748 = vmatmul.mubr.bf16.gmra.mrb[0].mxu0 %v3670
        %v3749 = vpop.f32.mrb[0].mxu0
        %v3750 = vadd.f32 %v3707, %v3749
        %v3751 = vpop.f32.mrb[0].mxu0
        %v3752 = vadd.f32 %v3709, %v3751
        %v3753 = vpop.f32.mrb[0].mxu0
        %v3754 = vadd.f32 %v3711, %v3753
        %v3755 = vpop.f32.mrb[0].mxu0
        %v3756 = vadd.f32 %v3713, %v3755
        %3757 = vdwg.mxu0
        %3758 = vmatprep.subr.bf16.mxu0 %v3152
        %3759 = vmatpush1.bf16.msra.mxu0 %v3151
        %3760 = vmatprep.subr.bf16.mxu0 %v3158
        %3761 = vmatpush1.bf16.msra.mxu0 %v3157
        %3762 = vmatprep.subr.bf16.mxu0 %v3164
        %3763 = vmatpush1.bf16.msra.mxu0 %v3163
        %3764 = vmatprep.subr.bf16.mxu0 %v3170
        %3765 = vmatpush1.bf16.msra.mxu0 %v3169
        %3766 = vmatprep.subr.bf16.mxu0 %v3176
        %3767 = vmatpush1.bf16.msra.mxu0 %v3175
        %3768 = vmatprep.subr.bf16.mxu0 %v3182
        %3769 = vmatpush1.bf16.msra.mxu0 %v3181
        %3770 = vmatprep.subr.bf16.mxu0 %v3188
        %3771 = vmatpush1.bf16.msra.mxu0 %v3187
        %3772 = vmatprep.subr.bf16.mxu0 %v3194
        %3773 = vmatpush1.bf16.msra.mxu0 %v3193
        %3774 = vmatprep.subr.bf16.mxu0 %v3200
        %3775 = vmatpush1.bf16.msra.mxu0 %v3199
        %3776 = vmatprep.subr.bf16.mxu0 %v3206
        %3777 = vmatpush1.bf16.msra.mxu0 %v3205
        %3778 = vmatprep.subr.bf16.mxu0 %v3212
        %3779 = vmatpush1.bf16.msra.mxu0 %v3211
        %3780 = vmatprep.subr.bf16.mxu0 %v3218
        %3781 = vmatpush1.bf16.msra.mxu0 %v3217
        %3782 = vmatprep.subr.bf16.mxu0 %v3224
        %3783 = vmatpush1.bf16.msra.mxu0 %v3223
        %3784 = vmatprep.subr.bf16.mxu0 %v3230
        %3785 = vmatpush1.bf16.msra.mxu0 %v3229
        %3786 = vmatprep.subr.bf16.mxu0 %v3236
        %3787 = vmatpush1.bf16.msra.mxu0 %v3235
        %3788 = vmatprep.subr.bf16.mxu0 %v3242
        %3789 = vmatpush1.bf16.msra.mxu0 %v3241
        %3790 = vmatprep.mubr.bf16.mxu0 %v3660
        %3791 = vmatmul.mubr.bf16.gmra.mrb[0].mxu0 %v3653
        %v3792 = vpop.f32.mrb[0].mxu0
        %v3793 = vadd.f32 0.0, %v3792
        %v3794 = vpop.f32.mrb[0].mxu0
        %v3795 = vadd.f32 0.0, %v3794
        %v3796 = vpop.f32.mrb[0].mxu0
        %v3797 = vadd.f32 0.0, %v3796
        %v3798 = vpop.f32.mrb[0].mxu0
        %v3799 = vadd.f32 0.0, %v3798
        %3800 = vdwg.mxu0
        %3801 = vmatprep.subr.bf16.mxu0 %v3248
        %3802 = vmatpush1.bf16.msra.mxu0 %v3247
        %3803 = vmatprep.subr.bf16.mxu0 %v3369
        %3804 = vmatpush1.bf16.msra.mxu0 %v3366
        %3805 = vmatprep.subr.bf16.mxu0 0
        %3806 = vmatpush1.bf16.msra.mxu0 0
        %3807 = vmatprep.subr.bf16.mxu0 0
        %3808 = vmatpush1.bf16.msra.mxu0 0
        %3809 = vmatprep.subr.bf16.mxu0 0
        %3810 = vmatpush1.bf16.msra.mxu0 0
        %3811 = vmatprep.subr.bf16.mxu0 0
        %3812 = vmatpush1.bf16.msra.mxu0 0
        %3813 = vmatprep.subr.bf16.mxu0 0
        %3814 = vmatpush1.bf16.msra.mxu0 0
        %3815 = vmatprep.subr.bf16.mxu0 0
        %3816 = vmatpush1.bf16.msra.mxu0 0
        %3817 = vmatprep.subr.bf16.mxu0 0
        %3818 = vmatpush1.bf16.msra.mxu0 0
        %3819 = vmatprep.subr.bf16.mxu0 0
        %3820 = vmatpush1.bf16.msra.mxu0 0
        %3821 = vmatprep.subr.bf16.mxu0 0
        %3822 = vmatpush1.bf16.msra.mxu0 0
        %3823 = vmatprep.subr.bf16.mxu0 0
        %3824 = vmatpush1.bf16.msra.mxu0 0
        %3825 = vmatprep.subr.bf16.mxu0 0
        %3826 = vmatpush1.bf16.msra.mxu0 0
        %3827 = vmatprep.subr.bf16.mxu0 0
        %3828 = vmatpush1.bf16.msra.mxu0 0
        %3829 = vmatprep.subr.bf16.mxu0 0
        %3830 = vmatpush1.bf16.msra.mxu0 0
        %3831 = vmatprep.subr.bf16.mxu0 0
        %3832 = vmatpush1.bf16.msra.mxu0 0
        %3833 = vmatprep.mubr.bf16.mxu0 0
        %3834 = vmatmul.mubr.bf16.gmra.mrb[0].mxu0 %v3670
        %v3835 = vpop.f32.mrb[0].mxu0
        %v3836 = vadd.f32 %v3793, %v3835
        %v3837 = vpop.f32.mrb[0].mxu0
        %v3838 = vadd.f32 %v3795, %v3837
        %v3839 = vpop.f32.mrb[0].mxu0
        %v3840 = vadd.f32 %v3797, %v3839
        %v3841 = vpop.f32.mrb[0].mxu0
        %v3842 = vadd.f32 %v3799, %v3841
        %3843 = vdwg.mxu0
        %3844 = vmatprep.subr.bf16.mxu0 %v3154
        %3845 = vmatpush1.bf16.msra.mxu0 %v3153
        %3846 = vmatprep.subr.bf16.mxu0 %v3160
        %3847 = vmatpush1.bf16.msra.mxu0 %v3159
        %3848 = vmatprep.subr.bf16.mxu0 %v3166
        %3849 = vmatpush1.bf16.msra.mxu0 %v3165
        %3850 = vmatprep.subr.bf16.mxu0 %v3172
        %3851 = vmatpush1.bf16.msra.mxu0 %v3171
        %3852 = vmatprep.subr.bf16.mxu0 %v3178
        %3853 = vmatpush1.bf16.msra.mxu0 %v3177
        %3854 = vmatprep.subr.bf16.mxu0 %v3184
        %3855 = vmatpush1.bf16.msra.mxu0 %v3183
        %3856 = vmatprep.subr.bf16.mxu0 %v3190
        %3857 = vmatpush1.bf16.msra.mxu0 %v3189
        %3858 = vmatprep.subr.bf16.mxu0 %v3196
        %3859 = vmatpush1.bf16.msra.mxu0 %v3195
        %3860 = vmatprep.subr.bf16.mxu0 %v3202
        %3861 = vmatpush1.bf16.msra.mxu0 %v3201
        %3862 = vmatprep.subr.bf16.mxu0 %v3208
        %3863 = vmatpush1.bf16.msra.mxu0 %v3207
        %3864 = vmatprep.subr.bf16.mxu0 %v3214
        %3865 = vmatpush1.bf16.msra.mxu0 %v3213
        %3866 = vmatprep.subr.bf16.mxu0 %v3220
        %3867 = vmatpush1.bf16.msra.mxu0 %v3219
        %3868 = vmatprep.subr.bf16.mxu0 %v3226
        %3869 = vmatpush1.bf16.msra.mxu0 %v3225
        %3870 = vmatprep.subr.bf16.mxu0 %v3232
        %3871 = vmatpush1.bf16.msra.mxu0 %v3231
        %3872 = vmatprep.subr.bf16.mxu0 %v3238
        %3873 = vmatpush1.bf16.msra.mxu0 %v3237
        %3874 = vmatprep.subr.bf16.mxu0 %v3244
        %3875 = vmatpush1.bf16.msra.mxu0 %v3243
        %3876 = vmatprep.mubr.bf16.mxu0 %v3660
        %3877 = vmatmul.mubr.bf16.gmra.mrb[0].mxu0 %v3653
        %v3878 = vpop.f32.mrb[0].mxu0
        %v3879 = vadd.f32 0.0, %v3878
        %v3880 = vpop.f32.mrb[0].mxu0
        %v3881 = vadd.f32 0.0, %v3880
        %v3882 = vpop.f32.mrb[0].mxu0
        %v3883 = vadd.f32 0.0, %v3882
        %v3884 = vpop.f32.mrb[0].mxu0
        %v3885 = vadd.f32 0.0, %v3884
        %3886 = vdwg.mxu0
        %3887 = vmatprep.subr.bf16.mxu0 %v3250
        %3888 = vmatpush1.bf16.msra.mxu0 %v3249
        %3889 = vmatprep.subr.bf16.mxu0 %v3375
        %3890 = vmatpush1.bf16.msra.mxu0 %v3372
        %3891 = vmatprep.subr.bf16.mxu0 0
        %3892 = vmatpush1.bf16.msra.mxu0 0
        %3893 = vmatprep.subr.bf16.mxu0 0
        %3894 = vmatpush1.bf16.msra.mxu0 0
        %3895 = vmatprep.subr.bf16.mxu0 0
        %3896 = vmatpush1.bf16.msra.mxu0 0
        %3897 = vmatprep.subr.bf16.mxu0 0
        %3898 = vmatpush1.bf16.msra.mxu0 0
        %3899 = vmatprep.subr.bf16.mxu0 0
        %3900 = vmatpush1.bf16.msra.mxu0 0
        %3901 = vmatprep.subr.bf16.mxu0 0
        %3902 = vmatpush1.bf16.msra.mxu0 0
        %3903 = vmatprep.subr.bf16.mxu0 0
        %3904 = vmatpush1.bf16.msra.mxu0 0
        %3905 = vmatprep.subr.bf16.mxu0 0
        %3906 = vmatpush1.bf16.msra.mxu0 0
        %3907 = vmatprep.subr.bf16.mxu0 0
        %3908 = vmatpush1.bf16.msra.mxu0 0
        %3909 = vmatprep.subr.bf16.mxu0 0
        %3910 = vmatpush1.bf16.msra.mxu0 0
        %3911 = vmatprep.subr.bf16.mxu0 0
        %3912 = vmatpush1.bf16.msra.mxu0 0
        %3913 = vmatprep.subr.bf16.mxu0 0
        %3914 = vmatpush1.bf16.msra.mxu0 0
        %3915 = vmatprep.subr.bf16.mxu0 0
        %3916 = vmatpush1.bf16.msra.mxu0 0
        %3917 = vmatprep.subr.bf16.mxu0 0
        %3918 = vmatpush1.bf16.msra.mxu0 0
        %3919 = vmatprep.mubr.bf16.mxu0 0
        %3920 = vmatmul.mubr.bf16.gmra.mrb[0].mxu0 %v3670
        %v3921 = vpop.f32.mrb[0].mxu0
        %v3922 = vadd.f32 %v3879, %v3921
        %v3923 = vpop.f32.mrb[0].mxu0
        %v3924 = vadd.f32 %v3881, %v3923
        %v3925 = vpop.f32.mrb[0].mxu0
        %v3926 = vadd.f32 %v3883, %v3925
        %v3927 = vpop.f32.mrb[0].mxu0
        %v3928 = vadd.f32 %v3885, %v3927
        %3929 = vdwg.mxu0
        %v3930 = vadd.f32 %v2548, %v3750
        %v3931 = vadd.f32 %v2550, %v3752
        %v3932 = vadd.f32 %v2634, %v3836
        %v3933 = vadd.f32 %v2636, %v3838
        %v3934 = vadd.f32 %v2720, %v3922
        %v3935 = vadd.f32 %v2722, %v3924
        %v3936 = vadd.f32 %v2552, %v3754
        %v3937 = vadd.f32 %v2554, %v3756
        %v3938 = vadd.f32 %v2638, %v3840
        %v3939 = vadd.f32 %v2640, %v3842
        %v3940 = vadd.f32 %v2724, %v3926
        %v3941 = vadd.f32 %v2726, %v3928
        %s3942 = scalar_lea.vmem [#allocation2], 2520
        %v3943 = vld [vmem:[%s3942] sm:$0xff]
        %v3944 = vld [vmem:[%s3942 + $0x8] sm:$0xff]
        %v3945 = vld [vmem:[%s3942 + $0x10] sm:$0xff]
        %v3946 = vld [vmem:[%s3942 + $0x18] sm:$0xff]
        %v3947 = vld [vmem:[%s3942 + $0x20] sm:$0xff]
        %v3948 = vld [vmem:[%s3942 + $0x28] sm:$0xff]
        %v3949 = vld [vmem:[%s3942 + $0x30] sm:$0xff]
        %v3950 = vld [vmem:[%s3942 + $0x38] sm:$0xff]
        %v3951 = vld [vmem:[%s3942 + $0x40] sm:$0xff]
        %v3952 = vld [vmem:[%s3942 + $0x48] sm:$0xff]
        %v3953 = vld [vmem:[%s3942 + $0x50] sm:$0xff]
        %v3954 = vld [vmem:[%s3942 + $0x58] sm:$0xff]
        %v3955 = vld [vmem:[%s3942 + $0x60] sm:$0xff]
        %v3956 = vld [vmem:[%s3942 + $0x68] sm:$0xff]
        %v3957 = vld [vmem:[%s3942 + $0x70] sm:$0xff]
        %v3958 = vld [vmem:[%s3942 + $0x78] sm:$0xff]
        %v3959 = vld [vmem:[%s3942 + $0x80] sm:$0xff]
        %v3960 = vld [vmem:[%s3942 + $0x88] sm:$0xff]
        %v3961 = vld [vmem:[%s3942 + $0x90] sm:$0xff]
        %v3962 = vld [vmem:[%s3942 + $0x98] sm:$0xff]
        %v3963 = vld [vmem:[%s3942 + $0xa0] sm:$0xff]
        %v3964 = vld [vmem:[%s3942 + $0xa8] sm:$0xff]
        %v3965 = vld [vmem:[%s3942 + $0xb0] sm:$0xff]
        %v3966 = vld [vmem:[%s3942 + $0xb8] sm:$0xff]
        %v3967 = vld [vmem:[%s3942 + $0xc0] sm:$0xff]
        %v3968 = vld [vmem:[%s3942 + $0xc8] sm:$0xff]
        %v3969 = vld [vmem:[%s3942 + $0xd0] sm:$0xff]
        %v3970 = vld [vmem:[%s3942 + $0xd8] sm:$0xff]
        %v3971 = vld [vmem:[%s3942 + $0xe0] sm:$0xff]
        %v3972 = vld [vmem:[%s3942 + $0xe8] sm:$0xff]
        %v3973 = vld [vmem:[%s3942 + $0xf0] sm:$0xff]
        %v3974 = vld [vmem:[%s3942 + $0xf8] sm:$0xff]
        %v3975 = vld [vmem:[%s3942 + $0x100] sm:$0xff]
        %v3976 = vld [vmem:[%s3942 + $0x108] sm:$0xff]
        %v3977 = vld [vmem:[%s3942 + $0x110] sm:$0xff]
        %v3978 = vld [vmem:[%s3942 + $0x118] sm:$0xff]
        %v3979 = vld [vmem:[%s3942 + $0x120] sm:$0xff]
        %v3980 = vld [vmem:[%s3942 + $0x128] sm:$0xff]
        %v3981 = vld [vmem:[%s3942 + $0x130] sm:$0xff]
        %v3982 = vld [vmem:[%s3942 + $0x138] sm:$0xff]
        %v3983 = vld [vmem:[%s3942 + $0x140] sm:$0xff]
        %v3984 = vld [vmem:[%s3942 + $0x148] sm:$0xff]
        %v3985 = vld [vmem:[%s3942 + $0x150] sm:$0xff]
        %v3986 = vld [vmem:[%s3942 + $0x158] sm:$0xff]
        %v3987 = vld [vmem:[%s3942 + $0x160] sm:$0xff]
        %v3988 = vld [vmem:[%s3942 + $0x168] sm:$0xff]
        %v3989 = vld [vmem:[%s3942 + $0x170] sm:$0xff]
        %v3990 = vld [vmem:[%s3942 + $0x178] sm:$0xff]
        %v3991 = vld [vmem:[%s3942 + $0x180] sm:$0xff]
        %v3992 = vld [vmem:[%s3942 + $0x188] sm:$0xff]
        %v3993 = vld [vmem:[%s3942 + $0x190] sm:$0xff]
        %v3994 = vld [vmem:[%s3942 + $0x198] sm:$0xff]
        %v3995 = vld [vmem:[%s3942 + $0x1a0] sm:$0xff]
        %v3996 = vld [vmem:[%s3942 + $0x1a8] sm:$0xff]
        %v3997 = vld [vmem:[%s3942 + $0x1b0] sm:$0xff]
        %v3998 = vld [vmem:[%s3942 + $0x1b8] sm:$0xff]
        %v3999 = vld [vmem:[%s3942 + $0x1c0] sm:$0xff]
        %v4000 = vld [vmem:[%s3942 + $0x1c8] sm:$0xff]
        %v4001 = vld [vmem:[%s3942 + $0x1d0] sm:$0xff]
        %v4002 = vld [vmem:[%s3942 + $0x1d8] sm:$0xff]
        %v4003 = vld [vmem:[%s3942 + $0x1e0] sm:$0xff]
        %v4004 = vld [vmem:[%s3942 + $0x1e8] sm:$0xff]
        %v4005 = vld [vmem:[%s3942 + $0x1f0] sm:$0xff]
        %v4006 = vld [vmem:[%s3942 + $0x1f8] sm:$0xff]
        %v4007 = vld [vmem:[%s3942 + $0x200] sm:$0xff]
        %v4008 = vld [vmem:[%s3942 + $0x208] sm:$0xff]
        %v4009 = vld [vmem:[%s3942 + $0x210] sm:$0xff]
        %v4010 = vld [vmem:[%s3942 + $0x218] sm:$0xff]
        %v4011 = vld [vmem:[%s3942 + $0x220] sm:$0xff]
        %v4012 = vld [vmem:[%s3942 + $0x228] sm:$0xff]
        %v4013 = vld [vmem:[%s3942 + $0x230] sm:$0xff]
        %v4014 = vld [vmem:[%s3942 + $0x238] sm:$0xff]
        %v4015 = vld [vmem:[%s3942 + $0x240] sm:$0xff]
        %v4016 = vld [vmem:[%s3942 + $0x248] sm:$0xff]
        %v4017 = vld [vmem:[%s3942 + $0x250] sm:$0xff]
        %v4018 = vld [vmem:[%s3942 + $0x258] sm:$0xff]
        %v4019 = vld [vmem:[%s3942 + $0x260] sm:$0xff]
        %v4020 = vld [vmem:[%s3942 + $0x268] sm:$0xff]
        %v4021 = vld [vmem:[%s3942 + $0x270] sm:$0xff]
        %v4022 = vld [vmem:[%s3942 + $0x278] sm:$0xff]
        %v4023 = vld [vmem:[%s3942 + $0x280] sm:$0xff]
        %v4024 = vld [vmem:[%s3942 + $0x288] sm:$0xff]
        %v4025 = vld [vmem:[%s3942 + $0x290] sm:$0xff]
        %v4026 = vld [vmem:[%s3942 + $0x298] sm:$0xff]
        %v4027 = vld [vmem:[%s3942 + $0x2a0] sm:$0xff]
        %v4028 = vld [vmem:[%s3942 + $0x2a8] sm:$0xff]
        %v4029 = vld [vmem:[%s3942 + $0x2b0] sm:$0xff]
        %v4030 = vld [vmem:[%s3942 + $0x2b8] sm:$0xff]
        %v4031 = vld [vmem:[%s3942 + $0x2c0] sm:$0xff]
        %v4032 = vld [vmem:[%s3942 + $0x2c8] sm:$0xff]
        %v4033 = vld [vmem:[%s3942 + $0x2d0] sm:$0xff]
        %v4034 = vld [vmem:[%s3942 + $0x2d8] sm:$0xff]
        %v4035 = vld [vmem:[%s3942 + $0x2e0] sm:$0xff]
        %v4036 = vld [vmem:[%s3942 + $0x2e8] sm:$0xff]
        %v4037 = vld [vmem:[%s3942 + $0x2f0] sm:$0xff]
        %v4038 = vld [vmem:[%s3942 + $0x2f8] sm:$0xff]
        %v4039 = vld [vmem:[%s3942 + $0x300] sm:$0xff]
        %v4040 = vld [vmem:[%s3942 + $0x308] sm:$0xff]
        %v4041 = vld [vmem:[%s3942 + $0x310] sm:$0xff]
        %v4042 = vld [vmem:[%s3942 + $0x318] sm:$0xff]
        %v4043 = vld [vmem:[%s3942 + $0x320] sm:$0xff]
        %v4044 = vld [vmem:[%s3942 + $0x328] sm:$0xff]
        %v4045 = vld [vmem:[%s3942 + $0x330] sm:$0xff]
        %v4046 = vld [vmem:[%s3942 + $0x338] sm:$0xff]
        %v4047 = vld [vmem:[%s3942 + $0x340] sm:$0xff]
        %v4153 = vunpack.c.l.b16 %v3943
        %v4154 = vunpack.c.h.b16 %v3943
        %v4155 = vunpack.c.l.b16 %v3944
        %v4156 = vunpack.c.h.b16 %v3944
        %v4157 = vunpack.c.l.b16 %v3945
        %v4158 = vunpack.c.h.b16 %v3945
        %v4159 = vunpack.c.l.b16 %v3946
        %v4160 = vunpack.c.h.b16 %v3946
        %v4161 = vunpack.c.l.b16 %v3947
        %v4162 = vunpack.c.h.b16 %v3947
        %v4163 = vunpack.c.l.b16 %v3948
        %v4164 = vunpack.c.h.b16 %v3948
        %v4165 = vunpack.c.l.b16 %v3949
        %v4166 = vunpack.c.h.b16 %v3949
        %v4167 = vunpack.c.l.b16 %v3950
        %v4168 = vunpack.c.h.b16 %v3950
        %v4169 = vunpack.c.l.b16 %v3951
        %v4170 = vunpack.c.h.b16 %v3951
        %v4171 = vunpack.c.l.b16 %v3952
        %v4172 = vunpack.c.h.b16 %v3952
        %v4173 = vunpack.c.l.b16 %v3953
        %v4174 = vunpack.c.h.b16 %v3953
        %v4175 = vunpack.c.l.b16 %v3954
        %v4176 = vunpack.c.h.b16 %v3954
        %v4177 = vunpack.c.l.b16 %v3955
        %v4178 = vunpack.c.h.b16 %v3955
        %v4179 = vunpack.c.l.b16 %v3956
        %v4180 = vunpack.c.h.b16 %v3956
        %v4181 = vunpack.c.l.b16 %v3957
        %v4182 = vunpack.c.h.b16 %v3957
        %v4183 = vunpack.c.l.b16 %v3958
        %v4184 = vunpack.c.h.b16 %v3958
        %v4185 = vunpack.c.l.b16 %v3959
        %v4186 = vunpack.c.h.b16 %v3959
        %v4187 = vunpack.c.l.b16 %v3960
        %v4188 = vunpack.c.h.b16 %v3960
        %v4189 = vunpack.c.l.b16 %v3961
        %v4190 = vunpack.c.h.b16 %v3961
        %v4191 = vunpack.c.l.b16 %v3962
        %v4192 = vunpack.c.h.b16 %v3962
        %v4193 = vunpack.c.l.b16 %v3963
        %v4194 = vunpack.c.h.b16 %v3963
        %v4195 = vunpack.c.l.b16 %v3964
        %v4196 = vunpack.c.h.b16 %v3964
        %v4197 = vunpack.c.l.b16 %v3965
        %v4198 = vunpack.c.h.b16 %v3965
        %v4199 = vunpack.c.l.b16 %v3966
        %v4200 = vunpack.c.h.b16 %v3966
        %v4201 = vunpack.c.l.b16 %v3967
        %v4202 = vunpack.c.h.b16 %v3967
        %v4203 = vunpack.c.l.b16 %v3968
        %v4204 = vunpack.c.h.b16 %v3968
        %v4205 = vunpack.c.l.b16 %v3969
        %v4206 = vunpack.c.h.b16 %v3969
        %v4207 = vunpack.c.l.b16 %v3970
        %v4208 = vunpack.c.h.b16 %v3970
        %v4209 = vunpack.c.l.b16 %v3971
        %v4210 = vunpack.c.h.b16 %v3971
        %v4211 = vunpack.c.l.b16 %v3972
        %v4212 = vunpack.c.h.b16 %v3972
        %v4213 = vunpack.c.l.b16 %v3973
        %v4214 = vunpack.c.h.b16 %v3973
        %v4215 = vunpack.c.l.b16 %v3974
        %v4216 = vunpack.c.h.b16 %v3974
        %v4217 = vunpack.c.l.b16 %v3975
        %v4218 = vunpack.c.h.b16 %v3975
        %v4219 = vunpack.c.l.b16 %v3976
        %v4220 = vunpack.c.h.b16 %v3976
        %v4221 = vunpack.c.l.b16 %v3977
        %v4222 = vunpack.c.h.b16 %v3977
        %v4223 = vunpack.c.l.b16 %v3978
        %v4224 = vunpack.c.h.b16 %v3978
        %v4225 = vunpack.c.l.b16 %v3979
        %v4226 = vunpack.c.h.b16 %v3979
        %v4227 = vunpack.c.l.b16 %v3980
        %v4228 = vunpack.c.h.b16 %v3980
        %v4229 = vunpack.c.l.b16 %v3981
        %v4230 = vunpack.c.h.b16 %v3981
        %v4231 = vunpack.c.l.b16 %v3982
        %v4232 = vunpack.c.h.b16 %v3982
        %v4233 = vunpack.c.l.b16 %v3983
        %v4234 = vunpack.c.h.b16 %v3983
        %v4235 = vunpack.c.l.b16 %v3984
        %v4236 = vunpack.c.h.b16 %v3984
        %v4237 = vunpack.c.l.b16 %v3985
        %v4238 = vunpack.c.h.b16 %v3985
        %v4239 = vunpack.c.l.b16 %v3986
        %v4240 = vunpack.c.h.b16 %v3986
        %v4241 = vunpack.c.l.b16 %v3987
        %v4242 = vunpack.c.h.b16 %v3987
        %v4243 = vunpack.c.l.b16 %v3988
        %v4244 = vunpack.c.h.b16 %v3988
        %v4245 = vunpack.c.l.b16 %v3989
        %v4246 = vunpack.c.h.b16 %v3989
        %v4247 = vunpack.c.l.b16 %v3990
        %v4248 = vunpack.c.h.b16 %v3990
        %v4249 = vunpack.c.l.b16 %v3991
        %v4250 = vunpack.c.h.b16 %v3991
        %v4251 = vunpack.c.l.b16 %v3992
        %v4252 = vunpack.c.h.b16 %v3992
        %v4253 = vunpack.c.l.b16 %v3993
        %v4254 = vunpack.c.h.b16 %v3993
        %v4255 = vunpack.c.l.b16 %v3994
        %v4256 = vunpack.c.h.b16 %v3994
        %v4257 = vunpack.c.l.b16 %v3995
        %v4258 = vunpack.c.h.b16 %v3995
        %v4259 = vunpack.c.l.b16 %v3996
        %v4260 = vunpack.c.h.b16 %v3996
        %v4261 = vunpack.c.l.b16 %v3997
        %v4262 = vunpack.c.h.b16 %v3997
        %v4263 = vunpack.c.l.b16 %v3998
        %v4264 = vunpack.c.h.b16 %v3998
        %v4265 = vunpack.c.l.b16 %v3999
        %v4266 = vunpack.c.h.b16 %v3999
        %v4267 = vunpack.c.l.b16 %v4000
        %v4268 = vunpack.c.h.b16 %v4000
        %v4269 = vunpack.c.l.b16 %v4001
        %v4270 = vunpack.c.h.b16 %v4001
        %v4271 = vunpack.c.l.b16 %v4002
        %v4272 = vunpack.c.h.b16 %v4002
        %v4273 = vunpack.c.l.b16 %v4003
        %v4274 = vunpack.c.h.b16 %v4003
        %v4275 = vunpack.c.l.b16 %v4004
        %v4276 = vunpack.c.h.b16 %v4004
        %v4277 = vunpack.c.l.b16 %v4005
        %v4278 = vunpack.c.h.b16 %v4005
        %v4279 = vunpack.c.l.b16 %v4006
        %v4280 = vunpack.c.h.b16 %v4006
        %v4281 = vunpack.c.l.b16 %v4007
        %v4282 = vunpack.c.h.b16 %v4007
        %v4283 = vunpack.c.l.b16 %v4008
        %v4284 = vunpack.c.h.b16 %v4008
        %v4285 = vunpack.c.l.b16 %v4009
        %v4286 = vunpack.c.h.b16 %v4009
        %v4287 = vunpack.c.l.b16 %v4010
        %v4288 = vunpack.c.h.b16 %v4010
        %v4289 = vunpack.c.l.b16 %v4011
        %v4290 = vunpack.c.h.b16 %v4011
        %v4291 = vunpack.c.l.b16 %v4012
        %v4292 = vunpack.c.h.b16 %v4012
        %v4293 = vunpack.c.l.b16 %v4013
        %v4294 = vunpack.c.h.b16 %v4013
        %v4295 = vunpack.c.l.b16 %v4014
        %v4296 = vunpack.c.h.b16 %v4014
        %v4297 = vunpack.c.l.b16 %v4015
        %v4298 = vunpack.c.h.b16 %v4015
        %v4299 = vunpack.c.l.b16 %v4016
        %v4300 = vunpack.c.h.b16 %v4016
        %v4301 = vunpack.c.l.b16 %v4017
        %v4302 = vunpack.c.h.b16 %v4017
        %v4303 = vunpack.c.l.b16 %v4018
        %v4304 = vunpack.c.h.b16 %v4018
        %v4305 = vunpack.c.l.b16 %v4019
        %v4306 = vunpack.c.h.b16 %v4019
        %v4307 = vunpack.c.l.b16 %v4020
        %v4308 = vunpack.c.h.b16 %v4020
        %v4309 = vunpack.c.l.b16 %v4021
        %v4310 = vunpack.c.h.b16 %v4021
        %v4311 = vunpack.c.l.b16 %v4022
        %v4312 = vunpack.c.h.b16 %v4022
        %v4313 = vunpack.c.l.b16 %v4023
        %v4314 = vunpack.c.h.b16 %v4023
        %v4315 = vunpack.c.l.b16 %v4024
        %v4316 = vunpack.c.h.b16 %v4024
        %v4317 = vunpack.c.l.b16 %v4025
        %v4318 = vunpack.c.h.b16 %v4025
        %v4319 = vunpack.c.l.b16 %v4026
        %v4320 = vunpack.c.h.b16 %v4026
        %v4321 = vunpack.c.l.b16 %v4027
        %v4322 = vunpack.c.h.b16 %v4027
        %v4323 = vunpack.c.l.b16 %v4028
        %v4324 = vunpack.c.h.b16 %v4028
        %v4325 = vunpack.c.l.b16 %v4029
        %v4326 = vunpack.c.h.b16 %v4029
        %v4327 = vunpack.c.l.b16 %v4030
        %v4328 = vunpack.c.h.b16 %v4030
        %v4329 = vunpack.c.l.b16 %v4031
        %v4330 = vunpack.c.h.b16 %v4031
        %v4331 = vunpack.c.l.b16 %v4032
        %v4332 = vunpack.c.h.b16 %v4032
        %v4333 = vunpack.c.l.b16 %v4033
        %v4334 = vunpack.c.h.b16 %v4033
        %v4335 = vunpack.c.l.b16 %v4034
        %v4336 = vunpack.c.h.b16 %v4034
        %v4337 = vunpack.c.l.b16 %v4035
        %v4338 = vunpack.c.h.b16 %v4035
        %v4339 = vunpack.c.l.b16 %v4036
        %v4340 = vunpack.c.h.b16 %v4036
        %v4341 = vunpack.c.l.b16 %v4037
        %v4342 = vunpack.c.h.b16 %v4037
        %v4343 = vunpack.c.l.b16 %v4038
        %v4344 = vunpack.c.h.b16 %v4038
        %v4345 = vunpack.c.l.b16 %v4039
        %v4346 = vunpack.c.h.b16 %v4039
        %v4347 = vunpack.c.l.b16 %v4040
        %v4348 = vunpack.c.h.b16 %v4040
        %v4349 = vunpack.c.l.b16 %v4041
        %v4350 = vunpack.c.h.b16 %v4041
        %v4351 = vunpack.c.l.b16 %v4042
        %v4352 = vunpack.c.h.b16 %v4042
        %v4353 = vunpack.c.l.b16 %v4043
        %v4354 = vunpack.c.h.b16 %v4043
        %v4355 = vunpack.c.l.b16 %v4044
        %v4356 = vunpack.c.h.b16 %v4044
        %v4357 = vunpack.c.l.b16 %v4045
        %v4358 = vunpack.c.h.b16 %v4045
        %v4359 = vunpack.c.l.b16 %v4046
        %v4360 = vunpack.c.h.b16 %v4046
        %v4361 = vunpack.c.l.b16 %v4047
        %v4362 = vunpack.c.h.b16 %v4047
        %v4363 = vpack.c.b16 %v4159, %v4153
        %v4364 = vpack.c.b16 %v4160, %v4154
        %v4365 = vpack.c.b16 %v4161, %v4155
        %v4366 = vpack.c.b16 %v4162, %v4156
        %v4367 = vpack.c.b16 %v4163, %v4157
        %v4368 = vpack.c.b16 %v4164, %v4158
        %v4369 = vpack.c.b16 %v4171, %v4165
        %v4370 = vpack.c.b16 %v4172, %v4166
        %v4371 = vpack.c.b16 %v4173, %v4167
        %v4372 = vpack.c.b16 %v4174, %v4168
        %v4373 = vpack.c.b16 %v4175, %v4169
        %v4374 = vpack.c.b16 %v4176, %v4170
        %v4375 = vpack.c.b16 %v4183, %v4177
        %v4376 = vpack.c.b16 %v4184, %v4178
        %v4377 = vpack.c.b16 %v4185, %v4179
        %v4378 = vpack.c.b16 %v4186, %v4180
        %v4379 = vpack.c.b16 %v4187, %v4181
        %v4380 = vpack.c.b16 %v4188, %v4182
        %v4381 = vpack.c.b16 %v4195, %v4189
        %v4382 = vpack.c.b16 %v4196, %v4190
        %v4383 = vpack.c.b16 %v4197, %v4191
        %v4384 = vpack.c.b16 %v4198, %v4192
        %v4385 = vpack.c.b16 %v4199, %v4193
        %v4386 = vpack.c.b16 %v4200, %v4194
        %v4387 = vpack.c.b16 %v4207, %v4201
        %v4388 = vpack.c.b16 %v4208, %v4202
        %v4389 = vpack.c.b16 %v4209, %v4203
        %v4390 = vpack.c.b16 %v4210, %v4204
        %v4391 = vpack.c.b16 %v4211, %v4205
        %v4392 = vpack.c.b16 %v4212, %v4206
        %v4393 = vpack.c.b16 %v4219, %v4213
        %v4394 = vpack.c.b16 %v4220, %v4214
        %v4395 = vpack.c.b16 %v4221, %v4215
        %v4396 = vpack.c.b16 %v4222, %v4216
        %v4397 = vpack.c.b16 %v4223, %v4217
        %v4398 = vpack.c.b16 %v4224, %v4218
        %v4399 = vpack.c.b16 %v4231, %v4225
        %v4400 = vpack.c.b16 %v4232, %v4226
        %v4401 = vpack.c.b16 %v4233, %v4227
        %v4402 = vpack.c.b16 %v4234, %v4228
        %v4403 = vpack.c.b16 %v4235, %v4229
        %v4404 = vpack.c.b16 %v4236, %v4230
        %v4405 = vpack.c.b16 %v4243, %v4237
        %v4406 = vpack.c.b16 %v4244, %v4238
        %v4407 = vpack.c.b16 %v4245, %v4239
        %v4408 = vpack.c.b16 %v4246, %v4240
        %v4409 = vpack.c.b16 %v4247, %v4241
        %v4410 = vpack.c.b16 %v4248, %v4242
        %v4411 = vpack.c.b16 %v4255, %v4249
        %v4412 = vpack.c.b16 %v4256, %v4250
        %v4413 = vpack.c.b16 %v4257, %v4251
        %v4414 = vpack.c.b16 %v4258, %v4252
        %v4415 = vpack.c.b16 %v4259, %v4253
        %v4416 = vpack.c.b16 %v4260, %v4254
        %v4417 = vpack.c.b16 %v4267, %v4261
        %v4418 = vpack.c.b16 %v4268, %v4262
        %v4419 = vpack.c.b16 %v4269, %v4263
        %v4420 = vpack.c.b16 %v4270, %v4264
        %v4421 = vpack.c.b16 %v4271, %v4265
        %v4422 = vpack.c.b16 %v4272, %v4266
        %v4423 = vpack.c.b16 %v4279, %v4273
        %v4424 = vpack.c.b16 %v4280, %v4274
        %v4425 = vpack.c.b16 %v4281, %v4275
        %v4426 = vpack.c.b16 %v4282, %v4276
        %v4427 = vpack.c.b16 %v4283, %v4277
        %v4428 = vpack.c.b16 %v4284, %v4278
        %v4429 = vpack.c.b16 %v4291, %v4285
        %v4430 = vpack.c.b16 %v4292, %v4286
        %v4431 = vpack.c.b16 %v4293, %v4287
        %v4432 = vpack.c.b16 %v4294, %v4288
        %v4433 = vpack.c.b16 %v4295, %v4289
        %v4434 = vpack.c.b16 %v4296, %v4290
        %v4435 = vpack.c.b16 %v4303, %v4297
        %v4436 = vpack.c.b16 %v4304, %v4298
        %v4437 = vpack.c.b16 %v4305, %v4299
        %v4438 = vpack.c.b16 %v4306, %v4300
        %v4439 = vpack.c.b16 %v4307, %v4301
        %v4440 = vpack.c.b16 %v4308, %v4302
        %v4441 = vpack.c.b16 %v4315, %v4309
        %v4442 = vpack.c.b16 %v4316, %v4310
        %v4443 = vpack.c.b16 %v4317, %v4311
        %v4444 = vpack.c.b16 %v4318, %v4312
        %v4445 = vpack.c.b16 %v4319, %v4313
        %v4446 = vpack.c.b16 %v4320, %v4314
        %v4447 = vpack.c.b16 %v4327, %v4321
        %v4448 = vpack.c.b16 %v4328, %v4322
        %v4449 = vpack.c.b16 %v4329, %v4323
        %v4450 = vpack.c.b16 %v4330, %v4324
        %v4451 = vpack.c.b16 %v4331, %v4325
        %v4452 = vpack.c.b16 %v4332, %v4326
        %v4453 = vpack.c.b16 %v4339, %v4333
        %v4454 = vpack.c.b16 %v4340, %v4334
        %v4455 = vpack.c.b16 %v4341, %v4335
        %v4456 = vpack.c.b16 %v4342, %v4336
        %v4457 = vpack.c.b16 %v4343, %v4337
        %v4458 = vpack.c.b16 %v4344, %v4338
        %v4459 = vpack.c.b16 %v4351, %v4345
        %v4460 = vpack.c.b16 %v4352, %v4346
        %v4461 = vpack.c.b16 %v4353, %v4347
        %v4462 = vpack.c.b16 %v4354, %v4348
        %v4463 = vpack.c.b16 %v4355, %v4349
        %v4464 = vpack.c.b16 %v4356, %v4350
        %v4465 = vpack.c.b16 %v4357, %v4357
        %v4466 = vpack.c.b16 %v4358, %v4358
        %v4467 = vpack.c.b16 %v4359, %v4359
        %v4468 = vpack.c.b16 %v4360, %v4360
        %v4469 = vpack.c.b16 %v4361, %v4361
        %v4470 = vpack.c.b16 %v4362, %v4362
        %v4574 = vsel %vm1091, %v4465, 0
        %v4577 = vsel %vm1091, %v4466, 0
        %v4580 = vsel %vm1091, %v4467, 0
        %v4583 = vsel %vm1091, %v4468, 0
        %v4586 = vsel %vm1091, %v4469, 0
        %v4589 = vsel %vm1091, %v4470, 0
        %4591 = vmatprep.subr.bf16.mxu0 %v4364
        %4592 = vmatpush1.bf16.msra.mxu0 %v4363
        %4593 = vmatprep.subr.bf16.mxu0 %v4370
        %4594 = vmatpush1.bf16.msra.mxu0 %v4369
        %4595 = vmatprep.subr.bf16.mxu0 %v4376
        %4596 = vmatpush1.bf16.msra.mxu0 %v4375
        %4597 = vmatprep.subr.bf16.mxu0 %v4382
        %4598 = vmatpush1.bf16.msra.mxu0 %v4381
        %4599 = vmatprep.subr.bf16.mxu0 %v4388
        %4600 = vmatpush1.bf16.msra.mxu0 %v4387
        %4601 = vmatprep.subr.bf16.mxu0 %v4394
        %4602 = vmatpush1.bf16.msra.mxu0 %v4393
        %4603 = vmatprep.subr.bf16.mxu0 %v4400
        %4604 = vmatpush1.bf16.msra.mxu0 %v4399
        %4605 = vmatprep.subr.bf16.mxu0 %v4406
        %4606 = vmatpush1.bf16.msra.mxu0 %v4405
        %4607 = vmatprep.subr.bf16.mxu0 %v4412
        %4608 = vmatpush1.bf16.msra.mxu0 %v4411
        %4609 = vmatprep.subr.bf16.mxu0 %v4418
        %4610 = vmatpush1.bf16.msra.mxu0 %v4417
        %4611 = vmatprep.subr.bf16.mxu0 %v4424
        %4612 = vmatpush1.bf16.msra.mxu0 %v4423
        %4613 = vmatprep.subr.bf16.mxu0 %v4430
        %4614 = vmatpush1.bf16.msra.mxu0 %v4429
        %4615 = vmatprep.subr.bf16.mxu0 %v4436
        %4616 = vmatpush1.bf16.msra.mxu0 %v4435
        %4617 = vmatprep.subr.bf16.mxu0 %v4442
        %4618 = vmatpush1.bf16.msra.mxu0 %v4441
        %4619 = vmatprep.subr.bf16.mxu0 %v4448
        %4620 = vmatpush1.bf16.msra.mxu0 %v4447
        %4621 = vmatprep.subr.bf16.mxu0 %v4454
        %4622 = vmatpush1.bf16.msra.mxu0 %v4453
        %4623 = vmatprep.mubr.bf16.mxu0 %v3660
        %4624 = vmatmul.mubr.bf16.gmra.mrb[0].mxu0 %v3653
        %v4625 = vpop.f32.mrb[0].mxu0
        %v4626 = vadd.f32 0.0, %v4625
        %v4627 = vpop.f32.mrb[0].mxu0
        %v4628 = vadd.f32 0.0, %v4627
        %v4629 = vpop.f32.mrb[0].mxu0
        %v4630 = vadd.f32 0.0, %v4629
        %v4631 = vpop.f32.mrb[0].mxu0
        %v4632 = vadd.f32 0.0, %v4631
        %4633 = vdwg.mxu0
        %4634 = vmatprep.subr.bf16.mxu0 %v4460
        %4635 = vmatpush1.bf16.msra.mxu0 %v4459
        %4636 = vmatprep.subr.bf16.mxu0 %v4577
        %4637 = vmatpush1.bf16.msra.mxu0 %v4574
        %4638 = vmatprep.subr.bf16.mxu0 0
        %4639 = vmatpush1.bf16.msra.mxu0 0
        %4640 = vmatprep.subr.bf16.mxu0 0
        %4641 = vmatpush1.bf16.msra.mxu0 0
        %4642 = vmatprep.subr.bf16.mxu0 0
        %4643 = vmatpush1.bf16.msra.mxu0 0
        %4644 = vmatprep.subr.bf16.mxu0 0
        %4645 = vmatpush1.bf16.msra.mxu0 0
        %4646 = vmatprep.subr.bf16.mxu0 0
        %4647 = vmatpush1.bf16.msra.mxu0 0
        %4648 = vmatprep.subr.bf16.mxu0 0
        %4649 = vmatpush1.bf16.msra.mxu0 0
        %4650 = vmatprep.subr.bf16.mxu0 0
        %4651 = vmatpush1.bf16.msra.mxu0 0
        %4652 = vmatprep.subr.bf16.mxu0 0
        %4653 = vmatpush1.bf16.msra.mxu0 0
        %4654 = vmatprep.subr.bf16.mxu0 0
        %4655 = vmatpush1.bf16.msra.mxu0 0
        %4656 = vmatprep.subr.bf16.mxu0 0
        %4657 = vmatpush1.bf16.msra.mxu0 0
        %4658 = vmatprep.subr.bf16.mxu0 0
        %4659 = vmatpush1.bf16.msra.mxu0 0
        %4660 = vmatprep.subr.bf16.mxu0 0
        %4661 = vmatpush1.bf16.msra.mxu0 0
        %4662 = vmatprep.subr.bf16.mxu0 0
        %4663 = vmatpush1.bf16.msra.mxu0 0
        %4664 = vmatprep.subr.bf16.mxu0 0
        %4665 = vmatpush1.bf16.msra.mxu0 0
        %4666 = vmatprep.mubr.bf16.mxu0 0
        %4667 = vmatmul.mubr.bf16.gmra.mrb[0].mxu0 %v3670
        %v4668 = vpop.f32.mrb[0].mxu0
        %v4669 = vadd.f32 %v4626, %v4668
        %v4670 = vpop.f32.mrb[0].mxu0
        %v4671 = vadd.f32 %v4628, %v4670
        %v4672 = vpop.f32.mrb[0].mxu0
        %v4673 = vadd.f32 %v4630, %v4672
        %v4674 = vpop.f32.mrb[0].mxu0
        %v4675 = vadd.f32 %v4632, %v4674
        %4676 = vdwg.mxu0
        %4677 = vmatprep.subr.bf16.mxu0 %v4366
        %4678 = vmatpush1.bf16.msra.mxu0 %v4365
        %4679 = vmatprep.subr.bf16.mxu0 %v4372
        %4680 = vmatpush1.bf16.msra.mxu0 %v4371
        %4681 = vmatprep.subr.bf16.mxu0 %v4378
        %4682 = vmatpush1.bf16.msra.mxu0 %v4377
        %4683 = vmatprep.subr.bf16.mxu0 %v4384
        %4684 = vmatpush1.bf16.msra.mxu0 %v4383
        %4685 = vmatprep.subr.bf16.mxu0 %v4390
        %4686 = vmatpush1.bf16.msra.mxu0 %v4389
        %4687 = vmatprep.subr.bf16.mxu0 %v4396
        %4688 = vmatpush1.bf16.msra.mxu0 %v4395
        %4689 = vmatprep.subr.bf16.mxu0 %v4402
        %4690 = vmatpush1.bf16.msra.mxu0 %v4401
        %4691 = vmatprep.subr.bf16.mxu0 %v4408
        %4692 = vmatpush1.bf16.msra.mxu0 %v4407
        %4693 = vmatprep.subr.bf16.mxu0 %v4414
        %4694 = vmatpush1.bf16.msra.mxu0 %v4413
        %4695 = vmatprep.subr.bf16.mxu0 %v4420
        %4696 = vmatpush1.bf16.msra.mxu0 %v4419
        %4697 = vmatprep.subr.bf16.mxu0 %v4426
        %4698 = vmatpush1.bf16.msra.mxu0 %v4425
        %4699 = vmatprep.subr.bf16.mxu0 %v4432
        %4700 = vmatpush1.bf16.msra.mxu0 %v4431
        %4701 = vmatprep.subr.bf16.mxu0 %v4438
        %4702 = vmatpush1.bf16.msra.mxu0 %v4437
        %4703 = vmatprep.subr.bf16.mxu0 %v4444
        %4704 = vmatpush1.bf16.msra.mxu0 %v4443
        %4705 = vmatprep.subr.bf16.mxu0 %v4450
        %4706 = vmatpush1.bf16.msra.mxu0 %v4449
        %4707 = vmatprep.subr.bf16.mxu0 %v4456
        %4708 = vmatpush1.bf16.msra.mxu0 %v4455
        %4709 = vmatprep.mubr.bf16.mxu0 %v3660
        %4710 = vmatmul.mubr.bf16.gmra.mrb[0].mxu0 %v3653
        %v4711 = vpop.f32.mrb[0].mxu0
        %v4712 = vadd.f32 0.0, %v4711
        %v4713 = vpop.f32.mrb[0].mxu0
        %v4714 = vadd.f32 0.0, %v4713
        %v4715 = vpop.f32.mrb[0].mxu0
        %v4716 = vadd.f32 0.0, %v4715
        %v4717 = vpop.f32.mrb[0].mxu0
        %v4718 = vadd.f32 0.0, %v4717
        %4719 = vdwg.mxu0
        %4720 = vmatprep.subr.bf16.mxu0 %v4462
        %4721 = vmatpush1.bf16.msra.mxu0 %v4461
        %4722 = vmatprep.subr.bf16.mxu0 %v4583
        %4723 = vmatpush1.bf16.msra.mxu0 %v4580
        %4724 = vmatprep.subr.bf16.mxu0 0
        %4725 = vmatpush1.bf16.msra.mxu0 0
        %4726 = vmatprep.subr.bf16.mxu0 0
        %4727 = vmatpush1.bf16.msra.mxu0 0
        %4728 = vmatprep.subr.bf16.mxu0 0
        %4729 = vmatpush1.bf16.msra.mxu0 0
        %4730 = vmatprep.subr.bf16.mxu0 0
        %4731 = vmatpush1.bf16.msra.mxu0 0
        %4732 = vmatprep.subr.bf16.mxu0 0
        %4733 = vmatpush1.bf16.msra.mxu0 0
        %4734 = vmatprep.subr.bf16.mxu0 0
        %4735 = vmatpush1.bf16.msra.mxu0 0
        %4736 = vmatprep.subr.bf16.mxu0 0
        %4737 = vmatpush1.bf16.msra.mxu0 0
        %4738 = vmatprep.subr.bf16.mxu0 0
        %4739 = vmatpush1.bf16.msra.mxu0 0
        %4740 = vmatprep.subr.bf16.mxu0 0
        %4741 = vmatpush1.bf16.msra.mxu0 0
        %4742 = vmatprep.subr.bf16.mxu0 0
        %4743 = vmatpush1.bf16.msra.mxu0 0
        %4744 = vmatprep.subr.bf16.mxu0 0
        %4745 = vmatpush1.bf16.msra.mxu0 0
        %4746 = vmatprep.subr.bf16.mxu0 0
        %4747 = vmatpush1.bf16.msra.mxu0 0
        %4748 = vmatprep.subr.bf16.mxu0 0
        %4749 = vmatpush1.bf16.msra.mxu0 0
        %4750 = vmatprep.subr.bf16.mxu0 0
        %4751 = vmatpush1.bf16.msra.mxu0 0
        %4752 = vmatprep.mubr.bf16.mxu0 0
        %4753 = vmatmul.mubr.bf16.gmra.mrb[0].mxu0 %v3670
        %v4754 = vpop.f32.mrb[0].mxu0
        %v4755 = vadd.f32 %v4712, %v4754
        %v4756 = vpop.f32.mrb[0].mxu0
        %v4757 = vadd.f32 %v4714, %v4756
        %v4758 = vpop.f32.mrb[0].mxu0
        %v4759 = vadd.f32 %v4716, %v4758
        %v4760 = vpop.f32.mrb[0].mxu0
        %v4761 = vadd.f32 %v4718, %v4760
        %4762 = vdwg.mxu0
        %4763 = vmatprep.subr.bf16.mxu0 %v4368
        %4764 = vmatpush1.bf16.msra.mxu0 %v4367
        %4765 = vmatprep.subr.bf16.mxu0 %v4374
        %4766 = vmatpush1.bf16.msra.mxu0 %v4373
        %4767 = vmatprep.subr.bf16.mxu0 %v4380
        %4768 = vmatpush1.bf16.msra.mxu0 %v4379
        %4769 = vmatprep.subr.bf16.mxu0 %v4386
        %4770 = vmatpush1.bf16.msra.mxu0 %v4385
        %4771 = vmatprep.subr.bf16.mxu0 %v4392
        %4772 = vmatpush1.bf16.msra.mxu0 %v4391
        %4773 = vmatprep.subr.bf16.mxu0 %v4398
        %4774 = vmatpush1.bf16.msra.mxu0 %v4397
        %4775 = vmatprep.subr.bf16.mxu0 %v4404
        %4776 = vmatpush1.bf16.msra.mxu0 %v4403
        %4777 = vmatprep.subr.bf16.mxu0 %v4410
        %4778 = vmatpush1.bf16.msra.mxu0 %v4409
        %4779 = vmatprep.subr.bf16.mxu0 %v4416
        %4780 = vmatpush1.bf16.msra.mxu0 %v4415
        %4781 = vmatprep.subr.bf16.mxu0 %v4422
        %4782 = vmatpush1.bf16.msra.mxu0 %v4421
        %4783 = vmatprep.subr.bf16.mxu0 %v4428
        %4784 = vmatpush1.bf16.msra.mxu0 %v4427
        %4785 = vmatprep.subr.bf16.mxu0 %v4434
        %4786 = vmatpush1.bf16.msra.mxu0 %v4433
        %4787 = vmatprep.subr.bf16.mxu0 %v4440
        %4788 = vmatpush1.bf16.msra.mxu0 %v4439
        %4789 = vmatprep.subr.bf16.mxu0 %v4446
        %4790 = vmatpush1.bf16.msra.mxu0 %v4445
        %4791 = vmatprep.subr.bf16.mxu0 %v4452
        %4792 = vmatpush1.bf16.msra.mxu0 %v4451
        %4793 = vmatprep.subr.bf16.mxu0 %v4458
        %4794 = vmatpush1.bf16.msra.mxu0 %v4457
        %4795 = vmatprep.mubr.bf16.mxu0 %v3660
        %4796 = vmatmul.mubr.bf16.gmra.mrb[0].mxu0 %v3653
        %v4797 = vpop.f32.mrb[0].mxu0
        %v4798 = vadd.f32 0.0, %v4797
        %v4799 = vpop.f32.mrb[0].mxu0
        %v4800 = vadd.f32 0.0, %v4799
        %v4801 = vpop.f32.mrb[0].mxu0
        %v4802 = vadd.f32 0.0, %v4801
        %v4803 = vpop.f32.mrb[0].mxu0
        %v4804 = vadd.f32 0.0, %v4803
        %4805 = vdwg.mxu0
        %4806 = vmatprep.subr.bf16.mxu0 %v4464
        %4807 = vmatpush1.bf16.msra.mxu0 %v4463
        %4808 = vmatprep.subr.bf16.mxu0 %v4589
        %4809 = vmatpush1.bf16.msra.mxu0 %v4586
        %4810 = vmatprep.subr.bf16.mxu0 0
        %4811 = vmatpush1.bf16.msra.mxu0 0
        %4812 = vmatprep.subr.bf16.mxu0 0
        %4813 = vmatpush1.bf16.msra.mxu0 0
        %4814 = vmatprep.subr.bf16.mxu0 0
        %4815 = vmatpush1.bf16.msra.mxu0 0
        %4816 = vmatprep.subr.bf16.mxu0 0
        %4817 = vmatpush1.bf16.msra.mxu0 0
        %4818 = vmatprep.subr.bf16.mxu0 0
        %4819 = vmatpush1.bf16.msra.mxu0 0
        %4820 = vmatprep.subr.bf16.mxu0 0
        %4821 = vmatpush1.bf16.msra.mxu0 0
        %4822 = vmatprep.subr.bf16.mxu0 0
        %4823 = vmatpush1.bf16.msra.mxu0 0
        %4824 = vmatprep.subr.bf16.mxu0 0
        %4825 = vmatpush1.bf16.msra.mxu0 0
        %4826 = vmatprep.subr.bf16.mxu0 0
        %4827 = vmatpush1.bf16.msra.mxu0 0
        %4828 = vmatprep.subr.bf16.mxu0 0
        %4829 = vmatpush1.bf16.msra.mxu0 0
        %4830 = vmatprep.subr.bf16.mxu0 0
        %4831 = vmatpush1.bf16.msra.mxu0 0
        %4832 = vmatprep.subr.bf16.mxu0 0
        %4833 = vmatpush1.bf16.msra.mxu0 0
        %4834 = vmatprep.subr.bf16.mxu0 0
        %4835 = vmatpush1.bf16.msra.mxu0 0
        %4836 = vmatprep.subr.bf16.mxu0 0
        %4837 = vmatpush1.bf16.msra.mxu0 0
        %4838 = vmatprep.mubr.bf16.mxu0 0
        %4839 = vmatmul.mubr.bf16.gmra.mrb[0].mxu0 %v3670
        %v4840 = vpop.f32.mrb[0].mxu0
        %v4841 = vadd.f32 %v4798, %v4840
        %v4842 = vpop.f32.mrb[0].mxu0
        %v4843 = vadd.f32 %v4800, %v4842
        %v4844 = vpop.f32.mrb[0].mxu0
        %v4845 = vadd.f32 %v4802, %v4844
        %v4846 = vpop.f32.mrb[0].mxu0
        %v4847 = vadd.f32 %v4804, %v4846
        %4848 = vdwg.mxu0
        %v4849 = vadd.f32 %v3635, %v4669
        %v4850 = vadd.f32 %v3636, %v4671
        %v4851 = vadd.f32 %v3637, %v4755
        %v4852 = vadd.f32 %v3638, %v4757
        %v4853 = vadd.f32 %v3639, %v4841
        %v4854 = vadd.f32 %v3640, %v4843
        %v4855 = vadd.f32 %v3641, %v4673
        %v4856 = vadd.f32 %v3642, %v4675
        %v4857 = vadd.f32 %v3643, %v4759
        %v4858 = vadd.f32 %v3644, %v4761
        %v4859 = vadd.f32 %v3645, %v4845
        %v4860 = vadd.f32 %v3646, %v4847
        %v4861 = vrot.slane %v1378, 1
        %v4862 = vrot.slane %v1379, 1
        %v4863 = vrot.slane %v1380, 1
        %v4867 = vsel %vm1087, %v4863, 0
        %4869 = vmatprep.subr.bf16.mxu0 %v4364
        %4870 = vmatpush1.bf16.msra.mxu0 %v4363
        %4871 = vmatprep.subr.bf16.mxu0 %v4370
        %4872 = vmatpush1.bf16.msra.mxu0 %v4369
        %4873 = vmatprep.subr.bf16.mxu0 %v4376
        %4874 = vmatpush1.bf16.msra.mxu0 %v4375
        %4875 = vmatprep.subr.bf16.mxu0 %v4382
        %4876 = vmatpush1.bf16.msra.mxu0 %v4381
        %4877 = vmatprep.subr.bf16.mxu0 %v4388
        %4878 = vmatpush1.bf16.msra.mxu0 %v4387
        %4879 = vmatprep.subr.bf16.mxu0 %v4394
        %4880 = vmatpush1.bf16.msra.mxu0 %v4393
        %4881 = vmatprep.subr.bf16.mxu0 %v4400
        %4882 = vmatpush1.bf16.msra.mxu0 %v4399
        %4883 = vmatprep.subr.bf16.mxu0 %v4406
        %4884 = vmatpush1.bf16.msra.mxu0 %v4405
        %4885 = vmatprep.subr.bf16.mxu0 %v4412
        %4886 = vmatpush1.bf16.msra.mxu0 %v4411
        %4887 = vmatprep.subr.bf16.mxu0 %v4418
        %4888 = vmatpush1.bf16.msra.mxu0 %v4417
        %4889 = vmatprep.subr.bf16.mxu0 %v4424
        %4890 = vmatpush1.bf16.msra.mxu0 %v4423
        %4891 = vmatprep.subr.bf16.mxu0 %v4430
        %4892 = vmatpush1.bf16.msra.mxu0 %v4429
        %4893 = vmatprep.subr.bf16.mxu0 %v4436
        %4894 = vmatpush1.bf16.msra.mxu0 %v4435
        %4895 = vmatprep.subr.bf16.mxu0 %v4442
        %4896 = vmatpush1.bf16.msra.mxu0 %v4441
        %4897 = vmatprep.subr.bf16.mxu0 %v4448
        %4898 = vmatpush1.bf16.msra.mxu0 %v4447
        %4899 = vmatprep.subr.bf16.mxu0 %v4454
        %4900 = vmatpush1.bf16.msra.mxu0 %v4453
        %4901 = vmatprep.mubr.bf16.mxu0 %v4862
        %4902 = vmatmul.mubr.bf16.gmra.mrb[0].mxu0 %v4861
        %v4903 = vpop.f32.mrb[0].mxu0
        %v4904 = vadd.f32 0.0, %v4903
        %v4905 = vpop.f32.mrb[0].mxu0
        %v4906 = vadd.f32 0.0, %v4905
        %v4907 = vpop.f32.mrb[0].mxu0
        %v4908 = vadd.f32 0.0, %v4907
        %v4909 = vpop.f32.mrb[0].mxu0
        %v4910 = vadd.f32 0.0, %v4909
        %4911 = vdwg.mxu0
        %4912 = vmatprep.subr.bf16.mxu0 %v4460
        %4913 = vmatpush1.bf16.msra.mxu0 %v4459
        %4914 = vmatprep.subr.bf16.mxu0 %v4577
        %4915 = vmatpush1.bf16.msra.mxu0 %v4574
        %4916 = vmatprep.subr.bf16.mxu0 0
        %4917 = vmatpush1.bf16.msra.mxu0 0
        %4918 = vmatprep.subr.bf16.mxu0 0
        %4919 = vmatpush1.bf16.msra.mxu0 0
        %4920 = vmatprep.subr.bf16.mxu0 0
        %4921 = vmatpush1.bf16.msra.mxu0 0
        %4922 = vmatprep.subr.bf16.mxu0 0
        %4923 = vmatpush1.bf16.msra.mxu0 0
        %4924 = vmatprep.subr.bf16.mxu0 0
        %4925 = vmatpush1.bf16.msra.mxu0 0
        %4926 = vmatprep.subr.bf16.mxu0 0
        %4927 = vmatpush1.bf16.msra.mxu0 0
        %4928 = vmatprep.subr.bf16.mxu0 0
        %4929 = vmatpush1.bf16.msra.mxu0 0
        %4930 = vmatprep.subr.bf16.mxu0 0
        %4931 = vmatpush1.bf16.msra.mxu0 0
        %4932 = vmatprep.subr.bf16.mxu0 0
        %4933 = vmatpush1.bf16.msra.mxu0 0
        %4934 = vmatprep.subr.bf16.mxu0 0
        %4935 = vmatpush1.bf16.msra.mxu0 0
        %4936 = vmatprep.subr.bf16.mxu0 0
        %4937 = vmatpush1.bf16.msra.mxu0 0
        %4938 = vmatprep.subr.bf16.mxu0 0
        %4939 = vmatpush1.bf16.msra.mxu0 0
        %4940 = vmatprep.subr.bf16.mxu0 0
        %4941 = vmatpush1.bf16.msra.mxu0 0
        %4942 = vmatprep.subr.bf16.mxu0 0
        %4943 = vmatpush1.bf16.msra.mxu0 0
        %4944 = vmatprep.mubr.bf16.mxu0 0
        %4945 = vmatmul.mubr.bf16.gmra.mrb[0].mxu0 %v4867
        %v4946 = vpop.f32.mrb[0].mxu0
        %v4947 = vadd.f32 %v4904, %v4946
        %v4948 = vpop.f32.mrb[0].mxu0
        %v4949 = vadd.f32 %v4906, %v4948
        %v4950 = vpop.f32.mrb[0].mxu0
        %v4951 = vadd.f32 %v4908, %v4950
        %v4952 = vpop.f32.mrb[0].mxu0
        %v4953 = vadd.f32 %v4910, %v4952
        %4954 = vdwg.mxu0
        %4955 = vmatprep.subr.bf16.mxu0 %v4366
        %4956 = vmatpush1.bf16.msra.mxu0 %v4365
        %4957 = vmatprep.subr.bf16.mxu0 %v4372
        %4958 = vmatpush1.bf16.msra.mxu0 %v4371
        %4959 = vmatprep.subr.bf16.mxu0 %v4378
        %4960 = vmatpush1.bf16.msra.mxu0 %v4377
        %4961 = vmatprep.subr.bf16.mxu0 %v4384
        %4962 = vmatpush1.bf16.msra.mxu0 %v4383
        %4963 = vmatprep.subr.bf16.mxu0 %v4390
        %4964 = vmatpush1.bf16.msra.mxu0 %v4389
        %4965 = vmatprep.subr.bf16.mxu0 %v4396
        %4966 = vmatpush1.bf16.msra.mxu0 %v4395
        %4967 = vmatprep.subr.bf16.mxu0 %v4402
        %4968 = vmatpush1.bf16.msra.mxu0 %v4401
        %4969 = vmatprep.subr.bf16.mxu0 %v4408
        %4970 = vmatpush1.bf16.msra.mxu0 %v4407
        %4971 = vmatprep.subr.bf16.mxu0 %v4414
        %4972 = vmatpush1.bf16.msra.mxu0 %v4413
        %4973 = vmatprep.subr.bf16.mxu0 %v4420
        %4974 = vmatpush1.bf16.msra.mxu0 %v4419
        %4975 = vmatprep.subr.bf16.mxu0 %v4426
        %4976 = vmatpush1.bf16.msra.mxu0 %v4425
        %4977 = vmatprep.subr.bf16.mxu0 %v4432
        %4978 = vmatpush1.bf16.msra.mxu0 %v4431
        %4979 = vmatprep.subr.bf16.mxu0 %v4438
        %4980 = vmatpush1.bf16.msra.mxu0 %v4437
        %4981 = vmatprep.subr.bf16.mxu0 %v4444
        %4982 = vmatpush1.bf16.msra.mxu0 %v4443
        %4983 = vmatprep.subr.bf16.mxu0 %v4450
        %4984 = vmatpush1.bf16.msra.mxu0 %v4449
        %4985 = vmatprep.subr.bf16.mxu0 %v4456
        %4986 = vmatpush1.bf16.msra.mxu0 %v4455
        %4987 = vmatprep.mubr.bf16.mxu0 %v4862
        %4988 = vmatmul.mubr.bf16.gmra.mrb[0].mxu0 %v4861
        %v4989 = vpop.f32.mrb[0].mxu0
        %v4990 = vadd.f32 0.0, %v4989
        %v4991 = vpop.f32.mrb[0].mxu0
        %v4992 = vadd.f32 0.0, %v4991
        %v4993 = vpop.f32.mrb[0].mxu0
        %v4994 = vadd.f32 0.0, %v4993
        %v4995 = vpop.f32.mrb[0].mxu0
        %v4996 = vadd.f32 0.0, %v4995
        %4997 = vdwg.mxu0
        %4998 = vmatprep.subr.bf16.mxu0 %v4462
        %4999 = vmatpush1.bf16.msra.mxu0 %v4461
        %5000 = vmatprep.subr.bf16.mxu0 %v4583
        %5001 = vmatpush1.bf16.msra.mxu0 %v4580
        %5002 = vmatprep.subr.bf16.mxu0 0
        %5003 = vmatpush1.bf16.msra.mxu0 0
        %5004 = vmatprep.subr.bf16.mxu0 0
        %5005 = vmatpush1.bf16.msra.mxu0 0
        %5006 = vmatprep.subr.bf16.mxu0 0
        %5007 = vmatpush1.bf16.msra.mxu0 0
        %5008 = vmatprep.subr.bf16.mxu0 0
        %5009 = vmatpush1.bf16.msra.mxu0 0
        %5010 = vmatprep.subr.bf16.mxu0 0
        %5011 = vmatpush1.bf16.msra.mxu0 0
        %5012 = vmatprep.subr.bf16.mxu0 0
        %5013 = vmatpush1.bf16.msra.mxu0 0
        %5014 = vmatprep.subr.bf16.mxu0 0
        %5015 = vmatpush1.bf16.msra.mxu0 0
        %5016 = vmatprep.subr.bf16.mxu0 0
        %5017 = vmatpush1.bf16.msra.mxu0 0
        %5018 = vmatprep.subr.bf16.mxu0 0
        %5019 = vmatpush1.bf16.msra.mxu0 0
        %5020 = vmatprep.subr.bf16.mxu0 0
        %5021 = vmatpush1.bf16.msra.mxu0 0
        %5022 = vmatprep.subr.bf16.mxu0 0
        %5023 = vmatpush1.bf16.msra.mxu0 0
        %5024 = vmatprep.subr.bf16.mxu0 0
        %5025 = vmatpush1.bf16.msra.mxu0 0
        %5026 = vmatprep.subr.bf16.mxu0 0
        %5027 = vmatpush1.bf16.msra.mxu0 0
        %5028 = vmatprep.subr.bf16.mxu0 0
        %5029 = vmatpush1.bf16.msra.mxu0 0
        %5030 = vmatprep.mubr.bf16.mxu0 0
        %5031 = vmatmul.mubr.bf16.gmra.mrb[0].mxu0 %v4867
        %v5032 = vpop.f32.mrb[0].mxu0
        %v5033 = vadd.f32 %v4990, %v5032
        %v5034 = vpop.f32.mrb[0].mxu0
        %v5035 = vadd.f32 %v4992, %v5034
        %v5036 = vpop.f32.mrb[0].mxu0
        %v5037 = vadd.f32 %v4994, %v5036
        %v5038 = vpop.f32.mrb[0].mxu0
        %v5039 = vadd.f32 %v4996, %v5038
        %5040 = vdwg.mxu0
        %5041 = vmatprep.subr.bf16.mxu0 %v4368
        %5042 = vmatpush1.bf16.msra.mxu0 %v4367
        %5043 = vmatprep.subr.bf16.mxu0 %v4374
        %5044 = vmatpush1.bf16.msra.mxu0 %v4373
        %5045 = vmatprep.subr.bf16.mxu0 %v4380
        %5046 = vmatpush1.bf16.msra.mxu0 %v4379
        %5047 = vmatprep.subr.bf16.mxu0 %v4386
        %5048 = vmatpush1.bf16.msra.mxu0 %v4385
        %5049 = vmatprep.subr.bf16.mxu0 %v4392
        %5050 = vmatpush1.bf16.msra.mxu0 %v4391
        %5051 = vmatprep.subr.bf16.mxu0 %v4398
        %5052 = vmatpush1.bf16.msra.mxu0 %v4397
        %5053 = vmatprep.subr.bf16.mxu0 %v4404
        %5054 = vmatpush1.bf16.msra.mxu0 %v4403
        %5055 = vmatprep.subr.bf16.mxu0 %v4410
        %5056 = vmatpush1.bf16.msra.mxu0 %v4409
        %5057 = vmatprep.subr.bf16.mxu0 %v4416
        %5058 = vmatpush1.bf16.msra.mxu0 %v4415
        %5059 = vmatprep.subr.bf16.mxu0 %v4422
        %5060 = vmatpush1.bf16.msra.mxu0 %v4421
        %5061 = vmatprep.subr.bf16.mxu0 %v4428
        %5062 = vmatpush1.bf16.msra.mxu0 %v4427
        %5063 = vmatprep.subr.bf16.mxu0 %v4434
        %5064 = vmatpush1.bf16.msra.mxu0 %v4433
        %5065 = vmatprep.subr.bf16.mxu0 %v4440
        %5066 = vmatpush1.bf16.msra.mxu0 %v4439
        %5067 = vmatprep.subr.bf16.mxu0 %v4446
        %5068 = vmatpush1.bf16.msra.mxu0 %v4445
        %5069 = vmatprep.subr.bf16.mxu0 %v4452
        %5070 = vmatpush1.bf16.msra.mxu0 %v4451
        %5071 = vmatprep.subr.bf16.mxu0 %v4458
        %5072 = vmatpush1.bf16.msra.mxu0 %v4457
        %5073 = vmatprep.mubr.bf16.mxu0 %v4862
        %5074 = vmatmul.mubr.bf16.gmra.mrb[0].mxu0 %v4861
        %v5075 = vpop.f32.mrb[0].mxu0
        %v5076 = vadd.f32 0.0, %v5075
        %v5077 = vpop.f32.mrb[0].mxu0
        %v5078 = vadd.f32 0.0, %v5077
        %v5079 = vpop.f32.mrb[0].mxu0
        %v5080 = vadd.f32 0.0, %v5079
        %v5081 = vpop.f32.mrb[0].mxu0
        %v5082 = vadd.f32 0.0, %v5081
        %5083 = vdwg.mxu0
        %5084 = vmatprep.subr.bf16.mxu0 %v4464
        %5085 = vmatpush1.bf16.msra.mxu0 %v4463
        %5086 = vmatprep.subr.bf16.mxu0 %v4589
        %5087 = vmatpush1.bf16.msra.mxu0 %v4586
        %5088 = vmatprep.subr.bf16.mxu0 0
        %5089 = vmatpush1.bf16.msra.mxu0 0
        %5090 = vmatprep.subr.bf16.mxu0 0
        %5091 = vmatpush1.bf16.msra.mxu0 0
        %5092 = vmatprep.subr.bf16.mxu0 0
        %5093 = vmatpush1.bf16.msra.mxu0 0
        %5094 = vmatprep.subr.bf16.mxu0 0
        %5095 = vmatpush1.bf16.msra.mxu0 0
        %5096 = vmatprep.subr.bf16.mxu0 0
        %5097 = vmatpush1.bf16.msra.mxu0 0
        %5098 = vmatprep.subr.bf16.mxu0 0
        %5099 = vmatpush1.bf16.msra.mxu0 0
        %5100 = vmatprep.subr.bf16.mxu0 0
        %5101 = vmatpush1.bf16.msra.mxu0 0
        %5102 = vmatprep.subr.bf16.mxu0 0
        %5103 = vmatpush1.bf16.msra.mxu0 0
        %5104 = vmatprep.subr.bf16.mxu0 0
        %5105 = vmatpush1.bf16.msra.mxu0 0
        %5106 = vmatprep.subr.bf16.mxu0 0
        %5107 = vmatpush1.bf16.msra.mxu0 0
        %5108 = vmatprep.subr.bf16.mxu0 0
        %5109 = vmatpush1.bf16.msra.mxu0 0
        %5110 = vmatprep.subr.bf16.mxu0 0
        %5111 = vmatpush1.bf16.msra.mxu0 0
        %5112 = vmatprep.subr.bf16.mxu0 0
        %5113 = vmatpush1.bf16.msra.mxu0 0
        %5114 = vmatprep.subr.bf16.mxu0 0
        %5115 = vmatpush1.bf16.msra.mxu0 0
        %5116 = vmatprep.mubr.bf16.mxu0 0
        %5117 = vmatmul.mubr.bf16.gmra.mrb[0].mxu0 %v4867
        %v5118 = vpop.f32.mrb[0].mxu0
        %v5119 = vadd.f32 %v5076, %v5118
        %v5120 = vpop.f32.mrb[0].mxu0
        %v5121 = vadd.f32 %v5078, %v5120
        %v5122 = vpop.f32.mrb[0].mxu0
        %v5123 = vadd.f32 %v5080, %v5122
        %v5124 = vpop.f32.mrb[0].mxu0
        %v5125 = vadd.f32 %v5082, %v5124
        %5126 = vdwg.mxu0
        %v5127 = vadd.f32 %v3930, %v4947
        %v5128 = vadd.f32 %v3931, %v4949
        %v5129 = vadd.f32 %v3932, %v5033
        %v5130 = vadd.f32 %v3933, %v5035
        %v5131 = vadd.f32 %v3934, %v5119
        %v5132 = vadd.f32 %v3935, %v5121
        %v5133 = vadd.f32 %v3936, %v4951
        %v5134 = vadd.f32 %v3937, %v4953
        %v5135 = vadd.f32 %v3938, %v5037
        %v5136 = vadd.f32 %v3939, %v5039
        %v5137 = vadd.f32 %v3940, %v5123
        %v5138 = vadd.f32 %v3941, %v5125
        %s5139 = scalar_lea.vmem [#allocation2], 3360
        %v5140 = vld [vmem:[%s5139] sm:$0xff]
        %v5141 = vld [vmem:[%s5139 + $0x8] sm:$0xff]
        %v5142 = vld [vmem:[%s5139 + $0x10] sm:$0xff]
        %v5143 = vld [vmem:[%s5139 + $0x18] sm:$0xff]
        %v5144 = vld [vmem:[%s5139 + $0x20] sm:$0xff]
        %v5145 = vld [vmem:[%s5139 + $0x28] sm:$0xff]
        %v5146 = vld [vmem:[%s5139 + $0x30] sm:$0xff]
        %v5147 = vld [vmem:[%s5139 + $0x38] sm:$0xff]
        %v5148 = vld [vmem:[%s5139 + $0x40] sm:$0xff]
        %v5149 = vld [vmem:[%s5139 + $0x48] sm:$0xff]
        %v5150 = vld [vmem:[%s5139 + $0x50] sm:$0xff]
        %v5151 = vld [vmem:[%s5139 + $0x58] sm:$0xff]
        %v5152 = vld [vmem:[%s5139 + $0x60] sm:$0xff]
        %v5153 = vld [vmem:[%s5139 + $0x68] sm:$0xff]
        %v5154 = vld [vmem:[%s5139 + $0x70] sm:$0xff]
        %v5155 = vld [vmem:[%s5139 + $0x78] sm:$0xff]
        %v5156 = vld [vmem:[%s5139 + $0x80] sm:$0xff]
        %v5157 = vld [vmem:[%s5139 + $0x88] sm:$0xff]
        %v5158 = vld [vmem:[%s5139 + $0x90] sm:$0xff]
        %v5159 = vld [vmem:[%s5139 + $0x98] sm:$0xff]
        %v5160 = vld [vmem:[%s5139 + $0xa0] sm:$0xff]
        %v5161 = vld [vmem:[%s5139 + $0xa8] sm:$0xff]
        %v5162 = vld [vmem:[%s5139 + $0xb0] sm:$0xff]
        %v5163 = vld [vmem:[%s5139 + $0xb8] sm:$0xff]
        %v5164 = vld [vmem:[%s5139 + $0xc0] sm:$0xff]
        %v5165 = vld [vmem:[%s5139 + $0xc8] sm:$0xff]
        %v5166 = vld [vmem:[%s5139 + $0xd0] sm:$0xff]
        %v5167 = vld [vmem:[%s5139 + $0xd8] sm:$0xff]
        %v5168 = vld [vmem:[%s5139 + $0xe0] sm:$0xff]
        %v5169 = vld [vmem:[%s5139 + $0xe8] sm:$0xff]
        %v5170 = vld [vmem:[%s5139 + $0xf0] sm:$0xff]
        %v5171 = vld [vmem:[%s5139 + $0xf8] sm:$0xff]
        %v5172 = vld [vmem:[%s5139 + $0x100] sm:$0xff]
        %v5173 = vld [vmem:[%s5139 + $0x108] sm:$0xff]
        %v5174 = vld [vmem:[%s5139 + $0x110] sm:$0xff]
        %v5175 = vld [vmem:[%s5139 + $0x118] sm:$0xff]
        %v5176 = vld [vmem:[%s5139 + $0x120] sm:$0xff]
        %v5177 = vld [vmem:[%s5139 + $0x128] sm:$0xff]
        %v5178 = vld [vmem:[%s5139 + $0x130] sm:$0xff]
        %v5179 = vld [vmem:[%s5139 + $0x138] sm:$0xff]
        %v5180 = vld [vmem:[%s5139 + $0x140] sm:$0xff]
        %v5181 = vld [vmem:[%s5139 + $0x148] sm:$0xff]
        %v5182 = vld [vmem:[%s5139 + $0x150] sm:$0xff]
        %v5183 = vld [vmem:[%s5139 + $0x158] sm:$0xff]
        %v5184 = vld [vmem:[%s5139 + $0x160] sm:$0xff]
        %v5185 = vld [vmem:[%s5139 + $0x168] sm:$0xff]
        %v5186 = vld [vmem:[%s5139 + $0x170] sm:$0xff]
        %v5187 = vld [vmem:[%s5139 + $0x178] sm:$0xff]
        %v5188 = vld [vmem:[%s5139 + $0x180] sm:$0xff]
        %v5189 = vld [vmem:[%s5139 + $0x188] sm:$0xff]
        %v5190 = vld [vmem:[%s5139 + $0x190] sm:$0xff]
        %v5191 = vld [vmem:[%s5139 + $0x198] sm:$0xff]
        %v5192 = vld [vmem:[%s5139 + $0x1a0] sm:$0xff]
        %v5193 = vld [vmem:[%s5139 + $0x1a8] sm:$0xff]
        %v5194 = vld [vmem:[%s5139 + $0x1b0] sm:$0xff]
        %v5195 = vld [vmem:[%s5139 + $0x1b8] sm:$0xff]
        %v5196 = vld [vmem:[%s5139 + $0x1c0] sm:$0xff]
        %v5197 = vld [vmem:[%s5139 + $0x1c8] sm:$0xff]
        %v5198 = vld [vmem:[%s5139 + $0x1d0] sm:$0xff]
        %v5199 = vld [vmem:[%s5139 + $0x1d8] sm:$0xff]
        %v5200 = vld [vmem:[%s5139 + $0x1e0] sm:$0xff]
        %v5201 = vld [vmem:[%s5139 + $0x1e8] sm:$0xff]
        %v5202 = vld [vmem:[%s5139 + $0x1f0] sm:$0xff]
        %v5203 = vld [vmem:[%s5139 + $0x1f8] sm:$0xff]
        %v5204 = vld [vmem:[%s5139 + $0x200] sm:$0xff]
        %v5205 = vld [vmem:[%s5139 + $0x208] sm:$0xff]
        %v5206 = vld [vmem:[%s5139 + $0x210] sm:$0xff]
        %v5207 = vld [vmem:[%s5139 + $0x218] sm:$0xff]
        %v5208 = vld [vmem:[%s5139 + $0x220] sm:$0xff]
        %v5209 = vld [vmem:[%s5139 + $0x228] sm:$0xff]
        %v5210 = vld [vmem:[%s5139 + $0x230] sm:$0xff]
        %v5211 = vld [vmem:[%s5139 + $0x238] sm:$0xff]
        %v5212 = vld [vmem:[%s5139 + $0x240] sm:$0xff]
        %v5213 = vld [vmem:[%s5139 + $0x248] sm:$0xff]
        %v5214 = vld [vmem:[%s5139 + $0x250] sm:$0xff]
        %v5215 = vld [vmem:[%s5139 + $0x258] sm:$0xff]
        %v5216 = vld [vmem:[%s5139 + $0x260] sm:$0xff]
        %v5217 = vld [vmem:[%s5139 + $0x268] sm:$0xff]
        %v5218 = vld [vmem:[%s5139 + $0x270] sm:$0xff]
        %v5219 = vld [vmem:[%s5139 + $0x278] sm:$0xff]
        %v5220 = vld [vmem:[%s5139 + $0x280] sm:$0xff]
        %v5221 = vld [vmem:[%s5139 + $0x288] sm:$0xff]
        %v5222 = vld [vmem:[%s5139 + $0x290] sm:$0xff]
        %v5223 = vld [vmem:[%s5139 + $0x298] sm:$0xff]
        %v5224 = vld [vmem:[%s5139 + $0x2a0] sm:$0xff]
        %v5225 = vld [vmem:[%s5139 + $0x2a8] sm:$0xff]
        %v5226 = vld [vmem:[%s5139 + $0x2b0] sm:$0xff]
        %v5227 = vld [vmem:[%s5139 + $0x2b8] sm:$0xff]
        %v5228 = vld [vmem:[%s5139 + $0x2c0] sm:$0xff]
        %v5229 = vld [vmem:[%s5139 + $0x2c8] sm:$0xff]
        %v5230 = vld [vmem:[%s5139 + $0x2d0] sm:$0xff]
        %v5231 = vld [vmem:[%s5139 + $0x2d8] sm:$0xff]
        %v5232 = vld [vmem:[%s5139 + $0x2e0] sm:$0xff]
        %v5233 = vld [vmem:[%s5139 + $0x2e8] sm:$0xff]
        %v5234 = vld [vmem:[%s5139 + $0x2f0] sm:$0xff]
        %v5235 = vld [vmem:[%s5139 + $0x2f8] sm:$0xff]
        %v5236 = vld [vmem:[%s5139 + $0x300] sm:$0xff]
        %v5237 = vld [vmem:[%s5139 + $0x308] sm:$0xff]
        %v5238 = vld [vmem:[%s5139 + $0x310] sm:$0xff]
        %v5239 = vld [vmem:[%s5139 + $0x318] sm:$0xff]
        %v5240 = vld [vmem:[%s5139 + $0x320] sm:$0xff]
        %v5241 = vld [vmem:[%s5139 + $0x328] sm:$0xff]
        %v5242 = vld [vmem:[%s5139 + $0x330] sm:$0xff]
        %v5243 = vld [vmem:[%s5139 + $0x338] sm:$0xff]
        %v5244 = vld [vmem:[%s5139 + $0x340] sm:$0xff]
        %v5350 = vunpack.c.l.b16 %v5140
        %v5351 = vunpack.c.h.b16 %v5140
        %v5352 = vunpack.c.l.b16 %v5141
        %v5353 = vunpack.c.h.b16 %v5141
        %v5354 = vunpack.c.l.b16 %v5142
        %v5355 = vunpack.c.h.b16 %v5142
        %v5356 = vunpack.c.l.b16 %v5143
        %v5357 = vunpack.c.h.b16 %v5143
        %v5358 = vunpack.c.l.b16 %v5144
        %v5359 = vunpack.c.h.b16 %v5144
        %v5360 = vunpack.c.l.b16 %v5145
        %v5361 = vunpack.c.h.b16 %v5145
        %v5362 = vunpack.c.l.b16 %v5146
        %v5363 = vunpack.c.h.b16 %v5146
        %v5364 = vunpack.c.l.b16 %v5147
        %v5365 = vunpack.c.h.b16 %v5147
        %v5366 = vunpack.c.l.b16 %v5148
        %v5367 = vunpack.c.h.b16 %v5148
        %v5368 = vunpack.c.l.b16 %v5149
        %v5369 = vunpack.c.h.b16 %v5149
        %v5370 = vunpack.c.l.b16 %v5150
        %v5371 = vunpack.c.h.b16 %v5150
        %v5372 = vunpack.c.l.b16 %v5151
        %v5373 = vunpack.c.h.b16 %v5151
        %v5374 = vunpack.c.l.b16 %v5152
        %v5375 = vunpack.c.h.b16 %v5152
        %v5376 = vunpack.c.l.b16 %v5153
        %v5377 = vunpack.c.h.b16 %v5153
        %v5378 = vunpack.c.l.b16 %v5154
        %v5379 = vunpack.c.h.b16 %v5154
        %v5380 = vunpack.c.l.b16 %v5155
        %v5381 = vunpack.c.h.b16 %v5155
        %v5382 = vunpack.c.l.b16 %v5156
        %v5383 = vunpack.c.h.b16 %v5156
        %v5384 = vunpack.c.l.b16 %v5157
        %v5385 = vunpack.c.h.b16 %v5157
        %v5386 = vunpack.c.l.b16 %v5158
        %v5387 = vunpack.c.h.b16 %v5158
        %v5388 = vunpack.c.l.b16 %v5159
        %v5389 = vunpack.c.h.b16 %v5159
        %v5390 = vunpack.c.l.b16 %v5160
        %v5391 = vunpack.c.h.b16 %v5160
        %v5392 = vunpack.c.l.b16 %v5161
        %v5393 = vunpack.c.h.b16 %v5161
        %v5394 = vunpack.c.l.b16 %v5162
        %v5395 = vunpack.c.h.b16 %v5162
        %v5396 = vunpack.c.l.b16 %v5163
        %v5397 = vunpack.c.h.b16 %v5163
        %v5398 = vunpack.c.l.b16 %v5164
        %v5399 = vunpack.c.h.b16 %v5164
        %v5400 = vunpack.c.l.b16 %v5165
        %v5401 = vunpack.c.h.b16 %v5165
        %v5402 = vunpack.c.l.b16 %v5166
        %v5403 = vunpack.c.h.b16 %v5166
        %v5404 = vunpack.c.l.b16 %v5167
        %v5405 = vunpack.c.h.b16 %v5167
        %v5406 = vunpack.c.l.b16 %v5168
        %v5407 = vunpack.c.h.b16 %v5168
        %v5408 = vunpack.c.l.b16 %v5169
        %v5409 = vunpack.c.h.b16 %v5169
        %v5410 = vunpack.c.l.b16 %v5170
        %v5411 = vunpack.c.h.b16 %v5170
        %v5412 = vunpack.c.l.b16 %v5171
        %v5413 = vunpack.c.h.b16 %v5171
        %v5414 = vunpack.c.l.b16 %v5172
        %v5415 = vunpack.c.h.b16 %v5172
        %v5416 = vunpack.c.l.b16 %v5173
        %v5417 = vunpack.c.h.b16 %v5173
        %v5418 = vunpack.c.l.b16 %v5174
        %v5419 = vunpack.c.h.b16 %v5174
        %v5420 = vunpack.c.l.b16 %v5175
        %v5421 = vunpack.c.h.b16 %v5175
        %v5422 = vunpack.c.l.b16 %v5176
        %v5423 = vunpack.c.h.b16 %v5176
        %v5424 = vunpack.c.l.b16 %v5177
        %v5425 = vunpack.c.h.b16 %v5177
        %v5426 = vunpack.c.l.b16 %v5178
        %v5427 = vunpack.c.h.b16 %v5178
        %v5428 = vunpack.c.l.b16 %v5179
        %v5429 = vunpack.c.h.b16 %v5179
        %v5430 = vunpack.c.l.b16 %v5180
        %v5431 = vunpack.c.h.b16 %v5180
        %v5432 = vunpack.c.l.b16 %v5181
        %v5433 = vunpack.c.h.b16 %v5181
        %v5434 = vunpack.c.l.b16 %v5182
        %v5435 = vunpack.c.h.b16 %v5182
        %v5436 = vunpack.c.l.b16 %v5183
        %v5437 = vunpack.c.h.b16 %v5183
        %v5438 = vunpack.c.l.b16 %v5184
        %v5439 = vunpack.c.h.b16 %v5184
        %v5440 = vunpack.c.l.b16 %v5185
        %v5441 = vunpack.c.h.b16 %v5185
        %v5442 = vunpack.c.l.b16 %v5186
        %v5443 = vunpack.c.h.b16 %v5186
        %v5444 = vunpack.c.l.b16 %v5187
        %v5445 = vunpack.c.h.b16 %v5187
        %v5446 = vunpack.c.l.b16 %v5188
        %v5447 = vunpack.c.h.b16 %v5188
        %v5448 = vunpack.c.l.b16 %v5189
        %v5449 = vunpack.c.h.b16 %v5189
        %v5450 = vunpack.c.l.b16 %v5190
        %v5451 = vunpack.c.h.b16 %v5190
        %v5452 = vunpack.c.l.b16 %v5191
        %v5453 = vunpack.c.h.b16 %v5191
        %v5454 = vunpack.c.l.b16 %v5192
        %v5455 = vunpack.c.h.b16 %v5192
        %v5456 = vunpack.c.l.b16 %v5193
        %v5457 = vunpack.c.h.b16 %v5193
        %v5458 = vunpack.c.l.b16 %v5194
        %v5459 = vunpack.c.h.b16 %v5194
        %v5460 = vunpack.c.l.b16 %v5195
        %v5461 = vunpack.c.h.b16 %v5195
        %v5462 = vunpack.c.l.b16 %v5196
        %v5463 = vunpack.c.h.b16 %v5196
        %v5464 = vunpack.c.l.b16 %v5197
        %v5465 = vunpack.c.h.b16 %v5197
        %v5466 = vunpack.c.l.b16 %v5198
        %v5467 = vunpack.c.h.b16 %v5198
        %v5468 = vunpack.c.l.b16 %v5199
        %v5469 = vunpack.c.h.b16 %v5199
        %v5470 = vunpack.c.l.b16 %v5200
        %v5471 = vunpack.c.h.b16 %v5200
        %v5472 = vunpack.c.l.b16 %v5201
        %v5473 = vunpack.c.h.b16 %v5201
        %v5474 = vunpack.c.l.b16 %v5202
        %v5475 = vunpack.c.h.b16 %v5202
        %v5476 = vunpack.c.l.b16 %v5203
        %v5477 = vunpack.c.h.b16 %v5203
        %v5478 = vunpack.c.l.b16 %v5204
        %v5479 = vunpack.c.h.b16 %v5204
        %v5480 = vunpack.c.l.b16 %v5205
        %v5481 = vunpack.c.h.b16 %v5205
        %v5482 = vunpack.c.l.b16 %v5206
        %v5483 = vunpack.c.h.b16 %v5206
        %v5484 = vunpack.c.l.b16 %v5207
        %v5485 = vunpack.c.h.b16 %v5207
        %v5486 = vunpack.c.l.b16 %v5208
        %v5487 = vunpack.c.h.b16 %v5208
        %v5488 = vunpack.c.l.b16 %v5209
        %v5489 = vunpack.c.h.b16 %v5209
        %v5490 = vunpack.c.l.b16 %v5210
        %v5491 = vunpack.c.h.b16 %v5210
        %v5492 = vunpack.c.l.b16 %v5211
        %v5493 = vunpack.c.h.b16 %v5211
        %v5494 = vunpack.c.l.b16 %v5212
        %v5495 = vunpack.c.h.b16 %v5212
        %v5496 = vunpack.c.l.b16 %v5213
        %v5497 = vunpack.c.h.b16 %v5213
        %v5498 = vunpack.c.l.b16 %v5214
        %v5499 = vunpack.c.h.b16 %v5214
        %v5500 = vunpack.c.l.b16 %v5215
        %v5501 = vunpack.c.h.b16 %v5215
        %v5502 = vunpack.c.l.b16 %v5216
        %v5503 = vunpack.c.h.b16 %v5216
        %v5504 = vunpack.c.l.b16 %v5217
        %v5505 = vunpack.c.h.b16 %v5217
        %v5506 = vunpack.c.l.b16 %v5218
        %v5507 = vunpack.c.h.b16 %v5218
        %v5508 = vunpack.c.l.b16 %v5219
        %v5509 = vunpack.c.h.b16 %v5219
        %v5510 = vunpack.c.l.b16 %v5220
        %v5511 = vunpack.c.h.b16 %v5220
        %v5512 = vunpack.c.l.b16 %v5221
        %v5513 = vunpack.c.h.b16 %v5221
        %v5514 = vunpack.c.l.b16 %v5222
        %v5515 = vunpack.c.h.b16 %v5222
        %v5516 = vunpack.c.l.b16 %v5223
        %v5517 = vunpack.c.h.b16 %v5223
        %v5518 = vunpack.c.l.b16 %v5224
        %v5519 = vunpack.c.h.b16 %v5224
        %v5520 = vunpack.c.l.b16 %v5225
        %v5521 = vunpack.c.h.b16 %v5225
        %v5522 = vunpack.c.l.b16 %v5226
        %v5523 = vunpack.c.h.b16 %v5226
        %v5524 = vunpack.c.l.b16 %v5227
        %v5525 = vunpack.c.h.b16 %v5227
        %v5526 = vunpack.c.l.b16 %v5228
        %v5527 = vunpack.c.h.b16 %v5228
        %v5528 = vunpack.c.l.b16 %v5229
        %v5529 = vunpack.c.h.b16 %v5229
        %v5530 = vunpack.c.l.b16 %v5230
        %v5531 = vunpack.c.h.b16 %v5230
        %v5532 = vunpack.c.l.b16 %v5231
        %v5533 = vunpack.c.h.b16 %v5231
        %v5534 = vunpack.c.l.b16 %v5232
        %v5535 = vunpack.c.h.b16 %v5232
        %v5536 = vunpack.c.l.b16 %v5233
        %v5537 = vunpack.c.h.b16 %v5233
        %v5538 = vunpack.c.l.b16 %v5234
        %v5539 = vunpack.c.h.b16 %v5234
        %v5540 = vunpack.c.l.b16 %v5235
        %v5541 = vunpack.c.h.b16 %v5235
        %v5542 = vunpack.c.l.b16 %v5236
        %v5543 = vunpack.c.h.b16 %v5236
        %v5544 = vunpack.c.l.b16 %v5237
        %v5545 = vunpack.c.h.b16 %v5237
        %v5546 = vunpack.c.l.b16 %v5238
        %v5547 = vunpack.c.h.b16 %v5238
        %v5548 = vunpack.c.l.b16 %v5239
        %v5549 = vunpack.c.h.b16 %v5239
        %v5550 = vunpack.c.l.b16 %v5240
        %v5551 = vunpack.c.h.b16 %v5240
        %v5552 = vunpack.c.l.b16 %v5241
        %v5553 = vunpack.c.h.b16 %v5241
        %v5554 = vunpack.c.l.b16 %v5242
        %v5555 = vunpack.c.h.b16 %v5242
        %v5556 = vunpack.c.l.b16 %v5243
        %v5557 = vunpack.c.h.b16 %v5243
        %v5558 = vunpack.c.l.b16 %v5244
        %v5559 = vunpack.c.h.b16 %v5244
        %v5560 = vpack.c.b16 %v5356, %v5350
        %v5561 = vpack.c.b16 %v5357, %v5351
        %v5562 = vpack.c.b16 %v5358, %v5352
        %v5563 = vpack.c.b16 %v5359, %v5353
        %v5564 = vpack.c.b16 %v5360, %v5354
        %v5565 = vpack.c.b16 %v5361, %v5355
        %v5566 = vpack.c.b16 %v5368, %v5362
        %v5567 = vpack.c.b16 %v5369, %v5363
        %v5568 = vpack.c.b16 %v5370, %v5364
        %v5569 = vpack.c.b16 %v5371, %v5365
        %v5570 = vpack.c.b16 %v5372, %v5366
        %v5571 = vpack.c.b16 %v5373, %v5367
        %v5572 = vpack.c.b16 %v5380, %v5374
        %v5573 = vpack.c.b16 %v5381, %v5375
        %v5574 = vpack.c.b16 %v5382, %v5376
        %v5575 = vpack.c.b16 %v5383, %v5377
        %v5576 = vpack.c.b16 %v5384, %v5378
        %v5577 = vpack.c.b16 %v5385, %v5379
        %v5578 = vpack.c.b16 %v5392, %v5386
        %v5579 = vpack.c.b16 %v5393, %v5387
        %v5580 = vpack.c.b16 %v5394, %v5388
        %v5581 = vpack.c.b16 %v5395, %v5389
        %v5582 = vpack.c.b16 %v5396, %v5390
        %v5583 = vpack.c.b16 %v5397, %v5391
        %v5584 = vpack.c.b16 %v5404, %v5398
        %v5585 = vpack.c.b16 %v5405, %v5399
        %v5586 = vpack.c.b16 %v5406, %v5400
        %v5587 = vpack.c.b16 %v5407, %v5401
        %v5588 = vpack.c.b16 %v5408, %v5402
        %v5589 = vpack.c.b16 %v5409, %v5403
        %v5590 = vpack.c.b16 %v5416, %v5410
        %v5591 = vpack.c.b16 %v5417, %v5411
        %v5592 = vpack.c.b16 %v5418, %v5412
        %v5593 = vpack.c.b16 %v5419, %v5413
        %v5594 = vpack.c.b16 %v5420, %v5414
        %v5595 = vpack.c.b16 %v5421, %v5415
        %v5596 = vpack.c.b16 %v5428, %v5422
        %v5597 = vpack.c.b16 %v5429, %v5423
        %v5598 = vpack.c.b16 %v5430, %v5424
        %v5599 = vpack.c.b16 %v5431, %v5425
        %v5600 = vpack.c.b16 %v5432, %v5426
        %v5601 = vpack.c.b16 %v5433, %v5427
        %v5602 = vpack.c.b16 %v5440, %v5434
        %v5603 = vpack.c.b16 %v5441, %v5435
        %v5604 = vpack.c.b16 %v5442, %v5436
        %v5605 = vpack.c.b16 %v5443, %v5437
        %v5606 = vpack.c.b16 %v5444, %v5438
        %v5607 = vpack.c.b16 %v5445, %v5439
        %v5608 = vpack.c.b16 %v5452, %v5446
        %v5609 = vpack.c.b16 %v5453, %v5447
        %v5610 = vpack.c.b16 %v5454, %v5448
        %v5611 = vpack.c.b16 %v5455, %v5449
        %v5612 = vpack.c.b16 %v5456, %v5450
        %v5613 = vpack.c.b16 %v5457, %v5451
        %v5614 = vpack.c.b16 %v5464, %v5458
        %v5615 = vpack.c.b16 %v5465, %v5459
        %v5616 = vpack.c.b16 %v5466, %v5460
        %v5617 = vpack.c.b16 %v5467, %v5461
        %v5618 = vpack.c.b16 %v5468, %v5462
        %v5619 = vpack.c.b16 %v5469, %v5463
        %v5620 = vpack.c.b16 %v5476, %v5470
        %v5621 = vpack.c.b16 %v5477, %v5471
        %v5622 = vpack.c.b16 %v5478, %v5472
        %v5623 = vpack.c.b16 %v5479, %v5473
        %v5624 = vpack.c.b16 %v5480, %v5474
        %v5625 = vpack.c.b16 %v5481, %v5475
        %v5626 = vpack.c.b16 %v5488, %v5482
        %v5627 = vpack.c.b16 %v5489, %v5483
        %v5628 = vpack.c.b16 %v5490, %v5484
        %v5629 = vpack.c.b16 %v5491, %v5485
        %v5630 = vpack.c.b16 %v5492, %v5486
        %v5631 = vpack.c.b16 %v5493, %v5487
        %v5632 = vpack.c.b16 %v5500, %v5494
        %v5633 = vpack.c.b16 %v5501, %v5495
        %v5634 = vpack.c.b16 %v5502, %v5496
        %v5635 = vpack.c.b16 %v5503, %v5497
        %v5636 = vpack.c.b16 %v5504, %v5498
        %v5637 = vpack.c.b16 %v5505, %v5499
        %v5638 = vpack.c.b16 %v5512, %v5506
        %v5639 = vpack.c.b16 %v5513, %v5507
        %v5640 = vpack.c.b16 %v5514, %v5508
        %v5641 = vpack.c.b16 %v5515, %v5509
        %v5642 = vpack.c.b16 %v5516, %v5510
        %v5643 = vpack.c.b16 %v5517, %v5511
        %v5644 = vpack.c.b16 %v5524, %v5518
        %v5645 = vpack.c.b16 %v5525, %v5519
        %v5646 = vpack.c.b16 %v5526, %v5520
        %v5647 = vpack.c.b16 %v5527, %v5521
        %v5648 = vpack.c.b16 %v5528, %v5522
        %v5649 = vpack.c.b16 %v5529, %v5523
        %v5650 = vpack.c.b16 %v5536, %v5530
        %v5651 = vpack.c.b16 %v5537, %v5531
        %v5652 = vpack.c.b16 %v5538, %v5532
        %v5653 = vpack.c.b16 %v5539, %v5533
        %v5654 = vpack.c.b16 %v5540, %v5534
        %v5655 = vpack.c.b16 %v5541, %v5535
        %v5656 = vpack.c.b16 %v5548, %v5542
        %v5657 = vpack.c.b16 %v5549, %v5543
        %v5658 = vpack.c.b16 %v5550, %v5544
        %v5659 = vpack.c.b16 %v5551, %v5545
        %v5660 = vpack.c.b16 %v5552, %v5546
        %v5661 = vpack.c.b16 %v5553, %v5547
        %v5662 = vpack.c.b16 %v5554, %v5554
        %v5663 = vpack.c.b16 %v5555, %v5555
        %v5664 = vpack.c.b16 %v5556, %v5556
        %v5665 = vpack.c.b16 %v5557, %v5557
        %v5666 = vpack.c.b16 %v5558, %v5558
        %v5667 = vpack.c.b16 %v5559, %v5559
        %v5771 = vsel %vm1091, %v5662, 0
        %v5774 = vsel %vm1091, %v5663, 0
        %v5777 = vsel %vm1091, %v5664, 0
        %v5780 = vsel %vm1091, %v5665, 0
        %v5783 = vsel %vm1091, %v5666, 0
        %v5786 = vsel %vm1091, %v5667, 0
        %5788 = vmatprep.subr.bf16.mxu0 %v5561
        %5789 = vmatpush1.bf16.msra.mxu0 %v5560
        %5790 = vmatprep.subr.bf16.mxu0 %v5567
        %5791 = vmatpush1.bf16.msra.mxu0 %v5566
        %5792 = vmatprep.subr.bf16.mxu0 %v5573
        %5793 = vmatpush1.bf16.msra.mxu0 %v5572
        %5794 = vmatprep.subr.bf16.mxu0 %v5579
        %5795 = vmatpush1.bf16.msra.mxu0 %v5578
        %5796 = vmatprep.subr.bf16.mxu0 %v5585
        %5797 = vmatpush1.bf16.msra.mxu0 %v5584
        %5798 = vmatprep.subr.bf16.mxu0 %v5591
        %5799 = vmatpush1.bf16.msra.mxu0 %v5590
        %5800 = vmatprep.subr.bf16.mxu0 %v5597
        %5801 = vmatpush1.bf16.msra.mxu0 %v5596
        %5802 = vmatprep.subr.bf16.mxu0 %v5603
        %5803 = vmatpush1.bf16.msra.mxu0 %v5602
        %5804 = vmatprep.subr.bf16.mxu0 %v5609
        %5805 = vmatpush1.bf16.msra.mxu0 %v5608
        %5806 = vmatprep.subr.bf16.mxu0 %v5615
        %5807 = vmatpush1.bf16.msra.mxu0 %v5614
        %5808 = vmatprep.subr.bf16.mxu0 %v5621
        %5809 = vmatpush1.bf16.msra.mxu0 %v5620
        %5810 = vmatprep.subr.bf16.mxu0 %v5627
        %5811 = vmatpush1.bf16.msra.mxu0 %v5626
        %5812 = vmatprep.subr.bf16.mxu0 %v5633
        %5813 = vmatpush1.bf16.msra.mxu0 %v5632
        %5814 = vmatprep.subr.bf16.mxu0 %v5639
        %5815 = vmatpush1.bf16.msra.mxu0 %v5638
        %5816 = vmatprep.subr.bf16.mxu0 %v5645
        %5817 = vmatpush1.bf16.msra.mxu0 %v5644
        %5818 = vmatprep.subr.bf16.mxu0 %v5651
        %5819 = vmatpush1.bf16.msra.mxu0 %v5650
        %5820 = vmatprep.mubr.bf16.mxu0 %v4862
        %5821 = vmatmul.mubr.bf16.gmra.mrb[0].mxu0 %v4861
        %v5822 = vpop.f32.mrb[0].mxu0
        %v5823 = vadd.f32 0.0, %v5822
        %v5824 = vpop.f32.mrb[0].mxu0
        %v5825 = vadd.f32 0.0, %v5824
        %v5826 = vpop.f32.mrb[0].mxu0
        %v5827 = vadd.f32 0.0, %v5826
        %v5828 = vpop.f32.mrb[0].mxu0
        %v5829 = vadd.f32 0.0, %v5828
        %5830 = vdwg.mxu0
        %5831 = vmatprep.subr.bf16.mxu0 %v5657
        %5832 = vmatpush1.bf16.msra.mxu0 %v5656
        %5833 = vmatprep.subr.bf16.mxu0 %v5774
        %5834 = vmatpush1.bf16.msra.mxu0 %v5771
        %5835 = vmatprep.subr.bf16.mxu0 0
        %5836 = vmatpush1.bf16.msra.mxu0 0
        %5837 = vmatprep.subr.bf16.mxu0 0
        %5838 = vmatpush1.bf16.msra.mxu0 0
        %5839 = vmatprep.subr.bf16.mxu0 0
        %5840 = vmatpush1.bf16.msra.mxu0 0
        %5841 = vmatprep.subr.bf16.mxu0 0
        %5842 = vmatpush1.bf16.msra.mxu0 0
        %5843 = vmatprep.subr.bf16.mxu0 0
        %5844 = vmatpush1.bf16.msra.mxu0 0
        %5845 = vmatprep.subr.bf16.mxu0 0
        %5846 = vmatpush1.bf16.msra.mxu0 0
        %5847 = vmatprep.subr.bf16.mxu0 0
        %5848 = vmatpush1.bf16.msra.mxu0 0
        %5849 = vmatprep.subr.bf16.mxu0 0
        %5850 = vmatpush1.bf16.msra.mxu0 0
        %5851 = vmatprep.subr.bf16.mxu0 0
        %5852 = vmatpush1.bf16.msra.mxu0 0
        %5853 = vmatprep.subr.bf16.mxu0 0
        %5854 = vmatpush1.bf16.msra.mxu0 0
        %5855 = vmatprep.subr.bf16.mxu0 0
        %5856 = vmatpush1.bf16.msra.mxu0 0
        %5857 = vmatprep.subr.bf16.mxu0 0
        %5858 = vmatpush1.bf16.msra.mxu0 0
        %5859 = vmatprep.subr.bf16.mxu0 0
        %5860 = vmatpush1.bf16.msra.mxu0 0
        %5861 = vmatprep.subr.bf16.mxu0 0
        %5862 = vmatpush1.bf16.msra.mxu0 0
        %5863 = vmatprep.mubr.bf16.mxu0 0
        %5864 = vmatmul.mubr.bf16.gmra.mrb[0].mxu0 %v4867
        %v5865 = vpop.f32.mrb[0].mxu0
        %v5866 = vadd.f32 %v5823, %v5865
        %v5867 = vpop.f32.mrb[0].mxu0
        %v5868 = vadd.f32 %v5825, %v5867
        %v5869 = vpop.f32.mrb[0].mxu0
        %v5870 = vadd.f32 %v5827, %v5869
        %v5871 = vpop.f32.mrb[0].mxu0
        %v5872 = vadd.f32 %v5829, %v5871
        %5873 = vdwg.mxu0
        %5874 = vmatprep.subr.bf16.mxu0 %v5563
        %5875 = vmatpush1.bf16.msra.mxu0 %v5562
        %5876 = vmatprep.subr.bf16.mxu0 %v5569
        %5877 = vmatpush1.bf16.msra.mxu0 %v5568
        %5878 = vmatprep.subr.bf16.mxu0 %v5575
        %5879 = vmatpush1.bf16.msra.mxu0 %v5574
        %5880 = vmatprep.subr.bf16.mxu0 %v5581
        %5881 = vmatpush1.bf16.msra.mxu0 %v5580
        %5882 = vmatprep.subr.bf16.mxu0 %v5587
        %5883 = vmatpush1.bf16.msra.mxu0 %v5586
        %5884 = vmatprep.subr.bf16.mxu0 %v5593
        %5885 = vmatpush1.bf16.msra.mxu0 %v5592
        %5886 = vmatprep.subr.bf16.mxu0 %v5599
        %5887 = vmatpush1.bf16.msra.mxu0 %v5598
        %5888 = vmatprep.subr.bf16.mxu0 %v5605
        %5889 = vmatpush1.bf16.msra.mxu0 %v5604
        %5890 = vmatprep.subr.bf16.mxu0 %v5611
        %5891 = vmatpush1.bf16.msra.mxu0 %v5610
        %5892 = vmatprep.subr.bf16.mxu0 %v5617
        %5893 = vmatpush1.bf16.msra.mxu0 %v5616
        %5894 = vmatprep.subr.bf16.mxu0 %v5623
        %5895 = vmatpush1.bf16.msra.mxu0 %v5622
        %5896 = vmatprep.subr.bf16.mxu0 %v5629
        %5897 = vmatpush1.bf16.msra.mxu0 %v5628
        %5898 = vmatprep.subr.bf16.mxu0 %v5635
        %5899 = vmatpush1.bf16.msra.mxu0 %v5634
        %5900 = vmatprep.subr.bf16.mxu0 %v5641
        %5901 = vmatpush1.bf16.msra.mxu0 %v5640
        %5902 = vmatprep.subr.bf16.mxu0 %v5647
        %5903 = vmatpush1.bf16.msra.mxu0 %v5646
        %5904 = vmatprep.subr.bf16.mxu0 %v5653
        %5905 = vmatpush1.bf16.msra.mxu0 %v5652
        %5906 = vmatprep.mubr.bf16.mxu0 %v4862
        %5907 = vmatmul.mubr.bf16.gmra.mrb[0].mxu0 %v4861
        %v5908 = vpop.f32.mrb[0].mxu0
        %v5909 = vadd.f32 0.0, %v5908
        %v5910 = vpop.f32.mrb[0].mxu0
        %v5911 = vadd.f32 0.0, %v5910
        %v5912 = vpop.f32.mrb[0].mxu0
        %v5913 = vadd.f32 0.0, %v5912
        %v5914 = vpop.f32.mrb[0].mxu0
        %v5915 = vadd.f32 0.0, %v5914
        %5916 = vdwg.mxu0
        %5917 = vmatprep.subr.bf16.mxu0 %v5659
        %5918 = vmatpush1.bf16.msra.mxu0 %v5658
        %5919 = vmatprep.subr.bf16.mxu0 %v5780
        %5920 = vmatpush1.bf16.msra.mxu0 %v5777
        %5921 = vmatprep.subr.bf16.mxu0 0
        %5922 = vmatpush1.bf16.msra.mxu0 0
        %5923 = vmatprep.subr.bf16.mxu0 0
        %5924 = vmatpush1.bf16.msra.mxu0 0
        %5925 = vmatprep.subr.bf16.mxu0 0
        %5926 = vmatpush1.bf16.msra.mxu0 0
        %5927 = vmatprep.subr.bf16.mxu0 0
        %5928 = vmatpush1.bf16.msra.mxu0 0
        %5929 = vmatprep.subr.bf16.mxu0 0
        %5930 = vmatpush1.bf16.msra.mxu0 0
        %5931 = vmatprep.subr.bf16.mxu0 0
        %5932 = vmatpush1.bf16.msra.mxu0 0
        %5933 = vmatprep.subr.bf16.mxu0 0
        %5934 = vmatpush1.bf16.msra.mxu0 0
        %5935 = vmatprep.subr.bf16.mxu0 0
        %5936 = vmatpush1.bf16.msra.mxu0 0
        %5937 = vmatprep.subr.bf16.mxu0 0
        %5938 = vmatpush1.bf16.msra.mxu0 0
        %5939 = vmatprep.subr.bf16.mxu0 0
        %5940 = vmatpush1.bf16.msra.mxu0 0
        %5941 = vmatprep.subr.bf16.mxu0 0
        %5942 = vmatpush1.bf16.msra.mxu0 0
        %5943 = vmatprep.subr.bf16.mxu0 0
        %5944 = vmatpush1.bf16.msra.mxu0 0
        %5945 = vmatprep.subr.bf16.mxu0 0
        %5946 = vmatpush1.bf16.msra.mxu0 0
        %5947 = vmatprep.subr.bf16.mxu0 0
        %5948 = vmatpush1.bf16.msra.mxu0 0
        %5949 = vmatprep.mubr.bf16.mxu0 0
        %5950 = vmatmul.mubr.bf16.gmra.mrb[0].mxu0 %v4867
        %v5951 = vpop.f32.mrb[0].mxu0
        %v5952 = vadd.f32 %v5909, %v5951
        %v5953 = vpop.f32.mrb[0].mxu0
        %v5954 = vadd.f32 %v5911, %v5953
        %v5955 = vpop.f32.mrb[0].mxu0
        %v5956 = vadd.f32 %v5913, %v5955
        %v5957 = vpop.f32.mrb[0].mxu0
        %v5958 = vadd.f32 %v5915, %v5957
        %5959 = vdwg.mxu0
        %5960 = vmatprep.subr.bf16.mxu0 %v5565
        %5961 = vmatpush1.bf16.msra.mxu0 %v5564
        %5962 = vmatprep.subr.bf16.mxu0 %v5571
        %5963 = vmatpush1.bf16.msra.mxu0 %v5570
        %5964 = vmatprep.subr.bf16.mxu0 %v5577
        %5965 = vmatpush1.bf16.msra.mxu0 %v5576
        %5966 = vmatprep.subr.bf16.mxu0 %v5583
        %5967 = vmatpush1.bf16.msra.mxu0 %v5582
        %5968 = vmatprep.subr.bf16.mxu0 %v5589
        %5969 = vmatpush1.bf16.msra.mxu0 %v5588
        %5970 = vmatprep.subr.bf16.mxu0 %v5595
        %5971 = vmatpush1.bf16.msra.mxu0 %v5594
        %5972 = vmatprep.subr.bf16.mxu0 %v5601
        %5973 = vmatpush1.bf16.msra.mxu0 %v5600
        %5974 = vmatprep.subr.bf16.mxu0 %v5607
        %5975 = vmatpush1.bf16.msra.mxu0 %v5606
        %5976 = vmatprep.subr.bf16.mxu0 %v5613
        %5977 = vmatpush1.bf16.msra.mxu0 %v5612
        %5978 = vmatprep.subr.bf16.mxu0 %v5619
        %5979 = vmatpush1.bf16.msra.mxu0 %v5618
        %5980 = vmatprep.subr.bf16.mxu0 %v5625
        %5981 = vmatpush1.bf16.msra.mxu0 %v5624
        %5982 = vmatprep.subr.bf16.mxu0 %v5631
        %5983 = vmatpush1.bf16.msra.mxu0 %v5630
        %5984 = vmatprep.subr.bf16.mxu0 %v5637
        %5985 = vmatpush1.bf16.msra.mxu0 %v5636
        %5986 = vmatprep.subr.bf16.mxu0 %v5643
        %5987 = vmatpush1.bf16.msra.mxu0 %v5642
        %5988 = vmatprep.subr.bf16.mxu0 %v5649
        %5989 = vmatpush1.bf16.msra.mxu0 %v5648
        %5990 = vmatprep.subr.bf16.mxu0 %v5655
        %5991 = vmatpush1.bf16.msra.mxu0 %v5654
        %5992 = vmatprep.mubr.bf16.mxu0 %v4862
        %5993 = vmatmul.mubr.bf16.gmra.mrb[0].mxu0 %v4861
        %v5994 = vpop.f32.mrb[0].mxu0
        %v5995 = vadd.f32 0.0, %v5994
        %v5996 = vpop.f32.mrb[0].mxu0
        %v5997 = vadd.f32 0.0, %v5996
        %v5998 = vpop.f32.mrb[0].mxu0
        %v5999 = vadd.f32 0.0, %v5998
        %v6000 = vpop.f32.mrb[0].mxu0
        %v6001 = vadd.f32 0.0, %v6000
        %6002 = vdwg.mxu0
        %6003 = vmatprep.subr.bf16.mxu0 %v5661
        %6004 = vmatpush1.bf16.msra.mxu0 %v5660
        %6005 = vmatprep.subr.bf16.mxu0 %v5786
        %6006 = vmatpush1.bf16.msra.mxu0 %v5783
        %6007 = vmatprep.subr.bf16.mxu0 0
        %6008 = vmatpush1.bf16.msra.mxu0 0
        %6009 = vmatprep.subr.bf16.mxu0 0
        %6010 = vmatpush1.bf16.msra.mxu0 0
        %6011 = vmatprep.subr.bf16.mxu0 0
        %6012 = vmatpush1.bf16.msra.mxu0 0
        %6013 = vmatprep.subr.bf16.mxu0 0
        %6014 = vmatpush1.bf16.msra.mxu0 0
        %6015 = vmatprep.subr.bf16.mxu0 0
        %6016 = vmatpush1.bf16.msra.mxu0 0
        %6017 = vmatprep.subr.bf16.mxu0 0
        %6018 = vmatpush1.bf16.msra.mxu0 0
        %6019 = vmatprep.subr.bf16.mxu0 0
        %6020 = vmatpush1.bf16.msra.mxu0 0
        %6021 = vmatprep.subr.bf16.mxu0 0
        %6022 = vmatpush1.bf16.msra.mxu0 0
        %6023 = vmatprep.subr.bf16.mxu0 0
        %6024 = vmatpush1.bf16.msra.mxu0 0
        %6025 = vmatprep.subr.bf16.mxu0 0
        %6026 = vmatpush1.bf16.msra.mxu0 0
        %6027 = vmatprep.subr.bf16.mxu0 0
        %6028 = vmatpush1.bf16.msra.mxu0 0
        %6029 = vmatprep.subr.bf16.mxu0 0
        %6030 = vmatpush1.bf16.msra.mxu0 0
        %6031 = vmatprep.subr.bf16.mxu0 0
        %6032 = vmatpush1.bf16.msra.mxu0 0
        %6033 = vmatprep.subr.bf16.mxu0 0
        %6034 = vmatpush1.bf16.msra.mxu0 0
        %6035 = vmatprep.mubr.bf16.mxu0 0
        %6036 = vmatmul.mubr.bf16.gmra.mrb[0].mxu0 %v4867
        %v6037 = vpop.f32.mrb[0].mxu0
        %v6038 = vadd.f32 %v5995, %v6037
        %v6039 = vpop.f32.mrb[0].mxu0
        %v6040 = vadd.f32 %v5997, %v6039
        %v6041 = vpop.f32.mrb[0].mxu0
        %v6042 = vadd.f32 %v5999, %v6041
        %v6043 = vpop.f32.mrb[0].mxu0
        %v6044 = vadd.f32 %v6001, %v6043
        %6045 = vdwg.mxu0
        %v6046 = vadd.f32 %v4849, %v5866
        %v6047 = vadd.f32 %v4850, %v5868
        %v6048 = vadd.f32 %v4851, %v5952
        %v6049 = vadd.f32 %v4852, %v5954
        %v6050 = vadd.f32 %v4853, %v6038
        %v6051 = vadd.f32 %v4854, %v6040
        %v6052 = vadd.f32 %v4855, %v5870
        %v6053 = vadd.f32 %v4856, %v5872
        %v6054 = vadd.f32 %v4857, %v5956
        %v6055 = vadd.f32 %v4858, %v5958
        %v6056 = vadd.f32 %v4859, %v6042
        %v6057 = vadd.f32 %v4860, %v6044
        %v6058 = vrot.slane %v557, 1
        %v6059 = vrot.slane %v558, 1
        %v6060 = vrot.slane %v559, 1
        %v6064 = vsel %vm1087, %v6060, 0
        %6066 = vmatprep.subr.bf16.mxu0 %v5561
        %6067 = vmatpush1.bf16.msra.mxu0 %v5560
        %6068 = vmatprep.subr.bf16.mxu0 %v5567
        %6069 = vmatpush1.bf16.msra.mxu0 %v5566
        %6070 = vmatprep.subr.bf16.mxu0 %v5573
        %6071 = vmatpush1.bf16.msra.mxu0 %v5572
        %6072 = vmatprep.subr.bf16.mxu0 %v5579
        %6073 = vmatpush1.bf16.msra.mxu0 %v5578
        %6074 = vmatprep.subr.bf16.mxu0 %v5585
        %6075 = vmatpush1.bf16.msra.mxu0 %v5584
        %6076 = vmatprep.subr.bf16.mxu0 %v5591
        %6077 = vmatpush1.bf16.msra.mxu0 %v5590
        %6078 = vmatprep.subr.bf16.mxu0 %v5597
        %6079 = vmatpush1.bf16.msra.mxu0 %v5596
        %6080 = vmatprep.subr.bf16.mxu0 %v5603
        %6081 = vmatpush1.bf16.msra.mxu0 %v5602
        %6082 = vmatprep.subr.bf16.mxu0 %v5609
        %6083 = vmatpush1.bf16.msra.mxu0 %v5608
        %6084 = vmatprep.subr.bf16.mxu0 %v5615
        %6085 = vmatpush1.bf16.msra.mxu0 %v5614
        %6086 = vmatprep.subr.bf16.mxu0 %v5621
        %6087 = vmatpush1.bf16.msra.mxu0 %v5620
        %6088 = vmatprep.subr.bf16.mxu0 %v5627
        %6089 = vmatpush1.bf16.msra.mxu0 %v5626
        %6090 = vmatprep.subr.bf16.mxu0 %v5633
        %6091 = vmatpush1.bf16.msra.mxu0 %v5632
        %6092 = vmatprep.subr.bf16.mxu0 %v5639
        %6093 = vmatpush1.bf16.msra.mxu0 %v5638
        %6094 = vmatprep.subr.bf16.mxu0 %v5645
        %6095 = vmatpush1.bf16.msra.mxu0 %v5644
        %6096 = vmatprep.subr.bf16.mxu0 %v5651
        %6097 = vmatpush1.bf16.msra.mxu0 %v5650
        %6098 = vmatprep.mubr.bf16.mxu0 %v6059
        %6099 = vmatmul.mubr.bf16.gmra.mrb[0].mxu0 %v6058
        %v6100 = vpop.f32.mrb[0].mxu0
        %v6101 = vadd.f32 0.0, %v6100
        %v6102 = vpop.f32.mrb[0].mxu0
        %v6103 = vadd.f32 0.0, %v6102
        %v6104 = vpop.f32.mrb[0].mxu0
        %v6105 = vadd.f32 0.0, %v6104
        %v6106 = vpop.f32.mrb[0].mxu0
        %v6107 = vadd.f32 0.0, %v6106
        %6108 = vdwg.mxu0
        %6109 = vmatprep.subr.bf16.mxu0 %v5657
        %6110 = vmatpush1.bf16.msra.mxu0 %v5656
        %6111 = vmatprep.subr.bf16.mxu0 %v5774
        %6112 = vmatpush1.bf16.msra.mxu0 %v5771
        %6113 = vmatprep.subr.bf16.mxu0 0
        %6114 = vmatpush1.bf16.msra.mxu0 0
        %6115 = vmatprep.subr.bf16.mxu0 0
        %6116 = vmatpush1.bf16.msra.mxu0 0
        %6117 = vmatprep.subr.bf16.mxu0 0
        %6118 = vmatpush1.bf16.msra.mxu0 0
        %6119 = vmatprep.subr.bf16.mxu0 0
        %6120 = vmatpush1.bf16.msra.mxu0 0
        %6121 = vmatprep.subr.bf16.mxu0 0
        %6122 = vmatpush1.bf16.msra.mxu0 0
        %6123 = vmatprep.subr.bf16.mxu0 0
        %6124 = vmatpush1.bf16.msra.mxu0 0
        %6125 = vmatprep.subr.bf16.mxu0 0
        %6126 = vmatpush1.bf16.msra.mxu0 0
        %6127 = vmatprep.subr.bf16.mxu0 0
        %6128 = vmatpush1.bf16.msra.mxu0 0
        %6129 = vmatprep.subr.bf16.mxu0 0
        %6130 = vmatpush1.bf16.msra.mxu0 0
        %6131 = vmatprep.subr.bf16.mxu0 0
        %6132 = vmatpush1.bf16.msra.mxu0 0
        %6133 = vmatprep.subr.bf16.mxu0 0
        %6134 = vmatpush1.bf16.msra.mxu0 0
        %6135 = vmatprep.subr.bf16.mxu0 0
        %6136 = vmatpush1.bf16.msra.mxu0 0
        %6137 = vmatprep.subr.bf16.mxu0 0
        %6138 = vmatpush1.bf16.msra.mxu0 0
        %6139 = vmatprep.subr.bf16.mxu0 0
        %6140 = vmatpush1.bf16.msra.mxu0 0
        %6141 = vmatprep.mubr.bf16.mxu0 0
        %6142 = vmatmul.mubr.bf16.gmra.mrb[0].mxu0 %v6064
        %v6143 = vpop.f32.mrb[0].mxu0
        %v6144 = vadd.f32 %v6101, %v6143
        %v6145 = vpop.f32.mrb[0].mxu0
        %v6146 = vadd.f32 %v6103, %v6145
        %v6147 = vpop.f32.mrb[0].mxu0
        %v6148 = vadd.f32 %v6105, %v6147
        %v6149 = vpop.f32.mrb[0].mxu0
        %v6150 = vadd.f32 %v6107, %v6149
        %6151 = vdwg.mxu0
        %6152 = vmatprep.subr.bf16.mxu0 %v5563
        %6153 = vmatpush1.bf16.msra.mxu0 %v5562
        %6154 = vmatprep.subr.bf16.mxu0 %v5569
        %6155 = vmatpush1.bf16.msra.mxu0 %v5568
        %6156 = vmatprep.subr.bf16.mxu0 %v5575
        %6157 = vmatpush1.bf16.msra.mxu0 %v5574
        %6158 = vmatprep.subr.bf16.mxu0 %v5581
        %6159 = vmatpush1.bf16.msra.mxu0 %v5580
        %6160 = vmatprep.subr.bf16.mxu0 %v5587
        %6161 = vmatpush1.bf16.msra.mxu0 %v5586
        %6162 = vmatprep.subr.bf16.mxu0 %v5593
        %6163 = vmatpush1.bf16.msra.mxu0 %v5592
        %6164 = vmatprep.subr.bf16.mxu0 %v5599
        %6165 = vmatpush1.bf16.msra.mxu0 %v5598
        %6166 = vmatprep.subr.bf16.mxu0 %v5605
        %6167 = vmatpush1.bf16.msra.mxu0 %v5604
        %6168 = vmatprep.subr.bf16.mxu0 %v5611
        %6169 = vmatpush1.bf16.msra.mxu0 %v5610
        %6170 = vmatprep.subr.bf16.mxu0 %v5617
        %6171 = vmatpush1.bf16.msra.mxu0 %v5616
        %6172 = vmatprep.subr.bf16.mxu0 %v5623
        %6173 = vmatpush1.bf16.msra.mxu0 %v5622
        %6174 = vmatprep.subr.bf16.mxu0 %v5629
        %6175 = vmatpush1.bf16.msra.mxu0 %v5628
        %6176 = vmatprep.subr.bf16.mxu0 %v5635
        %6177 = vmatpush1.bf16.msra.mxu0 %v5634
        %6178 = vmatprep.subr.bf16.mxu0 %v5641
        %6179 = vmatpush1.bf16.msra.mxu0 %v5640
        %6180 = vmatprep.subr.bf16.mxu0 %v5647
        %6181 = vmatpush1.bf16.msra.mxu0 %v5646
        %6182 = vmatprep.subr.bf16.mxu0 %v5653
        %6183 = vmatpush1.bf16.msra.mxu0 %v5652
        %6184 = vmatprep.mubr.bf16.mxu0 %v6059
        %6185 = vmatmul.mubr.bf16.gmra.mrb[0].mxu0 %v6058
        %v6186 = vpop.f32.mrb[0].mxu0
        %v6187 = vadd.f32 0.0, %v6186
        %v6188 = vpop.f32.mrb[0].mxu0
        %v6189 = vadd.f32 0.0, %v6188
        %v6190 = vpop.f32.mrb[0].mxu0
        %v6191 = vadd.f32 0.0, %v6190
        %v6192 = vpop.f32.mrb[0].mxu0
        %v6193 = vadd.f32 0.0, %v6192
        %6194 = vdwg.mxu0
        %6195 = vmatprep.subr.bf16.mxu0 %v5659
        %6196 = vmatpush1.bf16.msra.mxu0 %v5658
        %6197 = vmatprep.subr.bf16.mxu0 %v5780
        %6198 = vmatpush1.bf16.msra.mxu0 %v5777
        %6199 = vmatprep.subr.bf16.mxu0 0
        %6200 = vmatpush1.bf16.msra.mxu0 0
        %6201 = vmatprep.subr.bf16.mxu0 0
        %6202 = vmatpush1.bf16.msra.mxu0 0
        %6203 = vmatprep.subr.bf16.mxu0 0
        %6204 = vmatpush1.bf16.msra.mxu0 0
        %6205 = vmatprep.subr.bf16.mxu0 0
        %6206 = vmatpush1.bf16.msra.mxu0 0
        %6207 = vmatprep.subr.bf16.mxu0 0
        %6208 = vmatpush1.bf16.msra.mxu0 0
        %6209 = vmatprep.subr.bf16.mxu0 0
        %6210 = vmatpush1.bf16.msra.mxu0 0
        %6211 = vmatprep.subr.bf16.mxu0 0
        %6212 = vmatpush1.bf16.msra.mxu0 0
        %6213 = vmatprep.subr.bf16.mxu0 0
        %6214 = vmatpush1.bf16.msra.mxu0 0
        %6215 = vmatprep.subr.bf16.mxu0 0
        %6216 = vmatpush1.bf16.msra.mxu0 0
        %6217 = vmatprep.subr.bf16.mxu0 0
        %6218 = vmatpush1.bf16.msra.mxu0 0
        %6219 = vmatprep.subr.bf16.mxu0 0
        %6220 = vmatpush1.bf16.msra.mxu0 0
        %6221 = vmatprep.subr.bf16.mxu0 0
        %6222 = vmatpush1.bf16.msra.mxu0 0
        %6223 = vmatprep.subr.bf16.mxu0 0
        %6224 = vmatpush1.bf16.msra.mxu0 0
        %6225 = vmatprep.subr.bf16.mxu0 0
        %6226 = vmatpush1.bf16.msra.mxu0 0
        %6227 = vmatprep.mubr.bf16.mxu0 0
        %6228 = vmatmul.mubr.bf16.gmra.mrb[0].mxu0 %v6064
        %v6229 = vpop.f32.mrb[0].mxu0
        %v6230 = vadd.f32 %v6187, %v6229
        %v6231 = vpop.f32.mrb[0].mxu0
        %v6232 = vadd.f32 %v6189, %v6231
        %v6233 = vpop.f32.mrb[0].mxu0
        %v6234 = vadd.f32 %v6191, %v6233
        %v6235 = vpop.f32.mrb[0].mxu0
        %v6236 = vadd.f32 %v6193, %v6235
        %6237 = vdwg.mxu0
        %6238 = vmatprep.subr.bf16.mxu0 %v5565
        %6239 = vmatpush1.bf16.msra.mxu0 %v5564
        %6240 = vmatprep.subr.bf16.mxu0 %v5571
        %6241 = vmatpush1.bf16.msra.mxu0 %v5570
        %6242 = vmatprep.subr.bf16.mxu0 %v5577
        %6243 = vmatpush1.bf16.msra.mxu0 %v5576
        %6244 = vmatprep.subr.bf16.mxu0 %v5583
        %6245 = vmatpush1.bf16.msra.mxu0 %v5582
        %6246 = vmatprep.subr.bf16.mxu0 %v5589
        %6247 = vmatpush1.bf16.msra.mxu0 %v5588
        %6248 = vmatprep.subr.bf16.mxu0 %v5595
        %6249 = vmatpush1.bf16.msra.mxu0 %v5594
        %6250 = vmatprep.subr.bf16.mxu0 %v5601
        %6251 = vmatpush1.bf16.msra.mxu0 %v5600
        %6252 = vmatprep.subr.bf16.mxu0 %v5607
        %6253 = vmatpush1.bf16.msra.mxu0 %v5606
        %6254 = vmatprep.subr.bf16.mxu0 %v5613
        %6255 = vmatpush1.bf16.msra.mxu0 %v5612
        %6256 = vmatprep.subr.bf16.mxu0 %v5619
        %6257 = vmatpush1.bf16.msra.mxu0 %v5618
        %6258 = vmatprep.subr.bf16.mxu0 %v5625
        %6259 = vmatpush1.bf16.msra.mxu0 %v5624
        %6260 = vmatprep.subr.bf16.mxu0 %v5631
        %6261 = vmatpush1.bf16.msra.mxu0 %v5630
        %6262 = vmatprep.subr.bf16.mxu0 %v5637
        %6263 = vmatpush1.bf16.msra.mxu0 %v5636
        %6264 = vmatprep.subr.bf16.mxu0 %v5643
        %6265 = vmatpush1.bf16.msra.mxu0 %v5642
        %6266 = vmatprep.subr.bf16.mxu0 %v5649
        %6267 = vmatpush1.bf16.msra.mxu0 %v5648
        %6268 = vmatprep.subr.bf16.mxu0 %v5655
        %6269 = vmatpush1.bf16.msra.mxu0 %v5654
        %6270 = vmatprep.mubr.bf16.mxu0 %v6059
        %6271 = vmatmul.mubr.bf16.gmra.mrb[0].mxu0 %v6058
        %v6272 = vpop.f32.mrb[0].mxu0
        %v6273 = vadd.f32 0.0, %v6272
        %v6274 = vpop.f32.mrb[0].mxu0
        %v6275 = vadd.f32 0.0, %v6274
        %v6276 = vpop.f32.mrb[0].mxu0
        %v6277 = vadd.f32 0.0, %v6276
        %v6278 = vpop.f32.mrb[0].mxu0
        %v6279 = vadd.f32 0.0, %v6278
        %6280 = vdwg.mxu0
        %6281 = vmatprep.subr.bf16.mxu0 %v5661
        %6282 = vmatpush1.bf16.msra.mxu0 %v5660
        %6283 = vmatprep.subr.bf16.mxu0 %v5786
        %6284 = vmatpush1.bf16.msra.mxu0 %v5783
        %6285 = vmatprep.subr.bf16.mxu0 0
        %6286 = vmatpush1.bf16.msra.mxu0 0
        %6287 = vmatprep.subr.bf16.mxu0 0
        %6288 = vmatpush1.bf16.msra.mxu0 0
        %6289 = vmatprep.subr.bf16.mxu0 0
        %6290 = vmatpush1.bf16.msra.mxu0 0
        %6291 = vmatprep.subr.bf16.mxu0 0
        %6292 = vmatpush1.bf16.msra.mxu0 0
        %6293 = vmatprep.subr.bf16.mxu0 0
        %6294 = vmatpush1.bf16.msra.mxu0 0
        %6295 = vmatprep.subr.bf16.mxu0 0
        %6296 = vmatpush1.bf16.msra.mxu0 0
        %6297 = vmatprep.subr.bf16.mxu0 0
        %6298 = vmatpush1.bf16.msra.mxu0 0
        %6299 = vmatprep.subr.bf16.mxu0 0
        %6300 = vmatpush1.bf16.msra.mxu0 0
        %6301 = vmatprep.subr.bf16.mxu0 0
        %6302 = vmatpush1.bf16.msra.mxu0 0
        %6303 = vmatprep.subr.bf16.mxu0 0
        %6304 = vmatpush1.bf16.msra.mxu0 0
        %6305 = vmatprep.subr.bf16.mxu0 0
        %6306 = vmatpush1.bf16.msra.mxu0 0
        %6307 = vmatprep.subr.bf16.mxu0 0
        %6308 = vmatpush1.bf16.msra.mxu0 0
        %6309 = vmatprep.subr.bf16.mxu0 0
        %6310 = vmatpush1.bf16.msra.mxu0 0
        %6311 = vmatprep.subr.bf16.mxu0 0
        %6312 = vmatpush1.bf16.msra.mxu0 0
        %6313 = vmatprep.mubr.bf16.mxu0 0
        %6314 = vmatmul.mubr.bf16.gmra.mrb[0].mxu0 %v6064
        %v6315 = vpop.f32.mrb[0].mxu0
        %v6316 = vadd.f32 %v6273, %v6315
        %v6317 = vpop.f32.mrb[0].mxu0
        %v6318 = vadd.f32 %v6275, %v6317
        %v6319 = vpop.f32.mrb[0].mxu0
        %v6320 = vadd.f32 %v6277, %v6319
        %v6321 = vpop.f32.mrb[0].mxu0
        %v6322 = vadd.f32 %v6279, %v6321
        %6323 = vdwg.mxu0
        %v6324 = vadd.f32 %v5127, %v6144
        %v6325 = vadd.f32 %v5128, %v6146
        %v6326 = vadd.f32 %v5129, %v6230
        %v6327 = vadd.f32 %v5130, %v6232
        %v6328 = vadd.f32 %v5131, %v6316
        %v6329 = vadd.f32 %v5132, %v6318
        %v6330 = vadd.f32 %v5133, %v6148
        %v6331 = vadd.f32 %v5134, %v6150
        %v6332 = vadd.f32 %v5135, %v6234
        %v6333 = vadd.f32 %v5136, %v6236
        %v6334 = vadd.f32 %v5137, %v6320
        %v6335 = vadd.f32 %v5138, %v6322
        %v6336 = vmax.f32 %v6046, %v6324
        %v6337 = vmax.f32 %v6047, %v6325
        %v6338 = vmax.f32 %v6048, %v6326
        %v6339 = vmax.f32 %v6049, %v6327
        %v6340 = vmax.f32 %v6050, %v6328
        %v6341 = vmax.f32 %v6051, %v6329
        %v6342 = vmax.f32 %v6052, %v6330
        %v6343 = vmax.f32 %v6053, %v6331
        %v6344 = vmax.f32 %v6054, %v6332
        %v6345 = vmax.f32 %v6055, %v6333
        %v6346 = vmax.f32 %v6056, %v6334
        %v6347 = vmax.f32 %v6057, %v6335
        %v6348 = vmax.f32 %v6336, %v6339
        %v6349 = vmax.f32 %v6337, %v6340
        %v6350 = vmax.f32 %v6338, %v6341
        %v6351 = vmax.f32 %v6342, %v6345
        %v6352 = vmax.f32 %v6343, %v6346
        %v6353 = vmax.f32 %v6344, %v6347
        %v6354 = vld [vmem:[#allocation4] sm:$0x7]
        %v6356 = vlaneseq
        %v6357 = vshrl.u32 %v6356, 7
        %v6358 = vsub.s32 0, %v6357
        %v6359 = vrot.slane %v6354, %v6358
        %v6360 = vlaneseq
        %v6361 = vshrl.u32 %v6360, 7
        %v6362 = vsub.s32 1, %v6361
        %v6363 = vrot.slane %v6354, %v6362
        %v6364 = vlaneseq
        %v6365 = vshrl.u32 %v6364, 7
        %v6366 = vsub.s32 2, %v6365
        %v6367 = vrot.slane %v6354, %v6366
        %v6371 = vadd.f32 %v6348, %v6359
        %v6372 = vadd.f32 %v6349, %v6363
        %v6373 = vadd.f32 %v6350, %v6367
        %v6374 = vadd.f32 %v6351, %v6359
        %v6375 = vadd.f32 %v6352, %v6363
        %v6376 = vadd.f32 %v6353, %v6367
        %v6377 = vmax.f32 %v6371, 0.0
        %v6378 = vmax.f32 %v6372, 0.0
        %v6379 = vmax.f32 %v6373, 0.0
        %v6380 = vmax.f32 %v6374, 0.0
        %v6381 = vmax.f32 %v6375, 0.0
        %v6382 = vmax.f32 %v6376, 0.0
        %v6383 = vpack.c.bf16 %v6380, %v6377
        %v6384 = vpack.c.bf16 %v6381, %v6378
        %v6385 = vpack.c.bf16 %v6382, %v6379
        %v6386 = vld [vmem:[#allocation6] sm:$0xff]
        %v6387 = vld [vmem:[#allocation6 + $0x8] sm:$0xff]
        %v6388 = vld [vmem:[#allocation6 + $0x10] sm:$0xff]
        %v6389 = vld [vmem:[#allocation6 + $0x18] sm:$0xff]
        %v6390 = vld [vmem:[#allocation6 + $0x20] sm:$0xff]
        %v6391 = vld [vmem:[#allocation6 + $0x28] sm:$0xff]
        %v6392 = vld [vmem:[#allocation6 + $0x30] sm:$0xff]
        %v6393 = vld [vmem:[#allocation6 + $0x38] sm:$0xff]
        %v6394 = vld [vmem:[#allocation6 + $0x40] sm:$0xff]
        %v6395 = vld [vmem:[#allocation6 + $0x48] sm:$0xff]
        %v6396 = vld [vmem:[#allocation6 + $0x50] sm:$0xff]
        %v6397 = vld [vmem:[#allocation6 + $0x58] sm:$0xff]
        %v6398 = vld [vmem:[#allocation6 + $0x60] sm:$0xff]
        %v6399 = vld [vmem:[#allocation6 + $0x68] sm:$0xff]
        %v6400 = vld [vmem:[#allocation6 + $0x70] sm:$0xff]
        %v6401 = vld [vmem:[#allocation6 + $0x78] sm:$0xff]
        %v6402 = vld [vmem:[#allocation6 + $0x80] sm:$0xff]
        %v6403 = vld [vmem:[#allocation6 + $0x88] sm:$0xff]
        %v6404 = vld [vmem:[#allocation6 + $0x90] sm:$0xff]
        %v6405 = vld [vmem:[#allocation6 + $0x98] sm:$0xff]
        %v6406 = vld [vmem:[#allocation6 + $0xa0] sm:$0xff]
        %v6407 = vld [vmem:[#allocation6 + $0xa8] sm:$0xff]
        %v6408 = vld [vmem:[#allocation6 + $0xb0] sm:$0xff]
        %v6409 = vld [vmem:[#allocation6 + $0xb8] sm:$0xff]
        %v6410 = vld [vmem:[#allocation6 + $0xc0] sm:$0xff]
        %v6411 = vld [vmem:[#allocation6 + $0xc8] sm:$0xff]
        %v6412 = vld [vmem:[#allocation6 + $0xd0] sm:$0xff]
        %v6413 = vld [vmem:[#allocation6 + $0xd8] sm:$0xff]
        %v6414 = vld [vmem:[#allocation6 + $0xe0] sm:$0xff]
        %v6415 = vld [vmem:[#allocation6 + $0xe8] sm:$0xff]
        %v6416 = vld [vmem:[#allocation6 + $0xf0] sm:$0xff]
        %v6417 = vld [vmem:[#allocation6 + $0xf8] sm:$0xff]
        %v6418 = vld [vmem:[#allocation6 + $0x100] sm:$0xff]
        %v6419 = vld [vmem:[#allocation6 + $0x108] sm:$0xff]
        %v6420 = vld [vmem:[#allocation6 + $0x110] sm:$0xff]
        %v6421 = vld [vmem:[#allocation6 + $0x118] sm:$0xff]
        %v6422 = vld [vmem:[#allocation6 + $0x120] sm:$0xff]
        %v6423 = vld [vmem:[#allocation6 + $0x128] sm:$0xff]
        %v6424 = vld [vmem:[#allocation6 + $0x130] sm:$0xff]
        %v6425 = vld [vmem:[#allocation6 + $0x138] sm:$0xff]
        %v6426 = vld [vmem:[#allocation6 + $0x140] sm:$0xff]
        %v6427 = vld [vmem:[#allocation6 + $0x148] sm:$0xff]
        %v6428 = vld [vmem:[#allocation6 + $0x150] sm:$0xff]
        %v6429 = vld [vmem:[#allocation6 + $0x158] sm:$0xff]
        %v6430 = vld [vmem:[#allocation6 + $0x160] sm:$0xff]
        %v6431 = vld [vmem:[#allocation6 + $0x168] sm:$0xff]
        %v6432 = vld [vmem:[#allocation6 + $0x170] sm:$0xff]
        %v6433 = vld [vmem:[#allocation6 + $0x178] sm:$0xff]
        %v6434 = vld [vmem:[#allocation6 + $0x180] sm:$0xff]
        %v6435 = vld [vmem:[#allocation6 + $0x188] sm:$0xff]
        %v6436 = vld [vmem:[#allocation6 + $0x190] sm:$0xff]
        %v6437 = vld [vmem:[#allocation6 + $0x198] sm:$0xff]
        %v6438 = vld [vmem:[#allocation6 + $0x1a0] sm:$0xff]
        %v6439 = vld [vmem:[#allocation6 + $0x1a8] sm:$0xff]
        %v6440 = vld [vmem:[#allocation6 + $0x1b0] sm:$0xff]
        %v6441 = vld [vmem:[#allocation6 + $0x1b8] sm:$0xff]
        %v6442 = vld [vmem:[#allocation6 + $0x1c0] sm:$0xff]
        %v6443 = vld [vmem:[#allocation6 + $0x1c8] sm:$0xff]
        %v6444 = vld [vmem:[#allocation6 + $0x1d0] sm:$0xff]
        %v6445 = vld [vmem:[#allocation6 + $0x1d8] sm:$0xff]
        %v6446 = vld [vmem:[#allocation6 + $0x1e0] sm:$0xff]
        %v6447 = vld [vmem:[#allocation6 + $0x1e8] sm:$0xff]
        %v6448 = vld [vmem:[#allocation6 + $0x1f0] sm:$0xff]
        %v6449 = vld [vmem:[#allocation6 + $0x1f8] sm:$0xff]
        %v6450 = vld [vmem:[#allocation6 + $0x200] sm:$0xff]
        %v6451 = vld [vmem:[#allocation6 + $0x208] sm:$0xff]
        %v6452 = vld [vmem:[#allocation6 + $0x210] sm:$0xff]
        %v6453 = vld [vmem:[#allocation6 + $0x218] sm:$0xff]
        %v6454 = vld [vmem:[#allocation6 + $0x220] sm:$0xff]
        %v6455 = vld [vmem:[#allocation6 + $0x228] sm:$0xff]
        %v6456 = vld [vmem:[#allocation6 + $0x230] sm:$0xff]
        %v6457 = vld [vmem:[#allocation6 + $0x238] sm:$0xff]
        %v6458 = vld [vmem:[#allocation6 + $0x240] sm:$0xff]
        %v6459 = vld [vmem:[#allocation6 + $0x248] sm:$0xff]
        %v6460 = vld [vmem:[#allocation6 + $0x250] sm:$0xff]
        %v6461 = vld [vmem:[#allocation6 + $0x258] sm:$0xff]
        %v6462 = vld [vmem:[#allocation6 + $0x260] sm:$0xff]
        %v6463 = vld [vmem:[#allocation6 + $0x268] sm:$0xff]
        %v6464 = vld [vmem:[#allocation6 + $0x270] sm:$0xff]
        %v6465 = vld [vmem:[#allocation6 + $0x278] sm:$0xff]
        %v6466 = vld [vmem:[#allocation6 + $0x280] sm:$0xff]
        %v6467 = vld [vmem:[#allocation6 + $0x288] sm:$0xff]
        %v6468 = vld [vmem:[#allocation6 + $0x290] sm:$0xff]
        %v6469 = vld [vmem:[#allocation6 + $0x298] sm:$0xff]
        %v6470 = vld [vmem:[#allocation6 + $0x2a0] sm:$0xff]
        %v6471 = vld [vmem:[#allocation6 + $0x2a8] sm:$0xff]
        %v6472 = vld [vmem:[#allocation6 + $0x2b0] sm:$0xff]
        %v6473 = vld [vmem:[#allocation6 + $0x2b8] sm:$0xff]
        %v6474 = vld [vmem:[#allocation6 + $0x2c0] sm:$0xff]
        %v6475 = vld [vmem:[#allocation6 + $0x2c8] sm:$0xff]
        %v6476 = vld [vmem:[#allocation6 + $0x2d0] sm:$0xff]
        %v6477 = vld [vmem:[#allocation6 + $0x2d8] sm:$0xff]
        %v6478 = vld [vmem:[#allocation6 + $0x2e0] sm:$0xff]
        %v6479 = vld [vmem:[#allocation6 + $0x2e8] sm:$0xff]
        %v6480 = vld [vmem:[#allocation6 + $0x2f0] sm:$0xff]
        %v6481 = vld [vmem:[#allocation6 + $0x2f8] sm:$0xff]
        %s6482 = scalar_lea.vmem [#allocation6], 768
        %v6483 = vld [vmem:[%s6482] sm:$0xff]
        %v6484 = vld [vmem:[%s6482 + $0x8] sm:$0xff]
        %v6485 = vld [vmem:[%s6482 + $0x10] sm:$0xff]
        %v6486 = vld [vmem:[%s6482 + $0x18] sm:$0xff]
        %v6487 = vld [vmem:[%s6482 + $0x20] sm:$0xff]
        %v6488 = vld [vmem:[%s6482 + $0x28] sm:$0xff]
        %v6489 = vld [vmem:[%s6482 + $0x30] sm:$0xff]
        %v6490 = vld [vmem:[%s6482 + $0x38] sm:$0xff]
        %v6491 = vld [vmem:[%s6482 + $0x40] sm:$0xff]
        %v6492 = vld [vmem:[%s6482 + $0x48] sm:$0xff]
        %v6493 = vld [vmem:[%s6482 + $0x50] sm:$0xff]
        %v6494 = vld [vmem:[%s6482 + $0x58] sm:$0xff]
        %v6495 = vld [vmem:[%s6482 + $0x60] sm:$0xff]
        %v6496 = vld [vmem:[%s6482 + $0x68] sm:$0xff]
        %v6497 = vld [vmem:[%s6482 + $0x70] sm:$0xff]
        %v6498 = vld [vmem:[%s6482 + $0x78] sm:$0xff]
        %v6499 = vld [vmem:[%s6482 + $0x80] sm:$0xff]
        %v6500 = vld [vmem:[%s6482 + $0x88] sm:$0xff]
        %v6501 = vld [vmem:[%s6482 + $0x90] sm:$0xff]
        %v6502 = vld [vmem:[%s6482 + $0x98] sm:$0xff]
        %v6503 = vld [vmem:[%s6482 + $0xa0] sm:$0xff]
        %v6504 = vld [vmem:[%s6482 + $0xa8] sm:$0xff]
        %v6505 = vld [vmem:[%s6482 + $0xb0] sm:$0xff]
        %v6506 = vld [vmem:[%s6482 + $0xb8] sm:$0xff]
        %v6507 = vld [vmem:[%s6482 + $0xc0] sm:$0xff]
        %v6508 = vld [vmem:[%s6482 + $0xc8] sm:$0xff]
        %v6509 = vld [vmem:[%s6482 + $0xd0] sm:$0xff]
        %v6510 = vld [vmem:[%s6482 + $0xd8] sm:$0xff]
        %v6511 = vld [vmem:[%s6482 + $0xe0] sm:$0xff]
        %v6512 = vld [vmem:[%s6482 + $0xe8] sm:$0xff]
        %v6513 = vld [vmem:[%s6482 + $0xf0] sm:$0xff]
        %v6514 = vld [vmem:[%s6482 + $0xf8] sm:$0xff]
        %v6515 = vld [vmem:[%s6482 + $0x100] sm:$0xff]
        %v6516 = vld [vmem:[%s6482 + $0x108] sm:$0xff]
        %v6517 = vld [vmem:[%s6482 + $0x110] sm:$0xff]
        %v6518 = vld [vmem:[%s6482 + $0x118] sm:$0xff]
        %v6519 = vld [vmem:[%s6482 + $0x120] sm:$0xff]
        %v6520 = vld [vmem:[%s6482 + $0x128] sm:$0xff]
        %v6521 = vld [vmem:[%s6482 + $0x130] sm:$0xff]
        %v6522 = vld [vmem:[%s6482 + $0x138] sm:$0xff]
        %v6523 = vld [vmem:[%s6482 + $0x140] sm:$0xff]
        %v6524 = vld [vmem:[%s6482 + $0x148] sm:$0xff]
        %v6525 = vld [vmem:[%s6482 + $0x150] sm:$0xff]
        %v6526 = vld [vmem:[%s6482 + $0x158] sm:$0xff]
        %v6527 = vld [vmem:[%s6482 + $0x160] sm:$0xff]
        %v6528 = vld [vmem:[%s6482 + $0x168] sm:$0xff]
        %v6529 = vld [vmem:[%s6482 + $0x170] sm:$0xff]
        %v6530 = vld [vmem:[%s6482 + $0x178] sm:$0xff]
        %v6531 = vld [vmem:[%s6482 + $0x180] sm:$0xff]
        %v6532 = vld [vmem:[%s6482 + $0x188] sm:$0xff]
        %v6533 = vld [vmem:[%s6482 + $0x190] sm:$0xff]
        %v6534 = vld [vmem:[%s6482 + $0x198] sm:$0xff]
        %v6535 = vld [vmem:[%s6482 + $0x1a0] sm:$0xff]
        %v6536 = vld [vmem:[%s6482 + $0x1a8] sm:$0xff]
        %v6537 = vld [vmem:[%s6482 + $0x1b0] sm:$0xff]
        %v6538 = vld [vmem:[%s6482 + $0x1b8] sm:$0xff]
        %v6539 = vld [vmem:[%s6482 + $0x1c0] sm:$0xff]
        %v6540 = vld [vmem:[%s6482 + $0x1c8] sm:$0xff]
        %v6541 = vld [vmem:[%s6482 + $0x1d0] sm:$0xff]
        %v6542 = vld [vmem:[%s6482 + $0x1d8] sm:$0xff]
        %v6543 = vld [vmem:[%s6482 + $0x1e0] sm:$0xff]
        %v6544 = vld [vmem:[%s6482 + $0x1e8] sm:$0xff]
        %v6545 = vld [vmem:[%s6482 + $0x1f0] sm:$0xff]
        %v6546 = vld [vmem:[%s6482 + $0x1f8] sm:$0xff]
        %v6547 = vld [vmem:[%s6482 + $0x200] sm:$0xff]
        %v6548 = vld [vmem:[%s6482 + $0x208] sm:$0xff]
        %v6549 = vld [vmem:[%s6482 + $0x210] sm:$0xff]
        %v6550 = vld [vmem:[%s6482 + $0x218] sm:$0xff]
        %v6551 = vld [vmem:[%s6482 + $0x220] sm:$0xff]
        %v6552 = vld [vmem:[%s6482 + $0x228] sm:$0xff]
        %v6553 = vld [vmem:[%s6482 + $0x230] sm:$0xff]
        %v6554 = vld [vmem:[%s6482 + $0x238] sm:$0xff]
        %v6555 = vld [vmem:[%s6482 + $0x240] sm:$0xff]
        %v6556 = vld [vmem:[%s6482 + $0x248] sm:$0xff]
        %v6557 = vld [vmem:[%s6482 + $0x250] sm:$0xff]
        %v6558 = vld [vmem:[%s6482 + $0x258] sm:$0xff]
        %v6559 = vld [vmem:[%s6482 + $0x260] sm:$0xff]
        %v6560 = vld [vmem:[%s6482 + $0x268] sm:$0xff]
        %v6561 = vld [vmem:[%s6482 + $0x270] sm:$0xff]
        %v6562 = vld [vmem:[%s6482 + $0x278] sm:$0xff]
        %v6563 = vld [vmem:[%s6482 + $0x280] sm:$0xff]
        %v6564 = vld [vmem:[%s6482 + $0x288] sm:$0xff]
        %v6565 = vld [vmem:[%s6482 + $0x290] sm:$0xff]
        %v6566 = vld [vmem:[%s6482 + $0x298] sm:$0xff]
        %v6567 = vld [vmem:[%s6482 + $0x2a0] sm:$0xff]
        %v6568 = vld [vmem:[%s6482 + $0x2a8] sm:$0xff]
        %v6569 = vld [vmem:[%s6482 + $0x2b0] sm:$0xff]
        %v6570 = vld [vmem:[%s6482 + $0x2b8] sm:$0xff]
        %v6571 = vld [vmem:[%s6482 + $0x2c0] sm:$0xff]
        %v6572 = vld [vmem:[%s6482 + $0x2c8] sm:$0xff]
        %v6573 = vld [vmem:[%s6482 + $0x2d0] sm:$0xff]
        %v6574 = vld [vmem:[%s6482 + $0x2d8] sm:$0xff]
        %v6575 = vld [vmem:[%s6482 + $0x2e0] sm:$0xff]
        %v6576 = vld [vmem:[%s6482 + $0x2e8] sm:$0xff]
        %v6577 = vld [vmem:[%s6482 + $0x2f0] sm:$0xff]
        %v6578 = vld [vmem:[%s6482 + $0x2f8] sm:$0xff]
        %v6580 = vshrl.u32 %v6383, 16
        %v6582 = vshll.u32 %v6383, 16
        %v6584 = vrot.slane %v6582, 1
        %v6585 = vor.u32 %v6580, %v6584
        %v6587 = vshrl.u32 %v6384, 16
        %v6589 = vshll.u32 %v6384, 16
        %v6591 = vrot.slane %v6589, 1
        %v6592 = vor.u32 %v6587, %v6591
        %v6594 = vshrl.u32 %v6385, 16
        %v6596 = vshll.u32 %v6385, 16
        %v6598 = vrot.slane %v6596, 1
        %v6599 = vor.u32 %v6594, %v6598
        %v6699 = vunpack.c.l.b16 %v6483
        %v6700 = vunpack.c.h.b16 %v6483
        %v6701 = vunpack.c.l.b16 %v6484
        %v6702 = vunpack.c.h.b16 %v6484
        %v6703 = vunpack.c.l.b16 %v6485
        %v6704 = vunpack.c.h.b16 %v6485
        %v6705 = vunpack.c.l.b16 %v6486
        %v6706 = vunpack.c.h.b16 %v6486
        %v6707 = vunpack.c.l.b16 %v6487
        %v6708 = vunpack.c.h.b16 %v6487
        %v6709 = vunpack.c.l.b16 %v6488
        %v6710 = vunpack.c.h.b16 %v6488
        %v6711 = vunpack.c.l.b16 %v6489
        %v6712 = vunpack.c.h.b16 %v6489
        %v6713 = vunpack.c.l.b16 %v6490
        %v6714 = vunpack.c.h.b16 %v6490
        %v6715 = vunpack.c.l.b16 %v6491
        %v6716 = vunpack.c.h.b16 %v6491
        %v6717 = vunpack.c.l.b16 %v6492
        %v6718 = vunpack.c.h.b16 %v6492
        %v6719 = vunpack.c.l.b16 %v6493
        %v6720 = vunpack.c.h.b16 %v6493
        %v6721 = vunpack.c.l.b16 %v6494
        %v6722 = vunpack.c.h.b16 %v6494
        %v6723 = vunpack.c.l.b16 %v6495
        %v6724 = vunpack.c.h.b16 %v6495
        %v6725 = vunpack.c.l.b16 %v6496
        %v6726 = vunpack.c.h.b16 %v6496
        %v6727 = vunpack.c.l.b16 %v6497
        %v6728 = vunpack.c.h.b16 %v6497
        %v6729 = vunpack.c.l.b16 %v6498
        %v6730 = vunpack.c.h.b16 %v6498
        %v6731 = vunpack.c.l.b16 %v6499
        %v6732 = vunpack.c.h.b16 %v6499
        %v6733 = vunpack.c.l.b16 %v6500
        %v6734 = vunpack.c.h.b16 %v6500
        %v6735 = vunpack.c.l.b16 %v6501
        %v6736 = vunpack.c.h.b16 %v6501
        %v6737 = vunpack.c.l.b16 %v6502
        %v6738 = vunpack.c.h.b16 %v6502
        %v6739 = vunpack.c.l.b16 %v6503
        %v6740 = vunpack.c.h.b16 %v6503
        %v6741 = vunpack.c.l.b16 %v6504
        %v6742 = vunpack.c.h.b16 %v6504
        %v6743 = vunpack.c.l.b16 %v6505
        %v6744 = vunpack.c.h.b16 %v6505
        %v6745 = vunpack.c.l.b16 %v6506
        %v6746 = vunpack.c.h.b16 %v6506
        %v6747 = vunpack.c.l.b16 %v6507
        %v6748 = vunpack.c.h.b16 %v6507
        %v6749 = vunpack.c.l.b16 %v6508
        %v6750 = vunpack.c.h.b16 %v6508
        %v6751 = vunpack.c.l.b16 %v6509
        %v6752 = vunpack.c.h.b16 %v6509
        %v6753 = vunpack.c.l.b16 %v6510
        %v6754 = vunpack.c.h.b16 %v6510
        %v6755 = vunpack.c.l.b16 %v6511
        %v6756 = vunpack.c.h.b16 %v6511
        %v6757 = vunpack.c.l.b16 %v6512
        %v6758 = vunpack.c.h.b16 %v6512
        %v6759 = vunpack.c.l.b16 %v6513
        %v6760 = vunpack.c.h.b16 %v6513
        %v6761 = vunpack.c.l.b16 %v6514
        %v6762 = vunpack.c.h.b16 %v6514
        %v6763 = vunpack.c.l.b16 %v6515
        %v6764 = vunpack.c.h.b16 %v6515
        %v6765 = vunpack.c.l.b16 %v6516
        %v6766 = vunpack.c.h.b16 %v6516
        %v6767 = vunpack.c.l.b16 %v6517
        %v6768 = vunpack.c.h.b16 %v6517
        %v6769 = vunpack.c.l.b16 %v6518
        %v6770 = vunpack.c.h.b16 %v6518
        %v6771 = vunpack.c.l.b16 %v6519
        %v6772 = vunpack.c.h.b16 %v6519
        %v6773 = vunpack.c.l.b16 %v6520
        %v6774 = vunpack.c.h.b16 %v6520
        %v6775 = vunpack.c.l.b16 %v6521
        %v6776 = vunpack.c.h.b16 %v6521
        %v6777 = vunpack.c.l.b16 %v6522
        %v6778 = vunpack.c.h.b16 %v6522
        %v6779 = vunpack.c.l.b16 %v6523
        %v6780 = vunpack.c.h.b16 %v6523
        %v6781 = vunpack.c.l.b16 %v6524
        %v6782 = vunpack.c.h.b16 %v6524
        %v6783 = vunpack.c.l.b16 %v6525
        %v6784 = vunpack.c.h.b16 %v6525
        %v6785 = vunpack.c.l.b16 %v6526
        %v6786 = vunpack.c.h.b16 %v6526
        %v6787 = vunpack.c.l.b16 %v6527
        %v6788 = vunpack.c.h.b16 %v6527
        %v6789 = vunpack.c.l.b16 %v6528
        %v6790 = vunpack.c.h.b16 %v6528
        %v6791 = vunpack.c.l.b16 %v6529
        %v6792 = vunpack.c.h.b16 %v6529
        %v6793 = vunpack.c.l.b16 %v6530
        %v6794 = vunpack.c.h.b16 %v6530
        %v6795 = vunpack.c.l.b16 %v6531
        %v6796 = vunpack.c.h.b16 %v6531
        %v6797 = vunpack.c.l.b16 %v6532
        %v6798 = vunpack.c.h.b16 %v6532
        %v6799 = vunpack.c.l.b16 %v6533
        %v6800 = vunpack.c.h.b16 %v6533
        %v6801 = vunpack.c.l.b16 %v6534
        %v6802 = vunpack.c.h.b16 %v6534
        %v6803 = vunpack.c.l.b16 %v6535
        %v6804 = vunpack.c.h.b16 %v6535
        %v6805 = vunpack.c.l.b16 %v6536
        %v6806 = vunpack.c.h.b16 %v6536
        %v6807 = vunpack.c.l.b16 %v6537
        %v6808 = vunpack.c.h.b16 %v6537
        %v6809 = vunpack.c.l.b16 %v6538
        %v6810 = vunpack.c.h.b16 %v6538
        %v6811 = vunpack.c.l.b16 %v6539
        %v6812 = vunpack.c.h.b16 %v6539
        %v6813 = vunpack.c.l.b16 %v6540
        %v6814 = vunpack.c.h.b16 %v6540
        %v6815 = vunpack.c.l.b16 %v6541
        %v6816 = vunpack.c.h.b16 %v6541
        %v6817 = vunpack.c.l.b16 %v6542
        %v6818 = vunpack.c.h.b16 %v6542
        %v6819 = vunpack.c.l.b16 %v6543
        %v6820 = vunpack.c.h.b16 %v6543
        %v6821 = vunpack.c.l.b16 %v6544
        %v6822 = vunpack.c.h.b16 %v6544
        %v6823 = vunpack.c.l.b16 %v6545
        %v6824 = vunpack.c.h.b16 %v6545
        %v6825 = vunpack.c.l.b16 %v6546
        %v6826 = vunpack.c.h.b16 %v6546
        %v6827 = vunpack.c.l.b16 %v6547
        %v6828 = vunpack.c.h.b16 %v6547
        %v6829 = vunpack.c.l.b16 %v6548
        %v6830 = vunpack.c.h.b16 %v6548
        %v6831 = vunpack.c.l.b16 %v6549
        %v6832 = vunpack.c.h.b16 %v6549
        %v6833 = vunpack.c.l.b16 %v6550
        %v6834 = vunpack.c.h.b16 %v6550
        %v6835 = vunpack.c.l.b16 %v6551
        %v6836 = vunpack.c.h.b16 %v6551
        %v6837 = vunpack.c.l.b16 %v6552
        %v6838 = vunpack.c.h.b16 %v6552
        %v6839 = vunpack.c.l.b16 %v6553
        %v6840 = vunpack.c.h.b16 %v6553
        %v6841 = vunpack.c.l.b16 %v6554
        %v6842 = vunpack.c.h.b16 %v6554
        %v6843 = vunpack.c.l.b16 %v6555
        %v6844 = vunpack.c.h.b16 %v6555
        %v6845 = vunpack.c.l.b16 %v6556
        %v6846 = vunpack.c.h.b16 %v6556
        %v6847 = vunpack.c.l.b16 %v6557
        %v6848 = vunpack.c.h.b16 %v6557
        %v6849 = vunpack.c.l.b16 %v6558
        %v6850 = vunpack.c.h.b16 %v6558
        %v6851 = vunpack.c.l.b16 %v6559
        %v6852 = vunpack.c.h.b16 %v6559
        %v6853 = vunpack.c.l.b16 %v6560
        %v6854 = vunpack.c.h.b16 %v6560
        %v6855 = vunpack.c.l.b16 %v6561
        %v6856 = vunpack.c.h.b16 %v6561
        %v6857 = vunpack.c.l.b16 %v6562
        %v6858 = vunpack.c.h.b16 %v6562
        %v6859 = vunpack.c.l.b16 %v6563
        %v6860 = vunpack.c.h.b16 %v6563
        %v6861 = vunpack.c.l.b16 %v6564
        %v6862 = vunpack.c.h.b16 %v6564
        %v6863 = vunpack.c.l.b16 %v6565
        %v6864 = vunpack.c.h.b16 %v6565
        %v6865 = vunpack.c.l.b16 %v6566
        %v6866 = vunpack.c.h.b16 %v6566
        %v6867 = vunpack.c.l.b16 %v6567
        %v6868 = vunpack.c.h.b16 %v6567
        %v6869 = vunpack.c.l.b16 %v6568
        %v6870 = vunpack.c.h.b16 %v6568
        %v6871 = vunpack.c.l.b16 %v6569
        %v6872 = vunpack.c.h.b16 %v6569
        %v6873 = vunpack.c.l.b16 %v6570
        %v6874 = vunpack.c.h.b16 %v6570
        %v6875 = vunpack.c.l.b16 %v6571
        %v6876 = vunpack.c.h.b16 %v6571
        %v6877 = vunpack.c.l.b16 %v6572
        %v6878 = vunpack.c.h.b16 %v6572
        %v6879 = vunpack.c.l.b16 %v6573
        %v6880 = vunpack.c.h.b16 %v6573
        %v6881 = vunpack.c.l.b16 %v6574
        %v6882 = vunpack.c.h.b16 %v6574
        %v6883 = vunpack.c.l.b16 %v6575
        %v6884 = vunpack.c.h.b16 %v6575
        %v6885 = vunpack.c.l.b16 %v6576
        %v6886 = vunpack.c.h.b16 %v6576
        %v6887 = vunpack.c.l.b16 %v6577
        %v6888 = vunpack.c.h.b16 %v6577
        %v6889 = vunpack.c.l.b16 %v6578
        %v6890 = vunpack.c.h.b16 %v6578
        %v6891 = vpack.c.b16 %v6703, %v6699
        %v6892 = vpack.c.b16 %v6704, %v6700
        %v6893 = vpack.c.b16 %v6705, %v6701
        %v6894 = vpack.c.b16 %v6706, %v6702
        %v6895 = vpack.c.b16 %v6711, %v6707
        %v6896 = vpack.c.b16 %v6712, %v6708
        %v6897 = vpack.c.b16 %v6713, %v6709
        %v6898 = vpack.c.b16 %v6714, %v6710
        %v6899 = vpack.c.b16 %v6719, %v6715
        %v6900 = vpack.c.b16 %v6720, %v6716
        %v6901 = vpack.c.b16 %v6721, %v6717
        %v6902 = vpack.c.b16 %v6722, %v6718
        %v6903 = vpack.c.b16 %v6727, %v6723
        %v6904 = vpack.c.b16 %v6728, %v6724
        %v6905 = vpack.c.b16 %v6729, %v6725
        %v6906 = vpack.c.b16 %v6730, %v6726
        %v6907 = vpack.c.b16 %v6735, %v6731
        %v6908 = vpack.c.b16 %v6736, %v6732
        %v6909 = vpack.c.b16 %v6737, %v6733
        %v6910 = vpack.c.b16 %v6738, %v6734
        %v6911 = vpack.c.b16 %v6743, %v6739
        %v6912 = vpack.c.b16 %v6744, %v6740
        %v6913 = vpack.c.b16 %v6745, %v6741
        %v6914 = vpack.c.b16 %v6746, %v6742
        %v6915 = vpack.c.b16 %v6751, %v6747
        %v6916 = vpack.c.b16 %v6752, %v6748
        %v6917 = vpack.c.b16 %v6753, %v6749
        %v6918 = vpack.c.b16 %v6754, %v6750
        %v6919 = vpack.c.b16 %v6759, %v6755
        %v6920 = vpack.c.b16 %v6760, %v6756
        %v6921 = vpack.c.b16 %v6761, %v6757
        %v6922 = vpack.c.b16 %v6762, %v6758
        %v6923 = vpack.c.b16 %v6767, %v6763
        %v6924 = vpack.c.b16 %v6768, %v6764
        %v6925 = vpack.c.b16 %v6769, %v6765
        %v6926 = vpack.c.b16 %v6770, %v6766
        %v6927 = vpack.c.b16 %v6775, %v6771
        %v6928 = vpack.c.b16 %v6776, %v6772
        %v6929 = vpack.c.b16 %v6777, %v6773
        %v6930 = vpack.c.b16 %v6778, %v6774
        %v6931 = vpack.c.b16 %v6783, %v6779
        %v6932 = vpack.c.b16 %v6784, %v6780
        %v6933 = vpack.c.b16 %v6785, %v6781
        %v6934 = vpack.c.b16 %v6786, %v6782
        %v6935 = vpack.c.b16 %v6791, %v6787
        %v6936 = vpack.c.b16 %v6792, %v6788
        %v6937 = vpack.c.b16 %v6793, %v6789
        %v6938 = vpack.c.b16 %v6794, %v6790
        %v6939 = vpack.c.b16 %v6799, %v6795
        %v6940 = vpack.c.b16 %v6800, %v6796
        %v6941 = vpack.c.b16 %v6801, %v6797
        %v6942 = vpack.c.b16 %v6802, %v6798
        %v6943 = vpack.c.b16 %v6807, %v6803
        %v6944 = vpack.c.b16 %v6808, %v6804
        %v6945 = vpack.c.b16 %v6809, %v6805
        %v6946 = vpack.c.b16 %v6810, %v6806
        %v6947 = vpack.c.b16 %v6815, %v6811
        %v6948 = vpack.c.b16 %v6816, %v6812
        %v6949 = vpack.c.b16 %v6817, %v6813
        %v6950 = vpack.c.b16 %v6818, %v6814
        %v6951 = vpack.c.b16 %v6823, %v6819
        %v6952 = vpack.c.b16 %v6824, %v6820
        %v6953 = vpack.c.b16 %v6825, %v6821
        %v6954 = vpack.c.b16 %v6826, %v6822
        %v6955 = vpack.c.b16 %v6831, %v6827
        %v6956 = vpack.c.b16 %v6832, %v6828
        %v6957 = vpack.c.b16 %v6833, %v6829
        %v6958 = vpack.c.b16 %v6834, %v6830
        %v6959 = vpack.c.b16 %v6839, %v6835
        %v6960 = vpack.c.b16 %v6840, %v6836
        %v6961 = vpack.c.b16 %v6841, %v6837
        %v6962 = vpack.c.b16 %v6842, %v6838
        %v6963 = vpack.c.b16 %v6847, %v6843
        %v6964 = vpack.c.b16 %v6848, %v6844
        %v6965 = vpack.c.b16 %v6849, %v6845
        %v6966 = vpack.c.b16 %v6850, %v6846
        %v6967 = vpack.c.b16 %v6855, %v6851
        %v6968 = vpack.c.b16 %v6856, %v6852
        %v6969 = vpack.c.b16 %v6857, %v6853
        %v6970 = vpack.c.b16 %v6858, %v6854
        %v6971 = vpack.c.b16 %v6863, %v6859
        %v6972 = vpack.c.b16 %v6864, %v6860
        %v6973 = vpack.c.b16 %v6865, %v6861
        %v6974 = vpack.c.b16 %v6866, %v6862
        %v6975 = vpack.c.b16 %v6871, %v6867
        %v6976 = vpack.c.b16 %v6872, %v6868
        %v6977 = vpack.c.b16 %v6873, %v6869
        %v6978 = vpack.c.b16 %v6874, %v6870
        %v6979 = vpack.c.b16 %v6879, %v6875
        %v6980 = vpack.c.b16 %v6880, %v6876
        %v6981 = vpack.c.b16 %v6881, %v6877
        %v6982 = vpack.c.b16 %v6882, %v6878
        %v6983 = vpack.c.b16 %v6887, %v6883
        %v6984 = vpack.c.b16 %v6888, %v6884
        %v6985 = vpack.c.b16 %v6889, %v6885
        %v6986 = vpack.c.b16 %v6890, %v6886
        %7083 = vmatprep.subr.bf16.mxu0 %v6892
        %7084 = vmatpush1.bf16.msra.mxu0 %v6891
        %7085 = vmatprep.subr.bf16.mxu0 %v6896
        %7086 = vmatpush1.bf16.msra.mxu0 %v6895
        %7087 = vmatprep.subr.bf16.mxu0 %v6900
        %7088 = vmatpush1.bf16.msra.mxu0 %v6899
        %7089 = vmatprep.subr.bf16.mxu0 %v6904
        %7090 = vmatpush1.bf16.msra.mxu0 %v6903
        %7091 = vmatprep.subr.bf16.mxu0 %v6908
        %7092 = vmatpush1.bf16.msra.mxu0 %v6907
        %7093 = vmatprep.subr.bf16.mxu0 %v6912
        %7094 = vmatpush1.bf16.msra.mxu0 %v6911
        %7095 = vmatprep.subr.bf16.mxu0 %v6916
        %7096 = vmatpush1.bf16.msra.mxu0 %v6915
        %7097 = vmatprep.subr.bf16.mxu0 %v6920
        %7098 = vmatpush1.bf16.msra.mxu0 %v6919
        %7099 = vmatprep.subr.bf16.mxu0 %v6924
        %7100 = vmatpush1.bf16.msra.mxu0 %v6923
        %7101 = vmatprep.subr.bf16.mxu0 %v6928
        %7102 = vmatpush1.bf16.msra.mxu0 %v6927
        %7103 = vmatprep.subr.bf16.mxu0 %v6932
        %7104 = vmatpush1.bf16.msra.mxu0 %v6931
        %7105 = vmatprep.subr.bf16.mxu0 %v6936
        %7106 = vmatpush1.bf16.msra.mxu0 %v6935
        %7107 = vmatprep.subr.bf16.mxu0 %v6940
        %7108 = vmatpush1.bf16.msra.mxu0 %v6939
        %7109 = vmatprep.subr.bf16.mxu0 %v6944
        %7110 = vmatpush1.bf16.msra.mxu0 %v6943
        %7111 = vmatprep.subr.bf16.mxu0 %v6948
        %7112 = vmatpush1.bf16.msra.mxu0 %v6947
        %7113 = vmatprep.subr.bf16.mxu0 %v6952
        %7114 = vmatpush1.bf16.msra.mxu0 %v6951
        %7115 = vmatprep.mubr.bf16.mxu0 %v6592
        %7116 = vmatmul.mubr.bf16.gmra.mrb[0].mxu0 %v6585
        %v7117 = vpop.f32.mrb[0].mxu0
        %v7118 = vadd.f32 0.0, %v7117
        %v7119 = vpop.f32.mrb[0].mxu0
        %v7120 = vadd.f32 0.0, %v7119
        %v7121 = vpop.f32.mrb[0].mxu0
        %v7122 = vpop.f32.mrb[0].mxu0
        %7123 = vdwg.mxu0
        %7124 = vmatprep.subr.bf16.mxu0 %v6956
        %7125 = vmatpush1.bf16.msra.mxu0 %v6955
        %7126 = vmatprep.subr.bf16.mxu0 %v6960
        %7127 = vmatpush1.bf16.msra.mxu0 %v6959
        %7128 = vmatprep.subr.bf16.mxu0 %v6964
        %7129 = vmatpush1.bf16.msra.mxu0 %v6963
        %7130 = vmatprep.subr.bf16.mxu0 %v6968
        %7131 = vmatpush1.bf16.msra.mxu0 %v6967
        %7132 = vmatprep.subr.bf16.mxu0 %v6972
        %7133 = vmatpush1.bf16.msra.mxu0 %v6971
        %7134 = vmatprep.subr.bf16.mxu0 %v6976
        %7135 = vmatpush1.bf16.msra.mxu0 %v6975
        %7136 = vmatprep.subr.bf16.mxu0 %v6980
        %7137 = vmatpush1.bf16.msra.mxu0 %v6979
        %7138 = vmatprep.subr.bf16.mxu0 %v6984
        %7139 = vmatpush1.bf16.msra.mxu0 %v6983
        %7140 = vmatprep.subr.bf16.mxu0 0
        %7141 = vmatpush1.bf16.msra.mxu0 0
        %7142 = vmatprep.subr.bf16.mxu0 0
        %7143 = vmatpush1.bf16.msra.mxu0 0
        %7144 = vmatprep.subr.bf16.mxu0 0
        %7145 = vmatpush1.bf16.msra.mxu0 0
        %7146 = vmatprep.subr.bf16.mxu0 0
        %7147 = vmatpush1.bf16.msra.mxu0 0
        %7148 = vmatprep.subr.bf16.mxu0 0
        %7149 = vmatpush1.bf16.msra.mxu0 0
        %7150 = vmatprep.subr.bf16.mxu0 0
        %7151 = vmatpush1.bf16.msra.mxu0 0
        %7152 = vmatprep.subr.bf16.mxu0 0
        %7153 = vmatpush1.bf16.msra.mxu0 0
        %7154 = vmatprep.subr.bf16.mxu0 0
        %7155 = vmatpush1.bf16.msra.mxu0 0
        %7156 = vmatprep.mubr.bf16.mxu0 0
        %7157 = vmatmul.mubr.bf16.gmra.mrb[0].mxu0 %v6599
        %v7158 = vpop.f32.mrb[0].mxu0
        %v7159 = vadd.f32 %v7118, %v7158
        %v7160 = vpop.f32.mrb[0].mxu0
        %v7161 = vadd.f32 %v7120, %v7160
        %v7162 = vpop.f32.mrb[0].mxu0
        %v7163 = vpop.f32.mrb[0].mxu0
        %7164 = vdwg.mxu0
        %7165 = vmatprep.subr.bf16.mxu0 %v6894
        %7166 = vmatpush1.bf16.msra.mxu0 %v6893
        %7167 = vmatprep.subr.bf16.mxu0 %v6898
        %7168 = vmatpush1.bf16.msra.mxu0 %v6897
        %7169 = vmatprep.subr.bf16.mxu0 %v6902
        %7170 = vmatpush1.bf16.msra.mxu0 %v6901
        %7171 = vmatprep.subr.bf16.mxu0 %v6906
        %7172 = vmatpush1.bf16.msra.mxu0 %v6905
        %7173 = vmatprep.subr.bf16.mxu0 %v6910
        %7174 = vmatpush1.bf16.msra.mxu0 %v6909
        %7175 = vmatprep.subr.bf16.mxu0 %v6914
        %7176 = vmatpush1.bf16.msra.mxu0 %v6913
        %7177 = vmatprep.subr.bf16.mxu0 %v6918
        %7178 = vmatpush1.bf16.msra.mxu0 %v6917
        %7179 = vmatprep.subr.bf16.mxu0 %v6922
        %7180 = vmatpush1.bf16.msra.mxu0 %v6921
        %7181 = vmatprep.subr.bf16.mxu0 %v6926
        %7182 = vmatpush1.bf16.msra.mxu0 %v6925
        %7183 = vmatprep.subr.bf16.mxu0 %v6930
        %7184 = vmatpush1.bf16.msra.mxu0 %v6929
        %7185 = vmatprep.subr.bf16.mxu0 %v6934
        %7186 = vmatpush1.bf16.msra.mxu0 %v6933
        %7187 = vmatprep.subr.bf16.mxu0 %v6938
        %7188 = vmatpush1.bf16.msra.mxu0 %v6937
        %7189 = vmatprep.subr.bf16.mxu0 %v6942
        %7190 = vmatpush1.bf16.msra.mxu0 %v6941
        %7191 = vmatprep.subr.bf16.mxu0 %v6946
        %7192 = vmatpush1.bf16.msra.mxu0 %v6945
        %7193 = vmatprep.subr.bf16.mxu0 %v6950
        %7194 = vmatpush1.bf16.msra.mxu0 %v6949
        %7195 = vmatprep.subr.bf16.mxu0 %v6954
        %7196 = vmatpush1.bf16.msra.mxu0 %v6953
        %7197 = vmatprep.mubr.bf16.mxu0 %v6592
        %7198 = vmatmul.mubr.bf16.gmra.mrb[0].mxu0 %v6585
        %v7199 = vpop.f32.mrb[0].mxu0
        %v7200 = vadd.f32 0.0, %v7199
        %v7201 = vpop.f32.mrb[0].mxu0
        %v7202 = vadd.f32 0.0, %v7201
        %v7203 = vpop.f32.mrb[0].mxu0
        %v7204 = vpop.f32.mrb[0].mxu0
        %7205 = vdwg.mxu0
        %7206 = vmatprep.subr.bf16.mxu0 %v6958
        %7207 = vmatpush1.bf16.msra.mxu0 %v6957
        %7208 = vmatprep.subr.bf16.mxu0 %v6962
        %7209 = vmatpush1.bf16.msra.mxu0 %v6961
        %7210 = vmatprep.subr.bf16.mxu0 %v6966
        %7211 = vmatpush1.bf16.msra.mxu0 %v6965
        %7212 = vmatprep.subr.bf16.mxu0 %v6970
        %7213 = vmatpush1.bf16.msra.mxu0 %v6969
        %7214 = vmatprep.subr.bf16.mxu0 %v6974
        %7215 = vmatpush1.bf16.msra.mxu0 %v6973
        %7216 = vmatprep.subr.bf16.mxu0 %v6978
        %7217 = vmatpush1.bf16.msra.mxu0 %v6977
        %7218 = vmatprep.subr.bf16.mxu0 %v6982
        %7219 = vmatpush1.bf16.msra.mxu0 %v6981
        %7220 = vmatprep.subr.bf16.mxu0 %v6986
        %7221 = vmatpush1.bf16.msra.mxu0 %v6985
        %7222 = vmatprep.subr.bf16.mxu0 0
        %7223 = vmatpush1.bf16.msra.mxu0 0
        %7224 = vmatprep.subr.bf16.mxu0 0
        %7225 = vmatpush1.bf16.msra.mxu0 0
        %7226 = vmatprep.subr.bf16.mxu0 0
        %7227 = vmatpush1.bf16.msra.mxu0 0
        %7228 = vmatprep.subr.bf16.mxu0 0
        %7229 = vmatpush1.bf16.msra.mxu0 0
        %7230 = vmatprep.subr.bf16.mxu0 0
        %7231 = vmatpush1.bf16.msra.mxu0 0
        %7232 = vmatprep.subr.bf16.mxu0 0
        %7233 = vmatpush1.bf16.msra.mxu0 0
        %7234 = vmatprep.subr.bf16.mxu0 0
        %7235 = vmatpush1.bf16.msra.mxu0 0
        %7236 = vmatprep.subr.bf16.mxu0 0
        %7237 = vmatpush1.bf16.msra.mxu0 0
        %7238 = vmatprep.mubr.bf16.mxu0 0
        %7239 = vmatmul.mubr.bf16.gmra.mrb[0].mxu0 %v6599
        %v7240 = vpop.f32.mrb[0].mxu0
        %v7241 = vadd.f32 %v7200, %v7240
        %v7242 = vpop.f32.mrb[0].mxu0
        %v7243 = vadd.f32 %v7202, %v7242
        %v7244 = vpop.f32.mrb[0].mxu0
        %v7245 = vpop.f32.mrb[0].mxu0
        %7246 = vdwg.mxu0
        %v7343 = vunpack.c.l.b16 %v6386
        %v7344 = vunpack.c.h.b16 %v6386
        %v7345 = vunpack.c.l.b16 %v6387
        %v7346 = vunpack.c.h.b16 %v6387
        %v7347 = vunpack.c.l.b16 %v6388
        %v7348 = vunpack.c.h.b16 %v6388
        %v7349 = vunpack.c.l.b16 %v6389
        %v7350 = vunpack.c.h.b16 %v6389
        %v7351 = vunpack.c.l.b16 %v6390
        %v7352 = vunpack.c.h.b16 %v6390
        %v7353 = vunpack.c.l.b16 %v6391
        %v7354 = vunpack.c.h.b16 %v6391
        %v7355 = vunpack.c.l.b16 %v6392
        %v7356 = vunpack.c.h.b16 %v6392
        %v7357 = vunpack.c.l.b16 %v6393
        %v7358 = vunpack.c.h.b16 %v6393
        %v7359 = vunpack.c.l.b16 %v6394
        %v7360 = vunpack.c.h.b16 %v6394
        %v7361 = vunpack.c.l.b16 %v6395
        %v7362 = vunpack.c.h.b16 %v6395
        %v7363 = vunpack.c.l.b16 %v6396
        %v7364 = vunpack.c.h.b16 %v6396
        %v7365 = vunpack.c.l.b16 %v6397
        %v7366 = vunpack.c.h.b16 %v6397
        %v7367 = vunpack.c.l.b16 %v6398
        %v7368 = vunpack.c.h.b16 %v6398
        %v7369 = vunpack.c.l.b16 %v6399
        %v7370 = vunpack.c.h.b16 %v6399
        %v7371 = vunpack.c.l.b16 %v6400
        %v7372 = vunpack.c.h.b16 %v6400
        %v7373 = vunpack.c.l.b16 %v6401
        %v7374 = vunpack.c.h.b16 %v6401
        %v7375 = vunpack.c.l.b16 %v6402
        %v7376 = vunpack.c.h.b16 %v6402
        %v7377 = vunpack.c.l.b16 %v6403
        %v7378 = vunpack.c.h.b16 %v6403
        %v7379 = vunpack.c.l.b16 %v6404
        %v7380 = vunpack.c.h.b16 %v6404
        %v7381 = vunpack.c.l.b16 %v6405
        %v7382 = vunpack.c.h.b16 %v6405
        %v7383 = vunpack.c.l.b16 %v6406
        %v7384 = vunpack.c.h.b16 %v6406
        %v7385 = vunpack.c.l.b16 %v6407
        %v7386 = vunpack.c.h.b16 %v6407
        %v7387 = vunpack.c.l.b16 %v6408
        %v7388 = vunpack.c.h.b16 %v6408
        %v7389 = vunpack.c.l.b16 %v6409
        %v7390 = vunpack.c.h.b16 %v6409
        %v7391 = vunpack.c.l.b16 %v6410
        %v7392 = vunpack.c.h.b16 %v6410
        %v7393 = vunpack.c.l.b16 %v6411
        %v7394 = vunpack.c.h.b16 %v6411
        %v7395 = vunpack.c.l.b16 %v6412
        %v7396 = vunpack.c.h.b16 %v6412
        %v7397 = vunpack.c.l.b16 %v6413
        %v7398 = vunpack.c.h.b16 %v6413
        %v7399 = vunpack.c.l.b16 %v6414
        %v7400 = vunpack.c.h.b16 %v6414
        %v7401 = vunpack.c.l.b16 %v6415
        %v7402 = vunpack.c.h.b16 %v6415
        %v7403 = vunpack.c.l.b16 %v6416
        %v7404 = vunpack.c.h.b16 %v6416
        %v7405 = vunpack.c.l.b16 %v6417
        %v7406 = vunpack.c.h.b16 %v6417
        %v7407 = vunpack.c.l.b16 %v6418
        %v7408 = vunpack.c.h.b16 %v6418
        %v7409 = vunpack.c.l.b16 %v6419
        %v7410 = vunpack.c.h.b16 %v6419
        %v7411 = vunpack.c.l.b16 %v6420
        %v7412 = vunpack.c.h.b16 %v6420
        %v7413 = vunpack.c.l.b16 %v6421
        %v7414 = vunpack.c.h.b16 %v6421
        %v7415 = vunpack.c.l.b16 %v6422
        %v7416 = vunpack.c.h.b16 %v6422
        %v7417 = vunpack.c.l.b16 %v6423
        %v7418 = vunpack.c.h.b16 %v6423
        %v7419 = vunpack.c.l.b16 %v6424
        %v7420 = vunpack.c.h.b16 %v6424
        %v7421 = vunpack.c.l.b16 %v6425
        %v7422 = vunpack.c.h.b16 %v6425
        %v7423 = vunpack.c.l.b16 %v6426
        %v7424 = vunpack.c.h.b16 %v6426
        %v7425 = vunpack.c.l.b16 %v6427
        %v7426 = vunpack.c.h.b16 %v6427
        %v7427 = vunpack.c.l.b16 %v6428
        %v7428 = vunpack.c.h.b16 %v6428
        %v7429 = vunpack.c.l.b16 %v6429
        %v7430 = vunpack.c.h.b16 %v6429
        %v7431 = vunpack.c.l.b16 %v6430
        %v7432 = vunpack.c.h.b16 %v6430
        %v7433 = vunpack.c.l.b16 %v6431
        %v7434 = vunpack.c.h.b16 %v6431
        %v7435 = vunpack.c.l.b16 %v6432
        %v7436 = vunpack.c.h.b16 %v6432
        %v7437 = vunpack.c.l.b16 %v6433
        %v7438 = vunpack.c.h.b16 %v6433
        %v7439 = vunpack.c.l.b16 %v6434
        %v7440 = vunpack.c.h.b16 %v6434
        %v7441 = vunpack.c.l.b16 %v6435
        %v7442 = vunpack.c.h.b16 %v6435
        %v7443 = vunpack.c.l.b16 %v6436
        %v7444 = vunpack.c.h.b16 %v6436
        %v7445 = vunpack.c.l.b16 %v6437
        %v7446 = vunpack.c.h.b16 %v6437
        %v7447 = vunpack.c.l.b16 %v6438
        %v7448 = vunpack.c.h.b16 %v6438
        %v7449 = vunpack.c.l.b16 %v6439
        %v7450 = vunpack.c.h.b16 %v6439
        %v7451 = vunpack.c.l.b16 %v6440
        %v7452 = vunpack.c.h.b16 %v6440
        %v7453 = vunpack.c.l.b16 %v6441
        %v7454 = vunpack.c.h.b16 %v6441
        %v7455 = vunpack.c.l.b16 %v6442
        %v7456 = vunpack.c.h.b16 %v6442
        %v7457 = vunpack.c.l.b16 %v6443
        %v7458 = vunpack.c.h.b16 %v6443
        %v7459 = vunpack.c.l.b16 %v6444
        %v7460 = vunpack.c.h.b16 %v6444
        %v7461 = vunpack.c.l.b16 %v6445
        %v7462 = vunpack.c.h.b16 %v6445
        %v7463 = vunpack.c.l.b16 %v6446
        %v7464 = vunpack.c.h.b16 %v6446
        %v7465 = vunpack.c.l.b16 %v6447
        %v7466 = vunpack.c.h.b16 %v6447
        %v7467 = vunpack.c.l.b16 %v6448
        %v7468 = vunpack.c.h.b16 %v6448
        %v7469 = vunpack.c.l.b16 %v6449
        %v7470 = vunpack.c.h.b16 %v6449
        %v7471 = vunpack.c.l.b16 %v6450
        %v7472 = vunpack.c.h.b16 %v6450
        %v7473 = vunpack.c.l.b16 %v6451
        %v7474 = vunpack.c.h.b16 %v6451
        %v7475 = vunpack.c.l.b16 %v6452
        %v7476 = vunpack.c.h.b16 %v6452
        %v7477 = vunpack.c.l.b16 %v6453
        %v7478 = vunpack.c.h.b16 %v6453
        %v7479 = vunpack.c.l.b16 %v6454
        %v7480 = vunpack.c.h.b16 %v6454
        %v7481 = vunpack.c.l.b16 %v6455
        %v7482 = vunpack.c.h.b16 %v6455
        %v7483 = vunpack.c.l.b16 %v6456
        %v7484 = vunpack.c.h.b16 %v6456
        %v7485 = vunpack.c.l.b16 %v6457
        %v7486 = vunpack.c.h.b16 %v6457
        %v7487 = vunpack.c.l.b16 %v6458
        %v7488 = vunpack.c.h.b16 %v6458
        %v7489 = vunpack.c.l.b16 %v6459
        %v7490 = vunpack.c.h.b16 %v6459
        %v7491 = vunpack.c.l.b16 %v6460
        %v7492 = vunpack.c.h.b16 %v6460
        %v7493 = vunpack.c.l.b16 %v6461
        %v7494 = vunpack.c.h.b16 %v6461
        %v7495 = vunpack.c.l.b16 %v6462
        %v7496 = vunpack.c.h.b16 %v6462
        %v7497 = vunpack.c.l.b16 %v6463
        %v7498 = vunpack.c.h.b16 %v6463
        %v7499 = vunpack.c.l.b16 %v6464
        %v7500 = vunpack.c.h.b16 %v6464
        %v7501 = vunpack.c.l.b16 %v6465
        %v7502 = vunpack.c.h.b16 %v6465
        %v7503 = vunpack.c.l.b16 %v6466
        %v7504 = vunpack.c.h.b16 %v6466
        %v7505 = vunpack.c.l.b16 %v6467
        %v7506 = vunpack.c.h.b16 %v6467
        %v7507 = vunpack.c.l.b16 %v6468
        %v7508 = vunpack.c.h.b16 %v6468
        %v7509 = vunpack.c.l.b16 %v6469
        %v7510 = vunpack.c.h.b16 %v6469
        %v7511 = vunpack.c.l.b16 %v6470
        %v7512 = vunpack.c.h.b16 %v6470
        %v7513 = vunpack.c.l.b16 %v6471
        %v7514 = vunpack.c.h.b16 %v6471
        %v7515 = vunpack.c.l.b16 %v6472
        %v7516 = vunpack.c.h.b16 %v6472
        %v7517 = vunpack.c.l.b16 %v6473
        %v7518 = vunpack.c.h.b16 %v6473
        %v7519 = vunpack.c.l.b16 %v6474
        %v7520 = vunpack.c.h.b16 %v6474
        %v7521 = vunpack.c.l.b16 %v6475
        %v7522 = vunpack.c.h.b16 %v6475
        %v7523 = vunpack.c.l.b16 %v6476
        %v7524 = vunpack.c.h.b16 %v6476
        %v7525 = vunpack.c.l.b16 %v6477
        %v7526 = vunpack.c.h.b16 %v6477
        %v7527 = vunpack.c.l.b16 %v6478
        %v7528 = vunpack.c.h.b16 %v6478
        %v7529 = vunpack.c.l.b16 %v6479
        %v7530 = vunpack.c.h.b16 %v6479
        %v7531 = vunpack.c.l.b16 %v6480
        %v7532 = vunpack.c.h.b16 %v6480
        %v7533 = vunpack.c.l.b16 %v6481
        %v7534 = vunpack.c.h.b16 %v6481
        %v7535 = vpack.c.b16 %v7347, %v7343
        %v7536 = vpack.c.b16 %v7348, %v7344
        %v7537 = vpack.c.b16 %v7349, %v7345
        %v7538 = vpack.c.b16 %v7350, %v7346
        %v7539 = vpack.c.b16 %v7355, %v7351
        %v7540 = vpack.c.b16 %v7356, %v7352
        %v7541 = vpack.c.b16 %v7357, %v7353
        %v7542 = vpack.c.b16 %v7358, %v7354
        %v7543 = vpack.c.b16 %v7363, %v7359
        %v7544 = vpack.c.b16 %v7364, %v7360
        %v7545 = vpack.c.b16 %v7365, %v7361
        %v7546 = vpack.c.b16 %v7366, %v7362
        %v7547 = vpack.c.b16 %v7371, %v7367
        %v7548 = vpack.c.b16 %v7372, %v7368
        %v7549 = vpack.c.b16 %v7373, %v7369
        %v7550 = vpack.c.b16 %v7374, %v7370
        %v7551 = vpack.c.b16 %v7379, %v7375
        %v7552 = vpack.c.b16 %v7380, %v7376
        %v7553 = vpack.c.b16 %v7381, %v7377
        %v7554 = vpack.c.b16 %v7382, %v7378
        %v7555 = vpack.c.b16 %v7387, %v7383
        %v7556 = vpack.c.b16 %v7388, %v7384
        %v7557 = vpack.c.b16 %v7389, %v7385
        %v7558 = vpack.c.b16 %v7390, %v7386
        %v7559 = vpack.c.b16 %v7395, %v7391
        %v7560 = vpack.c.b16 %v7396, %v7392
        %v7561 = vpack.c.b16 %v7397, %v7393
        %v7562 = vpack.c.b16 %v7398, %v7394
        %v7563 = vpack.c.b16 %v7403, %v7399
        %v7564 = vpack.c.b16 %v7404, %v7400
        %v7565 = vpack.c.b16 %v7405, %v7401
        %v7566 = vpack.c.b16 %v7406, %v7402
        %v7567 = vpack.c.b16 %v7411, %v7407
        %v7568 = vpack.c.b16 %v7412, %v7408
        %v7569 = vpack.c.b16 %v7413, %v7409
        %v7570 = vpack.c.b16 %v7414, %v7410
        %v7571 = vpack.c.b16 %v7419, %v7415
        %v7572 = vpack.c.b16 %v7420, %v7416
        %v7573 = vpack.c.b16 %v7421, %v7417
        %v7574 = vpack.c.b16 %v7422, %v7418
        %v7575 = vpack.c.b16 %v7427, %v7423
        %v7576 = vpack.c.b16 %v7428, %v7424
        %v7577 = vpack.c.b16 %v7429, %v7425
        %v7578 = vpack.c.b16 %v7430, %v7426
        %v7579 = vpack.c.b16 %v7435, %v7431
        %v7580 = vpack.c.b16 %v7436, %v7432
        %v7581 = vpack.c.b16 %v7437, %v7433
        %v7582 = vpack.c.b16 %v7438, %v7434
        %v7583 = vpack.c.b16 %v7443, %v7439
        %v7584 = vpack.c.b16 %v7444, %v7440
        %v7585 = vpack.c.b16 %v7445, %v7441
        %v7586 = vpack.c.b16 %v7446, %v7442
        %v7587 = vpack.c.b16 %v7451, %v7447
        %v7588 = vpack.c.b16 %v7452, %v7448
        %v7589 = vpack.c.b16 %v7453, %v7449
        %v7590 = vpack.c.b16 %v7454, %v7450
        %v7591 = vpack.c.b16 %v7459, %v7455
        %v7592 = vpack.c.b16 %v7460, %v7456
        %v7593 = vpack.c.b16 %v7461, %v7457
        %v7594 = vpack.c.b16 %v7462, %v7458
        %v7595 = vpack.c.b16 %v7467, %v7463
        %v7596 = vpack.c.b16 %v7468, %v7464
        %v7597 = vpack.c.b16 %v7469, %v7465
        %v7598 = vpack.c.b16 %v7470, %v7466
        %v7599 = vpack.c.b16 %v7475, %v7471
        %v7600 = vpack.c.b16 %v7476, %v7472
        %v7601 = vpack.c.b16 %v7477, %v7473
        %v7602 = vpack.c.b16 %v7478, %v7474
        %v7603 = vpack.c.b16 %v7483, %v7479
        %v7604 = vpack.c.b16 %v7484, %v7480
        %v7605 = vpack.c.b16 %v7485, %v7481
        %v7606 = vpack.c.b16 %v7486, %v7482
        %v7607 = vpack.c.b16 %v7491, %v7487
        %v7608 = vpack.c.b16 %v7492, %v7488
        %v7609 = vpack.c.b16 %v7493, %v7489
        %v7610 = vpack.c.b16 %v7494, %v7490
        %v7611 = vpack.c.b16 %v7499, %v7495
        %v7612 = vpack.c.b16 %v7500, %v7496
        %v7613 = vpack.c.b16 %v7501, %v7497
        %v7614 = vpack.c.b16 %v7502, %v7498
        %v7615 = vpack.c.b16 %v7507, %v7503
        %v7616 = vpack.c.b16 %v7508, %v7504
        %v7617 = vpack.c.b16 %v7509, %v7505
        %v7618 = vpack.c.b16 %v7510, %v7506
        %v7619 = vpack.c.b16 %v7515, %v7511
        %v7620 = vpack.c.b16 %v7516, %v7512
        %v7621 = vpack.c.b16 %v7517, %v7513
        %v7622 = vpack.c.b16 %v7518, %v7514
        %v7623 = vpack.c.b16 %v7523, %v7519
        %v7624 = vpack.c.b16 %v7524, %v7520
        %v7625 = vpack.c.b16 %v7525, %v7521
        %v7626 = vpack.c.b16 %v7526, %v7522
        %v7627 = vpack.c.b16 %v7531, %v7527
        %v7628 = vpack.c.b16 %v7532, %v7528
        %v7629 = vpack.c.b16 %v7533, %v7529
        %v7630 = vpack.c.b16 %v7534, %v7530
        %7727 = vmatprep.subr.bf16.mxu0 %v7536
        %7728 = vmatpush1.bf16.msra.mxu0 %v7535
        %7729 = vmatprep.subr.bf16.mxu0 %v7540
        %7730 = vmatpush1.bf16.msra.mxu0 %v7539
        %7731 = vmatprep.subr.bf16.mxu0 %v7544
        %7732 = vmatpush1.bf16.msra.mxu0 %v7543
        %7733 = vmatprep.subr.bf16.mxu0 %v7548
        %7734 = vmatpush1.bf16.msra.mxu0 %v7547
        %7735 = vmatprep.subr.bf16.mxu0 %v7552
        %7736 = vmatpush1.bf16.msra.mxu0 %v7551
        %7737 = vmatprep.subr.bf16.mxu0 %v7556
        %7738 = vmatpush1.bf16.msra.mxu0 %v7555
        %7739 = vmatprep.subr.bf16.mxu0 %v7560
        %7740 = vmatpush1.bf16.msra.mxu0 %v7559
        %7741 = vmatprep.subr.bf16.mxu0 %v7564
        %7742 = vmatpush1.bf16.msra.mxu0 %v7563
        %7743 = vmatprep.subr.bf16.mxu0 %v7568
        %7744 = vmatpush1.bf16.msra.mxu0 %v7567
        %7745 = vmatprep.subr.bf16.mxu0 %v7572
        %7746 = vmatpush1.bf16.msra.mxu0 %v7571
        %7747 = vmatprep.subr.bf16.mxu0 %v7576
        %7748 = vmatpush1.bf16.msra.mxu0 %v7575
        %7749 = vmatprep.subr.bf16.mxu0 %v7580
        %7750 = vmatpush1.bf16.msra.mxu0 %v7579
        %7751 = vmatprep.subr.bf16.mxu0 %v7584
        %7752 = vmatpush1.bf16.msra.mxu0 %v7583
        %7753 = vmatprep.subr.bf16.mxu0 %v7588
        %7754 = vmatpush1.bf16.msra.mxu0 %v7587
        %7755 = vmatprep.subr.bf16.mxu0 %v7592
        %7756 = vmatpush1.bf16.msra.mxu0 %v7591
        %7757 = vmatprep.subr.bf16.mxu0 %v7596
        %7758 = vmatpush1.bf16.msra.mxu0 %v7595
        %7759 = vmatprep.mubr.bf16.mxu0 %v6384
        %7760 = vmatmul.mubr.bf16.gmra.mrb[0].mxu0 %v6383
        %v7761 = vpop.f32.mrb[0].mxu0
        %v7762 = vadd.f32 %v7159, %v7761
        %v7763 = vpop.f32.mrb[0].mxu0
        %v7764 = vadd.f32 %v7161, %v7763
        %v7765 = vpop.f32.mrb[0].mxu0
        %v7766 = vpop.f32.mrb[0].mxu0
        %7767 = vdwg.mxu0
        %7768 = vmatprep.subr.bf16.mxu0 %v7600
        %7769 = vmatpush1.bf16.msra.mxu0 %v7599
        %7770 = vmatprep.subr.bf16.mxu0 %v7604
        %7771 = vmatpush1.bf16.msra.mxu0 %v7603
        %7772 = vmatprep.subr.bf16.mxu0 %v7608
        %7773 = vmatpush1.bf16.msra.mxu0 %v7607
        %7774 = vmatprep.subr.bf16.mxu0 %v7612
        %7775 = vmatpush1.bf16.msra.mxu0 %v7611
        %7776 = vmatprep.subr.bf16.mxu0 %v7616
        %7777 = vmatpush1.bf16.msra.mxu0 %v7615
        %7778 = vmatprep.subr.bf16.mxu0 %v7620
        %7779 = vmatpush1.bf16.msra.mxu0 %v7619
        %7780 = vmatprep.subr.bf16.mxu0 %v7624
        %7781 = vmatpush1.bf16.msra.mxu0 %v7623
        %7782 = vmatprep.subr.bf16.mxu0 %v7628
        %7783 = vmatpush1.bf16.msra.mxu0 %v7627
        %7784 = vmatprep.subr.bf16.mxu0 0
        %7785 = vmatpush1.bf16.msra.mxu0 0
        %7786 = vmatprep.subr.bf16.mxu0 0
        %7787 = vmatpush1.bf16.msra.mxu0 0
        %7788 = vmatprep.subr.bf16.mxu0 0
        %7789 = vmatpush1.bf16.msra.mxu0 0
        %7790 = vmatprep.subr.bf16.mxu0 0
        %7791 = vmatpush1.bf16.msra.mxu0 0
        %7792 = vmatprep.subr.bf16.mxu0 0
        %7793 = vmatpush1.bf16.msra.mxu0 0
        %7794 = vmatprep.subr.bf16.mxu0 0
        %7795 = vmatpush1.bf16.msra.mxu0 0
        %7796 = vmatprep.subr.bf16.mxu0 0
        %7797 = vmatpush1.bf16.msra.mxu0 0
        %7798 = vmatprep.subr.bf16.mxu0 0
        %7799 = vmatpush1.bf16.msra.mxu0 0
        %7800 = vmatprep.mubr.bf16.mxu0 0
        %7801 = vmatmul.mubr.bf16.gmra.mrb[0].mxu0 %v6385
        %v7802 = vpop.f32.mrb[0].mxu0
        %v7803 = vadd.f32 %v7762, %v7802
        %v7804 = vpop.f32.mrb[0].mxu0
        %v7805 = vadd.f32 %v7764, %v7804
        %v7806 = vpop.f32.mrb[0].mxu0
        %v7807 = vpop.f32.mrb[0].mxu0
        %7808 = vdwg.mxu0
        %7809 = vmatprep.subr.bf16.mxu0 %v7538
        %7810 = vmatpush1.bf16.msra.mxu0 %v7537
        %7811 = vmatprep.subr.bf16.mxu0 %v7542
        %7812 = vmatpush1.bf16.msra.mxu0 %v7541
        %7813 = vmatprep.subr.bf16.mxu0 %v7546
        %7814 = vmatpush1.bf16.msra.mxu0 %v7545
        %7815 = vmatprep.subr.bf16.mxu0 %v7550
        %7816 = vmatpush1.bf16.msra.mxu0 %v7549
        %7817 = vmatprep.subr.bf16.mxu0 %v7554
        %7818 = vmatpush1.bf16.msra.mxu0 %v7553
        %7819 = vmatprep.subr.bf16.mxu0 %v7558
        %7820 = vmatpush1.bf16.msra.mxu0 %v7557
        %7821 = vmatprep.subr.bf16.mxu0 %v7562
        %7822 = vmatpush1.bf16.msra.mxu0 %v7561
        %7823 = vmatprep.subr.bf16.mxu0 %v7566
        %7824 = vmatpush1.bf16.msra.mxu0 %v7565
        %7825 = vmatprep.subr.bf16.mxu0 %v7570
        %7826 = vmatpush1.bf16.msra.mxu0 %v7569
        %7827 = vmatprep.subr.bf16.mxu0 %v7574
        %7828 = vmatpush1.bf16.msra.mxu0 %v7573
        %7829 = vmatprep.subr.bf16.mxu0 %v7578
        %7830 = vmatpush1.bf16.msra.mxu0 %v7577
        %7831 = vmatprep.subr.bf16.mxu0 %v7582
        %7832 = vmatpush1.bf16.msra.mxu0 %v7581
        %7833 = vmatprep.subr.bf16.mxu0 %v7586
        %7834 = vmatpush1.bf16.msra.mxu0 %v7585
        %7835 = vmatprep.subr.bf16.mxu0 %v7590
        %7836 = vmatpush1.bf16.msra.mxu0 %v7589
        %7837 = vmatprep.subr.bf16.mxu0 %v7594
        %7838 = vmatpush1.bf16.msra.mxu0 %v7593
        %7839 = vmatprep.subr.bf16.mxu0 %v7598
        %7840 = vmatpush1.bf16.msra.mxu0 %v7597
        %7841 = vmatprep.mubr.bf16.mxu0 %v6384
        %7842 = vmatmul.mubr.bf16.gmra.mrb[0].mxu0 %v6383
        %v7843 = vpop.f32.mrb[0].mxu0
        %v7844 = vadd.f32 %v7241, %v7843
        %v7845 = vpop.f32.mrb[0].mxu0
        %v7846 = vadd.f32 %v7243, %v7845
        %v7847 = vpop.f32.mrb[0].mxu0
        %v7848 = vpop.f32.mrb[0].mxu0
        %7849 = vdwg.mxu0
        %7850 = vmatprep.subr.bf16.mxu0 %v7602
        %7851 = vmatpush1.bf16.msra.mxu0 %v7601
        %7852 = vmatprep.subr.bf16.mxu0 %v7606
        %7853 = vmatpush1.bf16.msra.mxu0 %v7605
        %7854 = vmatprep.subr.bf16.mxu0 %v7610
        %7855 = vmatpush1.bf16.msra.mxu0 %v7609
        %7856 = vmatprep.subr.bf16.mxu0 %v7614
        %7857 = vmatpush1.bf16.msra.mxu0 %v7613
        %7858 = vmatprep.subr.bf16.mxu0 %v7618
        %7859 = vmatpush1.bf16.msra.mxu0 %v7617
        %7860 = vmatprep.subr.bf16.mxu0 %v7622
        %7861 = vmatpush1.bf16.msra.mxu0 %v7621
        %7862 = vmatprep.subr.bf16.mxu0 %v7626
        %7863 = vmatpush1.bf16.msra.mxu0 %v7625
        %7864 = vmatprep.subr.bf16.mxu0 %v7630
        %7865 = vmatpush1.bf16.msra.mxu0 %v7629
        %7866 = vmatprep.subr.bf16.mxu0 0
        %7867 = vmatpush1.bf16.msra.mxu0 0
        %7868 = vmatprep.subr.bf16.mxu0 0
        %7869 = vmatpush1.bf16.msra.mxu0 0
        %7870 = vmatprep.subr.bf16.mxu0 0
        %7871 = vmatpush1.bf16.msra.mxu0 0
        %7872 = vmatprep.subr.bf16.mxu0 0
        %7873 = vmatpush1.bf16.msra.mxu0 0
        %7874 = vmatprep.subr.bf16.mxu0 0
        %7875 = vmatpush1.bf16.msra.mxu0 0
        %7876 = vmatprep.subr.bf16.mxu0 0
        %7877 = vmatpush1.bf16.msra.mxu0 0
        %7878 = vmatprep.subr.bf16.mxu0 0
        %7879 = vmatpush1.bf16.msra.mxu0 0
        %7880 = vmatprep.subr.bf16.mxu0 0
        %7881 = vmatpush1.bf16.msra.mxu0 0
        %7882 = vmatprep.mubr.bf16.mxu0 0
        %7883 = vmatmul.mubr.bf16.gmra.mrb[0].mxu0 %v6385
        %v7884 = vpop.f32.mrb[0].mxu0
        %v7885 = vadd.f32 %v7844, %v7884
        %v7886 = vpop.f32.mrb[0].mxu0
        %v7887 = vadd.f32 %v7846, %v7886
        %v7888 = vpop.f32.mrb[0].mxu0
        %v7889 = vpop.f32.mrb[0].mxu0
        %7890 = vdwg.mxu0
        %s7891 = scalar_lea.vmem [#allocation6], 1536
        %v7892 = vld [vmem:[%s7891] sm:$0xff]
        %v7893 = vld [vmem:[%s7891 + $0x8] sm:$0xff]
        %v7894 = vld [vmem:[%s7891 + $0x10] sm:$0xff]
        %v7895 = vld [vmem:[%s7891 + $0x18] sm:$0xff]
        %v7896 = vld [vmem:[%s7891 + $0x20] sm:$0xff]
        %v7897 = vld [vmem:[%s7891 + $0x28] sm:$0xff]
        %v7898 = vld [vmem:[%s7891 + $0x30] sm:$0xff]
        %v7899 = vld [vmem:[%s7891 + $0x38] sm:$0xff]
        %v7900 = vld [vmem:[%s7891 + $0x40] sm:$0xff]
        %v7901 = vld [vmem:[%s7891 + $0x48] sm:$0xff]
        %v7902 = vld [vmem:[%s7891 + $0x50] sm:$0xff]
        %v7903 = vld [vmem:[%s7891 + $0x58] sm:$0xff]
        %v7904 = vld [vmem:[%s7891 + $0x60] sm:$0xff]
        %v7905 = vld [vmem:[%s7891 + $0x68] sm:$0xff]
        %v7906 = vld [vmem:[%s7891 + $0x70] sm:$0xff]
        %v7907 = vld [vmem:[%s7891 + $0x78] sm:$0xff]
        %v7908 = vld [vmem:[%s7891 + $0x80] sm:$0xff]
        %v7909 = vld [vmem:[%s7891 + $0x88] sm:$0xff]
        %v7910 = vld [vmem:[%s7891 + $0x90] sm:$0xff]
        %v7911 = vld [vmem:[%s7891 + $0x98] sm:$0xff]
        %v7912 = vld [vmem:[%s7891 + $0xa0] sm:$0xff]
        %v7913 = vld [vmem:[%s7891 + $0xa8] sm:$0xff]
        %v7914 = vld [vmem:[%s7891 + $0xb0] sm:$0xff]
        %v7915 = vld [vmem:[%s7891 + $0xb8] sm:$0xff]
        %v7916 = vld [vmem:[%s7891 + $0xc0] sm:$0xff]
        %v7917 = vld [vmem:[%s7891 + $0xc8] sm:$0xff]
        %v7918 = vld [vmem:[%s7891 + $0xd0] sm:$0xff]
        %v7919 = vld [vmem:[%s7891 + $0xd8] sm:$0xff]
        %v7920 = vld [vmem:[%s7891 + $0xe0] sm:$0xff]
        %v7921 = vld [vmem:[%s7891 + $0xe8] sm:$0xff]
        %v7922 = vld [vmem:[%s7891 + $0xf0] sm:$0xff]
        %v7923 = vld [vmem:[%s7891 + $0xf8] sm:$0xff]
        %v7924 = vld [vmem:[%s7891 + $0x100] sm:$0xff]
        %v7925 = vld [vmem:[%s7891 + $0x108] sm:$0xff]
        %v7926 = vld [vmem:[%s7891 + $0x110] sm:$0xff]
        %v7927 = vld [vmem:[%s7891 + $0x118] sm:$0xff]
        %v7928 = vld [vmem:[%s7891 + $0x120] sm:$0xff]
        %v7929 = vld [vmem:[%s7891 + $0x128] sm:$0xff]
        %v7930 = vld [vmem:[%s7891 + $0x130] sm:$0xff]
        %v7931 = vld [vmem:[%s7891 + $0x138] sm:$0xff]
        %v7932 = vld [vmem:[%s7891 + $0x140] sm:$0xff]
        %v7933 = vld [vmem:[%s7891 + $0x148] sm:$0xff]
        %v7934 = vld [vmem:[%s7891 + $0x150] sm:$0xff]
        %v7935 = vld [vmem:[%s7891 + $0x158] sm:$0xff]
        %v7936 = vld [vmem:[%s7891 + $0x160] sm:$0xff]
        %v7937 = vld [vmem:[%s7891 + $0x168] sm:$0xff]
        %v7938 = vld [vmem:[%s7891 + $0x170] sm:$0xff]
        %v7939 = vld [vmem:[%s7891 + $0x178] sm:$0xff]
        %v7940 = vld [vmem:[%s7891 + $0x180] sm:$0xff]
        %v7941 = vld [vmem:[%s7891 + $0x188] sm:$0xff]
        %v7942 = vld [vmem:[%s7891 + $0x190] sm:$0xff]
        %v7943 = vld [vmem:[%s7891 + $0x198] sm:$0xff]
        %v7944 = vld [vmem:[%s7891 + $0x1a0] sm:$0xff]
        %v7945 = vld [vmem:[%s7891 + $0x1a8] sm:$0xff]
        %v7946 = vld [vmem:[%s7891 + $0x1b0] sm:$0xff]
        %v7947 = vld [vmem:[%s7891 + $0x1b8] sm:$0xff]
        %v7948 = vld [vmem:[%s7891 + $0x1c0] sm:$0xff]
        %v7949 = vld [vmem:[%s7891 + $0x1c8] sm:$0xff]
        %v7950 = vld [vmem:[%s7891 + $0x1d0] sm:$0xff]
        %v7951 = vld [vmem:[%s7891 + $0x1d8] sm:$0xff]
        %v7952 = vld [vmem:[%s7891 + $0x1e0] sm:$0xff]
        %v7953 = vld [vmem:[%s7891 + $0x1e8] sm:$0xff]
        %v7954 = vld [vmem:[%s7891 + $0x1f0] sm:$0xff]
        %v7955 = vld [vmem:[%s7891 + $0x1f8] sm:$0xff]
        %v7956 = vld [vmem:[%s7891 + $0x200] sm:$0xff]
        %v7957 = vld [vmem:[%s7891 + $0x208] sm:$0xff]
        %v7958 = vld [vmem:[%s7891 + $0x210] sm:$0xff]
        %v7959 = vld [vmem:[%s7891 + $0x218] sm:$0xff]
        %v7960 = vld [vmem:[%s7891 + $0x220] sm:$0xff]
        %v7961 = vld [vmem:[%s7891 + $0x228] sm:$0xff]
        %v7962 = vld [vmem:[%s7891 + $0x230] sm:$0xff]
        %v7963 = vld [vmem:[%s7891 + $0x238] sm:$0xff]
        %v7964 = vld [vmem:[%s7891 + $0x240] sm:$0xff]
        %v7965 = vld [vmem:[%s7891 + $0x248] sm:$0xff]
        %v7966 = vld [vmem:[%s7891 + $0x250] sm:$0xff]
        %v7967 = vld [vmem:[%s7891 + $0x258] sm:$0xff]
        %v7968 = vld [vmem:[%s7891 + $0x260] sm:$0xff]
        %v7969 = vld [vmem:[%s7891 + $0x268] sm:$0xff]
        %v7970 = vld [vmem:[%s7891 + $0x270] sm:$0xff]
        %v7971 = vld [vmem:[%s7891 + $0x278] sm:$0xff]
        %v7972 = vld [vmem:[%s7891 + $0x280] sm:$0xff]
        %v7973 = vld [vmem:[%s7891 + $0x288] sm:$0xff]
        %v7974 = vld [vmem:[%s7891 + $0x290] sm:$0xff]
        %v7975 = vld [vmem:[%s7891 + $0x298] sm:$0xff]
        %v7976 = vld [vmem:[%s7891 + $0x2a0] sm:$0xff]
        %v7977 = vld [vmem:[%s7891 + $0x2a8] sm:$0xff]
        %v7978 = vld [vmem:[%s7891 + $0x2b0] sm:$0xff]
        %v7979 = vld [vmem:[%s7891 + $0x2b8] sm:$0xff]
        %v7980 = vld [vmem:[%s7891 + $0x2c0] sm:$0xff]
        %v7981 = vld [vmem:[%s7891 + $0x2c8] sm:$0xff]
        %v7982 = vld [vmem:[%s7891 + $0x2d0] sm:$0xff]
        %v7983 = vld [vmem:[%s7891 + $0x2d8] sm:$0xff]
        %v7984 = vld [vmem:[%s7891 + $0x2e0] sm:$0xff]
        %v7985 = vld [vmem:[%s7891 + $0x2e8] sm:$0xff]
        %v7986 = vld [vmem:[%s7891 + $0x2f0] sm:$0xff]
        %v7987 = vld [vmem:[%s7891 + $0x2f8] sm:$0xff]
        %v7991 = vrot.slane %v6383, 1
        %v7992 = vrot.slane %v6384, 1
        %v7993 = vrot.slane %v6385, 1
        %v8093 = vunpack.c.l.b16 %v7892
        %v8094 = vunpack.c.h.b16 %v7892
        %v8095 = vunpack.c.l.b16 %v7893
        %v8096 = vunpack.c.h.b16 %v7893
        %v8097 = vunpack.c.l.b16 %v7894
        %v8098 = vunpack.c.h.b16 %v7894
        %v8099 = vunpack.c.l.b16 %v7895
        %v8100 = vunpack.c.h.b16 %v7895
        %v8101 = vunpack.c.l.b16 %v7896
        %v8102 = vunpack.c.h.b16 %v7896
        %v8103 = vunpack.c.l.b16 %v7897
        %v8104 = vunpack.c.h.b16 %v7897
        %v8105 = vunpack.c.l.b16 %v7898
        %v8106 = vunpack.c.h.b16 %v7898
        %v8107 = vunpack.c.l.b16 %v7899
        %v8108 = vunpack.c.h.b16 %v7899
        %v8109 = vunpack.c.l.b16 %v7900
        %v8110 = vunpack.c.h.b16 %v7900
        %v8111 = vunpack.c.l.b16 %v7901
        %v8112 = vunpack.c.h.b16 %v7901
        %v8113 = vunpack.c.l.b16 %v7902
        %v8114 = vunpack.c.h.b16 %v7902
        %v8115 = vunpack.c.l.b16 %v7903
        %v8116 = vunpack.c.h.b16 %v7903
        %v8117 = vunpack.c.l.b16 %v7904
        %v8118 = vunpack.c.h.b16 %v7904
        %v8119 = vunpack.c.l.b16 %v7905
        %v8120 = vunpack.c.h.b16 %v7905
        %v8121 = vunpack.c.l.b16 %v7906
        %v8122 = vunpack.c.h.b16 %v7906
        %v8123 = vunpack.c.l.b16 %v7907
        %v8124 = vunpack.c.h.b16 %v7907
        %v8125 = vunpack.c.l.b16 %v7908
        %v8126 = vunpack.c.h.b16 %v7908
        %v8127 = vunpack.c.l.b16 %v7909
        %v8128 = vunpack.c.h.b16 %v7909
        %v8129 = vunpack.c.l.b16 %v7910
        %v8130 = vunpack.c.h.b16 %v7910
        %v8131 = vunpack.c.l.b16 %v7911
        %v8132 = vunpack.c.h.b16 %v7911
        %v8133 = vunpack.c.l.b16 %v7912
        %v8134 = vunpack.c.h.b16 %v7912
        %v8135 = vunpack.c.l.b16 %v7913
        %v8136 = vunpack.c.h.b16 %v7913
        %v8137 = vunpack.c.l.b16 %v7914
        %v8138 = vunpack.c.h.b16 %v7914
        %v8139 = vunpack.c.l.b16 %v7915
        %v8140 = vunpack.c.h.b16 %v7915
        %v8141 = vunpack.c.l.b16 %v7916
        %v8142 = vunpack.c.h.b16 %v7916
        %v8143 = vunpack.c.l.b16 %v7917
        %v8144 = vunpack.c.h.b16 %v7917
        %v8145 = vunpack.c.l.b16 %v7918
        %v8146 = vunpack.c.h.b16 %v7918
        %v8147 = vunpack.c.l.b16 %v7919
        %v8148 = vunpack.c.h.b16 %v7919
        %v8149 = vunpack.c.l.b16 %v7920
        %v8150 = vunpack.c.h.b16 %v7920
        %v8151 = vunpack.c.l.b16 %v7921
        %v8152 = vunpack.c.h.b16 %v7921
        %v8153 = vunpack.c.l.b16 %v7922
        %v8154 = vunpack.c.h.b16 %v7922
        %v8155 = vunpack.c.l.b16 %v7923
        %v8156 = vunpack.c.h.b16 %v7923
        %v8157 = vunpack.c.l.b16 %v7924
        %v8158 = vunpack.c.h.b16 %v7924
        %v8159 = vunpack.c.l.b16 %v7925
        %v8160 = vunpack.c.h.b16 %v7925
        %v8161 = vunpack.c.l.b16 %v7926
        %v8162 = vunpack.c.h.b16 %v7926
        %v8163 = vunpack.c.l.b16 %v7927
        %v8164 = vunpack.c.h.b16 %v7927
        %v8165 = vunpack.c.l.b16 %v7928
        %v8166 = vunpack.c.h.b16 %v7928
        %v8167 = vunpack.c.l.b16 %v7929
        %v8168 = vunpack.c.h.b16 %v7929
        %v8169 = vunpack.c.l.b16 %v7930
        %v8170 = vunpack.c.h.b16 %v7930
        %v8171 = vunpack.c.l.b16 %v7931
        %v8172 = vunpack.c.h.b16 %v7931
        %v8173 = vunpack.c.l.b16 %v7932
        %v8174 = vunpack.c.h.b16 %v7932
        %v8175 = vunpack.c.l.b16 %v7933
        %v8176 = vunpack.c.h.b16 %v7933
        %v8177 = vunpack.c.l.b16 %v7934
        %v8178 = vunpack.c.h.b16 %v7934
        %v8179 = vunpack.c.l.b16 %v7935
        %v8180 = vunpack.c.h.b16 %v7935
        %v8181 = vunpack.c.l.b16 %v7936
        %v8182 = vunpack.c.h.b16 %v7936
        %v8183 = vunpack.c.l.b16 %v7937
        %v8184 = vunpack.c.h.b16 %v7937
        %v8185 = vunpack.c.l.b16 %v7938
        %v8186 = vunpack.c.h.b16 %v7938
        %v8187 = vunpack.c.l.b16 %v7939
        %v8188 = vunpack.c.h.b16 %v7939
        %v8189 = vunpack.c.l.b16 %v7940
        %v8190 = vunpack.c.h.b16 %v7940
        %v8191 = vunpack.c.l.b16 %v7941
        %v8192 = vunpack.c.h.b16 %v7941
        %v8193 = vunpack.c.l.b16 %v7942
        %v8194 = vunpack.c.h.b16 %v7942
        %v8195 = vunpack.c.l.b16 %v7943
        %v8196 = vunpack.c.h.b16 %v7943
        %v8197 = vunpack.c.l.b16 %v7944
        %v8198 = vunpack.c.h.b16 %v7944
        %v8199 = vunpack.c.l.b16 %v7945
        %v8200 = vunpack.c.h.b16 %v7945
        %v8201 = vunpack.c.l.b16 %v7946
        %v8202 = vunpack.c.h.b16 %v7946
        %v8203 = vunpack.c.l.b16 %v7947
        %v8204 = vunpack.c.h.b16 %v7947
        %v8205 = vunpack.c.l.b16 %v7948
        %v8206 = vunpack.c.h.b16 %v7948
        %v8207 = vunpack.c.l.b16 %v7949
        %v8208 = vunpack.c.h.b16 %v7949
        %v8209 = vunpack.c.l.b16 %v7950
        %v8210 = vunpack.c.h.b16 %v7950
        %v8211 = vunpack.c.l.b16 %v7951
        %v8212 = vunpack.c.h.b16 %v7951
        %v8213 = vunpack.c.l.b16 %v7952
        %v8214 = vunpack.c.h.b16 %v7952
        %v8215 = vunpack.c.l.b16 %v7953
        %v8216 = vunpack.c.h.b16 %v7953
        %v8217 = vunpack.c.l.b16 %v7954
        %v8218 = vunpack.c.h.b16 %v7954
        %v8219 = vunpack.c.l.b16 %v7955
        %v8220 = vunpack.c.h.b16 %v7955
        %v8221 = vunpack.c.l.b16 %v7956
        %v8222 = vunpack.c.h.b16 %v7956
        %v8223 = vunpack.c.l.b16 %v7957
        %v8224 = vunpack.c.h.b16 %v7957
        %v8225 = vunpack.c.l.b16 %v7958
        %v8226 = vunpack.c.h.b16 %v7958
        %v8227 = vunpack.c.l.b16 %v7959
        %v8228 = vunpack.c.h.b16 %v7959
        %v8229 = vunpack.c.l.b16 %v7960
        %v8230 = vunpack.c.h.b16 %v7960
        %v8231 = vunpack.c.l.b16 %v7961
        %v8232 = vunpack.c.h.b16 %v7961
        %v8233 = vunpack.c.l.b16 %v7962
        %v8234 = vunpack.c.h.b16 %v7962
        %v8235 = vunpack.c.l.b16 %v7963
        %v8236 = vunpack.c.h.b16 %v7963
        %v8237 = vunpack.c.l.b16 %v7964
        %v8238 = vunpack.c.h.b16 %v7964
        %v8239 = vunpack.c.l.b16 %v7965
        %v8240 = vunpack.c.h.b16 %v7965
        %v8241 = vunpack.c.l.b16 %v7966
        %v8242 = vunpack.c.h.b16 %v7966
        %v8243 = vunpack.c.l.b16 %v7967
        %v8244 = vunpack.c.h.b16 %v7967
        %v8245 = vunpack.c.l.b16 %v7968
        %v8246 = vunpack.c.h.b16 %v7968
        %v8247 = vunpack.c.l.b16 %v7969
        %v8248 = vunpack.c.h.b16 %v7969
        %v8249 = vunpack.c.l.b16 %v7970
        %v8250 = vunpack.c.h.b16 %v7970
        %v8251 = vunpack.c.l.b16 %v7971
        %v8252 = vunpack.c.h.b16 %v7971
        %v8253 = vunpack.c.l.b16 %v7972
        %v8254 = vunpack.c.h.b16 %v7972
        %v8255 = vunpack.c.l.b16 %v7973
        %v8256 = vunpack.c.h.b16 %v7973
        %v8257 = vunpack.c.l.b16 %v7974
        %v8258 = vunpack.c.h.b16 %v7974
        %v8259 = vunpack.c.l.b16 %v7975
        %v8260 = vunpack.c.h.b16 %v7975
        %v8261 = vunpack.c.l.b16 %v7976
        %v8262 = vunpack.c.h.b16 %v7976
        %v8263 = vunpack.c.l.b16 %v7977
        %v8264 = vunpack.c.h.b16 %v7977
        %v8265 = vunpack.c.l.b16 %v7978
        %v8266 = vunpack.c.h.b16 %v7978
        %v8267 = vunpack.c.l.b16 %v7979
        %v8268 = vunpack.c.h.b16 %v7979
        %v8269 = vunpack.c.l.b16 %v7980
        %v8270 = vunpack.c.h.b16 %v7980
        %v8271 = vunpack.c.l.b16 %v7981
        %v8272 = vunpack.c.h.b16 %v7981
        %v8273 = vunpack.c.l.b16 %v7982
        %v8274 = vunpack.c.h.b16 %v7982
        %v8275 = vunpack.c.l.b16 %v7983
        %v8276 = vunpack.c.h.b16 %v7983
        %v8277 = vunpack.c.l.b16 %v7984
        %v8278 = vunpack.c.h.b16 %v7984
        %v8279 = vunpack.c.l.b16 %v7985
        %v8280 = vunpack.c.h.b16 %v7985
        %v8281 = vunpack.c.l.b16 %v7986
        %v8282 = vunpack.c.h.b16 %v7986
        %v8283 = vunpack.c.l.b16 %v7987
        %v8284 = vunpack.c.h.b16 %v7987
        %v8285 = vpack.c.b16 %v8097, %v8093
        %v8286 = vpack.c.b16 %v8098, %v8094
        %v8287 = vpack.c.b16 %v8099, %v8095
        %v8288 = vpack.c.b16 %v8100, %v8096
        %v8289 = vpack.c.b16 %v8105, %v8101
        %v8290 = vpack.c.b16 %v8106, %v8102
        %v8291 = vpack.c.b16 %v8107, %v8103
        %v8292 = vpack.c.b16 %v8108, %v8104
        %v8293 = vpack.c.b16 %v8113, %v8109
        %v8294 = vpack.c.b16 %v8114, %v8110
        %v8295 = vpack.c.b16 %v8115, %v8111
        %v8296 = vpack.c.b16 %v8116, %v8112
        %v8297 = vpack.c.b16 %v8121, %v8117
        %v8298 = vpack.c.b16 %v8122, %v8118
        %v8299 = vpack.c.b16 %v8123, %v8119
        %v8300 = vpack.c.b16 %v8124, %v8120
        %v8301 = vpack.c.b16 %v8129, %v8125
        %v8302 = vpack.c.b16 %v8130, %v8126
        %v8303 = vpack.c.b16 %v8131, %v8127
        %v8304 = vpack.c.b16 %v8132, %v8128
        %v8305 = vpack.c.b16 %v8137, %v8133
        %v8306 = vpack.c.b16 %v8138, %v8134
        %v8307 = vpack.c.b16 %v8139, %v8135
        %v8308 = vpack.c.b16 %v8140, %v8136
        %v8309 = vpack.c.b16 %v8145, %v8141
        %v8310 = vpack.c.b16 %v8146, %v8142
        %v8311 = vpack.c.b16 %v8147, %v8143
        %v8312 = vpack.c.b16 %v8148, %v8144
        %v8313 = vpack.c.b16 %v8153, %v8149
        %v8314 = vpack.c.b16 %v8154, %v8150
        %v8315 = vpack.c.b16 %v8155, %v8151
        %v8316 = vpack.c.b16 %v8156, %v8152
        %v8317 = vpack.c.b16 %v8161, %v8157
        %v8318 = vpack.c.b16 %v8162, %v8158
        %v8319 = vpack.c.b16 %v8163, %v8159
        %v8320 = vpack.c.b16 %v8164, %v8160
        %v8321 = vpack.c.b16 %v8169, %v8165
        %v8322 = vpack.c.b16 %v8170, %v8166
        %v8323 = vpack.c.b16 %v8171, %v8167
        %v8324 = vpack.c.b16 %v8172, %v8168
        %v8325 = vpack.c.b16 %v8177, %v8173
        %v8326 = vpack.c.b16 %v8178, %v8174
        %v8327 = vpack.c.b16 %v8179, %v8175
        %v8328 = vpack.c.b16 %v8180, %v8176
        %v8329 = vpack.c.b16 %v8185, %v8181
        %v8330 = vpack.c.b16 %v8186, %v8182
        %v8331 = vpack.c.b16 %v8187, %v8183
        %v8332 = vpack.c.b16 %v8188, %v8184
        %v8333 = vpack.c.b16 %v8193, %v8189
        %v8334 = vpack.c.b16 %v8194, %v8190
        %v8335 = vpack.c.b16 %v8195, %v8191
        %v8336 = vpack.c.b16 %v8196, %v8192
        %v8337 = vpack.c.b16 %v8201, %v8197
        %v8338 = vpack.c.b16 %v8202, %v8198
        %v8339 = vpack.c.b16 %v8203, %v8199
        %v8340 = vpack.c.b16 %v8204, %v8200
        %v8341 = vpack.c.b16 %v8209, %v8205
        %v8342 = vpack.c.b16 %v8210, %v8206
        %v8343 = vpack.c.b16 %v8211, %v8207
        %v8344 = vpack.c.b16 %v8212, %v8208
        %v8345 = vpack.c.b16 %v8217, %v8213
        %v8346 = vpack.c.b16 %v8218, %v8214
        %v8347 = vpack.c.b16 %v8219, %v8215
        %v8348 = vpack.c.b16 %v8220, %v8216
        %v8349 = vpack.c.b16 %v8225, %v8221
        %v8350 = vpack.c.b16 %v8226, %v8222
        %v8351 = vpack.c.b16 %v8227, %v8223
        %v8352 = vpack.c.b16 %v8228, %v8224
        %v8353 = vpack.c.b16 %v8233, %v8229
        %v8354 = vpack.c.b16 %v8234, %v8230
        %v8355 = vpack.c.b16 %v8235, %v8231
        %v8356 = vpack.c.b16 %v8236, %v8232
        %v8357 = vpack.c.b16 %v8241, %v8237
        %v8358 = vpack.c.b16 %v8242, %v8238
        %v8359 = vpack.c.b16 %v8243, %v8239
        %v8360 = vpack.c.b16 %v8244, %v8240
        %v8361 = vpack.c.b16 %v8249, %v8245
        %v8362 = vpack.c.b16 %v8250, %v8246
        %v8363 = vpack.c.b16 %v8251, %v8247
        %v8364 = vpack.c.b16 %v8252, %v8248
        %v8365 = vpack.c.b16 %v8257, %v8253
        %v8366 = vpack.c.b16 %v8258, %v8254
        %v8367 = vpack.c.b16 %v8259, %v8255
        %v8368 = vpack.c.b16 %v8260, %v8256
        %v8369 = vpack.c.b16 %v8265, %v8261
        %v8370 = vpack.c.b16 %v8266, %v8262
        %v8371 = vpack.c.b16 %v8267, %v8263
        %v8372 = vpack.c.b16 %v8268, %v8264
        %v8373 = vpack.c.b16 %v8273, %v8269
        %v8374 = vpack.c.b16 %v8274, %v8270
        %v8375 = vpack.c.b16 %v8275, %v8271
        %v8376 = vpack.c.b16 %v8276, %v8272
        %v8377 = vpack.c.b16 %v8281, %v8277
        %v8378 = vpack.c.b16 %v8282, %v8278
        %v8379 = vpack.c.b16 %v8283, %v8279
        %v8380 = vpack.c.b16 %v8284, %v8280
        %8477 = vmatprep.subr.bf16.mxu0 %v8286
        %8478 = vmatpush1.bf16.msra.mxu0 %v8285
        %8479 = vmatprep.subr.bf16.mxu0 %v8290
        %8480 = vmatpush1.bf16.msra.mxu0 %v8289
        %8481 = vmatprep.subr.bf16.mxu0 %v8294
        %8482 = vmatpush1.bf16.msra.mxu0 %v8293
        %8483 = vmatprep.subr.bf16.mxu0 %v8298
        %8484 = vmatpush1.bf16.msra.mxu0 %v8297
        %8485 = vmatprep.subr.bf16.mxu0 %v8302
        %8486 = vmatpush1.bf16.msra.mxu0 %v8301
        %8487 = vmatprep.subr.bf16.mxu0 %v8306
        %8488 = vmatpush1.bf16.msra.mxu0 %v8305
        %8489 = vmatprep.subr.bf16.mxu0 %v8310
        %8490 = vmatpush1.bf16.msra.mxu0 %v8309
        %8491 = vmatprep.subr.bf16.mxu0 %v8314
        %8492 = vmatpush1.bf16.msra.mxu0 %v8313
        %8493 = vmatprep.subr.bf16.mxu0 %v8318
        %8494 = vmatpush1.bf16.msra.mxu0 %v8317
        %8495 = vmatprep.subr.bf16.mxu0 %v8322
        %8496 = vmatpush1.bf16.msra.mxu0 %v8321
        %8497 = vmatprep.subr.bf16.mxu0 %v8326
        %8498 = vmatpush1.bf16.msra.mxu0 %v8325
        %8499 = vmatprep.subr.bf16.mxu0 %v8330
        %8500 = vmatpush1.bf16.msra.mxu0 %v8329
        %8501 = vmatprep.subr.bf16.mxu0 %v8334
        %8502 = vmatpush1.bf16.msra.mxu0 %v8333
        %8503 = vmatprep.subr.bf16.mxu0 %v8338
        %8504 = vmatpush1.bf16.msra.mxu0 %v8337
        %8505 = vmatprep.subr.bf16.mxu0 %v8342
        %8506 = vmatpush1.bf16.msra.mxu0 %v8341
        %8507 = vmatprep.subr.bf16.mxu0 %v8346
        %8508 = vmatpush1.bf16.msra.mxu0 %v8345
        %8509 = vmatprep.mubr.bf16.mxu0 %v7992
        %8510 = vmatmul.mubr.bf16.gmra.mrb[0].mxu0 %v7991
        %v8511 = vpop.f32.mrb[0].mxu0
        %v8512 = vadd.f32 0.0, %v8511
        %v8513 = vpop.f32.mrb[0].mxu0
        %v8514 = vadd.f32 0.0, %v8513
        %v8515 = vpop.f32.mrb[0].mxu0
        %v8516 = vpop.f32.mrb[0].mxu0
        %8517 = vdwg.mxu0
        %8518 = vmatprep.subr.bf16.mxu0 %v8350
        %8519 = vmatpush1.bf16.msra.mxu0 %v8349
        %8520 = vmatprep.subr.bf16.mxu0 %v8354
        %8521 = vmatpush1.bf16.msra.mxu0 %v8353
        %8522 = vmatprep.subr.bf16.mxu0 %v8358
        %8523 = vmatpush1.bf16.msra.mxu0 %v8357
        %8524 = vmatprep.subr.bf16.mxu0 %v8362
        %8525 = vmatpush1.bf16.msra.mxu0 %v8361
        %8526 = vmatprep.subr.bf16.mxu0 %v8366
        %8527 = vmatpush1.bf16.msra.mxu0 %v8365
        %8528 = vmatprep.subr.bf16.mxu0 %v8370
        %8529 = vmatpush1.bf16.msra.mxu0 %v8369
        %8530 = vmatprep.subr.bf16.mxu0 %v8374
        %8531 = vmatpush1.bf16.msra.mxu0 %v8373
        %8532 = vmatprep.subr.bf16.mxu0 %v8378
        %8533 = vmatpush1.bf16.msra.mxu0 %v8377
        %8534 = vmatprep.subr.bf16.mxu0 0
        %8535 = vmatpush1.bf16.msra.mxu0 0
        %8536 = vmatprep.subr.bf16.mxu0 0
        %8537 = vmatpush1.bf16.msra.mxu0 0
        %8538 = vmatprep.subr.bf16.mxu0 0
        %8539 = vmatpush1.bf16.msra.mxu0 0
        %8540 = vmatprep.subr.bf16.mxu0 0
        %8541 = vmatpush1.bf16.msra.mxu0 0
        %8542 = vmatprep.subr.bf16.mxu0 0
        %8543 = vmatpush1.bf16.msra.mxu0 0
        %8544 = vmatprep.subr.bf16.mxu0 0
        %8545 = vmatpush1.bf16.msra.mxu0 0
        %8546 = vmatprep.subr.bf16.mxu0 0
        %8547 = vmatpush1.bf16.msra.mxu0 0
        %8548 = vmatprep.subr.bf16.mxu0 0
        %8549 = vmatpush1.bf16.msra.mxu0 0
        %8550 = vmatprep.mubr.bf16.mxu0 0
        %8551 = vmatmul.mubr.bf16.gmra.mrb[0].mxu0 %v7993
        %v8552 = vpop.f32.mrb[0].mxu0
        %v8553 = vadd.f32 %v8512, %v8552
        %v8554 = vpop.f32.mrb[0].mxu0
        %v8555 = vadd.f32 %v8514, %v8554
        %v8556 = vpop.f32.mrb[0].mxu0
        %v8557 = vpop.f32.mrb[0].mxu0
        %8558 = vdwg.mxu0
        %8559 = vmatprep.subr.bf16.mxu0 %v8288
        %8560 = vmatpush1.bf16.msra.mxu0 %v8287
        %8561 = vmatprep.subr.bf16.mxu0 %v8292
        %8562 = vmatpush1.bf16.msra.mxu0 %v8291
        %8563 = vmatprep.subr.bf16.mxu0 %v8296
        %8564 = vmatpush1.bf16.msra.mxu0 %v8295
        %8565 = vmatprep.subr.bf16.mxu0 %v8300
        %8566 = vmatpush1.bf16.msra.mxu0 %v8299
        %8567 = vmatprep.subr.bf16.mxu0 %v8304
        %8568 = vmatpush1.bf16.msra.mxu0 %v8303
        %8569 = vmatprep.subr.bf16.mxu0 %v8308
        %8570 = vmatpush1.bf16.msra.mxu0 %v8307
        %8571 = vmatprep.subr.bf16.mxu0 %v8312
        %8572 = vmatpush1.bf16.msra.mxu0 %v8311
        %8573 = vmatprep.subr.bf16.mxu0 %v8316
        %8574 = vmatpush1.bf16.msra.mxu0 %v8315
        %8575 = vmatprep.subr.bf16.mxu0 %v8320
        %8576 = vmatpush1.bf16.msra.mxu0 %v8319
        %8577 = vmatprep.subr.bf16.mxu0 %v8324
        %8578 = vmatpush1.bf16.msra.mxu0 %v8323
        %8579 = vmatprep.subr.bf16.mxu0 %v8328
        %8580 = vmatpush1.bf16.msra.mxu0 %v8327
        %8581 = vmatprep.subr.bf16.mxu0 %v8332
        %8582 = vmatpush1.bf16.msra.mxu0 %v8331
        %8583 = vmatprep.subr.bf16.mxu0 %v8336
        %8584 = vmatpush1.bf16.msra.mxu0 %v8335
        %8585 = vmatprep.subr.bf16.mxu0 %v8340
        %8586 = vmatpush1.bf16.msra.mxu0 %v8339
        %8587 = vmatprep.subr.bf16.mxu0 %v8344
        %8588 = vmatpush1.bf16.msra.mxu0 %v8343
        %8589 = vmatprep.subr.bf16.mxu0 %v8348
        %8590 = vmatpush1.bf16.msra.mxu0 %v8347
        %8591 = vmatprep.mubr.bf16.mxu0 %v7992
        %8592 = vmatmul.mubr.bf16.gmra.mrb[0].mxu0 %v7991
        %v8593 = vpop.f32.mrb[0].mxu0
        %v8594 = vadd.f32 0.0, %v8593
        %v8595 = vpop.f32.mrb[0].mxu0
        %v8596 = vadd.f32 0.0, %v8595
        %v8597 = vpop.f32.mrb[0].mxu0
        %v8598 = vpop.f32.mrb[0].mxu0
        %8599 = vdwg.mxu0
        %8600 = vmatprep.subr.bf16.mxu0 %v8352
        %8601 = vmatpush1.bf16.msra.mxu0 %v8351
        %8602 = vmatprep.subr.bf16.mxu0 %v8356
        %8603 = vmatpush1.bf16.msra.mxu0 %v8355
        %8604 = vmatprep.subr.bf16.mxu0 %v8360
        %8605 = vmatpush1.bf16.msra.mxu0 %v8359
        %8606 = vmatprep.subr.bf16.mxu0 %v8364
        %8607 = vmatpush1.bf16.msra.mxu0 %v8363
        %8608 = vmatprep.subr.bf16.mxu0 %v8368
        %8609 = vmatpush1.bf16.msra.mxu0 %v8367
        %8610 = vmatprep.subr.bf16.mxu0 %v8372
        %8611 = vmatpush1.bf16.msra.mxu0 %v8371
        %8612 = vmatprep.subr.bf16.mxu0 %v8376
        %8613 = vmatpush1.bf16.msra.mxu0 %v8375
        %8614 = vmatprep.subr.bf16.mxu0 %v8380
        %8615 = vmatpush1.bf16.msra.mxu0 %v8379
        %8616 = vmatprep.subr.bf16.mxu0 0
        %8617 = vmatpush1.bf16.msra.mxu0 0
        %8618 = vmatprep.subr.bf16.mxu0 0
        %8619 = vmatpush1.bf16.msra.mxu0 0
        %8620 = vmatprep.subr.bf16.mxu0 0
        %8621 = vmatpush1.bf16.msra.mxu0 0
        %8622 = vmatprep.subr.bf16.mxu0 0
        %8623 = vmatpush1.bf16.msra.mxu0 0
        %8624 = vmatprep.subr.bf16.mxu0 0
        %8625 = vmatpush1.bf16.msra.mxu0 0
        %8626 = vmatprep.subr.bf16.mxu0 0
        %8627 = vmatpush1.bf16.msra.mxu0 0
        %8628 = vmatprep.subr.bf16.mxu0 0
        %8629 = vmatpush1.bf16.msra.mxu0 0
        %8630 = vmatprep.subr.bf16.mxu0 0
        %8631 = vmatpush1.bf16.msra.mxu0 0
        %8632 = vmatprep.mubr.bf16.mxu0 0
        %8633 = vmatmul.mubr.bf16.gmra.mrb[0].mxu0 %v7993
        %v8634 = vpop.f32.mrb[0].mxu0
        %v8635 = vadd.f32 %v8594, %v8634
        %v8636 = vpop.f32.mrb[0].mxu0
        %v8637 = vadd.f32 %v8596, %v8636
        %v8638 = vpop.f32.mrb[0].mxu0
        %v8639 = vpop.f32.mrb[0].mxu0
        %8640 = vdwg.mxu0
        %v8641 = vadd.f32 %v7803, %v8553
        %v8642 = vadd.f32 %v7805, %v8555
        %v8643 = vadd.f32 %v7885, %v8635
        %v8644 = vadd.f32 %v7887, %v8637
        %s8645 = scalar_lea.vmem [#allocation6], 2304
        %v8646 = vld [vmem:[%s8645] sm:$0xff]
        %v8647 = vld [vmem:[%s8645 + $0x8] sm:$0xff]
        %v8648 = vld [vmem:[%s8645 + $0x10] sm:$0xff]
        %v8649 = vld [vmem:[%s8645 + $0x18] sm:$0xff]
        %v8650 = vld [vmem:[%s8645 + $0x20] sm:$0xff]
        %v8651 = vld [vmem:[%s8645 + $0x28] sm:$0xff]
        %v8652 = vld [vmem:[%s8645 + $0x30] sm:$0xff]
        %v8653 = vld [vmem:[%s8645 + $0x38] sm:$0xff]
        %v8654 = vld [vmem:[%s8645 + $0x40] sm:$0xff]
        %v8655 = vld [vmem:[%s8645 + $0x48] sm:$0xff]
        %v8656 = vld [vmem:[%s8645 + $0x50] sm:$0xff]
        %v8657 = vld [vmem:[%s8645 + $0x58] sm:$0xff]
        %v8658 = vld [vmem:[%s8645 + $0x60] sm:$0xff]
        %v8659 = vld [vmem:[%s8645 + $0x68] sm:$0xff]
        %v8660 = vld [vmem:[%s8645 + $0x70] sm:$0xff]
        %v8661 = vld [vmem:[%s8645 + $0x78] sm:$0xff]
        %v8662 = vld [vmem:[%s8645 + $0x80] sm:$0xff]
        %v8663 = vld [vmem:[%s8645 + $0x88] sm:$0xff]
        %v8664 = vld [vmem:[%s8645 + $0x90] sm:$0xff]
        %v8665 = vld [vmem:[%s8645 + $0x98] sm:$0xff]
        %v8666 = vld [vmem:[%s8645 + $0xa0] sm:$0xff]
        %v8667 = vld [vmem:[%s8645 + $0xa8] sm:$0xff]
        %v8668 = vld [vmem:[%s8645 + $0xb0] sm:$0xff]
        %v8669 = vld [vmem:[%s8645 + $0xb8] sm:$0xff]
        %v8670 = vld [vmem:[%s8645 + $0xc0] sm:$0xff]
        %v8671 = vld [vmem:[%s8645 + $0xc8] sm:$0xff]
        %v8672 = vld [vmem:[%s8645 + $0xd0] sm:$0xff]
        %v8673 = vld [vmem:[%s8645 + $0xd8] sm:$0xff]
        %v8674 = vld [vmem:[%s8645 + $0xe0] sm:$0xff]
        %v8675 = vld [vmem:[%s8645 + $0xe8] sm:$0xff]
        %v8676 = vld [vmem:[%s8645 + $0xf0] sm:$0xff]
        %v8677 = vld [vmem:[%s8645 + $0xf8] sm:$0xff]
        %v8678 = vld [vmem:[%s8645 + $0x100] sm:$0xff]
        %v8679 = vld [vmem:[%s8645 + $0x108] sm:$0xff]
        %v8680 = vld [vmem:[%s8645 + $0x110] sm:$0xff]
        %v8681 = vld [vmem:[%s8645 + $0x118] sm:$0xff]
        %v8682 = vld [vmem:[%s8645 + $0x120] sm:$0xff]
        %v8683 = vld [vmem:[%s8645 + $0x128] sm:$0xff]
        %v8684 = vld [vmem:[%s8645 + $0x130] sm:$0xff]
        %v8685 = vld [vmem:[%s8645 + $0x138] sm:$0xff]
        %v8686 = vld [vmem:[%s8645 + $0x140] sm:$0xff]
        %v8687 = vld [vmem:[%s8645 + $0x148] sm:$0xff]
        %v8688 = vld [vmem:[%s8645 + $0x150] sm:$0xff]
        %v8689 = vld [vmem:[%s8645 + $0x158] sm:$0xff]
        %v8690 = vld [vmem:[%s8645 + $0x160] sm:$0xff]
        %v8691 = vld [vmem:[%s8645 + $0x168] sm:$0xff]
        %v8692 = vld [vmem:[%s8645 + $0x170] sm:$0xff]
        %v8693 = vld [vmem:[%s8645 + $0x178] sm:$0xff]
        %v8694 = vld [vmem:[%s8645 + $0x180] sm:$0xff]
        %v8695 = vld [vmem:[%s8645 + $0x188] sm:$0xff]
        %v8696 = vld [vmem:[%s8645 + $0x190] sm:$0xff]
        %v8697 = vld [vmem:[%s8645 + $0x198] sm:$0xff]
        %v8698 = vld [vmem:[%s8645 + $0x1a0] sm:$0xff]
        %v8699 = vld [vmem:[%s8645 + $0x1a8] sm:$0xff]
        %v8700 = vld [vmem:[%s8645 + $0x1b0] sm:$0xff]
        %v8701 = vld [vmem:[%s8645 + $0x1b8] sm:$0xff]
        %v8702 = vld [vmem:[%s8645 + $0x1c0] sm:$0xff]
        %v8703 = vld [vmem:[%s8645 + $0x1c8] sm:$0xff]
        %v8704 = vld [vmem:[%s8645 + $0x1d0] sm:$0xff]
        %v8705 = vld [vmem:[%s8645 + $0x1d8] sm:$0xff]
        %v8706 = vld [vmem:[%s8645 + $0x1e0] sm:$0xff]
        %v8707 = vld [vmem:[%s8645 + $0x1e8] sm:$0xff]
        %v8708 = vld [vmem:[%s8645 + $0x1f0] sm:$0xff]
        %v8709 = vld [vmem:[%s8645 + $0x1f8] sm:$0xff]
        %v8710 = vld [vmem:[%s8645 + $0x200] sm:$0xff]
        %v8711 = vld [vmem:[%s8645 + $0x208] sm:$0xff]
        %v8712 = vld [vmem:[%s8645 + $0x210] sm:$0xff]
        %v8713 = vld [vmem:[%s8645 + $0x218] sm:$0xff]
        %v8714 = vld [vmem:[%s8645 + $0x220] sm:$0xff]
        %v8715 = vld [vmem:[%s8645 + $0x228] sm:$0xff]
        %v8716 = vld [vmem:[%s8645 + $0x230] sm:$0xff]
        %v8717 = vld [vmem:[%s8645 + $0x238] sm:$0xff]
        %v8718 = vld [vmem:[%s8645 + $0x240] sm:$0xff]
        %v8719 = vld [vmem:[%s8645 + $0x248] sm:$0xff]
        %v8720 = vld [vmem:[%s8645 + $0x250] sm:$0xff]
        %v8721 = vld [vmem:[%s8645 + $0x258] sm:$0xff]
        %v8722 = vld [vmem:[%s8645 + $0x260] sm:$0xff]
        %v8723 = vld [vmem:[%s8645 + $0x268] sm:$0xff]
        %v8724 = vld [vmem:[%s8645 + $0x270] sm:$0xff]
        %v8725 = vld [vmem:[%s8645 + $0x278] sm:$0xff]
        %v8726 = vld [vmem:[%s8645 + $0x280] sm:$0xff]
        %v8727 = vld [vmem:[%s8645 + $0x288] sm:$0xff]
        %v8728 = vld [vmem:[%s8645 + $0x290] sm:$0xff]
        %v8729 = vld [vmem:[%s8645 + $0x298] sm:$0xff]
        %v8730 = vld [vmem:[%s8645 + $0x2a0] sm:$0xff]
        %v8731 = vld [vmem:[%s8645 + $0x2a8] sm:$0xff]
        %v8732 = vld [vmem:[%s8645 + $0x2b0] sm:$0xff]
        %v8733 = vld [vmem:[%s8645 + $0x2b8] sm:$0xff]
        %v8734 = vld [vmem:[%s8645 + $0x2c0] sm:$0xff]
        %v8735 = vld [vmem:[%s8645 + $0x2c8] sm:$0xff]
        %v8736 = vld [vmem:[%s8645 + $0x2d0] sm:$0xff]
        %v8737 = vld [vmem:[%s8645 + $0x2d8] sm:$0xff]
        %v8738 = vld [vmem:[%s8645 + $0x2e0] sm:$0xff]
        %v8739 = vld [vmem:[%s8645 + $0x2e8] sm:$0xff]
        %v8740 = vld [vmem:[%s8645 + $0x2f0] sm:$0xff]
        %v8741 = vld [vmem:[%s8645 + $0x2f8] sm:$0xff]
        %v8742 = vrot.slane %v6580, 1
        %v8743 = vrot.slane %v6582, 2
        %v8744 = vor.u32 %v8742, %v8743
        %v8745 = vrot.slane %v6587, 1
        %v8746 = vrot.slane %v6589, 2
        %v8747 = vor.u32 %v8745, %v8746
        %v8748 = vrot.slane %v6594, 1
        %v8749 = vrot.slane %v6596, 2
        %v8750 = vor.u32 %v8748, %v8749
        %v8850 = vunpack.c.l.b16 %v8646
        %v8851 = vunpack.c.h.b16 %v8646
        %v8852 = vunpack.c.l.b16 %v8647
        %v8853 = vunpack.c.h.b16 %v8647
        %v8854 = vunpack.c.l.b16 %v8648
        %v8855 = vunpack.c.h.b16 %v8648
        %v8856 = vunpack.c.l.b16 %v8649
        %v8857 = vunpack.c.h.b16 %v8649
        %v8858 = vunpack.c.l.b16 %v8650
        %v8859 = vunpack.c.h.b16 %v8650
        %v8860 = vunpack.c.l.b16 %v8651
        %v8861 = vunpack.c.h.b16 %v8651
        %v8862 = vunpack.c.l.b16 %v8652
        %v8863 = vunpack.c.h.b16 %v8652
        %v8864 = vunpack.c.l.b16 %v8653
        %v8865 = vunpack.c.h.b16 %v8653
        %v8866 = vunpack.c.l.b16 %v8654
        %v8867 = vunpack.c.h.b16 %v8654
        %v8868 = vunpack.c.l.b16 %v8655
        %v8869 = vunpack.c.h.b16 %v8655
        %v8870 = vunpack.c.l.b16 %v8656
        %v8871 = vunpack.c.h.b16 %v8656
        %v8872 = vunpack.c.l.b16 %v8657
        %v8873 = vunpack.c.h.b16 %v8657
        %v8874 = vunpack.c.l.b16 %v8658
        %v8875 = vunpack.c.h.b16 %v8658
        %v8876 = vunpack.c.l.b16 %v8659
        %v8877 = vunpack.c.h.b16 %v8659
        %v8878 = vunpack.c.l.b16 %v8660
        %v8879 = vunpack.c.h.b16 %v8660
        %v8880 = vunpack.c.l.b16 %v8661
        %v8881 = vunpack.c.h.b16 %v8661
        %v8882 = vunpack.c.l.b16 %v8662
        %v8883 = vunpack.c.h.b16 %v8662
        %v8884 = vunpack.c.l.b16 %v8663
        %v8885 = vunpack.c.h.b16 %v8663
        %v8886 = vunpack.c.l.b16 %v8664
        %v8887 = vunpack.c.h.b16 %v8664
        %v8888 = vunpack.c.l.b16 %v8665
        %v8889 = vunpack.c.h.b16 %v8665
        %v8890 = vunpack.c.l.b16 %v8666
        %v8891 = vunpack.c.h.b16 %v8666
        %v8892 = vunpack.c.l.b16 %v8667
        %v8893 = vunpack.c.h.b16 %v8667
        %v8894 = vunpack.c.l.b16 %v8668
        %v8895 = vunpack.c.h.b16 %v8668
        %v8896 = vunpack.c.l.b16 %v8669
        %v8897 = vunpack.c.h.b16 %v8669
        %v8898 = vunpack.c.l.b16 %v8670
        %v8899 = vunpack.c.h.b16 %v8670
        %v8900 = vunpack.c.l.b16 %v8671
        %v8901 = vunpack.c.h.b16 %v8671
        %v8902 = vunpack.c.l.b16 %v8672
        %v8903 = vunpack.c.h.b16 %v8672
        %v8904 = vunpack.c.l.b16 %v8673
        %v8905 = vunpack.c.h.b16 %v8673
        %v8906 = vunpack.c.l.b16 %v8674
        %v8907 = vunpack.c.h.b16 %v8674
        %v8908 = vunpack.c.l.b16 %v8675
        %v8909 = vunpack.c.h.b16 %v8675
        %v8910 = vunpack.c.l.b16 %v8676
        %v8911 = vunpack.c.h.b16 %v8676
        %v8912 = vunpack.c.l.b16 %v8677
        %v8913 = vunpack.c.h.b16 %v8677
        %v8914 = vunpack.c.l.b16 %v8678
        %v8915 = vunpack.c.h.b16 %v8678
        %v8916 = vunpack.c.l.b16 %v8679
        %v8917 = vunpack.c.h.b16 %v8679
        %v8918 = vunpack.c.l.b16 %v8680
        %v8919 = vunpack.c.h.b16 %v8680
        %v8920 = vunpack.c.l.b16 %v8681
        %v8921 = vunpack.c.h.b16 %v8681
        %v8922 = vunpack.c.l.b16 %v8682
        %v8923 = vunpack.c.h.b16 %v8682
        %v8924 = vunpack.c.l.b16 %v8683
        %v8925 = vunpack.c.h.b16 %v8683
        %v8926 = vunpack.c.l.b16 %v8684
        %v8927 = vunpack.c.h.b16 %v8684
        %v8928 = vunpack.c.l.b16 %v8685
        %v8929 = vunpack.c.h.b16 %v8685
        %v8930 = vunpack.c.l.b16 %v8686
        %v8931 = vunpack.c.h.b16 %v8686
        %v8932 = vunpack.c.l.b16 %v8687
        %v8933 = vunpack.c.h.b16 %v8687
        %v8934 = vunpack.c.l.b16 %v8688
        %v8935 = vunpack.c.h.b16 %v8688
        %v8936 = vunpack.c.l.b16 %v8689
        %v8937 = vunpack.c.h.b16 %v8689
        %v8938 = vunpack.c.l.b16 %v8690
        %v8939 = vunpack.c.h.b16 %v8690
        %v8940 = vunpack.c.l.b16 %v8691
        %v8941 = vunpack.c.h.b16 %v8691
        %v8942 = vunpack.c.l.b16 %v8692
        %v8943 = vunpack.c.h.b16 %v8692
        %v8944 = vunpack.c.l.b16 %v8693
        %v8945 = vunpack.c.h.b16 %v8693
        %v8946 = vunpack.c.l.b16 %v8694
        %v8947 = vunpack.c.h.b16 %v8694
        %v8948 = vunpack.c.l.b16 %v8695
        %v8949 = vunpack.c.h.b16 %v8695
        %v8950 = vunpack.c.l.b16 %v8696
        %v8951 = vunpack.c.h.b16 %v8696
        %v8952 = vunpack.c.l.b16 %v8697
        %v8953 = vunpack.c.h.b16 %v8697
        %v8954 = vunpack.c.l.b16 %v8698
        %v8955 = vunpack.c.h.b16 %v8698
        %v8956 = vunpack.c.l.b16 %v8699
        %v8957 = vunpack.c.h.b16 %v8699
        %v8958 = vunpack.c.l.b16 %v8700
        %v8959 = vunpack.c.h.b16 %v8700
        %v8960 = vunpack.c.l.b16 %v8701
        %v8961 = vunpack.c.h.b16 %v8701
        %v8962 = vunpack.c.l.b16 %v8702
        %v8963 = vunpack.c.h.b16 %v8702
        %v8964 = vunpack.c.l.b16 %v8703
        %v8965 = vunpack.c.h.b16 %v8703
        %v8966 = vunpack.c.l.b16 %v8704
        %v8967 = vunpack.c.h.b16 %v8704
        %v8968 = vunpack.c.l.b16 %v8705
        %v8969 = vunpack.c.h.b16 %v8705
        %v8970 = vunpack.c.l.b16 %v8706
        %v8971 = vunpack.c.h.b16 %v8706
        %v8972 = vunpack.c.l.b16 %v8707
        %v8973 = vunpack.c.h.b16 %v8707
        %v8974 = vunpack.c.l.b16 %v8708
        %v8975 = vunpack.c.h.b16 %v8708
        %v8976 = vunpack.c.l.b16 %v8709
        %v8977 = vunpack.c.h.b16 %v8709
        %v8978 = vunpack.c.l.b16 %v8710
        %v8979 = vunpack.c.h.b16 %v8710
        %v8980 = vunpack.c.l.b16 %v8711
        %v8981 = vunpack.c.h.b16 %v8711
        %v8982 = vunpack.c.l.b16 %v8712
        %v8983 = vunpack.c.h.b16 %v8712
        %v8984 = vunpack.c.l.b16 %v8713
        %v8985 = vunpack.c.h.b16 %v8713
        %v8986 = vunpack.c.l.b16 %v8714
        %v8987 = vunpack.c.h.b16 %v8714
        %v8988 = vunpack.c.l.b16 %v8715
        %v8989 = vunpack.c.h.b16 %v8715
        %v8990 = vunpack.c.l.b16 %v8716
        %v8991 = vunpack.c.h.b16 %v8716
        %v8992 = vunpack.c.l.b16 %v8717
        %v8993 = vunpack.c.h.b16 %v8717
        %v8994 = vunpack.c.l.b16 %v8718
        %v8995 = vunpack.c.h.b16 %v8718
        %v8996 = vunpack.c.l.b16 %v8719
        %v8997 = vunpack.c.h.b16 %v8719
        %v8998 = vunpack.c.l.b16 %v8720
        %v8999 = vunpack.c.h.b16 %v8720
        %v9000 = vunpack.c.l.b16 %v8721
        %v9001 = vunpack.c.h.b16 %v8721
        %v9002 = vunpack.c.l.b16 %v8722
        %v9003 = vunpack.c.h.b16 %v8722
        %v9004 = vunpack.c.l.b16 %v8723
        %v9005 = vunpack.c.h.b16 %v8723
        %v9006 = vunpack.c.l.b16 %v8724
        %v9007 = vunpack.c.h.b16 %v8724
        %v9008 = vunpack.c.l.b16 %v8725
        %v9009 = vunpack.c.h.b16 %v8725
        %v9010 = vunpack.c.l.b16 %v8726
        %v9011 = vunpack.c.h.b16 %v8726
        %v9012 = vunpack.c.l.b16 %v8727
        %v9013 = vunpack.c.h.b16 %v8727
        %v9014 = vunpack.c.l.b16 %v8728
        %v9015 = vunpack.c.h.b16 %v8728
        %v9016 = vunpack.c.l.b16 %v8729
        %v9017 = vunpack.c.h.b16 %v8729
        %v9018 = vunpack.c.l.b16 %v8730
        %v9019 = vunpack.c.h.b16 %v8730
        %v9020 = vunpack.c.l.b16 %v8731
        %v9021 = vunpack.c.h.b16 %v8731
        %v9022 = vunpack.c.l.b16 %v8732
        %v9023 = vunpack.c.h.b16 %v8732
        %v9024 = vunpack.c.l.b16 %v8733
        %v9025 = vunpack.c.h.b16 %v8733
        %v9026 = vunpack.c.l.b16 %v8734
        %v9027 = vunpack.c.h.b16 %v8734
        %v9028 = vunpack.c.l.b16 %v8735
        %v9029 = vunpack.c.h.b16 %v8735
        %v9030 = vunpack.c.l.b16 %v8736
        %v9031 = vunpack.c.h.b16 %v8736
        %v9032 = vunpack.c.l.b16 %v8737
        %v9033 = vunpack.c.h.b16 %v8737
        %v9034 = vunpack.c.l.b16 %v8738
        %v9035 = vunpack.c.h.b16 %v8738
        %v9036 = vunpack.c.l.b16 %v8739
        %v9037 = vunpack.c.h.b16 %v8739
        %v9038 = vunpack.c.l.b16 %v8740
        %v9039 = vunpack.c.h.b16 %v8740
        %v9040 = vunpack.c.l.b16 %v8741
        %v9041 = vunpack.c.h.b16 %v8741
        %v9042 = vpack.c.b16 %v8854, %v8850
        %v9043 = vpack.c.b16 %v8855, %v8851
        %v9044 = vpack.c.b16 %v8856, %v8852
        %v9045 = vpack.c.b16 %v8857, %v8853
        %v9046 = vpack.c.b16 %v8862, %v8858
        %v9047 = vpack.c.b16 %v8863, %v8859
        %v9048 = vpack.c.b16 %v8864, %v8860
        %v9049 = vpack.c.b16 %v8865, %v8861
        %v9050 = vpack.c.b16 %v8870, %v8866
        %v9051 = vpack.c.b16 %v8871, %v8867
        %v9052 = vpack.c.b16 %v8872, %v8868
        %v9053 = vpack.c.b16 %v8873, %v8869
        %v9054 = vpack.c.b16 %v8878, %v8874
        %v9055 = vpack.c.b16 %v8879, %v8875
        %v9056 = vpack.c.b16 %v8880, %v8876
        %v9057 = vpack.c.b16 %v8881, %v8877
        %v9058 = vpack.c.b16 %v8886, %v8882
        %v9059 = vpack.c.b16 %v8887, %v8883
        %v9060 = vpack.c.b16 %v8888, %v8884
        %v9061 = vpack.c.b16 %v8889, %v8885
        %v9062 = vpack.c.b16 %v8894, %v8890
        %v9063 = vpack.c.b16 %v8895, %v8891
        %v9064 = vpack.c.b16 %v8896, %v8892
        %v9065 = vpack.c.b16 %v8897, %v8893
        %v9066 = vpack.c.b16 %v8902, %v8898
        %v9067 = vpack.c.b16 %v8903, %v8899
        %v9068 = vpack.c.b16 %v8904, %v8900
        %v9069 = vpack.c.b16 %v8905, %v8901
        %v9070 = vpack.c.b16 %v8910, %v8906
        %v9071 = vpack.c.b16 %v8911, %v8907
        %v9072 = vpack.c.b16 %v8912, %v8908
        %v9073 = vpack.c.b16 %v8913, %v8909
        %v9074 = vpack.c.b16 %v8918, %v8914
        %v9075 = vpack.c.b16 %v8919, %v8915
        %v9076 = vpack.c.b16 %v8920, %v8916
        %v9077 = vpack.c.b16 %v8921, %v8917
        %v9078 = vpack.c.b16 %v8926, %v8922
        %v9079 = vpack.c.b16 %v8927, %v8923
        %v9080 = vpack.c.b16 %v8928, %v8924
        %v9081 = vpack.c.b16 %v8929, %v8925
        %v9082 = vpack.c.b16 %v8934, %v8930
        %v9083 = vpack.c.b16 %v8935, %v8931
        %v9084 = vpack.c.b16 %v8936, %v8932
        %v9085 = vpack.c.b16 %v8937, %v8933
        %v9086 = vpack.c.b16 %v8942, %v8938
        %v9087 = vpack.c.b16 %v8943, %v8939
        %v9088 = vpack.c.b16 %v8944, %v8940
        %v9089 = vpack.c.b16 %v8945, %v8941
        %v9090 = vpack.c.b16 %v8950, %v8946
        %v9091 = vpack.c.b16 %v8951, %v8947
        %v9092 = vpack.c.b16 %v8952, %v8948
        %v9093 = vpack.c.b16 %v8953, %v8949
        %v9094 = vpack.c.b16 %v8958, %v8954
        %v9095 = vpack.c.b16 %v8959, %v8955
        %v9096 = vpack.c.b16 %v8960, %v8956
        %v9097 = vpack.c.b16 %v8961, %v8957
        %v9098 = vpack.c.b16 %v8966, %v8962
        %v9099 = vpack.c.b16 %v8967, %v8963
        %v9100 = vpack.c.b16 %v8968, %v8964
        %v9101 = vpack.c.b16 %v8969, %v8965
        %v9102 = vpack.c.b16 %v8974, %v8970
        %v9103 = vpack.c.b16 %v8975, %v8971
        %v9104 = vpack.c.b16 %v8976, %v8972
        %v9105 = vpack.c.b16 %v8977, %v8973
        %v9106 = vpack.c.b16 %v8982, %v8978
        %v9107 = vpack.c.b16 %v8983, %v8979
        %v9108 = vpack.c.b16 %v8984, %v8980
        %v9109 = vpack.c.b16 %v8985, %v8981
        %v9110 = vpack.c.b16 %v8990, %v8986
        %v9111 = vpack.c.b16 %v8991, %v8987
        %v9112 = vpack.c.b16 %v8992, %v8988
        %v9113 = vpack.c.b16 %v8993, %v8989
        %v9114 = vpack.c.b16 %v8998, %v8994
        %v9115 = vpack.c.b16 %v8999, %v8995
        %v9116 = vpack.c.b16 %v9000, %v8996
        %v9117 = vpack.c.b16 %v9001, %v8997
        %v9118 = vpack.c.b16 %v9006, %v9002
        %v9119 = vpack.c.b16 %v9007, %v9003
        %v9120 = vpack.c.b16 %v9008, %v9004
        %v9121 = vpack.c.b16 %v9009, %v9005
        %v9122 = vpack.c.b16 %v9014, %v9010
        %v9123 = vpack.c.b16 %v9015, %v9011
        %v9124 = vpack.c.b16 %v9016, %v9012
        %v9125 = vpack.c.b16 %v9017, %v9013
        %v9126 = vpack.c.b16 %v9022, %v9018
        %v9127 = vpack.c.b16 %v9023, %v9019
        %v9128 = vpack.c.b16 %v9024, %v9020
        %v9129 = vpack.c.b16 %v9025, %v9021
        %v9130 = vpack.c.b16 %v9030, %v9026
        %v9131 = vpack.c.b16 %v9031, %v9027
        %v9132 = vpack.c.b16 %v9032, %v9028
        %v9133 = vpack.c.b16 %v9033, %v9029
        %v9134 = vpack.c.b16 %v9038, %v9034
        %v9135 = vpack.c.b16 %v9039, %v9035
        %v9136 = vpack.c.b16 %v9040, %v9036
        %v9137 = vpack.c.b16 %v9041, %v9037
        %9234 = vmatprep.subr.bf16.mxu0 %v9043
        %9235 = vmatpush1.bf16.msra.mxu0 %v9042
        %9236 = vmatprep.subr.bf16.mxu0 %v9047
        %9237 = vmatpush1.bf16.msra.mxu0 %v9046
        %9238 = vmatprep.subr.bf16.mxu0 %v9051
        %9239 = vmatpush1.bf16.msra.mxu0 %v9050
        %9240 = vmatprep.subr.bf16.mxu0 %v9055
        %9241 = vmatpush1.bf16.msra.mxu0 %v9054
        %9242 = vmatprep.subr.bf16.mxu0 %v9059
        %9243 = vmatpush1.bf16.msra.mxu0 %v9058
        %9244 = vmatprep.subr.bf16.mxu0 %v9063
        %9245 = vmatpush1.bf16.msra.mxu0 %v9062
        %9246 = vmatprep.subr.bf16.mxu0 %v9067
        %9247 = vmatpush1.bf16.msra.mxu0 %v9066
        %9248 = vmatprep.subr.bf16.mxu0 %v9071
        %9249 = vmatpush1.bf16.msra.mxu0 %v9070
        %9250 = vmatprep.subr.bf16.mxu0 %v9075
        %9251 = vmatpush1.bf16.msra.mxu0 %v9074
        %9252 = vmatprep.subr.bf16.mxu0 %v9079
        %9253 = vmatpush1.bf16.msra.mxu0 %v9078
        %9254 = vmatprep.subr.bf16.mxu0 %v9083
        %9255 = vmatpush1.bf16.msra.mxu0 %v9082
        %9256 = vmatprep.subr.bf16.mxu0 %v9087
        %9257 = vmatpush1.bf16.msra.mxu0 %v9086
        %9258 = vmatprep.subr.bf16.mxu0 %v9091
        %9259 = vmatpush1.bf16.msra.mxu0 %v9090
        %9260 = vmatprep.subr.bf16.mxu0 %v9095
        %9261 = vmatpush1.bf16.msra.mxu0 %v9094
        %9262 = vmatprep.subr.bf16.mxu0 %v9099
        %9263 = vmatpush1.bf16.msra.mxu0 %v9098
        %9264 = vmatprep.subr.bf16.mxu0 %v9103
        %9265 = vmatpush1.bf16.msra.mxu0 %v9102
        %9266 = vmatprep.mubr.bf16.mxu0 %v8747
        %9267 = vmatmul.mubr.bf16.gmra.mrb[0].mxu0 %v8744
        %v9268 = vpop.f32.mrb[0].mxu0
        %v9269 = vadd.f32 0.0, %v9268
        %v9270 = vpop.f32.mrb[0].mxu0
        %v9271 = vadd.f32 0.0, %v9270
        %v9272 = vpop.f32.mrb[0].mxu0
        %v9273 = vpop.f32.mrb[0].mxu0
        %9274 = vdwg.mxu0
        %9275 = vmatprep.subr.bf16.mxu0 %v9107
        %9276 = vmatpush1.bf16.msra.mxu0 %v9106
        %9277 = vmatprep.subr.bf16.mxu0 %v9111
        %9278 = vmatpush1.bf16.msra.mxu0 %v9110
        %9279 = vmatprep.subr.bf16.mxu0 %v9115
        %9280 = vmatpush1.bf16.msra.mxu0 %v9114
        %9281 = vmatprep.subr.bf16.mxu0 %v9119
        %9282 = vmatpush1.bf16.msra.mxu0 %v9118
        %9283 = vmatprep.subr.bf16.mxu0 %v9123
        %9284 = vmatpush1.bf16.msra.mxu0 %v9122
        %9285 = vmatprep.subr.bf16.mxu0 %v9127
        %9286 = vmatpush1.bf16.msra.mxu0 %v9126
        %9287 = vmatprep.subr.bf16.mxu0 %v9131
        %9288 = vmatpush1.bf16.msra.mxu0 %v9130
        %9289 = vmatprep.subr.bf16.mxu0 %v9135
        %9290 = vmatpush1.bf16.msra.mxu0 %v9134
        %9291 = vmatprep.subr.bf16.mxu0 0
        %9292 = vmatpush1.bf16.msra.mxu0 0
        %9293 = vmatprep.subr.bf16.mxu0 0
        %9294 = vmatpush1.bf16.msra.mxu0 0
        %9295 = vmatprep.subr.bf16.mxu0 0
        %9296 = vmatpush1.bf16.msra.mxu0 0
        %9297 = vmatprep.subr.bf16.mxu0 0
        %9298 = vmatpush1.bf16.msra.mxu0 0
        %9299 = vmatprep.subr.bf16.mxu0 0
        %9300 = vmatpush1.bf16.msra.mxu0 0
        %9301 = vmatprep.subr.bf16.mxu0 0
        %9302 = vmatpush1.bf16.msra.mxu0 0
        %9303 = vmatprep.subr.bf16.mxu0 0
        %9304 = vmatpush1.bf16.msra.mxu0 0
        %9305 = vmatprep.subr.bf16.mxu0 0
        %9306 = vmatpush1.bf16.msra.mxu0 0
        %9307 = vmatprep.mubr.bf16.mxu0 0
        %9308 = vmatmul.mubr.bf16.gmra.mrb[0].mxu0 %v8750
        %v9309 = vpop.f32.mrb[0].mxu0
        %v9310 = vadd.f32 %v9269, %v9309
        %v9311 = vpop.f32.mrb[0].mxu0
        %v9312 = vadd.f32 %v9271, %v9311
        %v9313 = vpop.f32.mrb[0].mxu0
        %v9314 = vpop.f32.mrb[0].mxu0
        %9315 = vdwg.mxu0
        %9316 = vmatprep.subr.bf16.mxu0 %v9045
        %9317 = vmatpush1.bf16.msra.mxu0 %v9044
        %9318 = vmatprep.subr.bf16.mxu0 %v9049
        %9319 = vmatpush1.bf16.msra.mxu0 %v9048
        %9320 = vmatprep.subr.bf16.mxu0 %v9053
        %9321 = vmatpush1.bf16.msra.mxu0 %v9052
        %9322 = vmatprep.subr.bf16.mxu0 %v9057
        %9323 = vmatpush1.bf16.msra.mxu0 %v9056
        %9324 = vmatprep.subr.bf16.mxu0 %v9061
        %9325 = vmatpush1.bf16.msra.mxu0 %v9060
        %9326 = vmatprep.subr.bf16.mxu0 %v9065
        %9327 = vmatpush1.bf16.msra.mxu0 %v9064
        %9328 = vmatprep.subr.bf16.mxu0 %v9069
        %9329 = vmatpush1.bf16.msra.mxu0 %v9068
        %9330 = vmatprep.subr.bf16.mxu0 %v9073
        %9331 = vmatpush1.bf16.msra.mxu0 %v9072
        %9332 = vmatprep.subr.bf16.mxu0 %v9077
        %9333 = vmatpush1.bf16.msra.mxu0 %v9076
        %9334 = vmatprep.subr.bf16.mxu0 %v9081
        %9335 = vmatpush1.bf16.msra.mxu0 %v9080
        %9336 = vmatprep.subr.bf16.mxu0 %v9085
        %9337 = vmatpush1.bf16.msra.mxu0 %v9084
        %9338 = vmatprep.subr.bf16.mxu0 %v9089
        %9339 = vmatpush1.bf16.msra.mxu0 %v9088
        %9340 = vmatprep.subr.bf16.mxu0 %v9093
        %9341 = vmatpush1.bf16.msra.mxu0 %v9092
        %9342 = vmatprep.subr.bf16.mxu0 %v9097
        %9343 = vmatpush1.bf16.msra.mxu0 %v9096
        %9344 = vmatprep.subr.bf16.mxu0 %v9101
        %9345 = vmatpush1.bf16.msra.mxu0 %v9100
        %9346 = vmatprep.subr.bf16.mxu0 %v9105
        %9347 = vmatpush1.bf16.msra.mxu0 %v9104
        %9348 = vmatprep.mubr.bf16.mxu0 %v8747
        %9349 = vmatmul.mubr.bf16.gmra.mrb[0].mxu0 %v8744
        %v9350 = vpop.f32.mrb[0].mxu0
        %v9351 = vadd.f32 0.0, %v9350
        %v9352 = vpop.f32.mrb[0].mxu0
        %v9353 = vadd.f32 0.0, %v9352
        %v9354 = vpop.f32.mrb[0].mxu0
        %v9355 = vpop.f32.mrb[0].mxu0
        %9356 = vdwg.mxu0
        %9357 = vmatprep.subr.bf16.mxu0 %v9109
        %9358 = vmatpush1.bf16.msra.mxu0 %v9108
        %9359 = vmatprep.subr.bf16.mxu0 %v9113
        %9360 = vmatpush1.bf16.msra.mxu0 %v9112
        %9361 = vmatprep.subr.bf16.mxu0 %v9117
        %9362 = vmatpush1.bf16.msra.mxu0 %v9116
        %9363 = vmatprep.subr.bf16.mxu0 %v9121
        %9364 = vmatpush1.bf16.msra.mxu0 %v9120
        %9365 = vmatprep.subr.bf16.mxu0 %v9125
        %9366 = vmatpush1.bf16.msra.mxu0 %v9124
        %9367 = vmatprep.subr.bf16.mxu0 %v9129
        %9368 = vmatpush1.bf16.msra.mxu0 %v9128
        %9369 = vmatprep.subr.bf16.mxu0 %v9133
        %9370 = vmatpush1.bf16.msra.mxu0 %v9132
        %9371 = vmatprep.subr.bf16.mxu0 %v9137
        %9372 = vmatpush1.bf16.msra.mxu0 %v9136
        %9373 = vmatprep.subr.bf16.mxu0 0
        %9374 = vmatpush1.bf16.msra.mxu0 0
        %9375 = vmatprep.subr.bf16.mxu0 0
        %9376 = vmatpush1.bf16.msra.mxu0 0
        %9377 = vmatprep.subr.bf16.mxu0 0
        %9378 = vmatpush1.bf16.msra.mxu0 0
        %9379 = vmatprep.subr.bf16.mxu0 0
        %9380 = vmatpush1.bf16.msra.mxu0 0
        %9381 = vmatprep.subr.bf16.mxu0 0
        %9382 = vmatpush1.bf16.msra.mxu0 0
        %9383 = vmatprep.subr.bf16.mxu0 0
        %9384 = vmatpush1.bf16.msra.mxu0 0
        %9385 = vmatprep.subr.bf16.mxu0 0
        %9386 = vmatpush1.bf16.msra.mxu0 0
        %9387 = vmatprep.subr.bf16.mxu0 0
        %9388 = vmatpush1.bf16.msra.mxu0 0
        %9389 = vmatprep.mubr.bf16.mxu0 0
        %9390 = vmatmul.mubr.bf16.gmra.mrb[0].mxu0 %v8750
        %v9391 = vpop.f32.mrb[0].mxu0
        %v9392 = vadd.f32 %v9351, %v9391
        %v9393 = vpop.f32.mrb[0].mxu0
        %v9394 = vadd.f32 %v9353, %v9393
        %v9395 = vpop.f32.mrb[0].mxu0
        %v9396 = vpop.f32.mrb[0].mxu0
        %9397 = vdwg.mxu0
        %v9398 = vadd.f32 %v8641, %v9310
        %v9399 = vadd.f32 %v8642, %v9312
        %v9400 = vadd.f32 %v8643, %v9392
        %v9401 = vadd.f32 %v8644, %v9394
        %s9402 = scalar_lea.vmem [#allocation6], 3072
        %v9403 = vld [vmem:[%s9402] sm:$0xff]
        %v9404 = vld [vmem:[%s9402 + $0x8] sm:$0xff]
        %v9405 = vld [vmem:[%s9402 + $0x10] sm:$0xff]
        %v9406 = vld [vmem:[%s9402 + $0x18] sm:$0xff]
        %v9407 = vld [vmem:[%s9402 + $0x20] sm:$0xff]
        %v9408 = vld [vmem:[%s9402 + $0x28] sm:$0xff]
        %v9409 = vld [vmem:[%s9402 + $0x30] sm:$0xff]
        %v9410 = vld [vmem:[%s9402 + $0x38] sm:$0xff]
        %v9411 = vld [vmem:[%s9402 + $0x40] sm:$0xff]
        %v9412 = vld [vmem:[%s9402 + $0x48] sm:$0xff]
        %v9413 = vld [vmem:[%s9402 + $0x50] sm:$0xff]
        %v9414 = vld [vmem:[%s9402 + $0x58] sm:$0xff]
        %v9415 = vld [vmem:[%s9402 + $0x60] sm:$0xff]
        %v9416 = vld [vmem:[%s9402 + $0x68] sm:$0xff]
        %v9417 = vld [vmem:[%s9402 + $0x70] sm:$0xff]
        %v9418 = vld [vmem:[%s9402 + $0x78] sm:$0xff]
        %v9419 = vld [vmem:[%s9402 + $0x80] sm:$0xff]
        %v9420 = vld [vmem:[%s9402 + $0x88] sm:$0xff]
        %v9421 = vld [vmem:[%s9402 + $0x90] sm:$0xff]
        %v9422 = vld [vmem:[%s9402 + $0x98] sm:$0xff]
        %v9423 = vld [vmem:[%s9402 + $0xa0] sm:$0xff]
        %v9424 = vld [vmem:[%s9402 + $0xa8] sm:$0xff]
        %v9425 = vld [vmem:[%s9402 + $0xb0] sm:$0xff]
        %v9426 = vld [vmem:[%s9402 + $0xb8] sm:$0xff]
        %v9427 = vld [vmem:[%s9402 + $0xc0] sm:$0xff]
        %v9428 = vld [vmem:[%s9402 + $0xc8] sm:$0xff]
        %v9429 = vld [vmem:[%s9402 + $0xd0] sm:$0xff]
        %v9430 = vld [vmem:[%s9402 + $0xd8] sm:$0xff]
        %v9431 = vld [vmem:[%s9402 + $0xe0] sm:$0xff]
        %v9432 = vld [vmem:[%s9402 + $0xe8] sm:$0xff]
        %v9433 = vld [vmem:[%s9402 + $0xf0] sm:$0xff]
        %v9434 = vld [vmem:[%s9402 + $0xf8] sm:$0xff]
        %v9435 = vld [vmem:[%s9402 + $0x100] sm:$0xff]
        %v9436 = vld [vmem:[%s9402 + $0x108] sm:$0xff]
        %v9437 = vld [vmem:[%s9402 + $0x110] sm:$0xff]
        %v9438 = vld [vmem:[%s9402 + $0x118] sm:$0xff]
        %v9439 = vld [vmem:[%s9402 + $0x120] sm:$0xff]
        %v9440 = vld [vmem:[%s9402 + $0x128] sm:$0xff]
        %v9441 = vld [vmem:[%s9402 + $0x130] sm:$0xff]
        %v9442 = vld [vmem:[%s9402 + $0x138] sm:$0xff]
        %v9443 = vld [vmem:[%s9402 + $0x140] sm:$0xff]
        %v9444 = vld [vmem:[%s9402 + $0x148] sm:$0xff]
        %v9445 = vld [vmem:[%s9402 + $0x150] sm:$0xff]
        %v9446 = vld [vmem:[%s9402 + $0x158] sm:$0xff]
        %v9447 = vld [vmem:[%s9402 + $0x160] sm:$0xff]
        %v9448 = vld [vmem:[%s9402 + $0x168] sm:$0xff]
        %v9449 = vld [vmem:[%s9402 + $0x170] sm:$0xff]
        %v9450 = vld [vmem:[%s9402 + $0x178] sm:$0xff]
        %v9451 = vld [vmem:[%s9402 + $0x180] sm:$0xff]
        %v9452 = vld [vmem:[%s9402 + $0x188] sm:$0xff]
        %v9453 = vld [vmem:[%s9402 + $0x190] sm:$0xff]
        %v9454 = vld [vmem:[%s9402 + $0x198] sm:$0xff]
        %v9455 = vld [vmem:[%s9402 + $0x1a0] sm:$0xff]
        %v9456 = vld [vmem:[%s9402 + $0x1a8] sm:$0xff]
        %v9457 = vld [vmem:[%s9402 + $0x1b0] sm:$0xff]
        %v9458 = vld [vmem:[%s9402 + $0x1b8] sm:$0xff]
        %v9459 = vld [vmem:[%s9402 + $0x1c0] sm:$0xff]
        %v9460 = vld [vmem:[%s9402 + $0x1c8] sm:$0xff]
        %v9461 = vld [vmem:[%s9402 + $0x1d0] sm:$0xff]
        %v9462 = vld [vmem:[%s9402 + $0x1d8] sm:$0xff]
        %v9463 = vld [vmem:[%s9402 + $0x1e0] sm:$0xff]
        %v9464 = vld [vmem:[%s9402 + $0x1e8] sm:$0xff]
        %v9465 = vld [vmem:[%s9402 + $0x1f0] sm:$0xff]
        %v9466 = vld [vmem:[%s9402 + $0x1f8] sm:$0xff]
        %v9467 = vld [vmem:[%s9402 + $0x200] sm:$0xff]
        %v9468 = vld [vmem:[%s9402 + $0x208] sm:$0xff]
        %v9469 = vld [vmem:[%s9402 + $0x210] sm:$0xff]
        %v9470 = vld [vmem:[%s9402 + $0x218] sm:$0xff]
        %v9471 = vld [vmem:[%s9402 + $0x220] sm:$0xff]
        %v9472 = vld [vmem:[%s9402 + $0x228] sm:$0xff]
        %v9473 = vld [vmem:[%s9402 + $0x230] sm:$0xff]
        %v9474 = vld [vmem:[%s9402 + $0x238] sm:$0xff]
        %v9475 = vld [vmem:[%s9402 + $0x240] sm:$0xff]
        %v9476 = vld [vmem:[%s9402 + $0x248] sm:$0xff]
        %v9477 = vld [vmem:[%s9402 + $0x250] sm:$0xff]
        %v9478 = vld [vmem:[%s9402 + $0x258] sm:$0xff]
        %v9479 = vld [vmem:[%s9402 + $0x260] sm:$0xff]
        %v9480 = vld [vmem:[%s9402 + $0x268] sm:$0xff]
        %v9481 = vld [vmem:[%s9402 + $0x270] sm:$0xff]
        %v9482 = vld [vmem:[%s9402 + $0x278] sm:$0xff]
        %v9483 = vld [vmem:[%s9402 + $0x280] sm:$0xff]
        %v9484 = vld [vmem:[%s9402 + $0x288] sm:$0xff]
        %v9485 = vld [vmem:[%s9402 + $0x290] sm:$0xff]
        %v9486 = vld [vmem:[%s9402 + $0x298] sm:$0xff]
        %v9487 = vld [vmem:[%s9402 + $0x2a0] sm:$0xff]
        %v9488 = vld [vmem:[%s9402 + $0x2a8] sm:$0xff]
        %v9489 = vld [vmem:[%s9402 + $0x2b0] sm:$0xff]
        %v9490 = vld [vmem:[%s9402 + $0x2b8] sm:$0xff]
        %v9491 = vld [vmem:[%s9402 + $0x2c0] sm:$0xff]
        %v9492 = vld [vmem:[%s9402 + $0x2c8] sm:$0xff]
        %v9493 = vld [vmem:[%s9402 + $0x2d0] sm:$0xff]
        %v9494 = vld [vmem:[%s9402 + $0x2d8] sm:$0xff]
        %v9495 = vld [vmem:[%s9402 + $0x2e0] sm:$0xff]
        %v9496 = vld [vmem:[%s9402 + $0x2e8] sm:$0xff]
        %v9497 = vld [vmem:[%s9402 + $0x2f0] sm:$0xff]
        %v9498 = vld [vmem:[%s9402 + $0x2f8] sm:$0xff]
        %v9499 = vrot.slane %v6383, 2
        %v9500 = vrot.slane %v6384, 2
        %v9501 = vrot.slane %v6385, 2
        %v9601 = vunpack.c.l.b16 %v9403
        %v9602 = vunpack.c.h.b16 %v9403
        %v9603 = vunpack.c.l.b16 %v9404
        %v9604 = vunpack.c.h.b16 %v9404
        %v9605 = vunpack.c.l.b16 %v9405
        %v9606 = vunpack.c.h.b16 %v9405
        %v9607 = vunpack.c.l.b16 %v9406
        %v9608 = vunpack.c.h.b16 %v9406
        %v9609 = vunpack.c.l.b16 %v9407
        %v9610 = vunpack.c.h.b16 %v9407
        %v9611 = vunpack.c.l.b16 %v9408
        %v9612 = vunpack.c.h.b16 %v9408
        %v9613 = vunpack.c.l.b16 %v9409
        %v9614 = vunpack.c.h.b16 %v9409
        %v9615 = vunpack.c.l.b16 %v9410
        %v9616 = vunpack.c.h.b16 %v9410
        %v9617 = vunpack.c.l.b16 %v9411
        %v9618 = vunpack.c.h.b16 %v9411
        %v9619 = vunpack.c.l.b16 %v9412
        %v9620 = vunpack.c.h.b16 %v9412
        %v9621 = vunpack.c.l.b16 %v9413
        %v9622 = vunpack.c.h.b16 %v9413
        %v9623 = vunpack.c.l.b16 %v9414
        %v9624 = vunpack.c.h.b16 %v9414
        %v9625 = vunpack.c.l.b16 %v9415
        %v9626 = vunpack.c.h.b16 %v9415
        %v9627 = vunpack.c.l.b16 %v9416
        %v9628 = vunpack.c.h.b16 %v9416
        %v9629 = vunpack.c.l.b16 %v9417
        %v9630 = vunpack.c.h.b16 %v9417
        %v9631 = vunpack.c.l.b16 %v9418
        %v9632 = vunpack.c.h.b16 %v9418
        %v9633 = vunpack.c.l.b16 %v9419
        %v9634 = vunpack.c.h.b16 %v9419
        %v9635 = vunpack.c.l.b16 %v9420
        %v9636 = vunpack.c.h.b16 %v9420
        %v9637 = vunpack.c.l.b16 %v9421
        %v9638 = vunpack.c.h.b16 %v9421
        %v9639 = vunpack.c.l.b16 %v9422
        %v9640 = vunpack.c.h.b16 %v9422
        %v9641 = vunpack.c.l.b16 %v9423
        %v9642 = vunpack.c.h.b16 %v9423
        %v9643 = vunpack.c.l.b16 %v9424
        %v9644 = vunpack.c.h.b16 %v9424
        %v9645 = vunpack.c.l.b16 %v9425
        %v9646 = vunpack.c.h.b16 %v9425
        %v9647 = vunpack.c.l.b16 %v9426
        %v9648 = vunpack.c.h.b16 %v9426
        %v9649 = vunpack.c.l.b16 %v9427
        %v9650 = vunpack.c.h.b16 %v9427
        %v9651 = vunpack.c.l.b16 %v9428
        %v9652 = vunpack.c.h.b16 %v9428
        %v9653 = vunpack.c.l.b16 %v9429
        %v9654 = vunpack.c.h.b16 %v9429
        %v9655 = vunpack.c.l.b16 %v9430
        %v9656 = vunpack.c.h.b16 %v9430
        %v9657 = vunpack.c.l.b16 %v9431
        %v9658 = vunpack.c.h.b16 %v9431
        %v9659 = vunpack.c.l.b16 %v9432
        %v9660 = vunpack.c.h.b16 %v9432
        %v9661 = vunpack.c.l.b16 %v9433
        %v9662 = vunpack.c.h.b16 %v9433
        %v9663 = vunpack.c.l.b16 %v9434
        %v9664 = vunpack.c.h.b16 %v9434
        %v9665 = vunpack.c.l.b16 %v9435
        %v9666 = vunpack.c.h.b16 %v9435
        %v9667 = vunpack.c.l.b16 %v9436
        %v9668 = vunpack.c.h.b16 %v9436
        %v9669 = vunpack.c.l.b16 %v9437
        %v9670 = vunpack.c.h.b16 %v9437
        %v9671 = vunpack.c.l.b16 %v9438
        %v9672 = vunpack.c.h.b16 %v9438
        %v9673 = vunpack.c.l.b16 %v9439
        %v9674 = vunpack.c.h.b16 %v9439
        %v9675 = vunpack.c.l.b16 %v9440
        %v9676 = vunpack.c.h.b16 %v9440
        %v9677 = vunpack.c.l.b16 %v9441
        %v9678 = vunpack.c.h.b16 %v9441
        %v9679 = vunpack.c.l.b16 %v9442
        %v9680 = vunpack.c.h.b16 %v9442
        %v9681 = vunpack.c.l.b16 %v9443
        %v9682 = vunpack.c.h.b16 %v9443
        %v9683 = vunpack.c.l.b16 %v9444
        %v9684 = vunpack.c.h.b16 %v9444
        %v9685 = vunpack.c.l.b16 %v9445
        %v9686 = vunpack.c.h.b16 %v9445
        %v9687 = vunpack.c.l.b16 %v9446
        %v9688 = vunpack.c.h.b16 %v9446
        %v9689 = vunpack.c.l.b16 %v9447
        %v9690 = vunpack.c.h.b16 %v9447
        %v9691 = vunpack.c.l.b16 %v9448
        %v9692 = vunpack.c.h.b16 %v9448
        %v9693 = vunpack.c.l.b16 %v9449
        %v9694 = vunpack.c.h.b16 %v9449
        %v9695 = vunpack.c.l.b16 %v9450
        %v9696 = vunpack.c.h.b16 %v9450
        %v9697 = vunpack.c.l.b16 %v9451
        %v9698 = vunpack.c.h.b16 %v9451
        %v9699 = vunpack.c.l.b16 %v9452
        %v9700 = vunpack.c.h.b16 %v9452
        %v9701 = vunpack.c.l.b16 %v9453
        %v9702 = vunpack.c.h.b16 %v9453
        %v9703 = vunpack.c.l.b16 %v9454
        %v9704 = vunpack.c.h.b16 %v9454
        %v9705 = vunpack.c.l.b16 %v9455
        %v9706 = vunpack.c.h.b16 %v9455
        %v9707 = vunpack.c.l.b16 %v9456
        %v9708 = vunpack.c.h.b16 %v9456
        %v9709 = vunpack.c.l.b16 %v9457
        %v9710 = vunpack.c.h.b16 %v9457
        %v9711 = vunpack.c.l.b16 %v9458
        %v9712 = vunpack.c.h.b16 %v9458
        %v9713 = vunpack.c.l.b16 %v9459
        %v9714 = vunpack.c.h.b16 %v9459
        %v9715 = vunpack.c.l.b16 %v9460
        %v9716 = vunpack.c.h.b16 %v9460
        %v9717 = vunpack.c.l.b16 %v9461
        %v9718 = vunpack.c.h.b16 %v9461
        %v9719 = vunpack.c.l.b16 %v9462
        %v9720 = vunpack.c.h.b16 %v9462
        %v9721 = vunpack.c.l.b16 %v9463
        %v9722 = vunpack.c.h.b16 %v9463
        %v9723 = vunpack.c.l.b16 %v9464
        %v9724 = vunpack.c.h.b16 %v9464
        %v9725 = vunpack.c.l.b16 %v9465
        %v9726 = vunpack.c.h.b16 %v9465
        %v9727 = vunpack.c.l.b16 %v9466
        %v9728 = vunpack.c.h.b16 %v9466
        %v9729 = vunpack.c.l.b16 %v9467
        %v9730 = vunpack.c.h.b16 %v9467
        %v9731 = vunpack.c.l.b16 %v9468
        %v9732 = vunpack.c.h.b16 %v9468
        %v9733 = vunpack.c.l.b16 %v9469
        %v9734 = vunpack.c.h.b16 %v9469
        %v9735 = vunpack.c.l.b16 %v9470
        %v9736 = vunpack.c.h.b16 %v9470
        %v9737 = vunpack.c.l.b16 %v9471
        %v9738 = vunpack.c.h.b16 %v9471
        %v9739 = vunpack.c.l.b16 %v9472
        %v9740 = vunpack.c.h.b16 %v9472
        %v9741 = vunpack.c.l.b16 %v9473
        %v9742 = vunpack.c.h.b16 %v9473
        %v9743 = vunpack.c.l.b16 %v9474
        %v9744 = vunpack.c.h.b16 %v9474
        %v9745 = vunpack.c.l.b16 %v9475
        %v9746 = vunpack.c.h.b16 %v9475
        %v9747 = vunpack.c.l.b16 %v9476
        %v9748 = vunpack.c.h.b16 %v9476
        %v9749 = vunpack.c.l.b16 %v9477
        %v9750 = vunpack.c.h.b16 %v9477
        %v9751 = vunpack.c.l.b16 %v9478
        %v9752 = vunpack.c.h.b16 %v9478
        %v9753 = vunpack.c.l.b16 %v9479
        %v9754 = vunpack.c.h.b16 %v9479
        %v9755 = vunpack.c.l.b16 %v9480
        %v9756 = vunpack.c.h.b16 %v9480
        %v9757 = vunpack.c.l.b16 %v9481
        %v9758 = vunpack.c.h.b16 %v9481
        %v9759 = vunpack.c.l.b16 %v9482
        %v9760 = vunpack.c.h.b16 %v9482
        %v9761 = vunpack.c.l.b16 %v9483
        %v9762 = vunpack.c.h.b16 %v9483
        %v9763 = vunpack.c.l.b16 %v9484
        %v9764 = vunpack.c.h.b16 %v9484
        %v9765 = vunpack.c.l.b16 %v9485
        %v9766 = vunpack.c.h.b16 %v9485
        %v9767 = vunpack.c.l.b16 %v9486
        %v9768 = vunpack.c.h.b16 %v9486
        %v9769 = vunpack.c.l.b16 %v9487
        %v9770 = vunpack.c.h.b16 %v9487
        %v9771 = vunpack.c.l.b16 %v9488
        %v9772 = vunpack.c.h.b16 %v9488
        %v9773 = vunpack.c.l.b16 %v9489
        %v9774 = vunpack.c.h.b16 %v9489
        %v9775 = vunpack.c.l.b16 %v9490
        %v9776 = vunpack.c.h.b16 %v9490
        %v9777 = vunpack.c.l.b16 %v9491
        %v9778 = vunpack.c.h.b16 %v9491
        %v9779 = vunpack.c.l.b16 %v9492
        %v9780 = vunpack.c.h.b16 %v9492
        %v9781 = vunpack.c.l.b16 %v9493
        %v9782 = vunpack.c.h.b16 %v9493
        %v9783 = vunpack.c.l.b16 %v9494
        %v9784 = vunpack.c.h.b16 %v9494
        %v9785 = vunpack.c.l.b16 %v9495
        %v9786 = vunpack.c.h.b16 %v9495
        %v9787 = vunpack.c.l.b16 %v9496
        %v9788 = vunpack.c.h.b16 %v9496
        %v9789 = vunpack.c.l.b16 %v9497
        %v9790 = vunpack.c.h.b16 %v9497
        %v9791 = vunpack.c.l.b16 %v9498
        %v9792 = vunpack.c.h.b16 %v9498
        %v9793 = vpack.c.b16 %v9605, %v9601
        %v9794 = vpack.c.b16 %v9606, %v9602
        %v9795 = vpack.c.b16 %v9607, %v9603
        %v9796 = vpack.c.b16 %v9608, %v9604
        %v9797 = vpack.c.b16 %v9613, %v9609
        %v9798 = vpack.c.b16 %v9614, %v9610
        %v9799 = vpack.c.b16 %v9615, %v9611
        %v9800 = vpack.c.b16 %v9616, %v9612
        %v9801 = vpack.c.b16 %v9621, %v9617
        %v9802 = vpack.c.b16 %v9622, %v9618
        %v9803 = vpack.c.b16 %v9623, %v9619
        %v9804 = vpack.c.b16 %v9624, %v9620
        %v9805 = vpack.c.b16 %v9629, %v9625
        %v9806 = vpack.c.b16 %v9630, %v9626
        %v9807 = vpack.c.b16 %v9631, %v9627
        %v9808 = vpack.c.b16 %v9632, %v9628
        %v9809 = vpack.c.b16 %v9637, %v9633
        %v9810 = vpack.c.b16 %v9638, %v9634
        %v9811 = vpack.c.b16 %v9639, %v9635
        %v9812 = vpack.c.b16 %v9640, %v9636
        %v9813 = vpack.c.b16 %v9645, %v9641
        %v9814 = vpack.c.b16 %v9646, %v9642
        %v9815 = vpack.c.b16 %v9647, %v9643
        %v9816 = vpack.c.b16 %v9648, %v9644
        %v9817 = vpack.c.b16 %v9653, %v9649
        %v9818 = vpack.c.b16 %v9654, %v9650
        %v9819 = vpack.c.b16 %v9655, %v9651
        %v9820 = vpack.c.b16 %v9656, %v9652
        %v9821 = vpack.c.b16 %v9661, %v9657
        %v9822 = vpack.c.b16 %v9662, %v9658
        %v9823 = vpack.c.b16 %v9663, %v9659
        %v9824 = vpack.c.b16 %v9664, %v9660
        %v9825 = vpack.c.b16 %v9669, %v9665
        %v9826 = vpack.c.b16 %v9670, %v9666
        %v9827 = vpack.c.b16 %v9671, %v9667
        %v9828 = vpack.c.b16 %v9672, %v9668
        %v9829 = vpack.c.b16 %v9677, %v9673
        %v9830 = vpack.c.b16 %v9678, %v9674
        %v9831 = vpack.c.b16 %v9679, %v9675
        %v9832 = vpack.c.b16 %v9680, %v9676
        %v9833 = vpack.c.b16 %v9685, %v9681
        %v9834 = vpack.c.b16 %v9686, %v9682
        %v9835 = vpack.c.b16 %v9687, %v9683
        %v9836 = vpack.c.b16 %v9688, %v9684
        %v9837 = vpack.c.b16 %v9693, %v9689
        %v9838 = vpack.c.b16 %v9694, %v9690
        %v9839 = vpack.c.b16 %v9695, %v9691
        %v9840 = vpack.c.b16 %v9696, %v9692
        %v9841 = vpack.c.b16 %v9701, %v9697
        %v9842 = vpack.c.b16 %v9702, %v9698
        %v9843 = vpack.c.b16 %v9703, %v9699
        %v9844 = vpack.c.b16 %v9704, %v9700
        %v9845 = vpack.c.b16 %v9709, %v9705
        %v9846 = vpack.c.b16 %v9710, %v9706
        %v9847 = vpack.c.b16 %v9711, %v9707
        %v9848 = vpack.c.b16 %v9712, %v9708
        %v9849 = vpack.c.b16 %v9717, %v9713
        %v9850 = vpack.c.b16 %v9718, %v9714
        %v9851 = vpack.c.b16 %v9719, %v9715
        %v9852 = vpack.c.b16 %v9720, %v9716
        %v9853 = vpack.c.b16 %v9725, %v9721
        %v9854 = vpack.c.b16 %v9726, %v9722
        %v9855 = vpack.c.b16 %v9727, %v9723
        %v9856 = vpack.c.b16 %v9728, %v9724
        %v9857 = vpack.c.b16 %v9733, %v9729
        %v9858 = vpack.c.b16 %v9734, %v9730
        %v9859 = vpack.c.b16 %v9735, %v9731
        %v9860 = vpack.c.b16 %v9736, %v9732
        %v9861 = vpack.c.b16 %v9741, %v9737
        %v9862 = vpack.c.b16 %v9742, %v9738
        %v9863 = vpack.c.b16 %v9743, %v9739
        %v9864 = vpack.c.b16 %v9744, %v9740
        %v9865 = vpack.c.b16 %v9749, %v9745
        %v9866 = vpack.c.b16 %v9750, %v9746
        %v9867 = vpack.c.b16 %v9751, %v9747
        %v9868 = vpack.c.b16 %v9752, %v9748
        %v9869 = vpack.c.b16 %v9757, %v9753
        %v9870 = vpack.c.b16 %v9758, %v9754
        %v9871 = vpack.c.b16 %v9759, %v9755
        %v9872 = vpack.c.b16 %v9760, %v9756
        %v9873 = vpack.c.b16 %v9765, %v9761
        %v9874 = vpack.c.b16 %v9766, %v9762
        %v9875 = vpack.c.b16 %v9767, %v9763
        %v9876 = vpack.c.b16 %v9768, %v9764
        %v9877 = vpack.c.b16 %v9773, %v9769
        %v9878 = vpack.c.b16 %v9774, %v9770
        %v9879 = vpack.c.b16 %v9775, %v9771
        %v9880 = vpack.c.b16 %v9776, %v9772
        %v9881 = vpack.c.b16 %v9781, %v9777
        %v9882 = vpack.c.b16 %v9782, %v9778
        %v9883 = vpack.c.b16 %v9783, %v9779
        %v9884 = vpack.c.b16 %v9784, %v9780
        %v9885 = vpack.c.b16 %v9789, %v9785
        %v9886 = vpack.c.b16 %v9790, %v9786
        %v9887 = vpack.c.b16 %v9791, %v9787
        %v9888 = vpack.c.b16 %v9792, %v9788
        %9985 = vmatprep.subr.bf16.mxu0 %v9794
        %9986 = vmatpush1.bf16.msra.mxu0 %v9793
        %9987 = vmatprep.subr.bf16.mxu0 %v9798
        %9988 = vmatpush1.bf16.msra.mxu0 %v9797
        %9989 = vmatprep.subr.bf16.mxu0 %v9802
        %9990 = vmatpush1.bf16.msra.mxu0 %v9801
        %9991 = vmatprep.subr.bf16.mxu0 %v9806
        %9992 = vmatpush1.bf16.msra.mxu0 %v9805
        %9993 = vmatprep.subr.bf16.mxu0 %v9810
        %9994 = vmatpush1.bf16.msra.mxu0 %v9809
        %9995 = vmatprep.subr.bf16.mxu0 %v9814
        %9996 = vmatpush1.bf16.msra.mxu0 %v9813
        %9997 = vmatprep.subr.bf16.mxu0 %v9818
        %9998 = vmatpush1.bf16.msra.mxu0 %v9817
        %9999 = vmatprep.subr.bf16.mxu0 %v9822
        %10000 = vmatpush1.bf16.msra.mxu0 %v9821
        %10001 = vmatprep.subr.bf16.mxu0 %v9826
        %10002 = vmatpush1.bf16.msra.mxu0 %v9825
        %10003 = vmatprep.subr.bf16.mxu0 %v9830
        %10004 = vmatpush1.bf16.msra.mxu0 %v9829
        %10005 = vmatprep.subr.bf16.mxu0 %v9834
        %10006 = vmatpush1.bf16.msra.mxu0 %v9833
        %10007 = vmatprep.subr.bf16.mxu0 %v9838
        %10008 = vmatpush1.bf16.msra.mxu0 %v9837
        %10009 = vmatprep.subr.bf16.mxu0 %v9842
        %10010 = vmatpush1.bf16.msra.mxu0 %v9841
        %10011 = vmatprep.subr.bf16.mxu0 %v9846
        %10012 = vmatpush1.bf16.msra.mxu0 %v9845
        %10013 = vmatprep.subr.bf16.mxu0 %v9850
        %10014 = vmatpush1.bf16.msra.mxu0 %v9849
        %10015 = vmatprep.subr.bf16.mxu0 %v9854
        %10016 = vmatpush1.bf16.msra.mxu0 %v9853
        %10017 = vmatprep.mubr.bf16.mxu0 %v9500
        %10018 = vmatmul.mubr.bf16.gmra.mrb[0].mxu0 %v9499
        %v10019 = vpop.f32.mrb[0].mxu0
        %v10020 = vadd.f32 0.0, %v10019
        %v10021 = vpop.f32.mrb[0].mxu0
        %v10022 = vadd.f32 0.0, %v10021
        %v10023 = vpop.f32.mrb[0].mxu0
        %v10024 = vpop.f32.mrb[0].mxu0
        %10025 = vdwg.mxu0
        %10026 = vmatprep.subr.bf16.mxu0 %v9858
        %10027 = vmatpush1.bf16.msra.mxu0 %v9857
        %10028 = vmatprep.subr.bf16.mxu0 %v9862
        %10029 = vmatpush1.bf16.msra.mxu0 %v9861
        %10030 = vmatprep.subr.bf16.mxu0 %v9866
        %10031 = vmatpush1.bf16.msra.mxu0 %v9865
        %10032 = vmatprep.subr.bf16.mxu0 %v9870
        %10033 = vmatpush1.bf16.msra.mxu0 %v9869
        %10034 = vmatprep.subr.bf16.mxu0 %v9874
        %10035 = vmatpush1.bf16.msra.mxu0 %v9873
        %10036 = vmatprep.subr.bf16.mxu0 %v9878
        %10037 = vmatpush1.bf16.msra.mxu0 %v9877
        %10038 = vmatprep.subr.bf16.mxu0 %v9882
        %10039 = vmatpush1.bf16.msra.mxu0 %v9881
        %10040 = vmatprep.subr.bf16.mxu0 %v9886
        %10041 = vmatpush1.bf16.msra.mxu0 %v9885
        %10042 = vmatprep.subr.bf16.mxu0 0
        %10043 = vmatpush1.bf16.msra.mxu0 0
        %10044 = vmatprep.subr.bf16.mxu0 0
        %10045 = vmatpush1.bf16.msra.mxu0 0
        %10046 = vmatprep.subr.bf16.mxu0 0
        %10047 = vmatpush1.bf16.msra.mxu0 0
        %10048 = vmatprep.subr.bf16.mxu0 0
        %10049 = vmatpush1.bf16.msra.mxu0 0
        %10050 = vmatprep.subr.bf16.mxu0 0
        %10051 = vmatpush1.bf16.msra.mxu0 0
        %10052 = vmatprep.subr.bf16.mxu0 0
        %10053 = vmatpush1.bf16.msra.mxu0 0
        %10054 = vmatprep.subr.bf16.mxu0 0
        %10055 = vmatpush1.bf16.msra.mxu0 0
        %10056 = vmatprep.subr.bf16.mxu0 0
        %10057 = vmatpush1.bf16.msra.mxu0 0
        %10058 = vmatprep.mubr.bf16.mxu0 0
        %10059 = vmatmul.mubr.bf16.gmra.mrb[0].mxu0 %v9501
        %v10060 = vpop.f32.mrb[0].mxu0
        %v10061 = vadd.f32 %v10020, %v10060
        %v10062 = vpop.f32.mrb[0].mxu0
        %v10063 = vadd.f32 %v10022, %v10062
        %v10064 = vpop.f32.mrb[0].mxu0
        %v10065 = vpop.f32.mrb[0].mxu0
        %10066 = vdwg.mxu0
        %10067 = vmatprep.subr.bf16.mxu0 %v9796
        %10068 = vmatpush1.bf16.msra.mxu0 %v9795
        %10069 = vmatprep.subr.bf16.mxu0 %v9800
        %10070 = vmatpush1.bf16.msra.mxu0 %v9799
        %10071 = vmatprep.subr.bf16.mxu0 %v9804
        %10072 = vmatpush1.bf16.msra.mxu0 %v9803
        %10073 = vmatprep.subr.bf16.mxu0 %v9808
        %10074 = vmatpush1.bf16.msra.mxu0 %v9807
        %10075 = vmatprep.subr.bf16.mxu0 %v9812
        %10076 = vmatpush1.bf16.msra.mxu0 %v9811
        %10077 = vmatprep.subr.bf16.mxu0 %v9816
        %10078 = vmatpush1.bf16.msra.mxu0 %v9815
        %10079 = vmatprep.subr.bf16.mxu0 %v9820
        %10080 = vmatpush1.bf16.msra.mxu0 %v9819
        %10081 = vmatprep.subr.bf16.mxu0 %v9824
        %10082 = vmatpush1.bf16.msra.mxu0 %v9823
        %10083 = vmatprep.subr.bf16.mxu0 %v9828
        %10084 = vmatpush1.bf16.msra.mxu0 %v9827
        %10085 = vmatprep.subr.bf16.mxu0 %v9832
        %10086 = vmatpush1.bf16.msra.mxu0 %v9831
        %10087 = vmatprep.subr.bf16.mxu0 %v9836
        %10088 = vmatpush1.bf16.msra.mxu0 %v9835
        %10089 = vmatprep.subr.bf16.mxu0 %v9840
        %10090 = vmatpush1.bf16.msra.mxu0 %v9839
        %10091 = vmatprep.subr.bf16.mxu0 %v9844
        %10092 = vmatpush1.bf16.msra.mxu0 %v9843
        %10093 = vmatprep.subr.bf16.mxu0 %v9848
        %10094 = vmatpush1.bf16.msra.mxu0 %v9847
        %10095 = vmatprep.subr.bf16.mxu0 %v9852
        %10096 = vmatpush1.bf16.msra.mxu0 %v9851
        %10097 = vmatprep.subr.bf16.mxu0 %v9856
        %10098 = vmatpush1.bf16.msra.mxu0 %v9855
        %10099 = vmatprep.mubr.bf16.mxu0 %v9500
        %10100 = vmatmul.mubr.bf16.gmra.mrb[0].mxu0 %v9499
        %v10101 = vpop.f32.mrb[0].mxu0
        %v10102 = vadd.f32 0.0, %v10101
        %v10103 = vpop.f32.mrb[0].mxu0
        %v10104 = vadd.f32 0.0, %v10103
        %v10105 = vpop.f32.mrb[0].mxu0
        %v10106 = vpop.f32.mrb[0].mxu0
        %10107 = vdwg.mxu0
        %10108 = vmatprep.subr.bf16.mxu0 %v9860
        %10109 = vmatpush1.bf16.msra.mxu0 %v9859
        %10110 = vmatprep.subr.bf16.mxu0 %v9864
        %10111 = vmatpush1.bf16.msra.mxu0 %v9863
        %10112 = vmatprep.subr.bf16.mxu0 %v9868
        %10113 = vmatpush1.bf16.msra.mxu0 %v9867
        %10114 = vmatprep.subr.bf16.mxu0 %v9872
        %10115 = vmatpush1.bf16.msra.mxu0 %v9871
        %10116 = vmatprep.subr.bf16.mxu0 %v9876
        %10117 = vmatpush1.bf16.msra.mxu0 %v9875
        %10118 = vmatprep.subr.bf16.mxu0 %v9880
        %10119 = vmatpush1.bf16.msra.mxu0 %v9879
        %10120 = vmatprep.subr.bf16.mxu0 %v9884
        %10121 = vmatpush1.bf16.msra.mxu0 %v9883
        %10122 = vmatprep.subr.bf16.mxu0 %v9888
        %10123 = vmatpush1.bf16.msra.mxu0 %v9887
        %10124 = vmatprep.subr.bf16.mxu0 0
        %10125 = vmatpush1.bf16.msra.mxu0 0
        %10126 = vmatprep.subr.bf16.mxu0 0
        %10127 = vmatpush1.bf16.msra.mxu0 0
        %10128 = vmatprep.subr.bf16.mxu0 0
        %10129 = vmatpush1.bf16.msra.mxu0 0
        %10130 = vmatprep.subr.bf16.mxu0 0
        %10131 = vmatpush1.bf16.msra.mxu0 0
        %10132 = vmatprep.subr.bf16.mxu0 0
        %10133 = vmatpush1.bf16.msra.mxu0 0
        %10134 = vmatprep.subr.bf16.mxu0 0
        %10135 = vmatpush1.bf16.msra.mxu0 0
        %10136 = vmatprep.subr.bf16.mxu0 0
        %10137 = vmatpush1.bf16.msra.mxu0 0
        %10138 = vmatprep.subr.bf16.mxu0 0
        %10139 = vmatpush1.bf16.msra.mxu0 0
        %10140 = vmatprep.mubr.bf16.mxu0 0
        %10141 = vmatmul.mubr.bf16.gmra.mrb[0].mxu0 %v9501
        %v10142 = vpop.f32.mrb[0].mxu0
        %v10143 = vadd.f32 %v10102, %v10142
        %v10144 = vpop.f32.mrb[0].mxu0
        %v10145 = vadd.f32 %v10104, %v10144
        %v10146 = vpop.f32.mrb[0].mxu0
        %v10147 = vpop.f32.mrb[0].mxu0
        %10148 = vdwg.mxu0
        %v10149 = vadd.f32 %v9398, %v10061
        %v10150 = vadd.f32 %v9399, %v10063
        %v10151 = vadd.f32 %v9400, %v10143
        %v10152 = vadd.f32 %v9401, %v10145
        %v10153 = vld [vmem:[#allocation7] sm:$0xf]
        %v10155 = vlaneseq
        %v10156 = vshrl.u32 %v10155, 7
        %v10157 = vsub.s32 0, %v10156
        %v10158 = vrot.slane %v10153, %v10157
        %v10159 = vlaneseq
        %v10160 = vshrl.u32 %v10159, 7
        %v10161 = vsub.s32 1, %v10160
        %v10162 = vrot.slane %v10153, %v10161
        %v10163 = vlaneseq
        %v10164 = vshrl.u32 %v10163, 7
        %v10165 = vsub.s32 2, %v10164
        %v10166 = vrot.slane %v10153, %v10165
        %v10167 = vlaneseq
        %v10168 = vshrl.u32 %v10167, 7
        %v10169 = vsub.s32 3, %v10168
        %v10170 = vrot.slane %v10153, %v10169
        %v10175 = vadd.f32 %v10149, %v10158
        %v10176 = vadd.f32 %v10150, %v10162
        %v10177 = vadd.f32 %v10151, %v10166
        %v10178 = vadd.f32 %v10152, %v10170
        %v10179 = vmax.f32 %v10175, 0.0
        %v10180 = vmax.f32 %v10176, 0.0
        %v10181 = vmax.f32 %v10177, 0.0
        %v10182 = vmax.f32 %v10178, 0.0
        %v10183 = vpack.c.bf16 %v10179, %v10179
        %v10184 = vpack.c.bf16 %v10180, %v10180
        %v10185 = vpack.c.bf16 %v10181, %v10181
        %v10186 = vpack.c.bf16 %v10182, %v10182
        %v10191 = vunpack.c.l.b16 %v10183
        %v10192 = vunpack.c.l.b16 %v10184
        %v10193 = vunpack.c.l.b16 %v10185
        %v10194 = vunpack.c.l.b16 %v10186
        %v10195 = vpack.c.b16 %v10192, %v10191
        %v10196 = vpack.c.b16 %v10194, %v10193
        %10199 = vst [vmem:[%s326] sm:$0xff] %v10195
        %10200 = vst [vmem:[%s326 + $0x8] sm:$0xff] %v10196
        %p10201 = scmp.lt.s32.totalorder %s20, 1
        %s10202 = scalar_select %p10201, %s20, 1
        %s10203 = smul.addr %s10202, 4
        %s10204 = smul.addr %s10203, 4
        %s10205 = scalar_lea.vmem %s6, %s10204
        // Predicated region
        $region61: #{cnn_forward.2} parent=43 // pred_check
          %p10206 = pneg %p174
        $region62: #{cnn_forward.2} parent=43 // pred_check_branch
          %10208 = sbr.rel (%p10206) target = $region64
        $region63: #{cnn_forward.2} parent=43 // pred_region
          _
        $region64: #{cnn_forward.2} parent=43 // pred_fallthru
          _
      $region44: #{cnn_forward.2} parent=5 // pred_fallthru
        _
      %p10209 = scmp.le.s32.totalorder 2, %s15
      // Predicated region
      $region65: #{cnn_forward.2} parent=5 // pred_check
        %p10210 = pneg %p10209
      $region66: #{cnn_forward.2} parent=5 // pred_check_branch
        %10212 = sbr.rel (%p10210) target = $region68
      $region67: #{cnn_forward.2} parent=5 // pred_region
        %s10213 = ssub.s32 %s15, 2
        // Predicated region
        $region69: #{cnn_forward.2} parent=67 // pred_check
          %p10214 = pneg %p180
        $region70: #{cnn_forward.2} parent=67 // pred_check_branch
          %10216 = sbr.rel (%p10214) target = $region72
        $region71: #{cnn_forward.2} parent=67 // pred_region
          %p10217 = scmp.lt.s32.totalorder %s21, 1
          %s10218 = scalar_select %p10217, %s21, 1
          %s10219 = smul.addr %s10218, 4
          %s10220 = smul.addr %s10219, 4
          %s10221 = scalar_lea.vmem %s6, %s10220
        $region72: #{cnn_forward.2} parent=67 // pred_fallthru
          _
      $region68: #{cnn_forward.2} parent=5 // pred_fallthru
        _
    $region6: #{cnn_forward.2} parent=1 // loop_footer
      %s19 = sadd.s32 1, %s15
    $region7: #{cnn_forward.2} parent=1 // loop_footer_branch
      %14 = sbr.rel target = $region3
    $region8: #{cnn_forward.2} parent=1 // loop_exit
      _
    %10222 = vsyncpa [#allocation3], 1
    %s10223 = scalar_lea.sflag [#allocation3], 1
    %10224 = vsyncpa %s10223, 1
    %10225 = vsyncpa [#allocation5], 1
    %10226 = vsyncpa [#allocation8], 1

</llo_original>
